<compile_context>
chip_gen: v6e
topology: v6e:2x2x1
jax: 0.10.0
libtpu: 0.0.40
codegen_flags: <defaults>
</compile_context>

<pallas_src>
import jax
import jax.numpy as jnp
import numpy as np
from jax import lax
from jax.experimental import pallas as pl
from jax.experimental.pallas import tpu as pltpu


def _round_up(x, m):
    return (x + m - 1) // m * m


def _image_seg_kernel(x_ref, w1_ref, shift1_ref, w2_ref, o_ref, xpad_s):
    """Fused conv3x3 -> BN(shift) -> ReLU -> conv3x3 for one image.

    x_ref     : (1, H, W, Cp)     bf16  (Cp = Cin padded to the bf16 pack, 16)
    w1_ref    : (9, Cp, Cp)       bf16  (BN scale folded in; tap-major dy*3+dx)
    shift1_ref: (1, Cp)           f32   (BN shift, zero-padded)
    w2_ref    : (9, Cop, Cp)      bf16  (conv2 weights, pre-transposed per tap)
    o_ref     : (1, Cop, H*W)     f32   (H*W on the lane axis -> lane-dense store)
    xpad_s    : (H+2, Wp, Cp)     bf16  VMEM halo buffer, reused for the intermediate
    """
    _, h, w, cp = x_ref.shape
    hw = h * w
    cop = o_ref.shape[1]
    wp = xpad_s.shape[1]
    dt = xpad_s.dtype

    # --- re-establish the zero halo: border only (interior is fully overwritten each
    #     grid step). Unconditional, so it is safe under megacore "parallel" sharding. ---
    xpad_s[0:1, :, :] = jnp.zeros((1, wp, cp), dt)
    xpad_s[h + 1:h + 2, :, :] = jnp.zeros((1, wp, cp), dt)
    xpad_s[1:h + 1, 0:1, :] = jnp.zeros((h, 1, cp), dt)
    xpad_s[1:h + 1, w + 1:w + 2, :] = jnp.zeros((h, 1, cp), dt)

    # Interior <- input image (channels already zero-padded to Cp in HBM: one dense store).
    xpad_s[1:h + 1, 1:w + 1, :] = x_ref[0]

    def tap(dy, dx):
        # One 3x3 tap of the (zero-bordered) activation as a (H*W, Cp) matmul operand.
        return xpad_s[dy:dy + h, dx:dx + w, :].reshape(hw, cp)

    # ---- conv1 (+ folded BN scale) -> shift -> ReLU : 9 accumulated MXU matmuls ----
    acc1 = jnp.zeros((hw, cp), jnp.float32)
    for dy in range(3):
        for dx in range(3):
            acc1 = acc1 + jnp.dot(tap(dy, dx), w1_ref[dy * 3 + dx],
                                  preferred_element_type=jnp.float32)
    h1 = jnp.maximum(acc1 + shift1_ref[...], 0.0)
    # Intermediate never leaves VMEM: back into the (still zero-bordered) halo buffer.
    # Padded channels of w1/shift are zero -> intermediate pad channels are exactly 0.
    xpad_s[1:h + 1, 1:w + 1, :] = h1.astype(dt).reshape(h, w, cp)

    # ---- conv2: 9 accumulated matmuls in trans_b form -> output already (Cout, H*W) ----
    acc2 = jnp.zeros((cop, hw), jnp.float32)
    for dy in range(3):
        for dx in range(3):
            acc2 = acc2 + lax.dot_general(
                w2_ref[dy * 3 + dx], tap(dy, dx),
                (((1,), (1,)), ((), ())),               # contract Cp with Cp (A @ B.T form)
                preferred_element_type=jnp.float32)
    o_ref[0] = acc2.astype(o_ref.dtype)                 # lane-dense (Cop, H*W) store


def _prep_params(params, cp, cop):
    """Fold BN scale into w1, pad channels to small multiples, tap-major reshape, bf16."""
    eps = 1e-5
    scale1 = params["gamma"] / jnp.sqrt(params["running_var"] + eps)
    shift1 = params["beta"] - params["running_mean"] * scale1

    w1 = params["w1"] * scale1[None, None, None, :]      # HWIO, BN scale folded (f32)
    w2 = params["w2"]
    cin = w1.shape[2]
    cout = w2.shape[3]

    w1p = jnp.zeros((3, 3, cp, cp), jnp.float32).at[:, :, :cin, :cin].set(w1)
    w1m = w1p.reshape(9, cp, cp).astype(jnp.bfloat16)

    # conv2 weights pre-transposed per tap: (9, Cout_p, Cp), so the kernel's trans_b
    # dot_general emits the output with H*W on the lane axis directly (no transpose).
    w2p = jnp.zeros((3, 3, cop, cp), jnp.float32).at[:, :, :cout, :cin].set(
        jnp.transpose(w2, (0, 1, 3, 2)))
    w2t = w2p.reshape(9, cop, cp).astype(jnp.bfloat16)

    shift1p = jnp.zeros((1, cp), jnp.float32).at[0, :cin].set(shift1)
    return w1m, shift1p, w2t


def image_seg_forward(x_nchw, params):
    """Image_Seg.forward: conv3x3 -> BN(eval) -> ReLU -> conv3x3. NCHW in/out."""
    n, cin, h, w = x_nchw.shape
    cout = params["w2"].shape[-1]
    cp = _round_up(cin, 16)            # contraction (K) axis: pad only to the bf16 pack
    cop = _round_up(cout, 8)           # output channels: pad only to a sublane multiple
    wp = _round_up(w + 2, 8)           # halo-scratch W rounded to a sublane multiple

    # NCHW -> NHWC, tiny channel pad (to 16, NOT 128), bf16 for the MXU.
    x = jnp.transpose(x_nchw, (0, 2, 3, 1)).astype(jnp.float32)
    x = jnp.pad(x, ((0, 0), (0, 0), (0, 0), (0, cp - cin))).astype(jnp.bfloat16)

    w1m, shift1p, w2t = _prep_params(params, cp, cop)

    out = pl.pallas_call(
        _image_seg_kernel,
        out_shape=jax.ShapeDtypeStruct((n, cop, h * w), jnp.float32),
        grid=(n,),
        in_specs=[
            pl.BlockSpec((1, h, w, cp), lambda i: (i, 0, 0, 0)),
            pl.BlockSpec((9, cp, cp), lambda i: (0, 0, 0)),
            pl.BlockSpec((1, cp), lambda i: (0, 0)),
            pl.BlockSpec((9, cop, cp), lambda i: (0, 0, 0)),
        ],
        out_specs=pl.BlockSpec((1, cop, h * w), lambda i: (i, 0, 0)),
        scratch_shapes=[
            pltpu.VMEM((h + 2, wp, cp), jnp.bfloat16),     # halo / intermediate buffer
        ],
        compiler_params=pltpu.CompilerParams(
            dimension_semantics=("parallel",)),
    )(x, w1m, shift1p, w2t)

    # (N, Cout_p, H*W) -> NCHW: a free reshape (+ no-op slice when cout is a multiple of 8).
    return out[:, :cout, :].reshape(n, cout, h, w)


def _reference_forward(x_nchw, params):
    """Pure-JAX f32 reference (lax.conv) matching the PyTorch module semantics."""
    x = jnp.transpose(x_nchw, (0, 2, 3, 1)).astype(jnp.float32)
    dn = ("NHWC", "HWIO", "NHWC")
    eps = 1e-5
    h = lax.conv_general_dilated(x, params["w1"], (1, 1), "SAME",
                                 dimension_numbers=dn)
    scale1 = params["gamma"] / jnp.sqrt(params["running_var"] + eps)
    shift1 = params["beta"] - params["running_mean"] * scale1
    h = jnp.maximum(h * scale1 + shift1, 0.0)
    y = lax.conv_general_dilated(h, params["w2"], (1, 1), "SAME",
                                 dimension_numbers=dn)
    return jnp.transpose(y, (0, 3, 1, 2))


def make_params(key, inplanes, outplanes):
    k1, k2, k3, k4, k5, k6 = jax.random.split(key, 6)
    return {
        # conv weights stored HWIO (PyTorch OIHW is just a permutation).
        "w1": 0.1 * jax.random.normal(k1, (3, 3, inplanes, inplanes), jnp.float32),
        "w2": 0.1 * jax.random.normal(k2, (3, 3, inplanes, outplanes), jnp.float32),
        # BatchNorm2d(inplanes) params / running stats (eval mode).
        "gamma": 0.5 + jax.random.uniform(k3, (inplanes,), jnp.float32),
        "beta": 0.1 * jax.random.normal(k4, (inplanes,), jnp.float32),
        "running_mean": 0.1 * jax.random.normal(k5, (inplanes,), jnp.float32),
        "running_var": 0.5 + jax.random.uniform(k6, (inplanes,), jnp.float32),
    }


if __name__ == "__main__":
    N, INPLANES, OUTPLANES, H, W = 2, 4, 8, 16, 16

    key = jax.random.PRNGKey(0)
    kx, kp = jax.random.split(key)
    x = jax.random.normal(kx, (N, INPLANES, H, W), jnp.float32)   # NCHW like PyTorch
    params = make_params(kp, INPLANES, OUTPLANES)

    out = jax.block_until_ready(image_seg_forward(x, params))
    ref = jax.block_until_ready(_reference_forward(x, params))

    assert out.shape == (N, OUTPLANES, H, W)
    # bf16 MXU operands (f32 accumulation) vs. pure-f32 reference -> loosened tolerance.
    np.testing.assert_allclose(np.asarray(out), np.asarray(ref),
                               rtol=3e-2, atol=3e-2)
    print("KERNEL_OK")
</pallas_src>

<mosaic_0001>
module attributes {stable_mosaic.version = 11 : i64} {
  func.func @_image_seg_kernel(%arg0: i32, %arg1: memref<1x16x16x16xbf16, #tpu.memory_space<vmem>>, %arg2: memref<9x16x16xbf16, #tpu.memory_space<vmem>>, %arg3: memref<1x16xf32, #tpu.memory_space<vmem>>, %arg4: memref<9x8x16xbf16, #tpu.memory_space<vmem>>, %arg5: memref<1x8x256xf32, #tpu.memory_space<vmem>>, %arg6: memref<18x24x16xbf16, #tpu.memory_space<vmem>>) attributes {dimension_semantics = [#tpu.dimension_semantics<parallel>], iteration_bounds = array<i64: 2>, scalar_prefetch = 0 : i64, scratch_operands = 1 : i64, tpu.core_type = #tpu.core_type<tc>, window_params = [{transform_indices = @transform_0, window_bounds = array<i64: 1, 16, 16, 16>}, {pipeline_mode = #tpu.pipeline_mode<synchronous>, transform_indices = @transform_1, window_bounds = array<i64: 9, 16, 16>}, {pipeline_mode = #tpu.pipeline_mode<synchronous>, transform_indices = @transform_2, window_bounds = array<i64: 1, 16>}, {pipeline_mode = #tpu.pipeline_mode<synchronous>, transform_indices = @transform_3, window_bounds = array<i64: 9, 8, 16>}, {transform_indices = @transform_4, window_bounds = array<i64: 1, 8, 256>}]} {
    %cst = arith.constant 0.000000e+00 : bf16
    %0 = vector.broadcast %cst : bf16 to vector<1x24x16xbf16>
    %c0 = arith.constant 0 : index
    %c0_0 = arith.constant 0 : index
    %c0_1 = arith.constant 0 : index
    %1 = vector.load %arg6[%c0, %c0_0, %c0_1] : memref<18x24x16xbf16, #tpu.memory_space<vmem>>, vector<1x24x16xbf16>
    tpu.vector_store %arg6[%c0, %c0_0, %c0_1], %0 {strides = array<i32>} : memref<18x24x16xbf16, #tpu.memory_space<vmem>>, vector<1x24x16xbf16>,
    %cst_2 = arith.constant 0.000000e+00 : bf16
    %2 = vector.broadcast %cst_2 : bf16 to vector<1x24x16xbf16>
    %c17 = arith.constant 17 : index
    %c0_3 = arith.constant 0 : index
    %c0_4 = arith.constant 0 : index
    %3 = vector.load %arg6[%c17, %c0_3, %c0_4] : memref<18x24x16xbf16, #tpu.memory_space<vmem>>, vector<1x24x16xbf16>
    tpu.vector_store %arg6[%c17, %c0_3, %c0_4], %2 {strides = array<i32>} : memref<18x24x16xbf16, #tpu.memory_space<vmem>>, vector<1x24x16xbf16>,
    %cst_5 = arith.constant 0.000000e+00 : bf16
    %4 = vector.broadcast %cst_5 : bf16 to vector<16x1x16xbf16>
    %c1 = arith.constant 1 : index
    %c0_6 = arith.constant 0 : index
    %c0_7 = arith.constant 0 : index
    %5 = vector.load %arg6[%c1, %c0_6, %c0_7] : memref<18x24x16xbf16, #tpu.memory_space<vmem>>, vector<16x1x16xbf16>
    tpu.vector_store %arg6[%c1, %c0_6, %c0_7], %4 {strides = array<i32>} : memref<18x24x16xbf16, #tpu.memory_space<vmem>>, vector<16x1x16xbf16>,
    %cst_8 = arith.constant 0.000000e+00 : bf16
    %6 = vector.broadcast %cst_8 : bf16 to vector<16x1x16xbf16>
    %c1_9 = arith.constant 1 : index
    %c17_10 = arith.constant 17 : index
    %c0_11 = arith.constant 0 : index
    %7 = vector.load %arg6[%c1_9, %c17_10, %c0_11] : memref<18x24x16xbf16, #tpu.memory_space<vmem>>, vector<16x1x16xbf16>
    tpu.vector_store %arg6[%c1_9, %c17_10, %c0_11], %6 {strides = array<i32>} : memref<18x24x16xbf16, #tpu.memory_space<vmem>>, vector<16x1x16xbf16>,
    %c0_12 = arith.constant 0 : index
    %c0_13 = arith.constant 0 : index
    %c0_14 = arith.constant 0 : index
    %c0_15 = arith.constant 0 : index
    %8 = vector.load %arg1[%c0_12, %c0_13, %c0_14, %c0_15] : memref<1x16x16x16xbf16, #tpu.memory_space<vmem>>, vector<1x16x16x16xbf16>
    %9 = vector.shape_cast %8 : vector<1x16x16x16xbf16> to vector<16x16x16xbf16>
    %c1_16 = arith.constant 1 : index
    %c1_17 = arith.constant 1 : index
    %c0_18 = arith.constant 0 : index
    %10 = vector.load %arg6[%c1_16, %c1_17, %c0_18] : memref<18x24x16xbf16, #tpu.memory_space<vmem>>, vector<16x16x16xbf16>
    tpu.vector_store %arg6[%c1_16, %c1_17, %c0_18], %9 {strides = array<i32>} : memref<18x24x16xbf16, #tpu.memory_space<vmem>>, vector<16x16x16xbf16>,
    %cst_19 = arith.constant 0.000000e+00 : f32
    %11 = vector.broadcast %cst_19 : f32 to vector<256x16xf32>
    %c0_20 = arith.constant 0 : index
    %c0_21 = arith.constant 0 : index
    %c0_22 = arith.constant 0 : index
    %12 = vector.load %arg6[%c0_20, %c0_21, %c0_22] : memref<18x24x16xbf16, #tpu.memory_space<vmem>>, vector<16x16x16xbf16>
    %13 = vector.shape_cast %12 : vector<16x16x16xbf16> to vector<256x16xbf16>
    %c0_23 = arith.constant 0 : index
    %c0_24 = arith.constant 0 : index
    %c0_25 = arith.constant 0 : index
    %14 = vector.load %arg2[%c0_23, %c0_24, %c0_25] : memref<9x16x16xbf16, #tpu.memory_space<vmem>>, vector<1x16x16xbf16>
    %15 = vector.shape_cast %14 : vector<1x16x16xbf16> to vector<16x16xbf16>
    %cst_26 = arith.constant dense<0.000000e+00> : vector<256x16xf32>
    %16 = tpu.matmul %13, %15, %cst_26 {dimension_numbers = #tpu.dot_dimension_numbers<[1], [0], [0], [1], [0, 0, 1, 1], [], []>} : vector<256x16xbf16>, vector<16x16xbf16>, vector<256x16xf32> -> vector<256x16xf32>
    %17 = arith.addf %11, %16 : vector<256x16xf32>
    %c0_27 = arith.constant 0 : index
    %c1_28 = arith.constant 1 : index
    %c0_29 = arith.constant 0 : index
    %18 = vector.load %arg6[%c0_27, %c1_28, %c0_29] : memref<18x24x16xbf16, #tpu.memory_space<vmem>>, vector<16x16x16xbf16>
    %19 = vector.shape_cast %18 : vector<16x16x16xbf16> to vector<256x16xbf16>
    %c1_30 = arith.constant 1 : index
    %c0_31 = arith.constant 0 : index
    %c0_32 = arith.constant 0 : index
    %20 = vector.load %arg2[%c1_30, %c0_31, %c0_32] : memref<9x16x16xbf16, #tpu.memory_space<vmem>>, vector<1x16x16xbf16>
    %21 = vector.shape_cast %20 : vector<1x16x16xbf16> to vector<16x16xbf16>
    %cst_33 = arith.constant dense<0.000000e+00> : vector<256x16xf32>
    %22 = tpu.matmul %19, %21, %cst_33 {dimension_numbers = #tpu.dot_dimension_numbers<[1], [0], [0], [1], [0, 0, 1, 1], [], []>} : vector<256x16xbf16>, vector<16x16xbf16>, vector<256x16xf32> -> vector<256x16xf32>
    %23 = arith.addf %17, %22 : vector<256x16xf32>
    %c0_34 = arith.constant 0 : index
    %c2 = arith.constant 2 : index
    %c0_35 = arith.constant 0 : index
    %24 = vector.load %arg6[%c0_34, %c2, %c0_35] : memref<18x24x16xbf16, #tpu.memory_space<vmem>>, vector<16x16x16xbf16>
    %25 = vector.shape_cast %24 : vector<16x16x16xbf16> to vector<256x16xbf16>
    %c2_36 = arith.constant 2 : index
    %c0_37 = arith.constant 0 : index
    %c0_38 = arith.constant 0 : index
    %26 = vector.load %arg2[%c2_36, %c0_37, %c0_38] : memref<9x16x16xbf16, #tpu.memory_space<vmem>>, vector<1x16x16xbf16>
    %27 = vector.shape_cast %26 : vector<1x16x16xbf16> to vector<16x16xbf16>
    %cst_39 = arith.constant dense<0.000000e+00> : vector<256x16xf32>
    %28 = tpu.matmul %25, %27, %cst_39 {dimension_numbers = #tpu.dot_dimension_numbers<[1], [0], [0], [1], [0, 0, 1, 1], [], []>} : vector<256x16xbf16>, vector<16x16xbf16>, vector<256x16xf32> -> vector<256x16xf32>
    %29 = arith.addf %23, %28 : vector<256x16xf32>
    %c1_40 = arith.constant 1 : index
    %c0_41 = arith.constant 0 : index
    %c0_42 = arith.constant 0 : index
    %30 = vector.load %arg6[%c1_40, %c0_41, %c0_42] : memref<18x24x16xbf16, #tpu.memory_space<vmem>>, vector<16x16x16xbf16>
    %31 = vector.shape_cast %30 : vector<16x16x16xbf16> to vector<256x16xbf16>
    %c3 = arith.constant 3 : index
    %c0_43 = arith.constant 0 : index
    %c0_44 = arith.constant 0 : index
    %32 = vector.load %arg2[%c3, %c0_43, %c0_44] : memref<9x16x16xbf16, #tpu.memory_space<vmem>>, vector<1x16x16xbf16>
    %33 = vector.shape_cast %32 : vector<1x16x16xbf16> to vector<16x16xbf16>
    %cst_45 = arith.constant dense<0.000000e+00> : vector<256x16xf32>
    %34 = tpu.matmul %31, %33, %cst_45 {dimension_numbers = #tpu.dot_dimension_numbers<[1], [0], [0], [1], [0, 0, 1, 1], [], []>} : vector<256x16xbf16>, vector<16x16xbf16>, vector<256x16xf32> -> vector<256x16xf32>
    %35 = arith.addf %29, %34 : vector<256x16xf32>
    %c1_46 = arith.constant 1 : index
    %c1_47 = arith.constant 1 : index
    %c0_48 = arith.constant 0 : index
    %36 = vector.load %arg6[%c1_46, %c1_47, %c0_48] : memref<18x24x16xbf16, #tpu.memory_space<vmem>>, vector<16x16x16xbf16>
    %37 = vector.shape_cast %36 : vector<16x16x16xbf16> to vector<256x16xbf16>
    %c4 = arith.constant 4 : index
    %c0_49 = arith.constant 0 : index
    %c0_50 = arith.constant 0 : index
    %38 = vector.load %arg2[%c4, %c0_49, %c0_50] : memref<9x16x16xbf16, #tpu.memory_space<vmem>>, vector<1x16x16xbf16>
    %39 = vector.shape_cast %38 : vector<1x16x16xbf16> to vector<16x16xbf16>
    %cst_51 = arith.constant dense<0.000000e+00> : vector<256x16xf32>
    %40 = tpu.matmul %37, %39, %cst_51 {dimension_numbers = #tpu.dot_dimension_numbers<[1], [0], [0], [1], [0, 0, 1, 1], [], []>} : vector<256x16xbf16>, vector<16x16xbf16>, vector<256x16xf32> -> vector<256x16xf32>
    %41 = arith.addf %35, %40 : vector<256x16xf32>
    %c1_52 = arith.constant 1 : index
    %c2_53 = arith.constant 2 : index
    %c0_54 = arith.constant 0 : index
    %42 = vector.load %arg6[%c1_52, %c2_53, %c0_54] : memref<18x24x16xbf16, #tpu.memory_space<vmem>>, vector<16x16x16xbf16>
    %43 = vector.shape_cast %42 : vector<16x16x16xbf16> to vector<256x16xbf16>
    %c5 = arith.constant 5 : index
    %c0_55 = arith.constant 0 : index
    %c0_56 = arith.constant 0 : index
    %44 = vector.load %arg2[%c5, %c0_55, %c0_56] : memref<9x16x16xbf16, #tpu.memory_space<vmem>>, vector<1x16x16xbf16>
    %45 = vector.shape_cast %44 : vector<1x16x16xbf16> to vector<16x16xbf16>
    %cst_57 = arith.constant dense<0.000000e+00> : vector<256x16xf32>
    %46 = tpu.matmul %43, %45, %cst_57 {dimension_numbers = #tpu.dot_dimension_numbers<[1], [0], [0], [1], [0, 0, 1, 1], [], []>} : vector<256x16xbf16>, vector<16x16xbf16>, vector<256x16xf32> -> vector<256x16xf32>
    %47 = arith.addf %41, %46 : vector<256x16xf32>
    %c2_58 = arith.constant 2 : index
    %c0_59 = arith.constant 0 : index
    %c0_60 = arith.constant 0 : index
    %48 = vector.load %arg6[%c2_58, %c0_59, %c0_60] : memref<18x24x16xbf16, #tpu.memory_space<vmem>>, vector<16x16x16xbf16>
    %49 = vector.shape_cast %48 : vector<16x16x16xbf16> to vector<256x16xbf16>
    %c6 = arith.constant 6 : index
    %c0_61 = arith.constant 0 : index
    %c0_62 = arith.constant 0 : index
    %50 = vector.load %arg2[%c6, %c0_61, %c0_62] : memref<9x16x16xbf16, #tpu.memory_space<vmem>>, vector<1x16x16xbf16>
    %51 = vector.shape_cast %50 : vector<1x16x16xbf16> to vector<16x16xbf16>
    %cst_63 = arith.constant dense<0.000000e+00> : vector<256x16xf32>
    %52 = tpu.matmul %49, %51, %cst_63 {dimension_numbers = #tpu.dot_dimension_numbers<[1], [0], [0], [1], [0, 0, 1, 1], [], []>} : vector<256x16xbf16>, vector<16x16xbf16>, vector<256x16xf32> -> vector<256x16xf32>
    %53 = arith.addf %47, %52 : vector<256x16xf32>
    %c2_64 = arith.constant 2 : index
    %c1_65 = arith.constant 1 : index
    %c0_66 = arith.constant 0 : index
    %54 = vector.load %arg6[%c2_64, %c1_65, %c0_66] : memref<18x24x16xbf16, #tpu.memory_space<vmem>>, vector<16x16x16xbf16>
    %55 = vector.shape_cast %54 : vector<16x16x16xbf16> to vector<256x16xbf16>
    %c7 = arith.constant 7 : index
    %c0_67 = arith.constant 0 : index
    %c0_68 = arith.constant 0 : index
    %56 = vector.load %arg2[%c7, %c0_67, %c0_68] : memref<9x16x16xbf16, #tpu.memory_space<vmem>>, vector<1x16x16xbf16>
    %57 = vector.shape_cast %56 : vector<1x16x16xbf16> to vector<16x16xbf16>
    %cst_69 = arith.constant dense<0.000000e+00> : vector<256x16xf32>
    %58 = tpu.matmul %55, %57, %cst_69 {dimension_numbers = #tpu.dot_dimension_numbers<[1], [0], [0], [1], [0, 0, 1, 1], [], []>} : vector<256x16xbf16>, vector<16x16xbf16>, vector<256x16xf32> -> vector<256x16xf32>
    %59 = arith.addf %53, %58 : vector<256x16xf32>
    %c2_70 = arith.constant 2 : index
    %c2_71 = arith.constant 2 : index
    %c0_72 = arith.constant 0 : index
    %60 = vector.load %arg6[%c2_70, %c2_71, %c0_72] : memref<18x24x16xbf16, #tpu.memory_space<vmem>>, vector<16x16x16xbf16>
    %61 = vector.shape_cast %60 : vector<16x16x16xbf16> to vector<256x16xbf16>
    %c8 = arith.constant 8 : index
    %c0_73 = arith.constant 0 : index
    %c0_74 = arith.constant 0 : index
    %62 = vector.load %arg2[%c8, %c0_73, %c0_74] : memref<9x16x16xbf16, #tpu.memory_space<vmem>>, vector<1x16x16xbf16>
    %63 = vector.shape_cast %62 : vector<1x16x16xbf16> to vector<16x16xbf16>
    %cst_75 = arith.constant dense<0.000000e+00> : vector<256x16xf32>
    %64 = tpu.matmul %61, %63, %cst_75 {dimension_numbers = #tpu.dot_dimension_numbers<[1], [0], [0], [1], [0, 0, 1, 1], [], []>} : vector<256x16xbf16>, vector<16x16xbf16>, vector<256x16xf32> -> vector<256x16xf32>
    %65 = arith.addf %59, %64 : vector<256x16xf32>
    %c0_76 = arith.constant 0 : index
    %c0_77 = arith.constant 0 : index
    %66 = vector.load %arg3[%c0_76, %c0_77] : memref<1x16xf32, #tpu.memory_space<vmem>>, vector<1x16xf32>
    %67 = vector.broadcast %66 : vector<1x16xf32> to vector<256x16xf32>
    %68 = arith.addf %65, %67 : vector<256x16xf32>
    %cst_78 = arith.constant 0.000000e+00 : f32
    %69 = vector.broadcast %cst_78 : f32 to vector<256x16xf32>
    %70 = arith.maximumf %68, %69 : vector<256x16xf32>
    %71 = arith.truncf %70 : vector<256x16xf32> to vector<256x16xbf16>
    %72 = vector.shape_cast %71 : vector<256x16xbf16> to vector<16x16x16xbf16>
    %c1_79 = arith.constant 1 : index
    %c1_80 = arith.constant 1 : index
    %c0_81 = arith.constant 0 : index
    %73 = vector.load %arg6[%c1_79, %c1_80, %c0_81] : memref<18x24x16xbf16, #tpu.memory_space<vmem>>, vector<16x16x16xbf16>
    tpu.vector_store %arg6[%c1_79, %c1_80, %c0_81], %72 {strides = array<i32>} : memref<18x24x16xbf16, #tpu.memory_space<vmem>>, vector<16x16x16xbf16>,
    %cst_82 = arith.constant 0.000000e+00 : f32
    %74 = vector.broadcast %cst_82 : f32 to vector<8x256xf32>
    %c0_83 = arith.constant 0 : index
    %c0_84 = arith.constant 0 : index
    %c0_85 = arith.constant 0 : index
    %75 = vector.load %arg4[%c0_83, %c0_84, %c0_85] : memref<9x8x16xbf16, #tpu.memory_space<vmem>>, vector<1x8x16xbf16>
    %76 = vector.shape_cast %75 : vector<1x8x16xbf16> to vector<8x16xbf16>
    %c0_86 = arith.constant 0 : index
    %c0_87 = arith.constant 0 : index
    %c0_88 = arith.constant 0 : index
    %77 = vector.load %arg6[%c0_86, %c0_87, %c0_88] : memref<18x24x16xbf16, #tpu.memory_space<vmem>>, vector<16x16x16xbf16>
    %78 = vector.shape_cast %77 : vector<16x16x16xbf16> to vector<256x16xbf16>
    %cst_89 = arith.constant dense<0.000000e+00> : vector<8x256xf32>
    %79 = tpu.matmul %76, %78, %cst_89 {dimension_numbers = #tpu.dot_dimension_numbers<[1], [1], [0], [0], [0, 0, 1, 0], [], []>} : vector<8x16xbf16>, vector<256x16xbf16>, vector<8x256xf32> -> vector<8x256xf32>
    %80 = arith.addf %74, %79 : vector<8x256xf32>
    %c1_90 = arith.constant 1 : index
    %c0_91 = arith.constant 0 : index
    %c0_92 = arith.constant 0 : index
    %81 = vector.load %arg4[%c1_90, %c0_91, %c0_92] : memref<9x8x16xbf16, #tpu.memory_space<vmem>>, vector<1x8x16xbf16>
    %82 = vector.shape_cast %81 : vector<1x8x16xbf16> to vector<8x16xbf16>
    %c0_93 = arith.constant 0 : index
    %c1_94 = arith.constant 1 : index
    %c0_95 = arith.constant 0 : index
    %83 = vector.load %arg6[%c0_93, %c1_94, %c0_95] : memref<18x24x16xbf16, #tpu.memory_space<vmem>>, vector<16x16x16xbf16>
    %84 = vector.shape_cast %83 : vector<16x16x16xbf16> to vector<256x16xbf16>
    %cst_96 = arith.constant dense<0.000000e+00> : vector<8x256xf32>
    %85 = tpu.matmul %82, %84, %cst_96 {dimension_numbers = #tpu.dot_dimension_numbers<[1], [1], [0], [0], [0, 0, 1, 0], [], []>} : vector<8x16xbf16>, vector<256x16xbf16>, vector<8x256xf32> -> vector<8x256xf32>
    %86 = arith.addf %80, %85 : vector<8x256xf32>
    %c2_97 = arith.constant 2 : index
    %c0_98 = arith.constant 0 : index
    %c0_99 = arith.constant 0 : index
    %87 = vector.load %arg4[%c2_97, %c0_98, %c0_99] : memref<9x8x16xbf16, #tpu.memory_space<vmem>>, vector<1x8x16xbf16>
    %88 = vector.shape_cast %87 : vector<1x8x16xbf16> to vector<8x16xbf16>
    %c0_100 = arith.constant 0 : index
    %c2_101 = arith.constant 2 : index
    %c0_102 = arith.constant 0 : index
    %89 = vector.load %arg6[%c0_100, %c2_101, %c0_102] : memref<18x24x16xbf16, #tpu.memory_space<vmem>>, vector<16x16x16xbf16>
    %90 = vector.shape_cast %89 : vector<16x16x16xbf16> to vector<256x16xbf16>
    %cst_103 = arith.constant dense<0.000000e+00> : vector<8x256xf32>
    %91 = tpu.matmul %88, %90, %cst_103 {dimension_numbers = #tpu.dot_dimension_numbers<[1], [1], [0], [0], [0, 0, 1, 0], [], []>} : vector<8x16xbf16>, vector<256x16xbf16>, vector<8x256xf32> -> vector<8x256xf32>
    %92 = arith.addf %86, %91 : vector<8x256xf32>
    %c3_104 = arith.constant 3 : index
    %c0_105 = arith.constant 0 : index
    %c0_106 = arith.constant 0 : index
    %93 = vector.load %arg4[%c3_104, %c0_105, %c0_106] : memref<9x8x16xbf16, #tpu.memory_space<vmem>>, vector<1x8x16xbf16>
    %94 = vector.shape_cast %93 : vector<1x8x16xbf16> to vector<8x16xbf16>
    %c1_107 = arith.constant 1 : index
    %c0_108 = arith.constant 0 : index
    %c0_109 = arith.constant 0 : index
    %95 = vector.load %arg6[%c1_107, %c0_108, %c0_109] : memref<18x24x16xbf16, #tpu.memory_space<vmem>>, vector<16x16x16xbf16>
    %96 = vector.shape_cast %95 : vector<16x16x16xbf16> to vector<256x16xbf16>
    %cst_110 = arith.constant dense<0.000000e+00> : vector<8x256xf32>
    %97 = tpu.matmul %94, %96, %cst_110 {dimension_numbers = #tpu.dot_dimension_numbers<[1], [1], [0], [0], [0, 0, 1, 0], [], []>} : vector<8x16xbf16>, vector<256x16xbf16>, vector<8x256xf32> -> vector<8x256xf32>
    %98 = arith.addf %92, %97 : vector<8x256xf32>
    %c4_111 = arith.constant 4 : index
    %c0_112 = arith.constant 0 : index
    %c0_113 = arith.constant 0 : index
    %99 = vector.load %arg4[%c4_111, %c0_112, %c0_113] : memref<9x8x16xbf16, #tpu.memory_space<vmem>>, vector<1x8x16xbf16>
    %100 = vector.shape_cast %99 : vector<1x8x16xbf16> to vector<8x16xbf16>
    %c1_114 = arith.constant 1 : index
    %c1_115 = arith.constant 1 : index
    %c0_116 = arith.constant 0 : index
    %101 = vector.load %arg6[%c1_114, %c1_115, %c0_116] : memref<18x24x16xbf16, #tpu.memory_space<vmem>>, vector<16x16x16xbf16>
    %102 = vector.shape_cast %101 : vector<16x16x16xbf16> to vector<256x16xbf16>
    %cst_117 = arith.constant dense<0.000000e+00> : vector<8x256xf32>
    %103 = tpu.matmul %100, %102, %cst_117 {dimension_numbers = #tpu.dot_dimension_numbers<[1], [1], [0], [0], [0, 0, 1, 0], [], []>} : vector<8x16xbf16>, vector<256x16xbf16>, vector<8x256xf32> -> vector<8x256xf32>
    %104 = arith.addf %98, %103 : vector<8x256xf32>
    %c5_118 = arith.constant 5 : index
    %c0_119 = arith.constant 0 : index
    %c0_120 = arith.constant 0 : index
    %105 = vector.load %arg4[%c5_118, %c0_119, %c0_120] : memref<9x8x16xbf16, #tpu.memory_space<vmem>>, vector<1x8x16xbf16>
    %106 = vector.shape_cast %105 : vector<1x8x16xbf16> to vector<8x16xbf16>
    %c1_121 = arith.constant 1 : index
    %c2_122 = arith.constant 2 : index
    %c0_123 = arith.constant 0 : index
    %107 = vector.load %arg6[%c1_121, %c2_122, %c0_123] : memref<18x24x16xbf16, #tpu.memory_space<vmem>>, vector<16x16x16xbf16>
    %108 = vector.shape_cast %107 : vector<16x16x16xbf16> to vector<256x16xbf16>
    %cst_124 = arith.constant dense<0.000000e+00> : vector<8x256xf32>
    %109 = tpu.matmul %106, %108, %cst_124 {dimension_numbers = #tpu.dot_dimension_numbers<[1], [1], [0], [0], [0, 0, 1, 0], [], []>} : vector<8x16xbf16>, vector<256x16xbf16>, vector<8x256xf32> -> vector<8x256xf32>
    %110 = arith.addf %104, %109 : vector<8x256xf32>
    %c6_125 = arith.constant 6 : index
    %c0_126 = arith.constant 0 : index
    %c0_127 = arith.constant 0 : index
    %111 = vector.load %arg4[%c6_125, %c0_126, %c0_127] : memref<9x8x16xbf16, #tpu.memory_space<vmem>>, vector<1x8x16xbf16>
    %112 = vector.shape_cast %111 : vector<1x8x16xbf16> to vector<8x16xbf16>
    %c2_128 = arith.constant 2 : index
    %c0_129 = arith.constant 0 : index
    %c0_130 = arith.constant 0 : index
    %113 = vector.load %arg6[%c2_128, %c0_129, %c0_130] : memref<18x24x16xbf16, #tpu.memory_space<vmem>>, vector<16x16x16xbf16>
    %114 = vector.shape_cast %113 : vector<16x16x16xbf16> to vector<256x16xbf16>
    %cst_131 = arith.constant dense<0.000000e+00> : vector<8x256xf32>
    %115 = tpu.matmul %112, %114, %cst_131 {dimension_numbers = #tpu.dot_dimension_numbers<[1], [1], [0], [0], [0, 0, 1, 0], [], []>} : vector<8x16xbf16>, vector<256x16xbf16>, vector<8x256xf32> -> vector<8x256xf32>
    %116 = arith.addf %110, %115 : vector<8x256xf32>
    %c7_132 = arith.constant 7 : index
    %c0_133 = arith.constant 0 : index
    %c0_134 = arith.constant 0 : index
    %117 = vector.load %arg4[%c7_132, %c0_133, %c0_134] : memref<9x8x16xbf16, #tpu.memory_space<vmem>>, vector<1x8x16xbf16>
    %118 = vector.shape_cast %117 : vector<1x8x16xbf16> to vector<8x16xbf16>
    %c2_135 = arith.constant 2 : index
    %c1_136 = arith.constant 1 : index
    %c0_137 = arith.constant 0 : index
    %119 = vector.load %arg6[%c2_135, %c1_136, %c0_137] : memref<18x24x16xbf16, #tpu.memory_space<vmem>>, vector<16x16x16xbf16>
    %120 = vector.shape_cast %119 : vector<16x16x16xbf16> to vector<256x16xbf16>
    %cst_138 = arith.constant dense<0.000000e+00> : vector<8x256xf32>
    %121 = tpu.matmul %118, %120, %cst_138 {dimension_numbers = #tpu.dot_dimension_numbers<[1], [1], [0], [0], [0, 0, 1, 0], [], []>} : vector<8x16xbf16>, vector<256x16xbf16>, vector<8x256xf32> -> vector<8x256xf32>
    %122 = arith.addf %116, %121 : vector<8x256xf32>
    %c8_139 = arith.constant 8 : index
    %c0_140 = arith.constant 0 : index
    %c0_141 = arith.constant 0 : index
    %123 = vector.load %arg4[%c8_139, %c0_140, %c0_141] : memref<9x8x16xbf16, #tpu.memory_space<vmem>>, vector<1x8x16xbf16>
    %124 = vector.shape_cast %123 : vector<1x8x16xbf16> to vector<8x16xbf16>
    %c2_142 = arith.constant 2 : index
    %c2_143 = arith.constant 2 : index
    %c0_144 = arith.constant 0 : index
    %125 = vector.load %arg6[%c2_142, %c2_143, %c0_144] : memref<18x24x16xbf16, #tpu.memory_space<vmem>>, vector<16x16x16xbf16>
    %126 = vector.shape_cast %125 : vector<16x16x16xbf16> to vector<256x16xbf16>
    %cst_145 = arith.constant dense<0.000000e+00> : vector<8x256xf32>
    %127 = tpu.matmul %124, %126, %cst_145 {dimension_numbers = #tpu.dot_dimension_numbers<[1], [1], [0], [0], [0, 0, 1, 0], [], []>} : vector<8x16xbf16>, vector<256x16xbf16>, vector<8x256xf32> -> vector<8x256xf32>
    %128 = arith.addf %122, %127 : vector<8x256xf32>
    %c0_146 = arith.constant 0 : index
    %c0_147 = arith.constant 0 : index
    %c0_148 = arith.constant 0 : index
    %129 = vector.load %arg5[%c0_146, %c0_147, %c0_148] : memref<1x8x256xf32, #tpu.memory_space<vmem>>, vector<1x8x256xf32>
    %130 = vector.shape_cast %129 : vector<1x8x256xf32> to vector<8x256xf32>
    %131 = vector.shape_cast %128 : vector<8x256xf32> to vector<1x8x256xf32>
    tpu.vector_store %arg5[%c0_146, %c0_147, %c0_148], %131 {strides = array<i32>} : memref<1x8x256xf32, #tpu.memory_space<vmem>>, vector<1x8x256xf32>,
    return
  }
  func.func @transform_0(%arg0: i32) -> (i32, i32, i32, i32) {
    %c0_i32 = arith.constant 0 : i32
    %c0_i32_0 = arith.constant 0 : i32
    %c0_i32_1 = arith.constant 0 : i32
    %c0_i32_2 = arith.constant 0 : i32
    return %arg0, %c0_i32, %c0_i32_0, %c0_i32_1 : i32, i32, i32, i32
  }
  func.func @transform_1(%arg0: i32) -> (i32, i32, i32) {
    %c0_i32 = arith.constant 0 : i32
    %c0_i32_0 = arith.constant 0 : i32
    %c0_i32_1 = arith.constant 0 : i32
    %c0_i32_2 = arith.constant 0 : i32
    return %c0_i32, %c0_i32_0, %c0_i32_1 : i32, i32, i32
  }
  func.func @transform_2(%arg0: i32) -> (i32, i32) {
    %c0_i32 = arith.constant 0 : i32
    %c0_i32_0 = arith.constant 0 : i32
    %c0_i32_1 = arith.constant 0 : i32
    return %c0_i32, %c0_i32_0 : i32, i32
  }
  func.func @transform_3(%arg0: i32) -> (i32, i32, i32) {
    %c0_i32 = arith.constant 0 : i32
    %c0_i32_0 = arith.constant 0 : i32
    %c0_i32_1 = arith.constant 0 : i32
    %c0_i32_2 = arith.constant 0 : i32
    return %c0_i32, %c0_i32_0, %c0_i32_1 : i32, i32, i32
  }
  func.func @transform_4(%arg0: i32) -> (i32, i32, i32) {
    %c0_i32 = arith.constant 0 : i32
    %c0_i32_0 = arith.constant 0 : i32
    %c0_i32_1 = arith.constant 0 : i32
    return %arg0, %c0_i32, %c0_i32_0 : i32, i32, i32
  }
}

</mosaic_0001>

<llo_original>
// kernel: tpu_custom_call.1
$region0: #{tpu_custom_call.1}
  #allocation0 [shape = 'u32[]', space=smem, size = 0x4, offset = 0x4, fixed_abs, tag = 'smem constant byte address 0x4 - core index']
  #allocation1 [shape = 'u32[144,128]{1,0:T(1,128)}', space=vmem, size = 0x12000, scoped, tag = 'internal scratch']
  #allocation2 [shape = 'bf16[18,24,16]{2,1,0:T(8,128)(2,1)}', space=vmem, size = 0x1b000, scoped, tag = 'scratch operand']
  %s0 = inlined_call_operand.hbm [shape: bf16[2,16,16,16], index: 0, kind: input, shape index: {}]
  %s1 = inlined_call_operand.hbm [shape: bf16[9,16,16], index: 1, kind: input, shape index: {}]
  %s2 = inlined_call_operand.vmem [shape: f32[1,16], index: 2, kind: input, shape index: {}]
  %s3 = inlined_call_operand.hbm [shape: bf16[9,8,16], index: 3, kind: input, shape index: {}]
  %s4 = inlined_call_operand.hbm [shape: f32[2,8,256], index: 4, kind: output, shape index: {}]
  %s5 = sld [smem:[#allocation0]]
  $region61: #{tpu_custom_call.1} parent=0
    _
  %s7 = ssub.s32 1, %s5
  %s8 = scalar_select 0, %s7, %s5
  $region1: #{tpu_custom_call.1} parent=0
    #allocation3 [shape = 'u8[131072]{0}', space=vmem, size = 0x20000, scoped, tag = 'input window, operand 0']
    #allocation4 [shape = 's32[2]{0}', space=sflag, size = 0x8, scoped, tag = 'scoped memory for tpu_custom_call.1']
    #allocation5 [shape = 's32[2]{0}', space=sflag, size = 0x8, scoped, tag = 'scoped memory for tpu_custom_call.1']
    #allocation6 [shape = 'u8[36864]{0}', space=vmem, size = 0x9000, scoped, tag = 'input window, operand 1, single buffered']
    #allocation7 [shape = 's32[1]{0}', space=sflag, size = 0x4, scoped, tag = 'scoped memory for tpu_custom_call.1']
    #allocation8 [shape = 'u8[18432]{0}', space=vmem, size = 0x4800, scoped, tag = 'input window, operand 3, single buffered']
    #allocation9 [shape = 'u8[16384]{0}', space=vmem, size = 0x4000, scoped, tag = 'output window, operand 0']
    %9 = vsyncpa [#allocation4], 0
    %s10 = scalar_lea.sflag [#allocation4], 1
    %11 = vsyncpa %s10, 0
    %12 = vsyncpa [#allocation7], 0
    %13 = vsyncpa [#allocation5], 0
    %s14 = scalar_lea.sflag [#allocation5], 1
    %15 = vsyncpa %s14, 0
    loop: start=0, step=1, limit=4
    $region2: #{tpu_custom_call.1} parent=1 // loop_pre_header
      _
    $region3: #{tpu_custom_call.1} parent=1 // loop_header
      %s17 = sphi 0, %s21
      %p18 = scmp.ge.s32.totalorder %s17, 4
      %s27 = sphi 0, %s29
      %s30 = sphi 0, %s27
      %s31 = sphi 0, %s30
      %s47 = sphi 0, %s31
      %s51 = sphi 0, %s51
      %s53 = sphi 0, %s51
      %s54 = sphi 0, %s53
      %s68 = sphi 0, %s54
      %s72 = sphi 0, %s72
      %s74 = sphi 0, %s72
      %s75 = sphi 0, %s74
      %s89 = sphi 0, %s75
      %s93 = sphi 0, %s93
      %s95 = sphi 0, %s93
      %s96 = sphi 0, %s95
      %s110 = sphi 0, %s96
      %s116 = sphi 0, %s118
      %s119 = sphi 0, %s116
      %s120 = sphi 0, %s119
      %s136 = sphi 0, %s120
    $region4: #{tpu_custom_call.1} parent=1 // loop_header_branch
      %20 = sbr.rel (%p18) target = $region8
    $region5: #{tpu_custom_call.1} parent=1 // loop_body
      %s22 = ssub.s32 %s17, 1
      %s23 = ssub.s32 %s17, 2
      %s24 = sadd.s32 %s17, 1
      %s25 = ssub.s32 %s17, %s24
      %p26 = scmp.eq.s32.totalorder %s25, 0
      %s28 = sadd.s32 %s27, 1
      %s29 = scalar_select %p26, %s27, %s28
      %p32 = pneg %p26
      %p33 = scmp.eq.s32.totalorder %s17, 1
      %p34 = por %p32, %p33
      %p35 = scmp.ne.s32.totalorder %s27, %s30
      %p36 = scmp.eq.s32.totalorder %s17, 0
      %p37 = por %p35, %p36
      %p38 = scmp.ne.s32.totalorder %s27, %s30
      %p39 = scmp.eq.s32.totalorder %s22, 1
      %p40 = por %p38, %p39
      %p41 = scmp.ne.s32.totalorder %s30, %s31
      %p42 = scmp.eq.s32.totalorder %s22, 0
      %p43 = por %p41, %p42
      %p44 = scmp.ne.s32.totalorder %s30, %s31
      %p45 = scmp.eq.s32.totalorder %s23, 1
      %p46 = por %p44, %p45
      %p48 = scmp.ne.s32.totalorder %s31, %s47
      %p49 = scmp.eq.s32.totalorder %s23, 0
      %p50 = por %p48, %p49
      %s52 = sadd.s32 %s51, 1
      %p55 = scmp.eq.s32.totalorder %s17, 1
      %p56 = scmp.ne.s32.totalorder %s51, %s53
      %p57 = scmp.eq.s32.totalorder %s17, 0
      %p58 = por %p56, %p57
      %p59 = scmp.ne.s32.totalorder %s51, %s53
      %p60 = scmp.eq.s32.totalorder %s22, 1
      %p61 = por %p59, %p60
      %p62 = scmp.ne.s32.totalorder %s53, %s54
      %p63 = scmp.eq.s32.totalorder %s22, 0
      %p64 = por %p62, %p63
      %p65 = scmp.ne.s32.totalorder %s53, %s54
      %p66 = scmp.eq.s32.totalorder %s23, 1
      %p67 = por %p65, %p66
      %p69 = scmp.ne.s32.totalorder %s54, %s68
      %p70 = scmp.eq.s32.totalorder %s23, 0
      %p71 = por %p69, %p70
      %s73 = sadd.s32 %s72, 1
      %p76 = scmp.eq.s32.totalorder %s17, 1
      %p77 = scmp.ne.s32.totalorder %s72, %s74
      %p78 = scmp.eq.s32.totalorder %s17, 0
      %p79 = por %p77, %p78
      %p80 = scmp.ne.s32.totalorder %s72, %s74
      %p81 = scmp.eq.s32.totalorder %s22, 1
      %p82 = por %p80, %p81
      %p83 = scmp.ne.s32.totalorder %s74, %s75
      %p84 = scmp.eq.s32.totalorder %s22, 0
      %p85 = por %p83, %p84
      %p86 = scmp.ne.s32.totalorder %s74, %s75
      %p87 = scmp.eq.s32.totalorder %s23, 1
      %p88 = por %p86, %p87
      %p90 = scmp.ne.s32.totalorder %s75, %s89
      %p91 = scmp.eq.s32.totalorder %s23, 0
      %p92 = por %p90, %p91
      %s94 = sadd.s32 %s93, 1
      %p97 = scmp.eq.s32.totalorder %s17, 1
      %p98 = scmp.ne.s32.totalorder %s93, %s95
      %p99 = scmp.eq.s32.totalorder %s17, 0
      %p100 = por %p98, %p99
      %p101 = scmp.ne.s32.totalorder %s93, %s95
      %p102 = scmp.eq.s32.totalorder %s22, 1
      %p103 = por %p101, %p102
      %p104 = scmp.ne.s32.totalorder %s95, %s96
      %p105 = scmp.eq.s32.totalorder %s22, 0
      %p106 = por %p104, %p105
      %p107 = scmp.ne.s32.totalorder %s95, %s96
      %p108 = scmp.eq.s32.totalorder %s23, 1
      %p109 = por %p107, %p108
      %p111 = scmp.ne.s32.totalorder %s96, %s110
      %p112 = scmp.eq.s32.totalorder %s23, 0
      %p113 = por %p111, %p112
      %s114 = ssub.s32 %s17, %s24
      %p115 = scmp.eq.s32.totalorder %s114, 0
      %s117 = sadd.s32 %s116, 1
      %s118 = scalar_select %p115, %s116, %s117
      %p121 = pneg %p115
      %p122 = scmp.eq.s32.totalorder %s17, 1
      %p123 = por %p121, %p122
      %p124 = scmp.ne.s32.totalorder %s116, %s119
      %p125 = scmp.eq.s32.totalorder %s17, 0
      %p126 = por %p124, %p125
      %p127 = scmp.ne.s32.totalorder %s116, %s119
      %p128 = scmp.eq.s32.totalorder %s22, 1
      %p129 = por %p127, %p128
      %p130 = scmp.ne.s32.totalorder %s119, %s120
      %p131 = scmp.eq.s32.totalorder %s22, 0
      %p132 = por %p130, %p131
      %p133 = scmp.ne.s32.totalorder %s119, %s120
      %p134 = scmp.eq.s32.totalorder %s23, 1
      %p135 = por %p133, %p134
      %p137 = scmp.ne.s32.totalorder %s120, %s136
      %p138 = scmp.eq.s32.totalorder %s23, 0
      %p139 = por %p137, %p138
      %p140 = scmp.le.s32.totalorder 1, %s17
      %p141 = scmp.lt.s32.totalorder %s17, 3
      %p142 = pnand %p140, %p141
      %p143 = pneg %p142
      // Predicated region
      $region9: #{tpu_custom_call.1} parent=5 // pred_check
        _
      $region10: #{tpu_custom_call.1} parent=5 // pred_check_branch
        %145 = sbr.rel (%p142) target = $region12
      $region11: #{tpu_custom_call.1} parent=5 // pred_region
        %s146 = ssub.s32 %s17, 1
        // Predicated region
        $region13: #{tpu_custom_call.1} parent=11 // pred_check
          %p147 = pneg %p64
        $region14: #{tpu_custom_call.1} parent=11 // pred_check_branch
          %149 = sbr.rel (%p147) target = $region16
        $region15: #{tpu_custom_call.1} parent=11 // pred_region
          %s151 = ssub.s32 1152, 1152
          %152 = vsyncadd [#allocation7], %s151
          %s153 = sshll.u32 [#allocation6], 4
          %s154 = int_to_ptr.vmem [resolvable:$true] %s153
          %159 = dma.hbm_to_vmem [thread:$0]  %s1, 1152, %s154, [#allocation7], 64, 64, 4
        $region16: #{tpu_custom_call.1} parent=11 // pred_fallthru
          _
        // Predicated region
        $region17: #{tpu_custom_call.1} parent=11 // pred_check
          %p160 = pneg %p85
        $region18: #{tpu_custom_call.1} parent=11 // pred_check_branch
          %162 = sbr.rel (%p160) target = $region20
        $region19: #{tpu_custom_call.1} parent=11 // pred_region
          _
        $region20: #{tpu_custom_call.1} parent=11 // pred_fallthru
          _
        // Predicated region
        $region21: #{tpu_custom_call.1} parent=11 // pred_check
          %p163 = pneg %p106
        $region22: #{tpu_custom_call.1} parent=11 // pred_check_branch
          %165 = sbr.rel (%p163) target = $region24
        $region23: #{tpu_custom_call.1} parent=11 // pred_region
          %s167 = ssub.s32 576, 576
          %168 = vsyncadd [#allocation7], %s167
          %s169 = sshll.u32 [#allocation8], 4
          %s170 = int_to_ptr.vmem [resolvable:$true] %s169
          %175 = dma.hbm_to_vmem [thread:$0]  %s3, 576, %s170, [#allocation7], 64, 64, 4
        $region24: #{tpu_custom_call.1} parent=11 // pred_fallthru
          _
      $region12: #{tpu_custom_call.1} parent=5 // pred_fallthru
        _
      %p176 = scmp.lt.s32.totalorder %s17, 2
      // Predicated region
      $region25: #{tpu_custom_call.1} parent=5 // pred_check
        %p177 = pneg %p176
      $region26: #{tpu_custom_call.1} parent=5 // pred_check_branch
        %179 = sbr.rel (%p177) target = $region28
      $region27: #{tpu_custom_call.1} parent=5 // pred_region
        // Predicated region
        $region29: #{tpu_custom_call.1} parent=27 // pred_check
          %p180 = pneg %p37
        $region30: #{tpu_custom_call.1} parent=27 // pred_check_branch
          %182 = sbr.rel (%p180) target = $region32
        $region31: #{tpu_custom_call.1} parent=27 // pred_region
          %s183 = sand.u32 %s27, 1
          %s184 = scalar_lea.sflag [#allocation4], %s183
          %s185 = sand.u32 %s27, 1
          %s186 = smul.addr %s185, 128
          %s187 = scalar_lea.vmem [#allocation3], %s186
          %s189 = ssub.s32 2048, 2048
          %190 = vsyncadd %s184, %s189
          %s191 = smul.addr %s17, 32
          %s192 = smul.addr %s191, 64
          %s193 = scalar_lea.hbm %s0, %s192
          %s194 = sshll.u32 %s187, 4
          %s195 = int_to_ptr.vmem [resolvable:$true] %s194
          %200 = dma.hbm_to_vmem [thread:$0]  %s193, 2048, %s195, %s184, 64, 64, 4
        $region32: #{tpu_custom_call.1} parent=27 // pred_fallthru
          _
      $region28: #{tpu_custom_call.1} parent=5 // pred_fallthru
        _
      %p201 = scmp.le.s32.totalorder 1, %s17
      %p202 = scmp.lt.s32.totalorder %s17, 3
      %p203 = pnand %p201, %p202
      %p204 = pneg %p203
      // Predicated region
      $region33: #{tpu_custom_call.1} parent=5 // pred_check
        _
      $region34: #{tpu_custom_call.1} parent=5 // pred_check_branch
        %206 = sbr.rel (%p203) target = $region36
      $region35: #{tpu_custom_call.1} parent=5 // pred_region
        %s207 = ssub.s32 %s17, 1
        %s208 = sand.u32 %s30, 1
        %s209 = scalar_lea.sflag [#allocation4], %s208
        %s210 = sand.u32 %s30, 1
        %s211 = smul.addr %s210, 128
        %s212 = scalar_lea.vmem [#allocation3], %s211
        // Predicated region
        $region37: #{tpu_custom_call.1} parent=35 // pred_check
          %p213 = pneg %p43
        $region38: #{tpu_custom_call.1} parent=35 // pred_check_branch
          %215 = sbr.rel (%p213) target = $region40
        $region39: #{tpu_custom_call.1} parent=35 // pred_region
          %216 = dma.done %s209, 2048
        $region40: #{tpu_custom_call.1} parent=35 // pred_fallthru
          _
        // Predicated region
        $region41: #{tpu_custom_call.1} parent=35 // pred_check
          %p217 = pneg %p64
        $region42: #{tpu_custom_call.1} parent=35 // pred_check_branch
          %219 = sbr.rel (%p217) target = $region44
        $region43: #{tpu_custom_call.1} parent=35 // pred_region
          %220 = dma.done [#allocation7], 1152
        $region44: #{tpu_custom_call.1} parent=35 // pred_fallthru
          _
        // Predicated region
        $region45: #{tpu_custom_call.1} parent=35 // pred_check
          %p221 = pneg %p106
        $region46: #{tpu_custom_call.1} parent=35 // pred_check_branch
          %223 = sbr.rel (%p221) target = $region48
        $region47: #{tpu_custom_call.1} parent=35 // pred_region
          %224 = dma.done [#allocation7], 576
        $region48: #{tpu_custom_call.1} parent=35 // pred_fallthru
          _
        %s225 = sand.u32 %s30, 1
        %s226 = scalar_lea.sflag [#allocation4], %s225
        %s227 = sand.u32 %s30, 1
        %s228 = smul.addr %s227, 128
        %s229 = scalar_lea.vmem [#allocation3], %s228
        %p230 = pneg %p43
        %p231 = pneg %p40
        %p232 = pneg %p64
        %p233 = pneg %p61
        %p234 = pneg %p85
        %p235 = pneg %p82
        %p236 = pneg %p106
        %p237 = pneg %p103
        %p238 = pneg %p132
        %p239 = pneg %p129
        %s240 = sand.u32 %s119, 1
        %s241 = scalar_lea.sflag [#allocation5], %s240
        %s242 = sand.u32 %s119, 1
        %s243 = smul.addr %s242, 16
        %s244 = scalar_lea.vmem [#allocation9], %s243
        %vm246 = vcmask 125952
        %247 = vst.msk [vmem:[#allocation2] sm:$0xf] %vm246, 0
        %248 = vst.msk [vmem:[#allocation2 + $0x4] sm:$0xf] %vm246, 0
        %249 = vst.msk [vmem:[#allocation2 + $0x8] sm:$0xf] %vm246, 0
        %s250 = scalar_lea.vmem [#allocation2], 204
        %251 = vst.msk [vmem:[%s250] sm:$0xf] %vm246, 0
        %252 = vst.msk [vmem:[%s250 + $0x4] sm:$0xf] %vm246, 0
        %253 = vst.msk [vmem:[%s250 + $0x8] sm:$0xf] %vm246, 0
        %s254 = scalar_lea.vmem [#allocation2], 12
        %vm255 = vcmask 122880
        %vm256 = vsmask.f32 256
        %vm257 = vmand %vm255, %vm256
        %v258 = vld [vmem:[%s254] sm:$0x1]
        %v259 = vsel %vm257, 0, %v258
        %260 = vst [vmem:[%s254] sm:$0x1] %v259
        %v261 = vld [vmem:[%s254 + $0xc] sm:$0x1]
        %v262 = vsel %vm257, 0, %v261
        %263 = vst [vmem:[%s254 + $0xc] sm:$0x1] %v262
        %v264 = vld [vmem:[%s254 + $0x18] sm:$0x1]
        %v265 = vsel %vm257, 0, %v264
        %266 = vst [vmem:[%s254 + $0x18] sm:$0x1] %v265
        %v267 = vld [vmem:[%s254 + $0x24] sm:$0x1]
        %v268 = vsel %vm257, 0, %v267
        %269 = vst [vmem:[%s254 + $0x24] sm:$0x1] %v268
        %v270 = vld [vmem:[%s254 + $0x30] sm:$0x1]
        %v271 = vsel %vm257, 0, %v270
        %272 = vst [vmem:[%s254 + $0x30] sm:$0x1] %v271
        %v273 = vld [vmem:[%s254 + $0x3c] sm:$0x1]
        %v274 = vsel %vm257, 0, %v273
        %275 = vst [vmem:[%s254 + $0x3c] sm:$0x1] %v274
        %v276 = vld [vmem:[%s254 + $0x48] sm:$0x1]
        %v277 = vsel %vm257, 0, %v276
        %278 = vst [vmem:[%s254 + $0x48] sm:$0x1] %v277
        %v279 = vld [vmem:[%s254 + $0x54] sm:$0x1]
        %v280 = vsel %vm257, 0, %v279
        %281 = vst [vmem:[%s254 + $0x54] sm:$0x1] %v280
        %v282 = vld [vmem:[%s254 + $0x60] sm:$0x1]
        %v283 = vsel %vm257, 0, %v282
        %284 = vst [vmem:[%s254 + $0x60] sm:$0x1] %v283
        %v285 = vld [vmem:[%s254 + $0x6c] sm:$0x1]
        %v286 = vsel %vm257, 0, %v285
        %287 = vst [vmem:[%s254 + $0x6c] sm:$0x1] %v286
        %v288 = vld [vmem:[%s254 + $0x78] sm:$0x1]
        %v289 = vsel %vm257, 0, %v288
        %290 = vst [vmem:[%s254 + $0x78] sm:$0x1] %v289
        %v291 = vld [vmem:[%s254 + $0x84] sm:$0x1]
        %v292 = vsel %vm257, 0, %v291
        %293 = vst [vmem:[%s254 + $0x84] sm:$0x1] %v292
        %v294 = vld [vmem:[%s254 + $0x90] sm:$0x1]
        %v295 = vsel %vm257, 0, %v294
        %296 = vst [vmem:[%s254 + $0x90] sm:$0x1] %v295
        %v297 = vld [vmem:[%s254 + $0x9c] sm:$0x1]
        %v298 = vsel %vm257, 0, %v297
        %299 = vst [vmem:[%s254 + $0x9c] sm:$0x1] %v298
        %v300 = vld [vmem:[%s254 + $0xa8] sm:$0x1]
        %v301 = vsel %vm257, 0, %v300
        %302 = vst [vmem:[%s254 + $0xa8] sm:$0x1] %v301
        %v303 = vld [vmem:[%s254 + $0xb4] sm:$0x1]
        %v304 = vsel %vm257, 0, %v303
        %305 = vst [vmem:[%s254 + $0xb4] sm:$0x1] %v304
        %vm306 = vsmask.f32 7938
        %vm307 = vmand %vm255, %vm306
        %v308 = vld [vmem:[%s254 + $0x8] sm:$0x1]
        %v309 = vsel %vm307, 0, %v308
        %310 = vst [vmem:[%s254 + $0x8] sm:$0x1] %v309
        %v311 = vld [vmem:[%s254 + $0x14] sm:$0x1]
        %v312 = vsel %vm307, 0, %v311
        %313 = vst [vmem:[%s254 + $0x14] sm:$0x1] %v312
        %v314 = vld [vmem:[%s254 + $0x20] sm:$0x1]
        %v315 = vsel %vm307, 0, %v314
        %316 = vst [vmem:[%s254 + $0x20] sm:$0x1] %v315
        %v317 = vld [vmem:[%s254 + $0x2c] sm:$0x1]
        %v318 = vsel %vm307, 0, %v317
        %319 = vst [vmem:[%s254 + $0x2c] sm:$0x1] %v318
        %v320 = vld [vmem:[%s254 + $0x38] sm:$0x1]
        %v321 = vsel %vm307, 0, %v320
        %322 = vst [vmem:[%s254 + $0x38] sm:$0x1] %v321
        %v323 = vld [vmem:[%s254 + $0x44] sm:$0x1]
        %v324 = vsel %vm307, 0, %v323
        %325 = vst [vmem:[%s254 + $0x44] sm:$0x1] %v324
        %v326 = vld [vmem:[%s254 + $0x50] sm:$0x1]
        %v327 = vsel %vm307, 0, %v326
        %328 = vst [vmem:[%s254 + $0x50] sm:$0x1] %v327
        %v329 = vld [vmem:[%s254 + $0x5c] sm:$0x1]
        %v330 = vsel %vm307, 0, %v329
        %331 = vst [vmem:[%s254 + $0x5c] sm:$0x1] %v330
        %v332 = vld [vmem:[%s254 + $0x68] sm:$0x1]
        %v333 = vsel %vm307, 0, %v332
        %334 = vst [vmem:[%s254 + $0x68] sm:$0x1] %v333
        %v335 = vld [vmem:[%s254 + $0x74] sm:$0x1]
        %v336 = vsel %vm307, 0, %v335
        %337 = vst [vmem:[%s254 + $0x74] sm:$0x1] %v336
        %v338 = vld [vmem:[%s254 + $0x80] sm:$0x1]
        %v339 = vsel %vm307, 0, %v338
        %340 = vst [vmem:[%s254 + $0x80] sm:$0x1] %v339
        %v341 = vld [vmem:[%s254 + $0x8c] sm:$0x1]
        %v342 = vsel %vm307, 0, %v341
        %343 = vst [vmem:[%s254 + $0x8c] sm:$0x1] %v342
        %v344 = vld [vmem:[%s254 + $0x98] sm:$0x1]
        %v345 = vsel %vm307, 0, %v344
        %346 = vst [vmem:[%s254 + $0x98] sm:$0x1] %v345
        %v347 = vld [vmem:[%s254 + $0xa4] sm:$0x1]
        %v348 = vsel %vm307, 0, %v347
        %349 = vst [vmem:[%s254 + $0xa4] sm:$0x1] %v348
        %v350 = vld [vmem:[%s254 + $0xb0] sm:$0x1]
        %v351 = vsel %vm307, 0, %v350
        %352 = vst [vmem:[%s254 + $0xb0] sm:$0x1] %v351
        %v353 = vld [vmem:[%s254 + $0xbc] sm:$0x1]
        %v354 = vsel %vm307, 0, %v353
        %355 = vst [vmem:[%s254 + $0xbc] sm:$0x1] %v354
        %v356 = vld [vmem:[%s212] sm:$0xf]
        %v357 = vld [vmem:[%s212 + $0x4] sm:$0xf]
        %v358 = vld [vmem:[%s212 + $0x8] sm:$0xf]
        %v359 = vld [vmem:[%s212 + $0xc] sm:$0xf]
        %v360 = vld [vmem:[%s212 + $0x10] sm:$0xf]
        %v361 = vld [vmem:[%s212 + $0x14] sm:$0xf]
        %v362 = vld [vmem:[%s212 + $0x18] sm:$0xf]
        %v363 = vld [vmem:[%s212 + $0x1c] sm:$0xf]
        %v364 = vld [vmem:[%s212 + $0x20] sm:$0xf]
        %v365 = vld [vmem:[%s212 + $0x24] sm:$0xf]
        %v366 = vld [vmem:[%s212 + $0x28] sm:$0xf]
        %v367 = vld [vmem:[%s212 + $0x2c] sm:$0xf]
        %v368 = vld [vmem:[%s212 + $0x30] sm:$0xf]
        %v369 = vld [vmem:[%s212 + $0x34] sm:$0xf]
        %v370 = vld [vmem:[%s212 + $0x38] sm:$0xf]
        %v371 = vld [vmem:[%s212 + $0x3c] sm:$0xf]
        %v372 = vld [vmem:[%s212 + $0x40] sm:$0xf]
        %v373 = vld [vmem:[%s212 + $0x44] sm:$0xf]
        %v374 = vld [vmem:[%s212 + $0x48] sm:$0xf]
        %v375 = vld [vmem:[%s212 + $0x4c] sm:$0xf]
        %v376 = vld [vmem:[%s212 + $0x50] sm:$0xf]
        %v377 = vld [vmem:[%s212 + $0x54] sm:$0xf]
        %v378 = vld [vmem:[%s212 + $0x58] sm:$0xf]
        %v379 = vld [vmem:[%s212 + $0x5c] sm:$0xf]
        %v380 = vld [vmem:[%s212 + $0x60] sm:$0xf]
        %v381 = vld [vmem:[%s212 + $0x64] sm:$0xf]
        %v382 = vld [vmem:[%s212 + $0x68] sm:$0xf]
        %v383 = vld [vmem:[%s212 + $0x6c] sm:$0xf]
        %v384 = vld [vmem:[%s212 + $0x70] sm:$0xf]
        %v385 = vld [vmem:[%s212 + $0x74] sm:$0xf]
        %v386 = vld [vmem:[%s212 + $0x78] sm:$0xf]
        %v387 = vld [vmem:[%s212 + $0x7c] sm:$0xf]
        %vm388 = vsmask.f32 4368
        %vm389 = vmor %vm256, %vm388
        %v391 = vshrl.u32 %v356, 16
        %v393 = vrot.slane %v391, 7
        %v394 = vshll.u32 %v356, 16
        %v396 = vor.u32 %v393, %v394
        %v397 = vrot.slane %v393, 4
        %v399 = vshrl.u32 %v357, 16
        %v401 = vrot.slane %v399, 7
        %v402 = vshll.u32 %v357, 16
        %v404 = vor.u32 %v401, %v402
        %v405 = vsel %vm389, %v397, %v404
        %v406 = vrot.slane %v401, 4
        %v408 = vshrl.u32 %v358, 16
        %v410 = vrot.slane %v408, 7
        %v411 = vshll.u32 %v358, 16
        %v413 = vor.u32 %v410, %v411
        %v414 = vrot.slane %v410, 4
        %v416 = vshrl.u32 %v359, 16
        %v418 = vrot.slane %v416, 7
        %v419 = vshll.u32 %v359, 16
        %v421 = vor.u32 %v418, %v419
        %v422 = vsel %vm389, %v414, %v421
        %v423 = vrot.slane %v418, 4
        %v425 = vshrl.u32 %v360, 16
        %v427 = vrot.slane %v425, 7
        %v428 = vshll.u32 %v360, 16
        %v430 = vor.u32 %v427, %v428
        %v431 = vrot.slane %v427, 4
        %v433 = vshrl.u32 %v361, 16
        %v435 = vrot.slane %v433, 7
        %v436 = vshll.u32 %v361, 16
        %v438 = vor.u32 %v435, %v436
        %v439 = vsel %vm389, %v431, %v438
        %v440 = vrot.slane %v435, 4
        %v442 = vshrl.u32 %v362, 16
        %v444 = vrot.slane %v442, 7
        %v445 = vshll.u32 %v362, 16
        %v447 = vor.u32 %v444, %v445
        %v448 = vrot.slane %v444, 4
        %v450 = vshrl.u32 %v363, 16
        %v452 = vrot.slane %v450, 7
        %v453 = vshll.u32 %v363, 16
        %v455 = vor.u32 %v452, %v453
        %v456 = vsel %vm389, %v448, %v455
        %v457 = vrot.slane %v452, 4
        %v459 = vshrl.u32 %v364, 16
        %v461 = vrot.slane %v459, 7
        %v462 = vshll.u32 %v364, 16
        %v464 = vor.u32 %v461, %v462
        %v465 = vrot.slane %v461, 4
        %v467 = vshrl.u32 %v365, 16
        %v469 = vrot.slane %v467, 7
        %v470 = vshll.u32 %v365, 16
        %v472 = vor.u32 %v469, %v470
        %v473 = vsel %vm389, %v465, %v472
        %v474 = vrot.slane %v469, 4
        %v476 = vshrl.u32 %v366, 16
        %v478 = vrot.slane %v476, 7
        %v479 = vshll.u32 %v366, 16
        %v481 = vor.u32 %v478, %v479
        %v482 = vrot.slane %v478, 4
        %v484 = vshrl.u32 %v367, 16
        %v486 = vrot.slane %v484, 7
        %v487 = vshll.u32 %v367, 16
        %v489 = vor.u32 %v486, %v487
        %v490 = vsel %vm389, %v482, %v489
        %v491 = vrot.slane %v486, 4
        %v493 = vshrl.u32 %v368, 16
        %v495 = vrot.slane %v493, 7
        %v496 = vshll.u32 %v368, 16
        %v498 = vor.u32 %v495, %v496
        %v499 = vrot.slane %v495, 4
        %v501 = vshrl.u32 %v369, 16
        %v503 = vrot.slane %v501, 7
        %v504 = vshll.u32 %v369, 16
        %v506 = vor.u32 %v503, %v504
        %v507 = vsel %vm389, %v499, %v506
        %v508 = vrot.slane %v503, 4
        %v510 = vshrl.u32 %v370, 16
        %v512 = vrot.slane %v510, 7
        %v513 = vshll.u32 %v370, 16
        %v515 = vor.u32 %v512, %v513
        %v516 = vrot.slane %v512, 4
        %v518 = vshrl.u32 %v371, 16
        %v520 = vrot.slane %v518, 7
        %v521 = vshll.u32 %v371, 16
        %v523 = vor.u32 %v520, %v521
        %v524 = vsel %vm389, %v516, %v523
        %v525 = vrot.slane %v520, 4
        %v527 = vshrl.u32 %v372, 16
        %v529 = vrot.slane %v527, 7
        %v530 = vshll.u32 %v372, 16
        %v532 = vor.u32 %v529, %v530
        %v533 = vrot.slane %v529, 4
        %v535 = vshrl.u32 %v373, 16
        %v537 = vrot.slane %v535, 7
        %v538 = vshll.u32 %v373, 16
        %v540 = vor.u32 %v537, %v538
        %v541 = vsel %vm389, %v533, %v540
        %v542 = vrot.slane %v537, 4
        %v544 = vshrl.u32 %v374, 16
        %v546 = vrot.slane %v544, 7
        %v547 = vshll.u32 %v374, 16
        %v549 = vor.u32 %v546, %v547
        %v550 = vrot.slane %v546, 4
        %v552 = vshrl.u32 %v375, 16
        %v554 = vrot.slane %v552, 7
        %v555 = vshll.u32 %v375, 16
        %v557 = vor.u32 %v554, %v555
        %v558 = vsel %vm389, %v550, %v557
        %v559 = vrot.slane %v554, 4
        %v561 = vshrl.u32 %v376, 16
        %v563 = vrot.slane %v561, 7
        %v564 = vshll.u32 %v376, 16
        %v566 = vor.u32 %v563, %v564
        %v567 = vrot.slane %v563, 4
        %v569 = vshrl.u32 %v377, 16
        %v571 = vrot.slane %v569, 7
        %v572 = vshll.u32 %v377, 16
        %v574 = vor.u32 %v571, %v572
        %v575 = vsel %vm389, %v567, %v574
        %v576 = vrot.slane %v571, 4
        %v578 = vshrl.u32 %v378, 16
        %v580 = vrot.slane %v578, 7
        %v581 = vshll.u32 %v378, 16
        %v583 = vor.u32 %v580, %v581
        %v584 = vrot.slane %v580, 4
        %v586 = vshrl.u32 %v379, 16
        %v588 = vrot.slane %v586, 7
        %v589 = vshll.u32 %v379, 16
        %v591 = vor.u32 %v588, %v589
        %v592 = vsel %vm389, %v584, %v591
        %v593 = vrot.slane %v588, 4
        %v595 = vshrl.u32 %v380, 16
        %v597 = vrot.slane %v595, 7
        %v598 = vshll.u32 %v380, 16
        %v600 = vor.u32 %v597, %v598
        %v601 = vrot.slane %v597, 4
        %v603 = vshrl.u32 %v381, 16
        %v605 = vrot.slane %v603, 7
        %v606 = vshll.u32 %v381, 16
        %v608 = vor.u32 %v605, %v606
        %v609 = vsel %vm389, %v601, %v608
        %v610 = vrot.slane %v605, 4
        %v612 = vshrl.u32 %v382, 16
        %v614 = vrot.slane %v612, 7
        %v615 = vshll.u32 %v382, 16
        %v617 = vor.u32 %v614, %v615
        %v618 = vrot.slane %v614, 4
        %v620 = vshrl.u32 %v383, 16
        %v622 = vrot.slane %v620, 7
        %v623 = vshll.u32 %v383, 16
        %v625 = vor.u32 %v622, %v623
        %v626 = vsel %vm389, %v618, %v625
        %v627 = vrot.slane %v622, 4
        %v629 = vshrl.u32 %v384, 16
        %v631 = vrot.slane %v629, 7
        %v632 = vshll.u32 %v384, 16
        %v634 = vor.u32 %v631, %v632
        %v635 = vrot.slane %v631, 4
        %v637 = vshrl.u32 %v385, 16
        %v639 = vrot.slane %v637, 7
        %v640 = vshll.u32 %v385, 16
        %v642 = vor.u32 %v639, %v640
        %v643 = vsel %vm389, %v635, %v642
        %v644 = vrot.slane %v639, 4
        %v646 = vshrl.u32 %v386, 16
        %v648 = vrot.slane %v646, 7
        %v649 = vshll.u32 %v386, 16
        %v651 = vor.u32 %v648, %v649
        %v652 = vrot.slane %v648, 4
        %v654 = vshrl.u32 %v387, 16
        %v656 = vrot.slane %v654, 7
        %v657 = vshll.u32 %v387, 16
        %v659 = vor.u32 %v656, %v657
        %v660 = vsel %vm389, %v652, %v659
        %v661 = vrot.slane %v656, 4
        %vm710 = vcmask 125952
        %vm711 = vmand %vm710, %vm306
        %v712 = vld [vmem:[%s254] sm:$0xf]
        %v713 = vsel %vm711, %v396, %v712
        %714 = vst [vmem:[%s254] sm:$0xf] %v713
        %715 = vst.msk [vmem:[%s254 + $0x4] sm:$0xf] %vm246, %v405
        %v716 = vld [vmem:[%s254 + $0x8] sm:$0x1]
        %v717 = vsel %vm257, %v406, %v716
        %718 = vst [vmem:[%s254 + $0x8] sm:$0x1] %v717
        %v719 = vld [vmem:[%s254 + $0xc] sm:$0xf]
        %v720 = vsel %vm711, %v413, %v719
        %721 = vst [vmem:[%s254 + $0xc] sm:$0xf] %v720
        %722 = vst.msk [vmem:[%s254 + $0x10] sm:$0xf] %vm246, %v422
        %v723 = vld [vmem:[%s254 + $0x14] sm:$0x1]
        %v724 = vsel %vm257, %v423, %v723
        %725 = vst [vmem:[%s254 + $0x14] sm:$0x1] %v724
        %v726 = vld [vmem:[%s254 + $0x18] sm:$0xf]
        %v727 = vsel %vm711, %v430, %v726
        %728 = vst [vmem:[%s254 + $0x18] sm:$0xf] %v727
        %729 = vst.msk [vmem:[%s254 + $0x1c] sm:$0xf] %vm246, %v439
        %v730 = vld [vmem:[%s254 + $0x20] sm:$0x1]
        %v731 = vsel %vm257, %v440, %v730
        %732 = vst [vmem:[%s254 + $0x20] sm:$0x1] %v731
        %v733 = vld [vmem:[%s254 + $0x24] sm:$0xf]
        %v734 = vsel %vm711, %v447, %v733
        %735 = vst [vmem:[%s254 + $0x24] sm:$0xf] %v734
        %736 = vst.msk [vmem:[%s254 + $0x28] sm:$0xf] %vm246, %v456
        %v737 = vld [vmem:[%s254 + $0x2c] sm:$0x1]
        %v738 = vsel %vm257, %v457, %v737
        %739 = vst [vmem:[%s254 + $0x2c] sm:$0x1] %v738
        %v740 = vld [vmem:[%s254 + $0x30] sm:$0xf]
        %v741 = vsel %vm711, %v464, %v740
        %742 = vst [vmem:[%s254 + $0x30] sm:$0xf] %v741
        %743 = vst.msk [vmem:[%s254 + $0x34] sm:$0xf] %vm246, %v473
        %v744 = vld [vmem:[%s254 + $0x38] sm:$0x1]
        %v745 = vsel %vm257, %v474, %v744
        %746 = vst [vmem:[%s254 + $0x38] sm:$0x1] %v745
        %v747 = vld [vmem:[%s254 + $0x3c] sm:$0xf]
        %v748 = vsel %vm711, %v481, %v747
        %749 = vst [vmem:[%s254 + $0x3c] sm:$0xf] %v748
        %750 = vst.msk [vmem:[%s254 + $0x40] sm:$0xf] %vm246, %v490
        %v751 = vld [vmem:[%s254 + $0x44] sm:$0x1]
        %v752 = vsel %vm257, %v491, %v751
        %753 = vst [vmem:[%s254 + $0x44] sm:$0x1] %v752
        %v754 = vld [vmem:[%s254 + $0x48] sm:$0xf]
        %v755 = vsel %vm711, %v498, %v754
        %756 = vst [vmem:[%s254 + $0x48] sm:$0xf] %v755
        %757 = vst.msk [vmem:[%s254 + $0x4c] sm:$0xf] %vm246, %v507
        %v758 = vld [vmem:[%s254 + $0x50] sm:$0x1]
        %v759 = vsel %vm257, %v508, %v758
        %760 = vst [vmem:[%s254 + $0x50] sm:$0x1] %v759
        %v761 = vld [vmem:[%s254 + $0x54] sm:$0xf]
        %v762 = vsel %vm711, %v515, %v761
        %763 = vst [vmem:[%s254 + $0x54] sm:$0xf] %v762
        %764 = vst.msk [vmem:[%s254 + $0x58] sm:$0xf] %vm246, %v524
        %v765 = vld [vmem:[%s254 + $0x5c] sm:$0x1]
        %v766 = vsel %vm257, %v525, %v765
        %767 = vst [vmem:[%s254 + $0x5c] sm:$0x1] %v766
        %v768 = vld [vmem:[%s254 + $0x60] sm:$0xf]
        %v769 = vsel %vm711, %v532, %v768
        %770 = vst [vmem:[%s254 + $0x60] sm:$0xf] %v769
        %771 = vst.msk [vmem:[%s254 + $0x64] sm:$0xf] %vm246, %v541
        %v772 = vld [vmem:[%s254 + $0x68] sm:$0x1]
        %v773 = vsel %vm257, %v542, %v772
        %774 = vst [vmem:[%s254 + $0x68] sm:$0x1] %v773
        %v775 = vld [vmem:[%s254 + $0x6c] sm:$0xf]
        %v776 = vsel %vm711, %v549, %v775
        %777 = vst [vmem:[%s254 + $0x6c] sm:$0xf] %v776
        %778 = vst.msk [vmem:[%s254 + $0x70] sm:$0xf] %vm246, %v558
        %v779 = vld [vmem:[%s254 + $0x74] sm:$0x1]
        %v780 = vsel %vm257, %v559, %v779
        %781 = vst [vmem:[%s254 + $0x74] sm:$0x1] %v780
        %v782 = vld [vmem:[%s254 + $0x78] sm:$0xf]
        %v783 = vsel %vm711, %v566, %v782
        %784 = vst [vmem:[%s254 + $0x78] sm:$0xf] %v783
        %785 = vst.msk [vmem:[%s254 + $0x7c] sm:$0xf] %vm246, %v575
        %v786 = vld [vmem:[%s254 + $0x80] sm:$0x1]
        %v787 = vsel %vm257, %v576, %v786
        %788 = vst [vmem:[%s254 + $0x80] sm:$0x1] %v787
        %v789 = vld [vmem:[%s254 + $0x84] sm:$0xf]
        %v790 = vsel %vm711, %v583, %v789
        %791 = vst [vmem:[%s254 + $0x84] sm:$0xf] %v790
        %792 = vst.msk [vmem:[%s254 + $0x88] sm:$0xf] %vm246, %v592
        %v793 = vld [vmem:[%s254 + $0x8c] sm:$0x1]
        %v794 = vsel %vm257, %v593, %v793
        %795 = vst [vmem:[%s254 + $0x8c] sm:$0x1] %v794
        %v796 = vld [vmem:[%s254 + $0x90] sm:$0xf]
        %v797 = vsel %vm711, %v600, %v796
        %798 = vst [vmem:[%s254 + $0x90] sm:$0xf] %v797
        %799 = vst.msk [vmem:[%s254 + $0x94] sm:$0xf] %vm246, %v609
        %v800 = vld [vmem:[%s254 + $0x98] sm:$0x1]
        %v801 = vsel %vm257, %v610, %v800
        %802 = vst [vmem:[%s254 + $0x98] sm:$0x1] %v801
        %v803 = vld [vmem:[%s254 + $0x9c] sm:$0xf]
        %v804 = vsel %vm711, %v617, %v803
        %805 = vst [vmem:[%s254 + $0x9c] sm:$0xf] %v804
        %806 = vst.msk [vmem:[%s254 + $0xa0] sm:$0xf] %vm246, %v626
        %v807 = vld [vmem:[%s254 + $0xa4] sm:$0x1]
        %v808 = vsel %vm257, %v627, %v807
        %809 = vst [vmem:[%s254 + $0xa4] sm:$0x1] %v808
        %v810 = vld [vmem:[%s254 + $0xa8] sm:$0xf]
        %v811 = vsel %vm711, %v634, %v810
        %812 = vst [vmem:[%s254 + $0xa8] sm:$0xf] %v811
        %813 = vst.msk [vmem:[%s254 + $0xac] sm:$0xf] %vm246, %v643
        %v814 = vld [vmem:[%s254 + $0xb0] sm:$0x1]
        %v815 = vsel %vm257, %v644, %v814
        %816 = vst [vmem:[%s254 + $0xb0] sm:$0x1] %v815
        %v817 = vld [vmem:[%s254 + $0xb4] sm:$0xf]
        %v818 = vsel %vm711, %v651, %v817
        %819 = vst [vmem:[%s254 + $0xb4] sm:$0xf] %v818
        %820 = vst.msk [vmem:[%s254 + $0xb8] sm:$0xf] %vm246, %v660
        %v821 = vld [vmem:[%s254 + $0xbc] sm:$0x1]
        %v822 = vsel %vm257, %v661, %v821
        %823 = vst [vmem:[%s254 + $0xbc] sm:$0x1] %v822
        %v824 = vld [vmem:[#allocation2] sm:$0xf]
        %v825 = vld [vmem:[#allocation2 + $0x4] sm:$0xf]
        %v826 = vld [vmem:[#allocation2 + $0xc] sm:$0xf]
        %v827 = vld [vmem:[#allocation2 + $0x10] sm:$0xf]
        %v828 = vld [vmem:[#allocation2 + $0x18] sm:$0xf]
        %v829 = vld [vmem:[#allocation2 + $0x1c] sm:$0xf]
        %v830 = vld [vmem:[#allocation2 + $0x24] sm:$0xf]
        %v831 = vld [vmem:[#allocation2 + $0x28] sm:$0xf]
        %v832 = vld [vmem:[#allocation2 + $0x30] sm:$0xf]
        %v833 = vld [vmem:[#allocation2 + $0x34] sm:$0xf]
        %v834 = vld [vmem:[#allocation2 + $0x3c] sm:$0xf]
        %v835 = vld [vmem:[#allocation2 + $0x40] sm:$0xf]
        %v836 = vld [vmem:[#allocation2 + $0x48] sm:$0xf]
        %v837 = vld [vmem:[#allocation2 + $0x4c] sm:$0xf]
        %v838 = vld [vmem:[#allocation2 + $0x54] sm:$0xf]
        %v839 = vld [vmem:[#allocation2 + $0x58] sm:$0xf]
        %v840 = vld [vmem:[#allocation2 + $0x60] sm:$0xf]
        %v841 = vld [vmem:[#allocation2 + $0x64] sm:$0xf]
        %v842 = vld [vmem:[#allocation2 + $0x6c] sm:$0xf]
        %v843 = vld [vmem:[#allocation2 + $0x70] sm:$0xf]
        %v844 = vld [vmem:[#allocation2 + $0x78] sm:$0xf]
        %v845 = vld [vmem:[#allocation2 + $0x7c] sm:$0xf]
        %v846 = vld [vmem:[#allocation2 + $0x84] sm:$0xf]
        %v847 = vld [vmem:[#allocation2 + $0x88] sm:$0xf]
        %v848 = vld [vmem:[#allocation2 + $0x90] sm:$0xf]
        %v849 = vld [vmem:[#allocation2 + $0x94] sm:$0xf]
        %v850 = vld [vmem:[#allocation2 + $0x9c] sm:$0xf]
        %v851 = vld [vmem:[#allocation2 + $0xa0] sm:$0xf]
        %v852 = vld [vmem:[#allocation2 + $0xa8] sm:$0xf]
        %v853 = vld [vmem:[#allocation2 + $0xac] sm:$0xf]
        %v854 = vld [vmem:[#allocation2 + $0xb4] sm:$0xf]
        %v855 = vld [vmem:[#allocation2 + $0xb8] sm:$0xf]
        %v856 = vld [vmem:[#allocation6] sm:$0xf]
        %v857 = vld [vmem:[#allocation6 + $0x4] sm:$0xf]
        %v858 = vld [vmem:[#allocation2 + $0x8] sm:$0x1]
        %v859 = vld [vmem:[#allocation2 + $0x14] sm:$0x1]
        %v860 = vld [vmem:[#allocation2 + $0x20] sm:$0x1]
        %v861 = vld [vmem:[#allocation2 + $0x2c] sm:$0x1]
        %v862 = vld [vmem:[#allocation2 + $0x38] sm:$0x1]
        %v863 = vld [vmem:[#allocation2 + $0x44] sm:$0x1]
        %v864 = vld [vmem:[#allocation2 + $0x50] sm:$0x1]
        %v865 = vld [vmem:[#allocation2 + $0x5c] sm:$0x1]
        %v866 = vld [vmem:[#allocation2 + $0x68] sm:$0x1]
        %v867 = vld [vmem:[#allocation2 + $0x74] sm:$0x1]
        %v868 = vld [vmem:[#allocation2 + $0x80] sm:$0x1]
        %v869 = vld [vmem:[#allocation2 + $0x8c] sm:$0x1]
        %v870 = vld [vmem:[#allocation2 + $0x98] sm:$0x1]
        %v871 = vld [vmem:[#allocation2 + $0xa4] sm:$0x1]
        %v872 = vld [vmem:[#allocation2 + $0xb0] sm:$0x1]
        %v873 = vld [vmem:[#allocation2 + $0xbc] sm:$0x1]
        %vm874 = vsmask.f32 3328
        %vm875 = vsmask.f32 7440
        %vm876 = vmor %vm874, %vm875
        %v878 = vshrl.u32 %v824, 16
        %v880 = vrot.slane %v878, 4
        %v881 = vshll.u32 %v824, 16
        %v883 = vrot.slane %v881, 5
        %v884 = vor.u32 %v880, %v883
        %v885 = vrot.slane %v884, 4
        %v887 = vshll.u32 %v825, 16
        %v889 = vrot.slane %v887, 5
        %v890 = vsel %vm876, %v885, %v889
        %v891 = vshrl.u32 %v825, 16
        %v893 = vrot.slane %v891, 4
        %v894 = vor.u32 %v893, %v889
        %v895 = vrot.slane %v894, 4
        %v897 = vshll.u32 %v858, 16
        %v899 = vrot.slane %v897, 5
        %v900 = vsel %vm876, %v895, %v899
        %v902 = vshrl.u32 %v826, 16
        %v904 = vrot.slane %v902, 4
        %v905 = vshll.u32 %v826, 16
        %v907 = vrot.slane %v905, 5
        %v908 = vor.u32 %v904, %v907
        %v909 = vrot.slane %v908, 4
        %v911 = vshll.u32 %v827, 16
        %v913 = vrot.slane %v911, 5
        %v914 = vsel %vm876, %v909, %v913
        %v915 = vshrl.u32 %v827, 16
        %v917 = vrot.slane %v915, 4
        %v918 = vor.u32 %v917, %v913
        %v919 = vrot.slane %v918, 4
        %v921 = vshll.u32 %v859, 16
        %v923 = vrot.slane %v921, 5
        %v924 = vsel %vm876, %v919, %v923
        %v926 = vshrl.u32 %v828, 16
        %v928 = vrot.slane %v926, 4
        %v929 = vshll.u32 %v828, 16
        %v931 = vrot.slane %v929, 5
        %v932 = vor.u32 %v928, %v931
        %v933 = vrot.slane %v932, 4
        %v935 = vshll.u32 %v829, 16
        %v937 = vrot.slane %v935, 5
        %v938 = vsel %vm876, %v933, %v937
        %v939 = vshrl.u32 %v829, 16
        %v941 = vrot.slane %v939, 4
        %v942 = vor.u32 %v941, %v937
        %v943 = vrot.slane %v942, 4
        %v945 = vshll.u32 %v860, 16
        %v947 = vrot.slane %v945, 5
        %v948 = vsel %vm876, %v943, %v947
        %v950 = vshrl.u32 %v830, 16
        %v952 = vrot.slane %v950, 4
        %v953 = vshll.u32 %v830, 16
        %v955 = vrot.slane %v953, 5
        %v956 = vor.u32 %v952, %v955
        %v957 = vrot.slane %v956, 4
        %v959 = vshll.u32 %v831, 16
        %v961 = vrot.slane %v959, 5
        %v962 = vsel %vm876, %v957, %v961
        %v963 = vshrl.u32 %v831, 16
        %v965 = vrot.slane %v963, 4
        %v966 = vor.u32 %v965, %v961
        %v967 = vrot.slane %v966, 4
        %v969 = vshll.u32 %v861, 16
        %v971 = vrot.slane %v969, 5
        %v972 = vsel %vm876, %v967, %v971
        %v974 = vshrl.u32 %v832, 16
        %v976 = vrot.slane %v974, 4
        %v977 = vshll.u32 %v832, 16
        %v979 = vrot.slane %v977, 5
        %v980 = vor.u32 %v976, %v979
        %v981 = vrot.slane %v980, 4
        %v983 = vshll.u32 %v833, 16
        %v985 = vrot.slane %v983, 5
        %v986 = vsel %vm876, %v981, %v985
        %v987 = vshrl.u32 %v833, 16
        %v989 = vrot.slane %v987, 4
        %v990 = vor.u32 %v989, %v985
        %v991 = vrot.slane %v990, 4
        %v993 = vshll.u32 %v862, 16
        %v995 = vrot.slane %v993, 5
        %v996 = vsel %vm876, %v991, %v995
        %v998 = vshrl.u32 %v834, 16
        %v1000 = vrot.slane %v998, 4
        %v1001 = vshll.u32 %v834, 16
        %v1003 = vrot.slane %v1001, 5
        %v1004 = vor.u32 %v1000, %v1003
        %v1005 = vrot.slane %v1004, 4
        %v1007 = vshll.u32 %v835, 16
        %v1009 = vrot.slane %v1007, 5
        %v1010 = vsel %vm876, %v1005, %v1009
        %v1011 = vshrl.u32 %v835, 16
        %v1013 = vrot.slane %v1011, 4
        %v1014 = vor.u32 %v1013, %v1009
        %v1015 = vrot.slane %v1014, 4
        %v1017 = vshll.u32 %v863, 16
        %v1019 = vrot.slane %v1017, 5
        %v1020 = vsel %vm876, %v1015, %v1019
        %v1022 = vshrl.u32 %v836, 16
        %v1024 = vrot.slane %v1022, 4
        %v1025 = vshll.u32 %v836, 16
        %v1027 = vrot.slane %v1025, 5
        %v1028 = vor.u32 %v1024, %v1027
        %v1029 = vrot.slane %v1028, 4
        %v1031 = vshll.u32 %v837, 16
        %v1033 = vrot.slane %v1031, 5
        %v1034 = vsel %vm876, %v1029, %v1033
        %v1035 = vshrl.u32 %v837, 16
        %v1037 = vrot.slane %v1035, 4
        %v1038 = vor.u32 %v1037, %v1033
        %v1039 = vrot.slane %v1038, 4
        %v1041 = vshll.u32 %v864, 16
        %v1043 = vrot.slane %v1041, 5
        %v1044 = vsel %vm876, %v1039, %v1043
        %v1046 = vshrl.u32 %v838, 16
        %v1048 = vrot.slane %v1046, 4
        %v1049 = vshll.u32 %v838, 16
        %v1051 = vrot.slane %v1049, 5
        %v1052 = vor.u32 %v1048, %v1051
        %v1053 = vrot.slane %v1052, 4
        %v1055 = vshll.u32 %v839, 16
        %v1057 = vrot.slane %v1055, 5
        %v1058 = vsel %vm876, %v1053, %v1057
        %v1059 = vshrl.u32 %v839, 16
        %v1061 = vrot.slane %v1059, 4
        %v1062 = vor.u32 %v1061, %v1057
        %v1063 = vrot.slane %v1062, 4
        %v1065 = vshll.u32 %v865, 16
        %v1067 = vrot.slane %v1065, 5
        %v1068 = vsel %vm876, %v1063, %v1067
        %v1070 = vshrl.u32 %v840, 16
        %v1072 = vrot.slane %v1070, 4
        %v1073 = vshll.u32 %v840, 16
        %v1075 = vrot.slane %v1073, 5
        %v1076 = vor.u32 %v1072, %v1075
        %v1077 = vrot.slane %v1076, 4
        %v1079 = vshll.u32 %v841, 16
        %v1081 = vrot.slane %v1079, 5
        %v1082 = vsel %vm876, %v1077, %v1081
        %v1083 = vshrl.u32 %v841, 16
        %v1085 = vrot.slane %v1083, 4
        %v1086 = vor.u32 %v1085, %v1081
        %v1087 = vrot.slane %v1086, 4
        %v1089 = vshll.u32 %v866, 16
        %v1091 = vrot.slane %v1089, 5
        %v1092 = vsel %vm876, %v1087, %v1091
        %v1094 = vshrl.u32 %v842, 16
        %v1096 = vrot.slane %v1094, 4
        %v1097 = vshll.u32 %v842, 16
        %v1099 = vrot.slane %v1097, 5
        %v1100 = vor.u32 %v1096, %v1099
        %v1101 = vrot.slane %v1100, 4
        %v1103 = vshll.u32 %v843, 16
        %v1105 = vrot.slane %v1103, 5
        %v1106 = vsel %vm876, %v1101, %v1105
        %v1107 = vshrl.u32 %v843, 16
        %v1109 = vrot.slane %v1107, 4
        %v1110 = vor.u32 %v1109, %v1105
        %v1111 = vrot.slane %v1110, 4
        %v1113 = vshll.u32 %v867, 16
        %v1115 = vrot.slane %v1113, 5
        %v1116 = vsel %vm876, %v1111, %v1115
        %v1118 = vshrl.u32 %v844, 16
        %v1120 = vrot.slane %v1118, 4
        %v1121 = vshll.u32 %v844, 16
        %v1123 = vrot.slane %v1121, 5
        %v1124 = vor.u32 %v1120, %v1123
        %v1125 = vrot.slane %v1124, 4
        %v1127 = vshll.u32 %v845, 16
        %v1129 = vrot.slane %v1127, 5
        %v1130 = vsel %vm876, %v1125, %v1129
        %v1131 = vshrl.u32 %v845, 16
        %v1133 = vrot.slane %v1131, 4
        %v1134 = vor.u32 %v1133, %v1129
        %v1135 = vrot.slane %v1134, 4
        %v1137 = vshll.u32 %v868, 16
        %v1139 = vrot.slane %v1137, 5
        %v1140 = vsel %vm876, %v1135, %v1139
        %v1142 = vshrl.u32 %v846, 16
        %v1144 = vrot.slane %v1142, 4
        %v1145 = vshll.u32 %v846, 16
        %v1147 = vrot.slane %v1145, 5
        %v1148 = vor.u32 %v1144, %v1147
        %v1149 = vrot.slane %v1148, 4
        %v1151 = vshll.u32 %v847, 16
        %v1153 = vrot.slane %v1151, 5
        %v1154 = vsel %vm876, %v1149, %v1153
        %v1155 = vshrl.u32 %v847, 16
        %v1157 = vrot.slane %v1155, 4
        %v1158 = vor.u32 %v1157, %v1153
        %v1159 = vrot.slane %v1158, 4
        %v1161 = vshll.u32 %v869, 16
        %v1163 = vrot.slane %v1161, 5
        %v1164 = vsel %vm876, %v1159, %v1163
        %v1166 = vshrl.u32 %v848, 16
        %v1168 = vrot.slane %v1166, 4
        %v1169 = vshll.u32 %v848, 16
        %v1171 = vrot.slane %v1169, 5
        %v1172 = vor.u32 %v1168, %v1171
        %v1173 = vrot.slane %v1172, 4
        %v1175 = vshll.u32 %v849, 16
        %v1177 = vrot.slane %v1175, 5
        %v1178 = vsel %vm876, %v1173, %v1177
        %v1179 = vshrl.u32 %v849, 16
        %v1181 = vrot.slane %v1179, 4
        %v1182 = vor.u32 %v1181, %v1177
        %v1183 = vrot.slane %v1182, 4
        %v1185 = vshll.u32 %v870, 16
        %v1187 = vrot.slane %v1185, 5
        %v1188 = vsel %vm876, %v1183, %v1187
        %v1190 = vshrl.u32 %v850, 16
        %v1192 = vrot.slane %v1190, 4
        %v1193 = vshll.u32 %v850, 16
        %v1195 = vrot.slane %v1193, 5
        %v1196 = vor.u32 %v1192, %v1195
        %v1197 = vrot.slane %v1196, 4
        %v1199 = vshll.u32 %v851, 16
        %v1201 = vrot.slane %v1199, 5
        %v1202 = vsel %vm876, %v1197, %v1201
        %v1203 = vshrl.u32 %v851, 16
        %v1205 = vrot.slane %v1203, 4
        %v1206 = vor.u32 %v1205, %v1201
        %v1207 = vrot.slane %v1206, 4
        %v1209 = vshll.u32 %v871, 16
        %v1211 = vrot.slane %v1209, 5
        %v1212 = vsel %vm876, %v1207, %v1211
        %v1214 = vshrl.u32 %v852, 16
        %v1216 = vrot.slane %v1214, 4
        %v1217 = vshll.u32 %v852, 16
        %v1219 = vrot.slane %v1217, 5
        %v1220 = vor.u32 %v1216, %v1219
        %v1221 = vrot.slane %v1220, 4
        %v1223 = vshll.u32 %v853, 16
        %v1225 = vrot.slane %v1223, 5
        %v1226 = vsel %vm876, %v1221, %v1225
        %v1227 = vshrl.u32 %v853, 16
        %v1229 = vrot.slane %v1227, 4
        %v1230 = vor.u32 %v1229, %v1225
        %v1231 = vrot.slane %v1230, 4
        %v1233 = vshll.u32 %v872, 16
        %v1235 = vrot.slane %v1233, 5
        %v1236 = vsel %vm876, %v1231, %v1235
        %v1238 = vshrl.u32 %v854, 16
        %v1240 = vrot.slane %v1238, 4
        %v1241 = vshll.u32 %v854, 16
        %v1243 = vrot.slane %v1241, 5
        %v1244 = vor.u32 %v1240, %v1243
        %v1245 = vrot.slane %v1244, 4
        %v1247 = vshll.u32 %v855, 16
        %v1249 = vrot.slane %v1247, 5
        %v1250 = vsel %vm876, %v1245, %v1249
        %v1251 = vshrl.u32 %v855, 16
        %v1253 = vrot.slane %v1251, 4
        %v1254 = vor.u32 %v1253, %v1249
        %v1255 = vrot.slane %v1254, 4
        %v1257 = vshll.u32 %v873, 16
        %v1259 = vrot.slane %v1257, 5
        %v1260 = vsel %vm876, %v1255, %v1259
        %s1261 = scalar_lea.vmem [#allocation6], 8
        %v1262 = vld [vmem:[%s1261] sm:$0xf]
        %v1263 = vld [vmem:[%s1261 + $0x4] sm:$0xf]
        %v1264 = vunpack.c.l.b16 %v890
        %v1265 = vunpack.c.l.b16 %v900
        %v1266 = vunpack.c.l.b16 %v914
        %v1267 = vunpack.c.l.b16 %v924
        %v1268 = vunpack.c.l.b16 %v938
        %v1269 = vunpack.c.l.b16 %v948
        %v1270 = vunpack.c.l.b16 %v962
        %v1271 = vunpack.c.l.b16 %v972
        %v1272 = vunpack.c.l.b16 %v986
        %v1273 = vunpack.c.l.b16 %v996
        %v1274 = vunpack.c.l.b16 %v1010
        %v1275 = vunpack.c.l.b16 %v1020
        %v1276 = vunpack.c.l.b16 %v1034
        %v1277 = vunpack.c.l.b16 %v1044
        %v1278 = vunpack.c.l.b16 %v1058
        %v1279 = vunpack.c.l.b16 %v1068
        %v1280 = vunpack.c.l.b16 %v1082
        %v1281 = vunpack.c.l.b16 %v1092
        %v1282 = vunpack.c.l.b16 %v1106
        %v1283 = vunpack.c.l.b16 %v1116
        %v1284 = vunpack.c.l.b16 %v1130
        %v1285 = vunpack.c.l.b16 %v1140
        %v1286 = vunpack.c.l.b16 %v1154
        %v1287 = vunpack.c.l.b16 %v1164
        %v1288 = vunpack.c.l.b16 %v1178
        %v1289 = vunpack.c.l.b16 %v1188
        %v1290 = vunpack.c.l.b16 %v1202
        %v1291 = vunpack.c.l.b16 %v1212
        %v1292 = vunpack.c.l.b16 %v1226
        %v1293 = vunpack.c.l.b16 %v1236
        %v1294 = vunpack.c.l.b16 %v1250
        %v1295 = vunpack.c.l.b16 %v1260
        %v1296 = vpack.c.b16 %v1265, %v1264
        %v1297 = vpack.c.b16 %v1267, %v1266
        %v1298 = vpack.c.b16 %v1269, %v1268
        %v1299 = vpack.c.b16 %v1271, %v1270
        %v1300 = vpack.c.b16 %v1273, %v1272
        %v1301 = vpack.c.b16 %v1275, %v1274
        %v1302 = vpack.c.b16 %v1277, %v1276
        %v1303 = vpack.c.b16 %v1279, %v1278
        %v1304 = vpack.c.b16 %v1281, %v1280
        %v1305 = vpack.c.b16 %v1283, %v1282
        %v1306 = vpack.c.b16 %v1285, %v1284
        %v1307 = vpack.c.b16 %v1287, %v1286
        %v1308 = vpack.c.b16 %v1289, %v1288
        %v1309 = vpack.c.b16 %v1291, %v1290
        %v1310 = vpack.c.b16 %v1293, %v1292
        %v1311 = vpack.c.b16 %v1295, %v1294
        %v1314 = vunpack.c.l.b16 %v1262
        %v1315 = vunpack.c.l.b16 %v1263
        %v1316 = vpack.c.b16 %v1315, %v1314
        %vm1318 = vcmask 130048
        %v1320 = vsel %vm1318, %v1296, 0
        %v1323 = vsel %vm1318, %v1297, 0
        %v1326 = vsel %vm1318, %v1298, 0
        %v1329 = vsel %vm1318, %v1299, 0
        %v1332 = vsel %vm1318, %v1300, 0
        %v1335 = vsel %vm1318, %v1301, 0
        %v1338 = vsel %vm1318, %v1302, 0
        %v1341 = vsel %vm1318, %v1303, 0
        %v1344 = vsel %vm1318, %v1304, 0
        %v1347 = vsel %vm1318, %v1305, 0
        %v1350 = vsel %vm1318, %v1306, 0
        %v1353 = vsel %vm1318, %v1307, 0
        %v1356 = vsel %vm1318, %v1308, 0
        %v1359 = vsel %vm1318, %v1309, 0
        %v1362 = vsel %vm1318, %v1310, 0
        %v1365 = vsel %vm1318, %v1311, 0
        %1367 = vmatprep.subr.bf16.mxu0 0
        %1368 = vmatpush1.bf16.msra.mxu0 0
        %1369 = vmatprep.subr.bf16.mxu0 0
        %1370 = vmatpush1.bf16.msra.mxu0 0
        %1371 = vmatprep.subr.bf16.mxu0 0
        %1372 = vmatpush1.bf16.msra.mxu0 0
        %1373 = vmatprep.subr.bf16.mxu0 0
        %1374 = vmatpush1.bf16.msra.mxu0 0
        %1375 = vmatprep.subr.bf16.mxu0 0
        %1376 = vmatpush1.bf16.msra.mxu0 0
        %1377 = vmatprep.subr.bf16.mxu0 0
        %1378 = vmatpush1.bf16.msra.mxu0 0
        %1379 = vmatprep.subr.bf16.mxu0 0
        %1380 = vmatpush1.bf16.msra.mxu0 0
        %1381 = vmatprep.subr.bf16.mxu0 0
        %1382 = vmatpush1.bf16.msra.mxu0 %v1316
        %1383 = vmatprep.subr.bf16.mxu0 0
        %1384 = vmatpush2.bf16.msra.mxu0 0
        %1385 = vmatprep.subr.bf16.mxu0 0
        %1386 = vmatpush2.bf16.msra.mxu0 0
        %1387 = vmatprep.subr.bf16.mxu0 0
        %1388 = vmatpush2.bf16.msra.mxu0 0
        %1389 = vmatprep.subr.bf16.mxu0 0
        %1390 = vmatpush2.bf16.msra.mxu0 0
        %1391 = vmatprep.subr.bf16.mxu0 0
        %1392 = vmatpush2.bf16.msra.mxu0 0
        %1393 = vmatprep.subr.bf16.mxu0 0
        %1394 = vmatpush2.bf16.msra.mxu0 0
        %1395 = vmatprep.subr.bf16.mxu0 0
        %1396 = vmatpush2.bf16.msra.mxu0 0
        %1397 = vmatprep.subr.bf16.mxu0 0
        %1398 = vmatpush2.bf16.msra.mxu0 0
        %1399 = vmatprep.mubr.bf16.mxu0 0
        %1400 = vmatmul.mubr.bf16.gmra.mxu0 %v1320
        %v1401 = vpop.f32.mrf.mxu0
        %v1402 = vadd.f32 0.0, %v1401
        %v1403 = vpop.f32.mrf.mxu0
        %v1404 = vpop.f32.mrf.mxu0
        %v1405 = vadd.f32 0.0, %v1404
        %v1406 = vpop.f32.mrf.mxu0
        %1407 = vmatprep.mubr.bf16.mxu0 0
        %1408 = vmatmul.mubr.bf16.gmra.mxu0 %v1323
        %v1409 = vpop.f32.mrf.mxu0
        %v1410 = vadd.f32 0.0, %v1409
        %v1411 = vpop.f32.mrf.mxu0
        %v1412 = vpop.f32.mrf.mxu0
        %v1413 = vadd.f32 0.0, %v1412
        %v1414 = vpop.f32.mrf.mxu0
        %1415 = vmatprep.mubr.bf16.mxu0 0
        %1416 = vmatmul.mubr.bf16.gmra.mxu0 %v1326
        %v1417 = vpop.f32.mrf.mxu0
        %v1418 = vadd.f32 0.0, %v1417
        %v1419 = vpop.f32.mrf.mxu0
        %v1420 = vpop.f32.mrf.mxu0
        %v1421 = vadd.f32 0.0, %v1420
        %v1422 = vpop.f32.mrf.mxu0
        %1423 = vmatprep.mubr.bf16.mxu0 0
        %1424 = vmatmul.mubr.bf16.gmra.mxu0 %v1329
        %v1425 = vpop.f32.mrf.mxu0
        %v1426 = vadd.f32 0.0, %v1425
        %v1427 = vpop.f32.mrf.mxu0
        %v1428 = vpop.f32.mrf.mxu0
        %v1429 = vadd.f32 0.0, %v1428
        %v1430 = vpop.f32.mrf.mxu0
        %1431 = vmatprep.mubr.bf16.mxu0 0
        %1432 = vmatmul.mubr.bf16.gmra.mxu0 %v1332
        %v1433 = vpop.f32.mrf.mxu0
        %v1434 = vadd.f32 0.0, %v1433
        %v1435 = vpop.f32.mrf.mxu0
        %v1436 = vpop.f32.mrf.mxu0
        %v1437 = vadd.f32 0.0, %v1436
        %v1438 = vpop.f32.mrf.mxu0
        %1439 = vmatprep.mubr.bf16.mxu0 0
        %1440 = vmatmul.mubr.bf16.gmra.mxu0 %v1335
        %v1441 = vpop.f32.mrf.mxu0
        %v1442 = vadd.f32 0.0, %v1441
        %v1443 = vpop.f32.mrf.mxu0
        %v1444 = vpop.f32.mrf.mxu0
        %v1445 = vadd.f32 0.0, %v1444
        %v1446 = vpop.f32.mrf.mxu0
        %1447 = vmatprep.mubr.bf16.mxu0 0
        %1448 = vmatmul.mubr.bf16.gmra.mxu0 %v1338
        %v1449 = vpop.f32.mrf.mxu0
        %v1450 = vadd.f32 0.0, %v1449
        %v1451 = vpop.f32.mrf.mxu0
        %v1452 = vpop.f32.mrf.mxu0
        %v1453 = vadd.f32 0.0, %v1452
        %v1454 = vpop.f32.mrf.mxu0
        %1455 = vmatprep.mubr.bf16.mxu0 0
        %1456 = vmatmul.mubr.bf16.gmra.mxu0 %v1341
        %v1457 = vpop.f32.mrf.mxu0
        %v1458 = vadd.f32 0.0, %v1457
        %v1459 = vpop.f32.mrf.mxu0
        %v1460 = vpop.f32.mrf.mxu0
        %v1461 = vadd.f32 0.0, %v1460
        %v1462 = vpop.f32.mrf.mxu0
        %1463 = vmatprep.mubr.bf16.mxu0 0
        %1464 = vmatmul.mubr.bf16.gmra.mxu0 %v1344
        %v1465 = vpop.f32.mrf.mxu0
        %v1466 = vadd.f32 0.0, %v1465
        %v1467 = vpop.f32.mrf.mxu0
        %v1468 = vpop.f32.mrf.mxu0
        %v1469 = vadd.f32 0.0, %v1468
        %v1470 = vpop.f32.mrf.mxu0
        %1471 = vmatprep.mubr.bf16.mxu0 0
        %1472 = vmatmul.mubr.bf16.gmra.mxu0 %v1347
        %v1473 = vpop.f32.mrf.mxu0
        %v1474 = vadd.f32 0.0, %v1473
        %v1475 = vpop.f32.mrf.mxu0
        %v1476 = vpop.f32.mrf.mxu0
        %v1477 = vadd.f32 0.0, %v1476
        %v1478 = vpop.f32.mrf.mxu0
        %1479 = vmatprep.mubr.bf16.mxu0 0
        %1480 = vmatmul.mubr.bf16.gmra.mxu0 %v1350
        %v1481 = vpop.f32.mrf.mxu0
        %v1482 = vadd.f32 0.0, %v1481
        %v1483 = vpop.f32.mrf.mxu0
        %v1484 = vpop.f32.mrf.mxu0
        %v1485 = vadd.f32 0.0, %v1484
        %v1486 = vpop.f32.mrf.mxu0
        %1487 = vmatprep.mubr.bf16.mxu0 0
        %1488 = vmatmul.mubr.bf16.gmra.mxu0 %v1353
        %v1489 = vpop.f32.mrf.mxu0
        %v1490 = vadd.f32 0.0, %v1489
        %v1491 = vpop.f32.mrf.mxu0
        %v1492 = vpop.f32.mrf.mxu0
        %v1493 = vadd.f32 0.0, %v1492
        %v1494 = vpop.f32.mrf.mxu0
        %1495 = vmatprep.mubr.bf16.mxu0 0
        %1496 = vmatmul.mubr.bf16.gmra.mxu0 %v1356
        %v1497 = vpop.f32.mrf.mxu0
        %v1498 = vadd.f32 0.0, %v1497
        %v1499 = vpop.f32.mrf.mxu0
        %v1500 = vpop.f32.mrf.mxu0
        %v1501 = vadd.f32 0.0, %v1500
        %v1502 = vpop.f32.mrf.mxu0
        %1503 = vmatprep.mubr.bf16.mxu0 0
        %1504 = vmatmul.mubr.bf16.gmra.mxu0 %v1359
        %v1505 = vpop.f32.mrf.mxu0
        %v1506 = vadd.f32 0.0, %v1505
        %v1507 = vpop.f32.mrf.mxu0
        %v1508 = vpop.f32.mrf.mxu0
        %v1509 = vadd.f32 0.0, %v1508
        %v1510 = vpop.f32.mrf.mxu0
        %1511 = vmatprep.mubr.bf16.mxu0 0
        %1512 = vmatmul.mubr.bf16.gmra.mxu0 %v1362
        %v1513 = vpop.f32.mrf.mxu0
        %v1514 = vadd.f32 0.0, %v1513
        %v1515 = vpop.f32.mrf.mxu0
        %v1516 = vpop.f32.mrf.mxu0
        %v1517 = vadd.f32 0.0, %v1516
        %v1518 = vpop.f32.mrf.mxu0
        %1519 = vmatprep.mubr.bf16.mxu0 0
        %1520 = vmatmul.mubr.bf16.gmra.mxu0 %v1365
        %v1521 = vpop.f32.mrf.mxu0
        %v1522 = vadd.f32 0.0, %v1521
        %v1523 = vpop.f32.mrf.mxu0
        %v1524 = vpop.f32.mrf.mxu0
        %v1525 = vadd.f32 0.0, %v1524
        %v1526 = vpop.f32.mrf.mxu0
        %1527 = vdwg.mxu0
        %v1560 = vunpack.c.l.b16 %v824
        %v1561 = vunpack.c.l.b16 %v825
        %v1562 = vunpack.c.l.b16 %v826
        %v1563 = vunpack.c.l.b16 %v827
        %v1564 = vunpack.c.l.b16 %v828
        %v1565 = vunpack.c.l.b16 %v829
        %v1566 = vunpack.c.l.b16 %v830
        %v1567 = vunpack.c.l.b16 %v831
        %v1568 = vunpack.c.l.b16 %v832
        %v1569 = vunpack.c.l.b16 %v833
        %v1570 = vunpack.c.l.b16 %v834
        %v1571 = vunpack.c.l.b16 %v835
        %v1572 = vunpack.c.l.b16 %v836
        %v1573 = vunpack.c.l.b16 %v837
        %v1574 = vunpack.c.l.b16 %v838
        %v1575 = vunpack.c.l.b16 %v839
        %v1576 = vunpack.c.l.b16 %v840
        %v1577 = vunpack.c.l.b16 %v841
        %v1578 = vunpack.c.l.b16 %v842
        %v1579 = vunpack.c.l.b16 %v843
        %v1580 = vunpack.c.l.b16 %v844
        %v1581 = vunpack.c.l.b16 %v845
        %v1582 = vunpack.c.l.b16 %v846
        %v1583 = vunpack.c.l.b16 %v847
        %v1584 = vunpack.c.l.b16 %v848
        %v1585 = vunpack.c.l.b16 %v849
        %v1586 = vunpack.c.l.b16 %v850
        %v1587 = vunpack.c.l.b16 %v851
        %v1588 = vunpack.c.l.b16 %v852
        %v1589 = vunpack.c.l.b16 %v853
        %v1590 = vunpack.c.l.b16 %v854
        %v1591 = vunpack.c.l.b16 %v855
        %v1592 = vpack.c.b16 %v1561, %v1560
        %v1593 = vpack.c.b16 %v1563, %v1562
        %v1594 = vpack.c.b16 %v1565, %v1564
        %v1595 = vpack.c.b16 %v1567, %v1566
        %v1596 = vpack.c.b16 %v1569, %v1568
        %v1597 = vpack.c.b16 %v1571, %v1570
        %v1598 = vpack.c.b16 %v1573, %v1572
        %v1599 = vpack.c.b16 %v1575, %v1574
        %v1600 = vpack.c.b16 %v1577, %v1576
        %v1601 = vpack.c.b16 %v1579, %v1578
        %v1602 = vpack.c.b16 %v1581, %v1580
        %v1603 = vpack.c.b16 %v1583, %v1582
        %v1604 = vpack.c.b16 %v1585, %v1584
        %v1605 = vpack.c.b16 %v1587, %v1586
        %v1606 = vpack.c.b16 %v1589, %v1588
        %v1607 = vpack.c.b16 %v1591, %v1590
        %v1610 = vunpack.c.l.b16 %v856
        %v1611 = vunpack.c.l.b16 %v857
        %v1612 = vpack.c.b16 %v1611, %v1610
        %v1615 = vsel %vm1318, %v1592, 0
        %v1618 = vsel %vm1318, %v1593, 0
        %v1621 = vsel %vm1318, %v1594, 0
        %v1624 = vsel %vm1318, %v1595, 0
        %v1627 = vsel %vm1318, %v1596, 0
        %v1630 = vsel %vm1318, %v1597, 0
        %v1633 = vsel %vm1318, %v1598, 0
        %v1636 = vsel %vm1318, %v1599, 0
        %v1639 = vsel %vm1318, %v1600, 0
        %v1642 = vsel %vm1318, %v1601, 0
        %v1645 = vsel %vm1318, %v1602, 0
        %v1648 = vsel %vm1318, %v1603, 0
        %v1651 = vsel %vm1318, %v1604, 0
        %v1654 = vsel %vm1318, %v1605, 0
        %v1657 = vsel %vm1318, %v1606, 0
        %v1660 = vsel %vm1318, %v1607, 0
        %1662 = vmatprep.subr.bf16.mxu0 0
        %1663 = vmatpush1.bf16.msra.mxu0 0
        %1664 = vmatprep.subr.bf16.mxu0 0
        %1665 = vmatpush1.bf16.msra.mxu0 0
        %1666 = vmatprep.subr.bf16.mxu0 0
        %1667 = vmatpush1.bf16.msra.mxu0 0
        %1668 = vmatprep.subr.bf16.mxu0 0
        %1669 = vmatpush1.bf16.msra.mxu0 0
        %1670 = vmatprep.subr.bf16.mxu0 0
        %1671 = vmatpush1.bf16.msra.mxu0 0
        %1672 = vmatprep.subr.bf16.mxu0 0
        %1673 = vmatpush1.bf16.msra.mxu0 0
        %1674 = vmatprep.subr.bf16.mxu0 0
        %1675 = vmatpush1.bf16.msra.mxu0 0
        %1676 = vmatprep.subr.bf16.mxu0 0
        %1677 = vmatpush1.bf16.msra.mxu0 %v1612
        %1678 = vmatprep.subr.bf16.mxu0 0
        %1679 = vmatpush2.bf16.msra.mxu0 0
        %1680 = vmatprep.subr.bf16.mxu0 0
        %1681 = vmatpush2.bf16.msra.mxu0 0
        %1682 = vmatprep.subr.bf16.mxu0 0
        %1683 = vmatpush2.bf16.msra.mxu0 0
        %1684 = vmatprep.subr.bf16.mxu0 0
        %1685 = vmatpush2.bf16.msra.mxu0 0
        %1686 = vmatprep.subr.bf16.mxu0 0
        %1687 = vmatpush2.bf16.msra.mxu0 0
        %1688 = vmatprep.subr.bf16.mxu0 0
        %1689 = vmatpush2.bf16.msra.mxu0 0
        %1690 = vmatprep.subr.bf16.mxu0 0
        %1691 = vmatpush2.bf16.msra.mxu0 0
        %1692 = vmatprep.subr.bf16.mxu0 0
        %1693 = vmatpush2.bf16.msra.mxu0 0
        %1694 = vmatprep.mubr.bf16.mxu0 0
        %1695 = vmatmul.mubr.bf16.gmra.mxu0 %v1615
        %v1696 = vpop.f32.mrf.mxu0
        %v1697 = vadd.f32 %v1402, %v1696
        %v1698 = vpop.f32.mrf.mxu0
        %v1699 = vpop.f32.mrf.mxu0
        %v1700 = vadd.f32 %v1405, %v1699
        %v1701 = vpop.f32.mrf.mxu0
        %1702 = vmatprep.mubr.bf16.mxu0 0
        %1703 = vmatmul.mubr.bf16.gmra.mxu0 %v1618
        %v1704 = vpop.f32.mrf.mxu0
        %v1705 = vadd.f32 %v1410, %v1704
        %v1706 = vpop.f32.mrf.mxu0
        %v1707 = vpop.f32.mrf.mxu0
        %v1708 = vadd.f32 %v1413, %v1707
        %v1709 = vpop.f32.mrf.mxu0
        %1710 = vmatprep.mubr.bf16.mxu0 0
        %1711 = vmatmul.mubr.bf16.gmra.mxu0 %v1621
        %v1712 = vpop.f32.mrf.mxu0
        %v1713 = vadd.f32 %v1418, %v1712
        %v1714 = vpop.f32.mrf.mxu0
        %v1715 = vpop.f32.mrf.mxu0
        %v1716 = vadd.f32 %v1421, %v1715
        %v1717 = vpop.f32.mrf.mxu0
        %1718 = vmatprep.mubr.bf16.mxu0 0
        %1719 = vmatmul.mubr.bf16.gmra.mxu0 %v1624
        %v1720 = vpop.f32.mrf.mxu0
        %v1721 = vadd.f32 %v1426, %v1720
        %v1722 = vpop.f32.mrf.mxu0
        %v1723 = vpop.f32.mrf.mxu0
        %v1724 = vadd.f32 %v1429, %v1723
        %v1725 = vpop.f32.mrf.mxu0
        %1726 = vmatprep.mubr.bf16.mxu0 0
        %1727 = vmatmul.mubr.bf16.gmra.mxu0 %v1627
        %v1728 = vpop.f32.mrf.mxu0
        %v1729 = vadd.f32 %v1434, %v1728
        %v1730 = vpop.f32.mrf.mxu0
        %v1731 = vpop.f32.mrf.mxu0
        %v1732 = vadd.f32 %v1437, %v1731
        %v1733 = vpop.f32.mrf.mxu0
        %1734 = vmatprep.mubr.bf16.mxu0 0
        %1735 = vmatmul.mubr.bf16.gmra.mxu0 %v1630
        %v1736 = vpop.f32.mrf.mxu0
        %v1737 = vadd.f32 %v1442, %v1736
        %v1738 = vpop.f32.mrf.mxu0
        %v1739 = vpop.f32.mrf.mxu0
        %v1740 = vadd.f32 %v1445, %v1739
        %v1741 = vpop.f32.mrf.mxu0
        %1742 = vmatprep.mubr.bf16.mxu0 0
        %1743 = vmatmul.mubr.bf16.gmra.mxu0 %v1633
        %v1744 = vpop.f32.mrf.mxu0
        %v1745 = vadd.f32 %v1450, %v1744
        %v1746 = vpop.f32.mrf.mxu0
        %v1747 = vpop.f32.mrf.mxu0
        %v1748 = vadd.f32 %v1453, %v1747
        %v1749 = vpop.f32.mrf.mxu0
        %1750 = vmatprep.mubr.bf16.mxu0 0
        %1751 = vmatmul.mubr.bf16.gmra.mxu0 %v1636
        %v1752 = vpop.f32.mrf.mxu0
        %v1753 = vadd.f32 %v1458, %v1752
        %v1754 = vpop.f32.mrf.mxu0
        %v1755 = vpop.f32.mrf.mxu0
        %v1756 = vadd.f32 %v1461, %v1755
        %v1757 = vpop.f32.mrf.mxu0
        %1758 = vmatprep.mubr.bf16.mxu0 0
        %1759 = vmatmul.mubr.bf16.gmra.mxu0 %v1639
        %v1760 = vpop.f32.mrf.mxu0
        %v1761 = vadd.f32 %v1466, %v1760
        %v1762 = vpop.f32.mrf.mxu0
        %v1763 = vpop.f32.mrf.mxu0
        %v1764 = vadd.f32 %v1469, %v1763
        %v1765 = vpop.f32.mrf.mxu0
        %1766 = vmatprep.mubr.bf16.mxu0 0
        %1767 = vmatmul.mubr.bf16.gmra.mxu0 %v1642
        %v1768 = vpop.f32.mrf.mxu0
        %v1769 = vadd.f32 %v1474, %v1768
        %v1770 = vpop.f32.mrf.mxu0
        %v1771 = vpop.f32.mrf.mxu0
        %v1772 = vadd.f32 %v1477, %v1771
        %v1773 = vpop.f32.mrf.mxu0
        %1774 = vmatprep.mubr.bf16.mxu0 0
        %1775 = vmatmul.mubr.bf16.gmra.mxu0 %v1645
        %v1776 = vpop.f32.mrf.mxu0
        %v1777 = vadd.f32 %v1482, %v1776
        %v1778 = vpop.f32.mrf.mxu0
        %v1779 = vpop.f32.mrf.mxu0
        %v1780 = vadd.f32 %v1485, %v1779
        %v1781 = vpop.f32.mrf.mxu0
        %1782 = vmatprep.mubr.bf16.mxu0 0
        %1783 = vmatmul.mubr.bf16.gmra.mxu0 %v1648
        %v1784 = vpop.f32.mrf.mxu0
        %v1785 = vadd.f32 %v1490, %v1784
        %v1786 = vpop.f32.mrf.mxu0
        %v1787 = vpop.f32.mrf.mxu0
        %v1788 = vadd.f32 %v1493, %v1787
        %v1789 = vpop.f32.mrf.mxu0
        %1790 = vmatprep.mubr.bf16.mxu0 0
        %1791 = vmatmul.mubr.bf16.gmra.mxu0 %v1651
        %v1792 = vpop.f32.mrf.mxu0
        %v1793 = vadd.f32 %v1498, %v1792
        %v1794 = vpop.f32.mrf.mxu0
        %v1795 = vpop.f32.mrf.mxu0
        %v1796 = vadd.f32 %v1501, %v1795
        %v1797 = vpop.f32.mrf.mxu0
        %1798 = vmatprep.mubr.bf16.mxu0 0
        %1799 = vmatmul.mubr.bf16.gmra.mxu0 %v1654
        %v1800 = vpop.f32.mrf.mxu0
        %v1801 = vadd.f32 %v1506, %v1800
        %v1802 = vpop.f32.mrf.mxu0
        %v1803 = vpop.f32.mrf.mxu0
        %v1804 = vadd.f32 %v1509, %v1803
        %v1805 = vpop.f32.mrf.mxu0
        %1806 = vmatprep.mubr.bf16.mxu0 0
        %1807 = vmatmul.mubr.bf16.gmra.mxu0 %v1657
        %v1808 = vpop.f32.mrf.mxu0
        %v1809 = vadd.f32 %v1514, %v1808
        %v1810 = vpop.f32.mrf.mxu0
        %v1811 = vpop.f32.mrf.mxu0
        %v1812 = vadd.f32 %v1517, %v1811
        %v1813 = vpop.f32.mrf.mxu0
        %1814 = vmatprep.mubr.bf16.mxu0 0
        %1815 = vmatmul.mubr.bf16.gmra.mxu0 %v1660
        %v1816 = vpop.f32.mrf.mxu0
        %v1817 = vadd.f32 %v1522, %v1816
        %v1818 = vpop.f32.mrf.mxu0
        %v1819 = vpop.f32.mrf.mxu0
        %v1820 = vadd.f32 %v1525, %v1819
        %v1821 = vpop.f32.mrf.mxu0
        %1822 = vdwg.mxu0
        %v1823 = vld [vmem:[#allocation2] sm:$0xe]
        %v1824 = vld [vmem:[#allocation2 + $0xc] sm:$0xe]
        %v1825 = vld [vmem:[#allocation2 + $0x18] sm:$0xe]
        %v1826 = vld [vmem:[#allocation2 + $0x24] sm:$0xe]
        %v1827 = vld [vmem:[#allocation2 + $0x30] sm:$0xe]
        %v1828 = vld [vmem:[#allocation2 + $0x3c] sm:$0xe]
        %v1829 = vld [vmem:[#allocation2 + $0x48] sm:$0xe]
        %v1830 = vld [vmem:[#allocation2 + $0x54] sm:$0xe]
        %v1831 = vld [vmem:[#allocation2 + $0x60] sm:$0xe]
        %v1832 = vld [vmem:[#allocation2 + $0x6c] sm:$0xe]
        %v1833 = vld [vmem:[#allocation2 + $0x78] sm:$0xe]
        %v1834 = vld [vmem:[#allocation2 + $0x84] sm:$0xe]
        %v1835 = vld [vmem:[#allocation2 + $0x90] sm:$0xe]
        %v1836 = vld [vmem:[#allocation2 + $0x9c] sm:$0xe]
        %v1837 = vld [vmem:[#allocation2 + $0xa8] sm:$0xe]
        %v1838 = vld [vmem:[#allocation2 + $0xb4] sm:$0xe]
        %vm1871 = vcmask 1042432
        %vm1872 = vcmask 1046532
        %vm1873 = vmor %vm1871, %vm1872
        %v1874 = vrot.slane %v1823, 5
        %v1875 = vrot.slane %v1874, 4
        %v1876 = vrot.slane %v825, 5
        %v1877 = vsel %vm1873, %v1875, %v1876
        %v1878 = vrot.slane %v1876, 4
        %v1879 = vrot.slane %v858, 5
        %v1880 = vsel %vm1873, %v1878, %v1879
        %v1881 = vrot.slane %v1824, 5
        %v1882 = vrot.slane %v1881, 4
        %v1883 = vrot.slane %v827, 5
        %v1884 = vsel %vm1873, %v1882, %v1883
        %v1885 = vrot.slane %v1883, 4
        %v1886 = vrot.slane %v859, 5
        %v1887 = vsel %vm1873, %v1885, %v1886
        %v1888 = vrot.slane %v1825, 5
        %v1889 = vrot.slane %v1888, 4
        %v1890 = vrot.slane %v829, 5
        %v1891 = vsel %vm1873, %v1889, %v1890
        %v1892 = vrot.slane %v1890, 4
        %v1893 = vrot.slane %v860, 5
        %v1894 = vsel %vm1873, %v1892, %v1893
        %v1895 = vrot.slane %v1826, 5
        %v1896 = vrot.slane %v1895, 4
        %v1897 = vrot.slane %v831, 5
        %v1898 = vsel %vm1873, %v1896, %v1897
        %v1899 = vrot.slane %v1897, 4
        %v1900 = vrot.slane %v861, 5
        %v1901 = vsel %vm1873, %v1899, %v1900
        %v1902 = vrot.slane %v1827, 5
        %v1903 = vrot.slane %v1902, 4
        %v1904 = vrot.slane %v833, 5
        %v1905 = vsel %vm1873, %v1903, %v1904
        %v1906 = vrot.slane %v1904, 4
        %v1907 = vrot.slane %v862, 5
        %v1908 = vsel %vm1873, %v1906, %v1907
        %v1909 = vrot.slane %v1828, 5
        %v1910 = vrot.slane %v1909, 4
        %v1911 = vrot.slane %v835, 5
        %v1912 = vsel %vm1873, %v1910, %v1911
        %v1913 = vrot.slane %v1911, 4
        %v1914 = vrot.slane %v863, 5
        %v1915 = vsel %vm1873, %v1913, %v1914
        %v1916 = vrot.slane %v1829, 5
        %v1917 = vrot.slane %v1916, 4
        %v1918 = vrot.slane %v837, 5
        %v1919 = vsel %vm1873, %v1917, %v1918
        %v1920 = vrot.slane %v1918, 4
        %v1921 = vrot.slane %v864, 5
        %v1922 = vsel %vm1873, %v1920, %v1921
        %v1923 = vrot.slane %v1830, 5
        %v1924 = vrot.slane %v1923, 4
        %v1925 = vrot.slane %v839, 5
        %v1926 = vsel %vm1873, %v1924, %v1925
        %v1927 = vrot.slane %v1925, 4
        %v1928 = vrot.slane %v865, 5
        %v1929 = vsel %vm1873, %v1927, %v1928
        %v1930 = vrot.slane %v1831, 5
        %v1931 = vrot.slane %v1930, 4
        %v1932 = vrot.slane %v841, 5
        %v1933 = vsel %vm1873, %v1931, %v1932
        %v1934 = vrot.slane %v1932, 4
        %v1935 = vrot.slane %v866, 5
        %v1936 = vsel %vm1873, %v1934, %v1935
        %v1937 = vrot.slane %v1832, 5
        %v1938 = vrot.slane %v1937, 4
        %v1939 = vrot.slane %v843, 5
        %v1940 = vsel %vm1873, %v1938, %v1939
        %v1941 = vrot.slane %v1939, 4
        %v1942 = vrot.slane %v867, 5
        %v1943 = vsel %vm1873, %v1941, %v1942
        %v1944 = vrot.slane %v1833, 5
        %v1945 = vrot.slane %v1944, 4
        %v1946 = vrot.slane %v845, 5
        %v1947 = vsel %vm1873, %v1945, %v1946
        %v1948 = vrot.slane %v1946, 4
        %v1949 = vrot.slane %v868, 5
        %v1950 = vsel %vm1873, %v1948, %v1949
        %v1951 = vrot.slane %v1834, 5
        %v1952 = vrot.slane %v1951, 4
        %v1953 = vrot.slane %v847, 5
        %v1954 = vsel %vm1873, %v1952, %v1953
        %v1955 = vrot.slane %v1953, 4
        %v1956 = vrot.slane %v869, 5
        %v1957 = vsel %vm1873, %v1955, %v1956
        %v1958 = vrot.slane %v1835, 5
        %v1959 = vrot.slane %v1958, 4
        %v1960 = vrot.slane %v849, 5
        %v1961 = vsel %vm1873, %v1959, %v1960
        %v1962 = vrot.slane %v1960, 4
        %v1963 = vrot.slane %v870, 5
        %v1964 = vsel %vm1873, %v1962, %v1963
        %v1965 = vrot.slane %v1836, 5
        %v1966 = vrot.slane %v1965, 4
        %v1967 = vrot.slane %v851, 5
        %v1968 = vsel %vm1873, %v1966, %v1967
        %v1969 = vrot.slane %v1967, 4
        %v1970 = vrot.slane %v871, 5
        %v1971 = vsel %vm1873, %v1969, %v1970
        %v1972 = vrot.slane %v1837, 5
        %v1973 = vrot.slane %v1972, 4
        %v1974 = vrot.slane %v853, 5
        %v1975 = vsel %vm1873, %v1973, %v1974
        %v1976 = vrot.slane %v1974, 4
        %v1977 = vrot.slane %v872, 5
        %v1978 = vsel %vm1873, %v1976, %v1977
        %v1979 = vrot.slane %v1838, 5
        %v1980 = vrot.slane %v1979, 4
        %v1981 = vrot.slane %v855, 5
        %v1982 = vsel %vm1873, %v1980, %v1981
        %v1983 = vrot.slane %v1981, 4
        %v1984 = vrot.slane %v873, 5
        %v1985 = vsel %vm1873, %v1983, %v1984
        %s1986 = scalar_lea.vmem [#allocation6], 16
        %v1987 = vld [vmem:[%s1986] sm:$0xf]
        %v1988 = vld [vmem:[%s1986 + $0x4] sm:$0xf]
        %v1989 = vunpack.c.l.b16 %v1877
        %v1990 = vunpack.c.l.b16 %v1880
        %v1991 = vunpack.c.l.b16 %v1884
        %v1992 = vunpack.c.l.b16 %v1887
        %v1993 = vunpack.c.l.b16 %v1891
        %v1994 = vunpack.c.l.b16 %v1894
        %v1995 = vunpack.c.l.b16 %v1898
        %v1996 = vunpack.c.l.b16 %v1901
        %v1997 = vunpack.c.l.b16 %v1905
        %v1998 = vunpack.c.l.b16 %v1908
        %v1999 = vunpack.c.l.b16 %v1912
        %v2000 = vunpack.c.l.b16 %v1915
        %v2001 = vunpack.c.l.b16 %v1919
        %v2002 = vunpack.c.l.b16 %v1922
        %v2003 = vunpack.c.l.b16 %v1926
        %v2004 = vunpack.c.l.b16 %v1929
        %v2005 = vunpack.c.l.b16 %v1933
        %v2006 = vunpack.c.l.b16 %v1936
        %v2007 = vunpack.c.l.b16 %v1940
        %v2008 = vunpack.c.l.b16 %v1943
        %v2009 = vunpack.c.l.b16 %v1947
        %v2010 = vunpack.c.l.b16 %v1950
        %v2011 = vunpack.c.l.b16 %v1954
        %v2012 = vunpack.c.l.b16 %v1957
        %v2013 = vunpack.c.l.b16 %v1961
        %v2014 = vunpack.c.l.b16 %v1964
        %v2015 = vunpack.c.l.b16 %v1968
        %v2016 = vunpack.c.l.b16 %v1971
        %v2017 = vunpack.c.l.b16 %v1975
        %v2018 = vunpack.c.l.b16 %v1978
        %v2019 = vunpack.c.l.b16 %v1982
        %v2020 = vunpack.c.l.b16 %v1985
        %v2021 = vpack.c.b16 %v1990, %v1989
        %v2022 = vpack.c.b16 %v1992, %v1991
        %v2023 = vpack.c.b16 %v1994, %v1993
        %v2024 = vpack.c.b16 %v1996, %v1995
        %v2025 = vpack.c.b16 %v1998, %v1997
        %v2026 = vpack.c.b16 %v2000, %v1999
        %v2027 = vpack.c.b16 %v2002, %v2001
        %v2028 = vpack.c.b16 %v2004, %v2003
        %v2029 = vpack.c.b16 %v2006, %v2005
        %v2030 = vpack.c.b16 %v2008, %v2007
        %v2031 = vpack.c.b16 %v2010, %v2009
        %v2032 = vpack.c.b16 %v2012, %v2011
        %v2033 = vpack.c.b16 %v2014, %v2013
        %v2034 = vpack.c.b16 %v2016, %v2015
        %v2035 = vpack.c.b16 %v2018, %v2017
        %v2036 = vpack.c.b16 %v2020, %v2019
        %v2039 = vunpack.c.l.b16 %v1987
        %v2040 = vunpack.c.l.b16 %v1988
        %v2041 = vpack.c.b16 %v2040, %v2039
        %v2044 = vsel %vm1318, %v2021, 0
        %v2047 = vsel %vm1318, %v2022, 0
        %v2050 = vsel %vm1318, %v2023, 0
        %v2053 = vsel %vm1318, %v2024, 0
        %v2056 = vsel %vm1318, %v2025, 0
        %v2059 = vsel %vm1318, %v2026, 0
        %v2062 = vsel %vm1318, %v2027, 0
        %v2065 = vsel %vm1318, %v2028, 0
        %v2068 = vsel %vm1318, %v2029, 0
        %v2071 = vsel %vm1318, %v2030, 0
        %v2074 = vsel %vm1318, %v2031, 0
        %v2077 = vsel %vm1318, %v2032, 0
        %v2080 = vsel %vm1318, %v2033, 0
        %v2083 = vsel %vm1318, %v2034, 0
        %v2086 = vsel %vm1318, %v2035, 0
        %v2089 = vsel %vm1318, %v2036, 0
        %2091 = vmatprep.subr.bf16.mxu0 0
        %2092 = vmatpush1.bf16.msra.mxu0 0
        %2093 = vmatprep.subr.bf16.mxu0 0
        %2094 = vmatpush1.bf16.msra.mxu0 0
        %2095 = vmatprep.subr.bf16.mxu0 0
        %2096 = vmatpush1.bf16.msra.mxu0 0
        %2097 = vmatprep.subr.bf16.mxu0 0
        %2098 = vmatpush1.bf16.msra.mxu0 0
        %2099 = vmatprep.subr.bf16.mxu0 0
        %2100 = vmatpush1.bf16.msra.mxu0 0
        %2101 = vmatprep.subr.bf16.mxu0 0
        %2102 = vmatpush1.bf16.msra.mxu0 0
        %2103 = vmatprep.subr.bf16.mxu0 0
        %2104 = vmatpush1.bf16.msra.mxu0 0
        %2105 = vmatprep.subr.bf16.mxu0 0
        %2106 = vmatpush1.bf16.msra.mxu0 %v2041
        %2107 = vmatprep.subr.bf16.mxu0 0
        %2108 = vmatpush2.bf16.msra.mxu0 0
        %2109 = vmatprep.subr.bf16.mxu0 0
        %2110 = vmatpush2.bf16.msra.mxu0 0
        %2111 = vmatprep.subr.bf16.mxu0 0
        %2112 = vmatpush2.bf16.msra.mxu0 0
        %2113 = vmatprep.subr.bf16.mxu0 0
        %2114 = vmatpush2.bf16.msra.mxu0 0
        %2115 = vmatprep.subr.bf16.mxu0 0
        %2116 = vmatpush2.bf16.msra.mxu0 0
        %2117 = vmatprep.subr.bf16.mxu0 0
        %2118 = vmatpush2.bf16.msra.mxu0 0
        %2119 = vmatprep.subr.bf16.mxu0 0
        %2120 = vmatpush2.bf16.msra.mxu0 0
        %2121 = vmatprep.subr.bf16.mxu0 0
        %2122 = vmatpush2.bf16.msra.mxu0 0
        %2123 = vmatprep.mubr.bf16.mxu0 0
        %2124 = vmatmul.mubr.bf16.gmra.mxu0 %v2044
        %v2125 = vpop.f32.mrf.mxu0
        %v2126 = vadd.f32 0.0, %v2125
        %v2127 = vpop.f32.mrf.mxu0
        %v2128 = vpop.f32.mrf.mxu0
        %v2129 = vadd.f32 0.0, %v2128
        %v2130 = vpop.f32.mrf.mxu0
        %2131 = vmatprep.mubr.bf16.mxu0 0
        %2132 = vmatmul.mubr.bf16.gmra.mxu0 %v2047
        %v2133 = vpop.f32.mrf.mxu0
        %v2134 = vadd.f32 0.0, %v2133
        %v2135 = vpop.f32.mrf.mxu0
        %v2136 = vpop.f32.mrf.mxu0
        %v2137 = vadd.f32 0.0, %v2136
        %v2138 = vpop.f32.mrf.mxu0
        %2139 = vmatprep.mubr.bf16.mxu0 0
        %2140 = vmatmul.mubr.bf16.gmra.mxu0 %v2050
        %v2141 = vpop.f32.mrf.mxu0
        %v2142 = vadd.f32 0.0, %v2141
        %v2143 = vpop.f32.mrf.mxu0
        %v2144 = vpop.f32.mrf.mxu0
        %v2145 = vadd.f32 0.0, %v2144
        %v2146 = vpop.f32.mrf.mxu0
        %2147 = vmatprep.mubr.bf16.mxu0 0
        %2148 = vmatmul.mubr.bf16.gmra.mxu0 %v2053
        %v2149 = vpop.f32.mrf.mxu0
        %v2150 = vadd.f32 0.0, %v2149
        %v2151 = vpop.f32.mrf.mxu0
        %v2152 = vpop.f32.mrf.mxu0
        %v2153 = vadd.f32 0.0, %v2152
        %v2154 = vpop.f32.mrf.mxu0
        %2155 = vmatprep.mubr.bf16.mxu0 0
        %2156 = vmatmul.mubr.bf16.gmra.mxu0 %v2056
        %v2157 = vpop.f32.mrf.mxu0
        %v2158 = vadd.f32 0.0, %v2157
        %v2159 = vpop.f32.mrf.mxu0
        %v2160 = vpop.f32.mrf.mxu0
        %v2161 = vadd.f32 0.0, %v2160
        %v2162 = vpop.f32.mrf.mxu0
        %2163 = vmatprep.mubr.bf16.mxu0 0
        %2164 = vmatmul.mubr.bf16.gmra.mxu0 %v2059
        %v2165 = vpop.f32.mrf.mxu0
        %v2166 = vadd.f32 0.0, %v2165
        %v2167 = vpop.f32.mrf.mxu0
        %v2168 = vpop.f32.mrf.mxu0
        %v2169 = vadd.f32 0.0, %v2168
        %v2170 = vpop.f32.mrf.mxu0
        %2171 = vmatprep.mubr.bf16.mxu0 0
        %2172 = vmatmul.mubr.bf16.gmra.mxu0 %v2062
        %v2173 = vpop.f32.mrf.mxu0
        %v2174 = vadd.f32 0.0, %v2173
        %v2175 = vpop.f32.mrf.mxu0
        %v2176 = vpop.f32.mrf.mxu0
        %v2177 = vadd.f32 0.0, %v2176
        %v2178 = vpop.f32.mrf.mxu0
        %2179 = vmatprep.mubr.bf16.mxu0 0
        %2180 = vmatmul.mubr.bf16.gmra.mxu0 %v2065
        %v2181 = vpop.f32.mrf.mxu0
        %v2182 = vadd.f32 0.0, %v2181
        %v2183 = vpop.f32.mrf.mxu0
        %v2184 = vpop.f32.mrf.mxu0
        %v2185 = vadd.f32 0.0, %v2184
        %v2186 = vpop.f32.mrf.mxu0
        %2187 = vmatprep.mubr.bf16.mxu0 0
        %2188 = vmatmul.mubr.bf16.gmra.mxu0 %v2068
        %v2189 = vpop.f32.mrf.mxu0
        %v2190 = vadd.f32 0.0, %v2189
        %v2191 = vpop.f32.mrf.mxu0
        %v2192 = vpop.f32.mrf.mxu0
        %v2193 = vadd.f32 0.0, %v2192
        %v2194 = vpop.f32.mrf.mxu0
        %2195 = vmatprep.mubr.bf16.mxu0 0
        %2196 = vmatmul.mubr.bf16.gmra.mxu0 %v2071
        %v2197 = vpop.f32.mrf.mxu0
        %v2198 = vadd.f32 0.0, %v2197
        %v2199 = vpop.f32.mrf.mxu0
        %v2200 = vpop.f32.mrf.mxu0
        %v2201 = vadd.f32 0.0, %v2200
        %v2202 = vpop.f32.mrf.mxu0
        %2203 = vmatprep.mubr.bf16.mxu0 0
        %2204 = vmatmul.mubr.bf16.gmra.mxu0 %v2074
        %v2205 = vpop.f32.mrf.mxu0
        %v2206 = vadd.f32 0.0, %v2205
        %v2207 = vpop.f32.mrf.mxu0
        %v2208 = vpop.f32.mrf.mxu0
        %v2209 = vadd.f32 0.0, %v2208
        %v2210 = vpop.f32.mrf.mxu0
        %2211 = vmatprep.mubr.bf16.mxu0 0
        %2212 = vmatmul.mubr.bf16.gmra.mxu0 %v2077
        %v2213 = vpop.f32.mrf.mxu0
        %v2214 = vadd.f32 0.0, %v2213
        %v2215 = vpop.f32.mrf.mxu0
        %v2216 = vpop.f32.mrf.mxu0
        %v2217 = vadd.f32 0.0, %v2216
        %v2218 = vpop.f32.mrf.mxu0
        %2219 = vmatprep.mubr.bf16.mxu0 0
        %2220 = vmatmul.mubr.bf16.gmra.mxu0 %v2080
        %v2221 = vpop.f32.mrf.mxu0
        %v2222 = vadd.f32 0.0, %v2221
        %v2223 = vpop.f32.mrf.mxu0
        %v2224 = vpop.f32.mrf.mxu0
        %v2225 = vadd.f32 0.0, %v2224
        %v2226 = vpop.f32.mrf.mxu0
        %2227 = vmatprep.mubr.bf16.mxu0 0
        %2228 = vmatmul.mubr.bf16.gmra.mxu0 %v2083
        %v2229 = vpop.f32.mrf.mxu0
        %v2230 = vadd.f32 0.0, %v2229
        %v2231 = vpop.f32.mrf.mxu0
        %v2232 = vpop.f32.mrf.mxu0
        %v2233 = vadd.f32 0.0, %v2232
        %v2234 = vpop.f32.mrf.mxu0
        %2235 = vmatprep.mubr.bf16.mxu0 0
        %2236 = vmatmul.mubr.bf16.gmra.mxu0 %v2086
        %v2237 = vpop.f32.mrf.mxu0
        %v2238 = vadd.f32 0.0, %v2237
        %v2239 = vpop.f32.mrf.mxu0
        %v2240 = vpop.f32.mrf.mxu0
        %v2241 = vadd.f32 0.0, %v2240
        %v2242 = vpop.f32.mrf.mxu0
        %2243 = vmatprep.mubr.bf16.mxu0 0
        %2244 = vmatmul.mubr.bf16.gmra.mxu0 %v2089
        %v2245 = vpop.f32.mrf.mxu0
        %v2246 = vadd.f32 0.0, %v2245
        %v2247 = vpop.f32.mrf.mxu0
        %v2248 = vpop.f32.mrf.mxu0
        %v2249 = vadd.f32 0.0, %v2248
        %v2250 = vpop.f32.mrf.mxu0
        %2251 = vdwg.mxu0
        %v2252 = vadd.f32 %v1697, %v2126
        %v2253 = vadd.f32 %v1700, %v2129
        %v2254 = vadd.f32 %v1705, %v2134
        %v2255 = vadd.f32 %v1708, %v2137
        %v2256 = vadd.f32 %v1713, %v2142
        %v2257 = vadd.f32 %v1716, %v2145
        %v2258 = vadd.f32 %v1721, %v2150
        %v2259 = vadd.f32 %v1724, %v2153
        %v2260 = vadd.f32 %v1729, %v2158
        %v2261 = vadd.f32 %v1732, %v2161
        %v2262 = vadd.f32 %v1737, %v2166
        %v2263 = vadd.f32 %v1740, %v2169
        %v2264 = vadd.f32 %v1745, %v2174
        %v2265 = vadd.f32 %v1748, %v2177
        %v2266 = vadd.f32 %v1753, %v2182
        %v2267 = vadd.f32 %v1756, %v2185
        %v2268 = vadd.f32 %v1761, %v2190
        %v2269 = vadd.f32 %v1764, %v2193
        %v2270 = vadd.f32 %v1769, %v2198
        %v2271 = vadd.f32 %v1772, %v2201
        %v2272 = vadd.f32 %v1777, %v2206
        %v2273 = vadd.f32 %v1780, %v2209
        %v2274 = vadd.f32 %v1785, %v2214
        %v2275 = vadd.f32 %v1788, %v2217
        %v2276 = vadd.f32 %v1793, %v2222
        %v2277 = vadd.f32 %v1796, %v2225
        %v2278 = vadd.f32 %v1801, %v2230
        %v2279 = vadd.f32 %v1804, %v2233
        %v2280 = vadd.f32 %v1809, %v2238
        %v2281 = vadd.f32 %v1812, %v2241
        %v2282 = vadd.f32 %v1817, %v2246
        %v2283 = vadd.f32 %v1820, %v2249
        %v2284 = vld [vmem:[%s254] sm:$0xf]
        %v2285 = vld [vmem:[%s254 + $0x4] sm:$0xf]
        %v2286 = vld [vmem:[%s254 + $0xc] sm:$0xf]
        %v2287 = vld [vmem:[%s254 + $0x10] sm:$0xf]
        %v2288 = vld [vmem:[%s254 + $0x18] sm:$0xf]
        %v2289 = vld [vmem:[%s254 + $0x1c] sm:$0xf]
        %v2290 = vld [vmem:[%s254 + $0x24] sm:$0xf]
        %v2291 = vld [vmem:[%s254 + $0x28] sm:$0xf]
        %v2292 = vld [vmem:[%s254 + $0x30] sm:$0xf]
        %v2293 = vld [vmem:[%s254 + $0x34] sm:$0xf]
        %v2294 = vld [vmem:[%s254 + $0x3c] sm:$0xf]
        %v2295 = vld [vmem:[%s254 + $0x40] sm:$0xf]
        %v2296 = vld [vmem:[%s254 + $0x48] sm:$0xf]
        %v2297 = vld [vmem:[%s254 + $0x4c] sm:$0xf]
        %v2298 = vld [vmem:[%s254 + $0x54] sm:$0xf]
        %v2299 = vld [vmem:[%s254 + $0x58] sm:$0xf]
        %v2300 = vld [vmem:[%s254 + $0x60] sm:$0xf]
        %v2301 = vld [vmem:[%s254 + $0x64] sm:$0xf]
        %v2302 = vld [vmem:[%s254 + $0x6c] sm:$0xf]
        %v2303 = vld [vmem:[%s254 + $0x70] sm:$0xf]
        %v2304 = vld [vmem:[%s254 + $0x78] sm:$0xf]
        %v2305 = vld [vmem:[%s254 + $0x7c] sm:$0xf]
        %v2306 = vld [vmem:[%s254 + $0x84] sm:$0xf]
        %v2307 = vld [vmem:[%s254 + $0x88] sm:$0xf]
        %v2308 = vld [vmem:[%s254 + $0x90] sm:$0xf]
        %v2309 = vld [vmem:[%s254 + $0x94] sm:$0xf]
        %v2310 = vld [vmem:[%s254 + $0x9c] sm:$0xf]
        %v2311 = vld [vmem:[%s254 + $0xa0] sm:$0xf]
        %v2312 = vld [vmem:[%s254 + $0xa8] sm:$0xf]
        %v2313 = vld [vmem:[%s254 + $0xac] sm:$0xf]
        %v2314 = vld [vmem:[%s254 + $0xb4] sm:$0xf]
        %v2315 = vld [vmem:[%s254 + $0xb8] sm:$0xf]
        %s2316 = scalar_lea.vmem [#allocation6], 24
        %v2317 = vld [vmem:[%s2316] sm:$0xf]
        %v2318 = vld [vmem:[%s2316 + $0x4] sm:$0xf]
        %v2351 = vunpack.c.l.b16 %v2284
        %v2352 = vunpack.c.l.b16 %v2285
        %v2353 = vunpack.c.l.b16 %v2286
        %v2354 = vunpack.c.l.b16 %v2287
        %v2355 = vunpack.c.l.b16 %v2288
        %v2356 = vunpack.c.l.b16 %v2289
        %v2357 = vunpack.c.l.b16 %v2290
        %v2358 = vunpack.c.l.b16 %v2291
        %v2359 = vunpack.c.l.b16 %v2292
        %v2360 = vunpack.c.l.b16 %v2293
        %v2361 = vunpack.c.l.b16 %v2294
        %v2362 = vunpack.c.l.b16 %v2295
        %v2363 = vunpack.c.l.b16 %v2296
        %v2364 = vunpack.c.l.b16 %v2297
        %v2365 = vunpack.c.l.b16 %v2298
        %v2366 = vunpack.c.l.b16 %v2299
        %v2367 = vunpack.c.l.b16 %v2300
        %v2368 = vunpack.c.l.b16 %v2301
        %v2369 = vunpack.c.l.b16 %v2302
        %v2370 = vunpack.c.l.b16 %v2303
        %v2371 = vunpack.c.l.b16 %v2304
        %v2372 = vunpack.c.l.b16 %v2305
        %v2373 = vunpack.c.l.b16 %v2306
        %v2374 = vunpack.c.l.b16 %v2307
        %v2375 = vunpack.c.l.b16 %v2308
        %v2376 = vunpack.c.l.b16 %v2309
        %v2377 = vunpack.c.l.b16 %v2310
        %v2378 = vunpack.c.l.b16 %v2311
        %v2379 = vunpack.c.l.b16 %v2312
        %v2380 = vunpack.c.l.b16 %v2313
        %v2381 = vunpack.c.l.b16 %v2314
        %v2382 = vunpack.c.l.b16 %v2315
        %v2383 = vpack.c.b16 %v2352, %v2351
        %v2384 = vpack.c.b16 %v2354, %v2353
        %v2385 = vpack.c.b16 %v2356, %v2355
        %v2386 = vpack.c.b16 %v2358, %v2357
        %v2387 = vpack.c.b16 %v2360, %v2359
        %v2388 = vpack.c.b16 %v2362, %v2361
        %v2389 = vpack.c.b16 %v2364, %v2363
        %v2390 = vpack.c.b16 %v2366, %v2365
        %v2391 = vpack.c.b16 %v2368, %v2367
        %v2392 = vpack.c.b16 %v2370, %v2369
        %v2393 = vpack.c.b16 %v2372, %v2371
        %v2394 = vpack.c.b16 %v2374, %v2373
        %v2395 = vpack.c.b16 %v2376, %v2375
        %v2396 = vpack.c.b16 %v2378, %v2377
        %v2397 = vpack.c.b16 %v2380, %v2379
        %v2398 = vpack.c.b16 %v2382, %v2381
        %v2401 = vunpack.c.l.b16 %v2317
        %v2402 = vunpack.c.l.b16 %v2318
        %v2403 = vpack.c.b16 %v2402, %v2401
        %v2406 = vsel %vm1318, %v2383, 0
        %v2409 = vsel %vm1318, %v2384, 0
        %v2412 = vsel %vm1318, %v2385, 0
        %v2415 = vsel %vm1318, %v2386, 0
        %v2418 = vsel %vm1318, %v2387, 0
        %v2421 = vsel %vm1318, %v2388, 0
        %v2424 = vsel %vm1318, %v2389, 0
        %v2427 = vsel %vm1318, %v2390, 0
        %v2430 = vsel %vm1318, %v2391, 0
        %v2433 = vsel %vm1318, %v2392, 0
        %v2436 = vsel %vm1318, %v2393, 0
        %v2439 = vsel %vm1318, %v2394, 0
        %v2442 = vsel %vm1318, %v2395, 0
        %v2445 = vsel %vm1318, %v2396, 0
        %v2448 = vsel %vm1318, %v2397, 0
        %v2451 = vsel %vm1318, %v2398, 0
        %2453 = vmatprep.subr.bf16.mxu0 0
        %2454 = vmatpush1.bf16.msra.mxu0 0
        %2455 = vmatprep.subr.bf16.mxu0 0
        %2456 = vmatpush1.bf16.msra.mxu0 0
        %2457 = vmatprep.subr.bf16.mxu0 0
        %2458 = vmatpush1.bf16.msra.mxu0 0
        %2459 = vmatprep.subr.bf16.mxu0 0
        %2460 = vmatpush1.bf16.msra.mxu0 0
        %2461 = vmatprep.subr.bf16.mxu0 0
        %2462 = vmatpush1.bf16.msra.mxu0 0
        %2463 = vmatprep.subr.bf16.mxu0 0
        %2464 = vmatpush1.bf16.msra.mxu0 0
        %2465 = vmatprep.subr.bf16.mxu0 0
        %2466 = vmatpush1.bf16.msra.mxu0 0
        %2467 = vmatprep.subr.bf16.mxu0 0
        %2468 = vmatpush1.bf16.msra.mxu0 %v2403
        %2469 = vmatprep.subr.bf16.mxu0 0
        %2470 = vmatpush2.bf16.msra.mxu0 0
        %2471 = vmatprep.subr.bf16.mxu0 0
        %2472 = vmatpush2.bf16.msra.mxu0 0
        %2473 = vmatprep.subr.bf16.mxu0 0
        %2474 = vmatpush2.bf16.msra.mxu0 0
        %2475 = vmatprep.subr.bf16.mxu0 0
        %2476 = vmatpush2.bf16.msra.mxu0 0
        %2477 = vmatprep.subr.bf16.mxu0 0
        %2478 = vmatpush2.bf16.msra.mxu0 0
        %2479 = vmatprep.subr.bf16.mxu0 0
        %2480 = vmatpush2.bf16.msra.mxu0 0
        %2481 = vmatprep.subr.bf16.mxu0 0
        %2482 = vmatpush2.bf16.msra.mxu0 0
        %2483 = vmatprep.subr.bf16.mxu0 0
        %2484 = vmatpush2.bf16.msra.mxu0 0
        %2485 = vmatprep.mubr.bf16.mxu0 0
        %2486 = vmatmul.mubr.bf16.gmra.mxu0 %v2406
        %v2487 = vpop.f32.mrf.mxu0
        %v2488 = vadd.f32 0.0, %v2487
        %v2489 = vpop.f32.mrf.mxu0
        %v2490 = vpop.f32.mrf.mxu0
        %v2491 = vadd.f32 0.0, %v2490
        %v2492 = vpop.f32.mrf.mxu0
        %2493 = vmatprep.mubr.bf16.mxu0 0
        %2494 = vmatmul.mubr.bf16.gmra.mxu0 %v2409
        %v2495 = vpop.f32.mrf.mxu0
        %v2496 = vadd.f32 0.0, %v2495
        %v2497 = vpop.f32.mrf.mxu0
        %v2498 = vpop.f32.mrf.mxu0
        %v2499 = vadd.f32 0.0, %v2498
        %v2500 = vpop.f32.mrf.mxu0
        %2501 = vmatprep.mubr.bf16.mxu0 0
        %2502 = vmatmul.mubr.bf16.gmra.mxu0 %v2412
        %v2503 = vpop.f32.mrf.mxu0
        %v2504 = vadd.f32 0.0, %v2503
        %v2505 = vpop.f32.mrf.mxu0
        %v2506 = vpop.f32.mrf.mxu0
        %v2507 = vadd.f32 0.0, %v2506
        %v2508 = vpop.f32.mrf.mxu0
        %2509 = vmatprep.mubr.bf16.mxu0 0
        %2510 = vmatmul.mubr.bf16.gmra.mxu0 %v2415
        %v2511 = vpop.f32.mrf.mxu0
        %v2512 = vadd.f32 0.0, %v2511
        %v2513 = vpop.f32.mrf.mxu0
        %v2514 = vpop.f32.mrf.mxu0
        %v2515 = vadd.f32 0.0, %v2514
        %v2516 = vpop.f32.mrf.mxu0
        %2517 = vmatprep.mubr.bf16.mxu0 0
        %2518 = vmatmul.mubr.bf16.gmra.mxu0 %v2418
        %v2519 = vpop.f32.mrf.mxu0
        %v2520 = vadd.f32 0.0, %v2519
        %v2521 = vpop.f32.mrf.mxu0
        %v2522 = vpop.f32.mrf.mxu0
        %v2523 = vadd.f32 0.0, %v2522
        %v2524 = vpop.f32.mrf.mxu0
        %2525 = vmatprep.mubr.bf16.mxu0 0
        %2526 = vmatmul.mubr.bf16.gmra.mxu0 %v2421
        %v2527 = vpop.f32.mrf.mxu0
        %v2528 = vadd.f32 0.0, %v2527
        %v2529 = vpop.f32.mrf.mxu0
        %v2530 = vpop.f32.mrf.mxu0
        %v2531 = vadd.f32 0.0, %v2530
        %v2532 = vpop.f32.mrf.mxu0
        %2533 = vmatprep.mubr.bf16.mxu0 0
        %2534 = vmatmul.mubr.bf16.gmra.mxu0 %v2424
        %v2535 = vpop.f32.mrf.mxu0
        %v2536 = vadd.f32 0.0, %v2535
        %v2537 = vpop.f32.mrf.mxu0
        %v2538 = vpop.f32.mrf.mxu0
        %v2539 = vadd.f32 0.0, %v2538
        %v2540 = vpop.f32.mrf.mxu0
        %2541 = vmatprep.mubr.bf16.mxu0 0
        %2542 = vmatmul.mubr.bf16.gmra.mxu0 %v2427
        %v2543 = vpop.f32.mrf.mxu0
        %v2544 = vadd.f32 0.0, %v2543
        %v2545 = vpop.f32.mrf.mxu0
        %v2546 = vpop.f32.mrf.mxu0
        %v2547 = vadd.f32 0.0, %v2546
        %v2548 = vpop.f32.mrf.mxu0
        %2549 = vmatprep.mubr.bf16.mxu0 0
        %2550 = vmatmul.mubr.bf16.gmra.mxu0 %v2430
        %v2551 = vpop.f32.mrf.mxu0
        %v2552 = vadd.f32 0.0, %v2551
        %v2553 = vpop.f32.mrf.mxu0
        %v2554 = vpop.f32.mrf.mxu0
        %v2555 = vadd.f32 0.0, %v2554
        %v2556 = vpop.f32.mrf.mxu0
        %2557 = vmatprep.mubr.bf16.mxu0 0
        %2558 = vmatmul.mubr.bf16.gmra.mxu0 %v2433
        %v2559 = vpop.f32.mrf.mxu0
        %v2560 = vadd.f32 0.0, %v2559
        %v2561 = vpop.f32.mrf.mxu0
        %v2562 = vpop.f32.mrf.mxu0
        %v2563 = vadd.f32 0.0, %v2562
        %v2564 = vpop.f32.mrf.mxu0
        %2565 = vmatprep.mubr.bf16.mxu0 0
        %2566 = vmatmul.mubr.bf16.gmra.mxu0 %v2436
        %v2567 = vpop.f32.mrf.mxu0
        %v2568 = vadd.f32 0.0, %v2567
        %v2569 = vpop.f32.mrf.mxu0
        %v2570 = vpop.f32.mrf.mxu0
        %v2571 = vadd.f32 0.0, %v2570
        %v2572 = vpop.f32.mrf.mxu0
        %2573 = vmatprep.mubr.bf16.mxu0 0
        %2574 = vmatmul.mubr.bf16.gmra.mxu0 %v2439
        %v2575 = vpop.f32.mrf.mxu0
        %v2576 = vadd.f32 0.0, %v2575
        %v2577 = vpop.f32.mrf.mxu0
        %v2578 = vpop.f32.mrf.mxu0
        %v2579 = vadd.f32 0.0, %v2578
        %v2580 = vpop.f32.mrf.mxu0
        %2581 = vmatprep.mubr.bf16.mxu0 0
        %2582 = vmatmul.mubr.bf16.gmra.mxu0 %v2442
        %v2583 = vpop.f32.mrf.mxu0
        %v2584 = vadd.f32 0.0, %v2583
        %v2585 = vpop.f32.mrf.mxu0
        %v2586 = vpop.f32.mrf.mxu0
        %v2587 = vadd.f32 0.0, %v2586
        %v2588 = vpop.f32.mrf.mxu0
        %2589 = vmatprep.mubr.bf16.mxu0 0
        %2590 = vmatmul.mubr.bf16.gmra.mxu0 %v2445
        %v2591 = vpop.f32.mrf.mxu0
        %v2592 = vadd.f32 0.0, %v2591
        %v2593 = vpop.f32.mrf.mxu0
        %v2594 = vpop.f32.mrf.mxu0
        %v2595 = vadd.f32 0.0, %v2594
        %v2596 = vpop.f32.mrf.mxu0
        %2597 = vmatprep.mubr.bf16.mxu0 0
        %2598 = vmatmul.mubr.bf16.gmra.mxu0 %v2448
        %v2599 = vpop.f32.mrf.mxu0
        %v2600 = vadd.f32 0.0, %v2599
        %v2601 = vpop.f32.mrf.mxu0
        %v2602 = vpop.f32.mrf.mxu0
        %v2603 = vadd.f32 0.0, %v2602
        %v2604 = vpop.f32.mrf.mxu0
        %2605 = vmatprep.mubr.bf16.mxu0 0
        %2606 = vmatmul.mubr.bf16.gmra.mxu0 %v2451
        %v2607 = vpop.f32.mrf.mxu0
        %v2608 = vadd.f32 0.0, %v2607
        %v2609 = vpop.f32.mrf.mxu0
        %v2610 = vpop.f32.mrf.mxu0
        %v2611 = vadd.f32 0.0, %v2610
        %v2612 = vpop.f32.mrf.mxu0
        %2613 = vdwg.mxu0
        %v2614 = vadd.f32 %v2252, %v2488
        %v2615 = vadd.f32 %v2253, %v2491
        %v2616 = vadd.f32 %v2254, %v2496
        %v2617 = vadd.f32 %v2255, %v2499
        %v2618 = vadd.f32 %v2256, %v2504
        %v2619 = vadd.f32 %v2257, %v2507
        %v2620 = vadd.f32 %v2258, %v2512
        %v2621 = vadd.f32 %v2259, %v2515
        %v2622 = vadd.f32 %v2260, %v2520
        %v2623 = vadd.f32 %v2261, %v2523
        %v2624 = vadd.f32 %v2262, %v2528
        %v2625 = vadd.f32 %v2263, %v2531
        %v2626 = vadd.f32 %v2264, %v2536
        %v2627 = vadd.f32 %v2265, %v2539
        %v2628 = vadd.f32 %v2266, %v2544
        %v2629 = vadd.f32 %v2267, %v2547
        %v2630 = vadd.f32 %v2268, %v2552
        %v2631 = vadd.f32 %v2269, %v2555
        %v2632 = vadd.f32 %v2270, %v2560
        %v2633 = vadd.f32 %v2271, %v2563
        %v2634 = vadd.f32 %v2272, %v2568
        %v2635 = vadd.f32 %v2273, %v2571
        %v2636 = vadd.f32 %v2274, %v2576
        %v2637 = vadd.f32 %v2275, %v2579
        %v2638 = vadd.f32 %v2276, %v2584
        %v2639 = vadd.f32 %v2277, %v2587
        %v2640 = vadd.f32 %v2278, %v2592
        %v2641 = vadd.f32 %v2279, %v2595
        %v2642 = vadd.f32 %v2280, %v2600
        %v2643 = vadd.f32 %v2281, %v2603
        %v2644 = vadd.f32 %v2282, %v2608
        %v2645 = vadd.f32 %v2283, %v2611
        %v2646 = vld [vmem:[%s254] sm:$0xf]
        %v2647 = vld [vmem:[%s254 + $0x4] sm:$0xf]
        %v2648 = vld [vmem:[%s254 + $0x8] sm:$0x1]
        %v2649 = vld [vmem:[%s254 + $0xc] sm:$0xf]
        %v2650 = vld [vmem:[%s254 + $0x10] sm:$0xf]
        %v2651 = vld [vmem:[%s254 + $0x14] sm:$0x1]
        %v2652 = vld [vmem:[%s254 + $0x18] sm:$0xf]
        %v2653 = vld [vmem:[%s254 + $0x1c] sm:$0xf]
        %v2654 = vld [vmem:[%s254 + $0x20] sm:$0x1]
        %v2655 = vld [vmem:[%s254 + $0x24] sm:$0xf]
        %v2656 = vld [vmem:[%s254 + $0x28] sm:$0xf]
        %v2657 = vld [vmem:[%s254 + $0x2c] sm:$0x1]
        %v2658 = vld [vmem:[%s254 + $0x30] sm:$0xf]
        %v2659 = vld [vmem:[%s254 + $0x34] sm:$0xf]
        %v2660 = vld [vmem:[%s254 + $0x38] sm:$0x1]
        %v2661 = vld [vmem:[%s254 + $0x3c] sm:$0xf]
        %v2662 = vld [vmem:[%s254 + $0x40] sm:$0xf]
        %v2663 = vld [vmem:[%s254 + $0x44] sm:$0x1]
        %v2664 = vld [vmem:[%s254 + $0x48] sm:$0xf]
        %v2665 = vld [vmem:[%s254 + $0x4c] sm:$0xf]
        %v2666 = vld [vmem:[%s254 + $0x50] sm:$0x1]
        %v2667 = vld [vmem:[%s254 + $0x54] sm:$0xf]
        %v2668 = vld [vmem:[%s254 + $0x58] sm:$0xf]
        %v2669 = vld [vmem:[%s254 + $0x5c] sm:$0x1]
        %v2670 = vld [vmem:[%s254 + $0x60] sm:$0xf]
        %v2671 = vld [vmem:[%s254 + $0x64] sm:$0xf]
        %v2672 = vld [vmem:[%s254 + $0x68] sm:$0x1]
        %v2673 = vld [vmem:[%s254 + $0x6c] sm:$0xf]
        %v2674 = vld [vmem:[%s254 + $0x70] sm:$0xf]
        %v2675 = vld [vmem:[%s254 + $0x74] sm:$0x1]
        %v2676 = vld [vmem:[%s254 + $0x78] sm:$0xf]
        %v2677 = vld [vmem:[%s254 + $0x7c] sm:$0xf]
        %v2678 = vld [vmem:[%s254 + $0x80] sm:$0x1]
        %v2679 = vld [vmem:[%s254 + $0x84] sm:$0xf]
        %v2680 = vld [vmem:[%s254 + $0x88] sm:$0xf]
        %v2681 = vld [vmem:[%s254 + $0x8c] sm:$0x1]
        %v2682 = vld [vmem:[%s254 + $0x90] sm:$0xf]
        %v2683 = vld [vmem:[%s254 + $0x94] sm:$0xf]
        %v2684 = vld [vmem:[%s254 + $0x98] sm:$0x1]
        %v2685 = vld [vmem:[%s254 + $0x9c] sm:$0xf]
        %v2686 = vld [vmem:[%s254 + $0xa0] sm:$0xf]
        %v2687 = vld [vmem:[%s254 + $0xa4] sm:$0x1]
        %v2688 = vld [vmem:[%s254 + $0xa8] sm:$0xf]
        %v2689 = vld [vmem:[%s254 + $0xac] sm:$0xf]
        %v2690 = vld [vmem:[%s254 + $0xb0] sm:$0x1]
        %v2691 = vld [vmem:[%s254 + $0xb4] sm:$0xf]
        %v2692 = vld [vmem:[%s254 + $0xb8] sm:$0xf]
        %v2693 = vld [vmem:[%s254 + $0xbc] sm:$0x1]
        %v2695 = vshrl.u32 %v2646, 16
        %v2697 = vrot.slane %v2695, 4
        %v2698 = vshll.u32 %v2646, 16
        %v2700 = vrot.slane %v2698, 5
        %v2701 = vor.u32 %v2697, %v2700
        %v2702 = vrot.slane %v2701, 4
        %v2704 = vshll.u32 %v2647, 16
        %v2706 = vrot.slane %v2704, 5
        %v2707 = vsel %vm876, %v2702, %v2706
        %v2708 = vshrl.u32 %v2647, 16
        %v2710 = vrot.slane %v2708, 4
        %v2711 = vor.u32 %v2710, %v2706
        %v2712 = vrot.slane %v2711, 4
        %v2714 = vshll.u32 %v2648, 16
        %v2716 = vrot.slane %v2714, 5
        %v2717 = vsel %vm876, %v2712, %v2716
        %v2719 = vshrl.u32 %v2649, 16
        %v2721 = vrot.slane %v2719, 4
        %v2722 = vshll.u32 %v2649, 16
        %v2724 = vrot.slane %v2722, 5
        %v2725 = vor.u32 %v2721, %v2724
        %v2726 = vrot.slane %v2725, 4
        %v2728 = vshll.u32 %v2650, 16
        %v2730 = vrot.slane %v2728, 5
        %v2731 = vsel %vm876, %v2726, %v2730
        %v2732 = vshrl.u32 %v2650, 16
        %v2734 = vrot.slane %v2732, 4
        %v2735 = vor.u32 %v2734, %v2730
        %v2736 = vrot.slane %v2735, 4
        %v2738 = vshll.u32 %v2651, 16
        %v2740 = vrot.slane %v2738, 5
        %v2741 = vsel %vm876, %v2736, %v2740
        %v2743 = vshrl.u32 %v2652, 16
        %v2745 = vrot.slane %v2743, 4
        %v2746 = vshll.u32 %v2652, 16
        %v2748 = vrot.slane %v2746, 5
        %v2749 = vor.u32 %v2745, %v2748
        %v2750 = vrot.slane %v2749, 4
        %v2752 = vshll.u32 %v2653, 16
        %v2754 = vrot.slane %v2752, 5
        %v2755 = vsel %vm876, %v2750, %v2754
        %v2756 = vshrl.u32 %v2653, 16
        %v2758 = vrot.slane %v2756, 4
        %v2759 = vor.u32 %v2758, %v2754
        %v2760 = vrot.slane %v2759, 4
        %v2762 = vshll.u32 %v2654, 16
        %v2764 = vrot.slane %v2762, 5
        %v2765 = vsel %vm876, %v2760, %v2764
        %v2767 = vshrl.u32 %v2655, 16
        %v2769 = vrot.slane %v2767, 4
        %v2770 = vshll.u32 %v2655, 16
        %v2772 = vrot.slane %v2770, 5
        %v2773 = vor.u32 %v2769, %v2772
        %v2774 = vrot.slane %v2773, 4
        %v2776 = vshll.u32 %v2656, 16
        %v2778 = vrot.slane %v2776, 5
        %v2779 = vsel %vm876, %v2774, %v2778
        %v2780 = vshrl.u32 %v2656, 16
        %v2782 = vrot.slane %v2780, 4
        %v2783 = vor.u32 %v2782, %v2778
        %v2784 = vrot.slane %v2783, 4
        %v2786 = vshll.u32 %v2657, 16
        %v2788 = vrot.slane %v2786, 5
        %v2789 = vsel %vm876, %v2784, %v2788
        %v2791 = vshrl.u32 %v2658, 16
        %v2793 = vrot.slane %v2791, 4
        %v2794 = vshll.u32 %v2658, 16
        %v2796 = vrot.slane %v2794, 5
        %v2797 = vor.u32 %v2793, %v2796
        %v2798 = vrot.slane %v2797, 4
        %v2800 = vshll.u32 %v2659, 16
        %v2802 = vrot.slane %v2800, 5
        %v2803 = vsel %vm876, %v2798, %v2802
        %v2804 = vshrl.u32 %v2659, 16
        %v2806 = vrot.slane %v2804, 4
        %v2807 = vor.u32 %v2806, %v2802
        %v2808 = vrot.slane %v2807, 4
        %v2810 = vshll.u32 %v2660, 16
        %v2812 = vrot.slane %v2810, 5
        %v2813 = vsel %vm876, %v2808, %v2812
        %v2815 = vshrl.u32 %v2661, 16
        %v2817 = vrot.slane %v2815, 4
        %v2818 = vshll.u32 %v2661, 16
        %v2820 = vrot.slane %v2818, 5
        %v2821 = vor.u32 %v2817, %v2820
        %v2822 = vrot.slane %v2821, 4
        %v2824 = vshll.u32 %v2662, 16
        %v2826 = vrot.slane %v2824, 5
        %v2827 = vsel %vm876, %v2822, %v2826
        %v2828 = vshrl.u32 %v2662, 16
        %v2830 = vrot.slane %v2828, 4
        %v2831 = vor.u32 %v2830, %v2826
        %v2832 = vrot.slane %v2831, 4
        %v2834 = vshll.u32 %v2663, 16
        %v2836 = vrot.slane %v2834, 5
        %v2837 = vsel %vm876, %v2832, %v2836
        %v2839 = vshrl.u32 %v2664, 16
        %v2841 = vrot.slane %v2839, 4
        %v2842 = vshll.u32 %v2664, 16
        %v2844 = vrot.slane %v2842, 5
        %v2845 = vor.u32 %v2841, %v2844
        %v2846 = vrot.slane %v2845, 4
        %v2848 = vshll.u32 %v2665, 16
        %v2850 = vrot.slane %v2848, 5
        %v2851 = vsel %vm876, %v2846, %v2850
        %v2852 = vshrl.u32 %v2665, 16
        %v2854 = vrot.slane %v2852, 4
        %v2855 = vor.u32 %v2854, %v2850
        %v2856 = vrot.slane %v2855, 4
        %v2858 = vshll.u32 %v2666, 16
        %v2860 = vrot.slane %v2858, 5
        %v2861 = vsel %vm876, %v2856, %v2860
        %v2863 = vshrl.u32 %v2667, 16
        %v2865 = vrot.slane %v2863, 4
        %v2866 = vshll.u32 %v2667, 16
        %v2868 = vrot.slane %v2866, 5
        %v2869 = vor.u32 %v2865, %v2868
        %v2870 = vrot.slane %v2869, 4
        %v2872 = vshll.u32 %v2668, 16
        %v2874 = vrot.slane %v2872, 5
        %v2875 = vsel %vm876, %v2870, %v2874
        %v2876 = vshrl.u32 %v2668, 16
        %v2878 = vrot.slane %v2876, 4
        %v2879 = vor.u32 %v2878, %v2874
        %v2880 = vrot.slane %v2879, 4
        %v2882 = vshll.u32 %v2669, 16
        %v2884 = vrot.slane %v2882, 5
        %v2885 = vsel %vm876, %v2880, %v2884
        %v2887 = vshrl.u32 %v2670, 16
        %v2889 = vrot.slane %v2887, 4
        %v2890 = vshll.u32 %v2670, 16
        %v2892 = vrot.slane %v2890, 5
        %v2893 = vor.u32 %v2889, %v2892
        %v2894 = vrot.slane %v2893, 4
        %v2896 = vshll.u32 %v2671, 16
        %v2898 = vrot.slane %v2896, 5
        %v2899 = vsel %vm876, %v2894, %v2898
        %v2900 = vshrl.u32 %v2671, 16
        %v2902 = vrot.slane %v2900, 4
        %v2903 = vor.u32 %v2902, %v2898
        %v2904 = vrot.slane %v2903, 4
        %v2906 = vshll.u32 %v2672, 16
        %v2908 = vrot.slane %v2906, 5
        %v2909 = vsel %vm876, %v2904, %v2908
        %v2911 = vshrl.u32 %v2673, 16
        %v2913 = vrot.slane %v2911, 4
        %v2914 = vshll.u32 %v2673, 16
        %v2916 = vrot.slane %v2914, 5
        %v2917 = vor.u32 %v2913, %v2916
        %v2918 = vrot.slane %v2917, 4
        %v2920 = vshll.u32 %v2674, 16
        %v2922 = vrot.slane %v2920, 5
        %v2923 = vsel %vm876, %v2918, %v2922
        %v2924 = vshrl.u32 %v2674, 16
        %v2926 = vrot.slane %v2924, 4
        %v2927 = vor.u32 %v2926, %v2922
        %v2928 = vrot.slane %v2927, 4
        %v2930 = vshll.u32 %v2675, 16
        %v2932 = vrot.slane %v2930, 5
        %v2933 = vsel %vm876, %v2928, %v2932
        %v2935 = vshrl.u32 %v2676, 16
        %v2937 = vrot.slane %v2935, 4
        %v2938 = vshll.u32 %v2676, 16
        %v2940 = vrot.slane %v2938, 5
        %v2941 = vor.u32 %v2937, %v2940
        %v2942 = vrot.slane %v2941, 4
        %v2944 = vshll.u32 %v2677, 16
        %v2946 = vrot.slane %v2944, 5
        %v2947 = vsel %vm876, %v2942, %v2946
        %v2948 = vshrl.u32 %v2677, 16
        %v2950 = vrot.slane %v2948, 4
        %v2951 = vor.u32 %v2950, %v2946
        %v2952 = vrot.slane %v2951, 4
        %v2954 = vshll.u32 %v2678, 16
        %v2956 = vrot.slane %v2954, 5
        %v2957 = vsel %vm876, %v2952, %v2956
        %v2959 = vshrl.u32 %v2679, 16
        %v2961 = vrot.slane %v2959, 4
        %v2962 = vshll.u32 %v2679, 16
        %v2964 = vrot.slane %v2962, 5
        %v2965 = vor.u32 %v2961, %v2964
        %v2966 = vrot.slane %v2965, 4
        %v2968 = vshll.u32 %v2680, 16
        %v2970 = vrot.slane %v2968, 5
        %v2971 = vsel %vm876, %v2966, %v2970
        %v2972 = vshrl.u32 %v2680, 16
        %v2974 = vrot.slane %v2972, 4
        %v2975 = vor.u32 %v2974, %v2970
        %v2976 = vrot.slane %v2975, 4
        %v2978 = vshll.u32 %v2681, 16
        %v2980 = vrot.slane %v2978, 5
        %v2981 = vsel %vm876, %v2976, %v2980
        %v2983 = vshrl.u32 %v2682, 16
        %v2985 = vrot.slane %v2983, 4
        %v2986 = vshll.u32 %v2682, 16
        %v2988 = vrot.slane %v2986, 5
        %v2989 = vor.u32 %v2985, %v2988
        %v2990 = vrot.slane %v2989, 4
        %v2992 = vshll.u32 %v2683, 16
        %v2994 = vrot.slane %v2992, 5
        %v2995 = vsel %vm876, %v2990, %v2994
        %v2996 = vshrl.u32 %v2683, 16
        %v2998 = vrot.slane %v2996, 4
        %v2999 = vor.u32 %v2998, %v2994
        %v3000 = vrot.slane %v2999, 4
        %v3002 = vshll.u32 %v2684, 16
        %v3004 = vrot.slane %v3002, 5
        %v3005 = vsel %vm876, %v3000, %v3004
        %v3007 = vshrl.u32 %v2685, 16
        %v3009 = vrot.slane %v3007, 4
        %v3010 = vshll.u32 %v2685, 16
        %v3012 = vrot.slane %v3010, 5
        %v3013 = vor.u32 %v3009, %v3012
        %v3014 = vrot.slane %v3013, 4
        %v3016 = vshll.u32 %v2686, 16
        %v3018 = vrot.slane %v3016, 5
        %v3019 = vsel %vm876, %v3014, %v3018
        %v3020 = vshrl.u32 %v2686, 16
        %v3022 = vrot.slane %v3020, 4
        %v3023 = vor.u32 %v3022, %v3018
        %v3024 = vrot.slane %v3023, 4
        %v3026 = vshll.u32 %v2687, 16
        %v3028 = vrot.slane %v3026, 5
        %v3029 = vsel %vm876, %v3024, %v3028
        %v3031 = vshrl.u32 %v2688, 16
        %v3033 = vrot.slane %v3031, 4
        %v3034 = vshll.u32 %v2688, 16
        %v3036 = vrot.slane %v3034, 5
        %v3037 = vor.u32 %v3033, %v3036
        %v3038 = vrot.slane %v3037, 4
        %v3040 = vshll.u32 %v2689, 16
        %v3042 = vrot.slane %v3040, 5
        %v3043 = vsel %vm876, %v3038, %v3042
        %v3044 = vshrl.u32 %v2689, 16
        %v3046 = vrot.slane %v3044, 4
        %v3047 = vor.u32 %v3046, %v3042
        %v3048 = vrot.slane %v3047, 4
        %v3050 = vshll.u32 %v2690, 16
        %v3052 = vrot.slane %v3050, 5
        %v3053 = vsel %vm876, %v3048, %v3052
        %v3055 = vshrl.u32 %v2691, 16
        %v3057 = vrot.slane %v3055, 4
        %v3058 = vshll.u32 %v2691, 16
        %v3060 = vrot.slane %v3058, 5
        %v3061 = vor.u32 %v3057, %v3060
        %v3062 = vrot.slane %v3061, 4
        %v3064 = vshll.u32 %v2692, 16
        %v3066 = vrot.slane %v3064, 5
        %v3067 = vsel %vm876, %v3062, %v3066
        %v3068 = vshrl.u32 %v2692, 16
        %v3070 = vrot.slane %v3068, 4
        %v3071 = vor.u32 %v3070, %v3066
        %v3072 = vrot.slane %v3071, 4
        %v3074 = vshll.u32 %v2693, 16
        %v3076 = vrot.slane %v3074, 5
        %v3077 = vsel %vm876, %v3072, %v3076
        %s3078 = scalar_lea.vmem [#allocation6], 32
        %v3079 = vld [vmem:[%s3078] sm:$0xf]
        %v3080 = vld [vmem:[%s3078 + $0x4] sm:$0xf]
        %v3081 = vunpack.c.l.b16 %v2707
        %v3082 = vunpack.c.l.b16 %v2717
        %v3083 = vunpack.c.l.b16 %v2731
        %v3084 = vunpack.c.l.b16 %v2741
        %v3085 = vunpack.c.l.b16 %v2755
        %v3086 = vunpack.c.l.b16 %v2765
        %v3087 = vunpack.c.l.b16 %v2779
        %v3088 = vunpack.c.l.b16 %v2789
        %v3089 = vunpack.c.l.b16 %v2803
        %v3090 = vunpack.c.l.b16 %v2813
        %v3091 = vunpack.c.l.b16 %v2827
        %v3092 = vunpack.c.l.b16 %v2837
        %v3093 = vunpack.c.l.b16 %v2851
        %v3094 = vunpack.c.l.b16 %v2861
        %v3095 = vunpack.c.l.b16 %v2875
        %v3096 = vunpack.c.l.b16 %v2885
        %v3097 = vunpack.c.l.b16 %v2899
        %v3098 = vunpack.c.l.b16 %v2909
        %v3099 = vunpack.c.l.b16 %v2923
        %v3100 = vunpack.c.l.b16 %v2933
        %v3101 = vunpack.c.l.b16 %v2947
        %v3102 = vunpack.c.l.b16 %v2957
        %v3103 = vunpack.c.l.b16 %v2971
        %v3104 = vunpack.c.l.b16 %v2981
        %v3105 = vunpack.c.l.b16 %v2995
        %v3106 = vunpack.c.l.b16 %v3005
        %v3107 = vunpack.c.l.b16 %v3019
        %v3108 = vunpack.c.l.b16 %v3029
        %v3109 = vunpack.c.l.b16 %v3043
        %v3110 = vunpack.c.l.b16 %v3053
        %v3111 = vunpack.c.l.b16 %v3067
        %v3112 = vunpack.c.l.b16 %v3077
        %v3113 = vpack.c.b16 %v3082, %v3081
        %v3114 = vpack.c.b16 %v3084, %v3083
        %v3115 = vpack.c.b16 %v3086, %v3085
        %v3116 = vpack.c.b16 %v3088, %v3087
        %v3117 = vpack.c.b16 %v3090, %v3089
        %v3118 = vpack.c.b16 %v3092, %v3091
        %v3119 = vpack.c.b16 %v3094, %v3093
        %v3120 = vpack.c.b16 %v3096, %v3095
        %v3121 = vpack.c.b16 %v3098, %v3097
        %v3122 = vpack.c.b16 %v3100, %v3099
        %v3123 = vpack.c.b16 %v3102, %v3101
        %v3124 = vpack.c.b16 %v3104, %v3103
        %v3125 = vpack.c.b16 %v3106, %v3105
        %v3126 = vpack.c.b16 %v3108, %v3107
        %v3127 = vpack.c.b16 %v3110, %v3109
        %v3128 = vpack.c.b16 %v3112, %v3111
        %v3131 = vunpack.c.l.b16 %v3079
        %v3132 = vunpack.c.l.b16 %v3080
        %v3133 = vpack.c.b16 %v3132, %v3131
        %v3136 = vsel %vm1318, %v3113, 0
        %v3139 = vsel %vm1318, %v3114, 0
        %v3142 = vsel %vm1318, %v3115, 0
        %v3145 = vsel %vm1318, %v3116, 0
        %v3148 = vsel %vm1318, %v3117, 0
        %v3151 = vsel %vm1318, %v3118, 0
        %v3154 = vsel %vm1318, %v3119, 0
        %v3157 = vsel %vm1318, %v3120, 0
        %v3160 = vsel %vm1318, %v3121, 0
        %v3163 = vsel %vm1318, %v3122, 0
        %v3166 = vsel %vm1318, %v3123, 0
        %v3169 = vsel %vm1318, %v3124, 0
        %v3172 = vsel %vm1318, %v3125, 0
        %v3175 = vsel %vm1318, %v3126, 0
        %v3178 = vsel %vm1318, %v3127, 0
        %v3181 = vsel %vm1318, %v3128, 0
        %3183 = vmatprep.subr.bf16.mxu0 0
        %3184 = vmatpush1.bf16.msra.mxu0 0
        %3185 = vmatprep.subr.bf16.mxu0 0
        %3186 = vmatpush1.bf16.msra.mxu0 0
        %3187 = vmatprep.subr.bf16.mxu0 0
        %3188 = vmatpush1.bf16.msra.mxu0 0
        %3189 = vmatprep.subr.bf16.mxu0 0
        %3190 = vmatpush1.bf16.msra.mxu0 0
        %3191 = vmatprep.subr.bf16.mxu0 0
        %3192 = vmatpush1.bf16.msra.mxu0 0
        %3193 = vmatprep.subr.bf16.mxu0 0
        %3194 = vmatpush1.bf16.msra.mxu0 0
        %3195 = vmatprep.subr.bf16.mxu0 0
        %3196 = vmatpush1.bf16.msra.mxu0 0
        %3197 = vmatprep.subr.bf16.mxu0 0
        %3198 = vmatpush1.bf16.msra.mxu0 %v3133
        %3199 = vmatprep.subr.bf16.mxu0 0
        %3200 = vmatpush2.bf16.msra.mxu0 0
        %3201 = vmatprep.subr.bf16.mxu0 0
        %3202 = vmatpush2.bf16.msra.mxu0 0
        %3203 = vmatprep.subr.bf16.mxu0 0
        %3204 = vmatpush2.bf16.msra.mxu0 0
        %3205 = vmatprep.subr.bf16.mxu0 0
        %3206 = vmatpush2.bf16.msra.mxu0 0
        %3207 = vmatprep.subr.bf16.mxu0 0
        %3208 = vmatpush2.bf16.msra.mxu0 0
        %3209 = vmatprep.subr.bf16.mxu0 0
        %3210 = vmatpush2.bf16.msra.mxu0 0
        %3211 = vmatprep.subr.bf16.mxu0 0
        %3212 = vmatpush2.bf16.msra.mxu0 0
        %3213 = vmatprep.subr.bf16.mxu0 0
        %3214 = vmatpush2.bf16.msra.mxu0 0
        %3215 = vmatprep.mubr.bf16.mxu0 0
        %3216 = vmatmul.mubr.bf16.gmra.mxu0 %v3136
        %v3217 = vpop.f32.mrf.mxu0
        %v3218 = vadd.f32 0.0, %v3217
        %v3219 = vpop.f32.mrf.mxu0
        %v3220 = vpop.f32.mrf.mxu0
        %v3221 = vadd.f32 0.0, %v3220
        %v3222 = vpop.f32.mrf.mxu0
        %3223 = vmatprep.mubr.bf16.mxu0 0
        %3224 = vmatmul.mubr.bf16.gmra.mxu0 %v3139
        %v3225 = vpop.f32.mrf.mxu0
        %v3226 = vadd.f32 0.0, %v3225
        %v3227 = vpop.f32.mrf.mxu0
        %v3228 = vpop.f32.mrf.mxu0
        %v3229 = vadd.f32 0.0, %v3228
        %v3230 = vpop.f32.mrf.mxu0
        %3231 = vmatprep.mubr.bf16.mxu0 0
        %3232 = vmatmul.mubr.bf16.gmra.mxu0 %v3142
        %v3233 = vpop.f32.mrf.mxu0
        %v3234 = vadd.f32 0.0, %v3233
        %v3235 = vpop.f32.mrf.mxu0
        %v3236 = vpop.f32.mrf.mxu0
        %v3237 = vadd.f32 0.0, %v3236
        %v3238 = vpop.f32.mrf.mxu0
        %3239 = vmatprep.mubr.bf16.mxu0 0
        %3240 = vmatmul.mubr.bf16.gmra.mxu0 %v3145
        %v3241 = vpop.f32.mrf.mxu0
        %v3242 = vadd.f32 0.0, %v3241
        %v3243 = vpop.f32.mrf.mxu0
        %v3244 = vpop.f32.mrf.mxu0
        %v3245 = vadd.f32 0.0, %v3244
        %v3246 = vpop.f32.mrf.mxu0
        %3247 = vmatprep.mubr.bf16.mxu0 0
        %3248 = vmatmul.mubr.bf16.gmra.mxu0 %v3148
        %v3249 = vpop.f32.mrf.mxu0
        %v3250 = vadd.f32 0.0, %v3249
        %v3251 = vpop.f32.mrf.mxu0
        %v3252 = vpop.f32.mrf.mxu0
        %v3253 = vadd.f32 0.0, %v3252
        %v3254 = vpop.f32.mrf.mxu0
        %3255 = vmatprep.mubr.bf16.mxu0 0
        %3256 = vmatmul.mubr.bf16.gmra.mxu0 %v3151
        %v3257 = vpop.f32.mrf.mxu0
        %v3258 = vadd.f32 0.0, %v3257
        %v3259 = vpop.f32.mrf.mxu0
        %v3260 = vpop.f32.mrf.mxu0
        %v3261 = vadd.f32 0.0, %v3260
        %v3262 = vpop.f32.mrf.mxu0
        %3263 = vmatprep.mubr.bf16.mxu0 0
        %3264 = vmatmul.mubr.bf16.gmra.mxu0 %v3154
        %v3265 = vpop.f32.mrf.mxu0
        %v3266 = vadd.f32 0.0, %v3265
        %v3267 = vpop.f32.mrf.mxu0
        %v3268 = vpop.f32.mrf.mxu0
        %v3269 = vadd.f32 0.0, %v3268
        %v3270 = vpop.f32.mrf.mxu0
        %3271 = vmatprep.mubr.bf16.mxu0 0
        %3272 = vmatmul.mubr.bf16.gmra.mxu0 %v3157
        %v3273 = vpop.f32.mrf.mxu0
        %v3274 = vadd.f32 0.0, %v3273
        %v3275 = vpop.f32.mrf.mxu0
        %v3276 = vpop.f32.mrf.mxu0
        %v3277 = vadd.f32 0.0, %v3276
        %v3278 = vpop.f32.mrf.mxu0
        %3279 = vmatprep.mubr.bf16.mxu0 0
        %3280 = vmatmul.mubr.bf16.gmra.mxu0 %v3160
        %v3281 = vpop.f32.mrf.mxu0
        %v3282 = vadd.f32 0.0, %v3281
        %v3283 = vpop.f32.mrf.mxu0
        %v3284 = vpop.f32.mrf.mxu0
        %v3285 = vadd.f32 0.0, %v3284
        %v3286 = vpop.f32.mrf.mxu0
        %3287 = vmatprep.mubr.bf16.mxu0 0
        %3288 = vmatmul.mubr.bf16.gmra.mxu0 %v3163
        %v3289 = vpop.f32.mrf.mxu0
        %v3290 = vadd.f32 0.0, %v3289
        %v3291 = vpop.f32.mrf.mxu0
        %v3292 = vpop.f32.mrf.mxu0
        %v3293 = vadd.f32 0.0, %v3292
        %v3294 = vpop.f32.mrf.mxu0
        %3295 = vmatprep.mubr.bf16.mxu0 0
        %3296 = vmatmul.mubr.bf16.gmra.mxu0 %v3166
        %v3297 = vpop.f32.mrf.mxu0
        %v3298 = vadd.f32 0.0, %v3297
        %v3299 = vpop.f32.mrf.mxu0
        %v3300 = vpop.f32.mrf.mxu0
        %v3301 = vadd.f32 0.0, %v3300
        %v3302 = vpop.f32.mrf.mxu0
        %3303 = vmatprep.mubr.bf16.mxu0 0
        %3304 = vmatmul.mubr.bf16.gmra.mxu0 %v3169
        %v3305 = vpop.f32.mrf.mxu0
        %v3306 = vadd.f32 0.0, %v3305
        %v3307 = vpop.f32.mrf.mxu0
        %v3308 = vpop.f32.mrf.mxu0
        %v3309 = vadd.f32 0.0, %v3308
        %v3310 = vpop.f32.mrf.mxu0
        %3311 = vmatprep.mubr.bf16.mxu0 0
        %3312 = vmatmul.mubr.bf16.gmra.mxu0 %v3172
        %v3313 = vpop.f32.mrf.mxu0
        %v3314 = vadd.f32 0.0, %v3313
        %v3315 = vpop.f32.mrf.mxu0
        %v3316 = vpop.f32.mrf.mxu0
        %v3317 = vadd.f32 0.0, %v3316
        %v3318 = vpop.f32.mrf.mxu0
        %3319 = vmatprep.mubr.bf16.mxu0 0
        %3320 = vmatmul.mubr.bf16.gmra.mxu0 %v3175
        %v3321 = vpop.f32.mrf.mxu0
        %v3322 = vadd.f32 0.0, %v3321
        %v3323 = vpop.f32.mrf.mxu0
        %v3324 = vpop.f32.mrf.mxu0
        %v3325 = vadd.f32 0.0, %v3324
        %v3326 = vpop.f32.mrf.mxu0
        %3327 = vmatprep.mubr.bf16.mxu0 0
        %3328 = vmatmul.mubr.bf16.gmra.mxu0 %v3178
        %v3329 = vpop.f32.mrf.mxu0
        %v3330 = vadd.f32 0.0, %v3329
        %v3331 = vpop.f32.mrf.mxu0
        %v3332 = vpop.f32.mrf.mxu0
        %v3333 = vadd.f32 0.0, %v3332
        %v3334 = vpop.f32.mrf.mxu0
        %3335 = vmatprep.mubr.bf16.mxu0 0
        %3336 = vmatmul.mubr.bf16.gmra.mxu0 %v3181
        %v3337 = vpop.f32.mrf.mxu0
        %v3338 = vadd.f32 0.0, %v3337
        %v3339 = vpop.f32.mrf.mxu0
        %v3340 = vpop.f32.mrf.mxu0
        %v3341 = vadd.f32 0.0, %v3340
        %v3342 = vpop.f32.mrf.mxu0
        %3343 = vdwg.mxu0
        %v3344 = vadd.f32 %v2614, %v3218
        %v3345 = vadd.f32 %v2615, %v3221
        %v3346 = vadd.f32 %v2616, %v3226
        %v3347 = vadd.f32 %v2617, %v3229
        %v3348 = vadd.f32 %v2618, %v3234
        %v3349 = vadd.f32 %v2619, %v3237
        %v3350 = vadd.f32 %v2620, %v3242
        %v3351 = vadd.f32 %v2621, %v3245
        %v3352 = vadd.f32 %v2622, %v3250
        %v3353 = vadd.f32 %v2623, %v3253
        %v3354 = vadd.f32 %v2624, %v3258
        %v3355 = vadd.f32 %v2625, %v3261
        %v3356 = vadd.f32 %v2626, %v3266
        %v3357 = vadd.f32 %v2627, %v3269
        %v3358 = vadd.f32 %v2628, %v3274
        %v3359 = vadd.f32 %v2629, %v3277
        %v3360 = vadd.f32 %v2630, %v3282
        %v3361 = vadd.f32 %v2631, %v3285
        %v3362 = vadd.f32 %v2632, %v3290
        %v3363 = vadd.f32 %v2633, %v3293
        %v3364 = vadd.f32 %v2634, %v3298
        %v3365 = vadd.f32 %v2635, %v3301
        %v3366 = vadd.f32 %v2636, %v3306
        %v3367 = vadd.f32 %v2637, %v3309
        %v3368 = vadd.f32 %v2638, %v3314
        %v3369 = vadd.f32 %v2639, %v3317
        %v3370 = vadd.f32 %v2640, %v3322
        %v3371 = vadd.f32 %v2641, %v3325
        %v3372 = vadd.f32 %v2642, %v3330
        %v3373 = vadd.f32 %v2643, %v3333
        %v3374 = vadd.f32 %v2644, %v3338
        %v3375 = vadd.f32 %v2645, %v3341
        %v3376 = vld [vmem:[%s254] sm:$0xe]
        %v3377 = vld [vmem:[%s254 + $0xc] sm:$0xe]
        %v3378 = vld [vmem:[%s254 + $0x18] sm:$0xe]
        %v3379 = vld [vmem:[%s254 + $0x24] sm:$0xe]
        %v3380 = vld [vmem:[%s254 + $0x30] sm:$0xe]
        %v3381 = vld [vmem:[%s254 + $0x3c] sm:$0xe]
        %v3382 = vld [vmem:[%s254 + $0x48] sm:$0xe]
        %v3383 = vld [vmem:[%s254 + $0x54] sm:$0xe]
        %v3384 = vld [vmem:[%s254 + $0x60] sm:$0xe]
        %v3385 = vld [vmem:[%s254 + $0x6c] sm:$0xe]
        %v3386 = vld [vmem:[%s254 + $0x78] sm:$0xe]
        %v3387 = vld [vmem:[%s254 + $0x84] sm:$0xe]
        %v3388 = vld [vmem:[%s254 + $0x90] sm:$0xe]
        %v3389 = vld [vmem:[%s254 + $0x9c] sm:$0xe]
        %v3390 = vld [vmem:[%s254 + $0xa8] sm:$0xe]
        %v3391 = vld [vmem:[%s254 + $0xb4] sm:$0xe]
        %v3440 = vrot.slane %v3376, 5
        %v3441 = vrot.slane %v3440, 4
        %v3442 = vrot.slane %v2647, 5
        %v3443 = vsel %vm1873, %v3441, %v3442
        %v3444 = vrot.slane %v3442, 4
        %v3445 = vrot.slane %v2648, 5
        %v3446 = vsel %vm1873, %v3444, %v3445
        %v3447 = vrot.slane %v3377, 5
        %v3448 = vrot.slane %v3447, 4
        %v3449 = vrot.slane %v2650, 5
        %v3450 = vsel %vm1873, %v3448, %v3449
        %v3451 = vrot.slane %v3449, 4
        %v3452 = vrot.slane %v2651, 5
        %v3453 = vsel %vm1873, %v3451, %v3452
        %v3454 = vrot.slane %v3378, 5
        %v3455 = vrot.slane %v3454, 4
        %v3456 = vrot.slane %v2653, 5
        %v3457 = vsel %vm1873, %v3455, %v3456
        %v3458 = vrot.slane %v3456, 4
        %v3459 = vrot.slane %v2654, 5
        %v3460 = vsel %vm1873, %v3458, %v3459
        %v3461 = vrot.slane %v3379, 5
        %v3462 = vrot.slane %v3461, 4
        %v3463 = vrot.slane %v2656, 5
        %v3464 = vsel %vm1873, %v3462, %v3463
        %v3465 = vrot.slane %v3463, 4
        %v3466 = vrot.slane %v2657, 5
        %v3467 = vsel %vm1873, %v3465, %v3466
        %v3468 = vrot.slane %v3380, 5
        %v3469 = vrot.slane %v3468, 4
        %v3470 = vrot.slane %v2659, 5
        %v3471 = vsel %vm1873, %v3469, %v3470
        %v3472 = vrot.slane %v3470, 4
        %v3473 = vrot.slane %v2660, 5
        %v3474 = vsel %vm1873, %v3472, %v3473
        %v3475 = vrot.slane %v3381, 5
        %v3476 = vrot.slane %v3475, 4
        %v3477 = vrot.slane %v2662, 5
        %v3478 = vsel %vm1873, %v3476, %v3477
        %v3479 = vrot.slane %v3477, 4
        %v3480 = vrot.slane %v2663, 5
        %v3481 = vsel %vm1873, %v3479, %v3480
        %v3482 = vrot.slane %v3382, 5
        %v3483 = vrot.slane %v3482, 4
        %v3484 = vrot.slane %v2665, 5
        %v3485 = vsel %vm1873, %v3483, %v3484
        %v3486 = vrot.slane %v3484, 4
        %v3487 = vrot.slane %v2666, 5
        %v3488 = vsel %vm1873, %v3486, %v3487
        %v3489 = vrot.slane %v3383, 5
        %v3490 = vrot.slane %v3489, 4
        %v3491 = vrot.slane %v2668, 5
        %v3492 = vsel %vm1873, %v3490, %v3491
        %v3493 = vrot.slane %v3491, 4
        %v3494 = vrot.slane %v2669, 5
        %v3495 = vsel %vm1873, %v3493, %v3494
        %v3496 = vrot.slane %v3384, 5
        %v3497 = vrot.slane %v3496, 4
        %v3498 = vrot.slane %v2671, 5
        %v3499 = vsel %vm1873, %v3497, %v3498
        %v3500 = vrot.slane %v3498, 4
        %v3501 = vrot.slane %v2672, 5
        %v3502 = vsel %vm1873, %v3500, %v3501
        %v3503 = vrot.slane %v3385, 5
        %v3504 = vrot.slane %v3503, 4
        %v3505 = vrot.slane %v2674, 5
        %v3506 = vsel %vm1873, %v3504, %v3505
        %v3507 = vrot.slane %v3505, 4
        %v3508 = vrot.slane %v2675, 5
        %v3509 = vsel %vm1873, %v3507, %v3508
        %v3510 = vrot.slane %v3386, 5
        %v3511 = vrot.slane %v3510, 4
        %v3512 = vrot.slane %v2677, 5
        %v3513 = vsel %vm1873, %v3511, %v3512
        %v3514 = vrot.slane %v3512, 4
        %v3515 = vrot.slane %v2678, 5
        %v3516 = vsel %vm1873, %v3514, %v3515
        %v3517 = vrot.slane %v3387, 5
        %v3518 = vrot.slane %v3517, 4
        %v3519 = vrot.slane %v2680, 5
        %v3520 = vsel %vm1873, %v3518, %v3519
        %v3521 = vrot.slane %v3519, 4
        %v3522 = vrot.slane %v2681, 5
        %v3523 = vsel %vm1873, %v3521, %v3522
        %v3524 = vrot.slane %v3388, 5
        %v3525 = vrot.slane %v3524, 4
        %v3526 = vrot.slane %v2683, 5
        %v3527 = vsel %vm1873, %v3525, %v3526
        %v3528 = vrot.slane %v3526, 4
        %v3529 = vrot.slane %v2684, 5
        %v3530 = vsel %vm1873, %v3528, %v3529
        %v3531 = vrot.slane %v3389, 5
        %v3532 = vrot.slane %v3531, 4
        %v3533 = vrot.slane %v2686, 5
        %v3534 = vsel %vm1873, %v3532, %v3533
        %v3535 = vrot.slane %v3533, 4
        %v3536 = vrot.slane %v2687, 5
        %v3537 = vsel %vm1873, %v3535, %v3536
        %v3538 = vrot.slane %v3390, 5
        %v3539 = vrot.slane %v3538, 4
        %v3540 = vrot.slane %v2689, 5
        %v3541 = vsel %vm1873, %v3539, %v3540
        %v3542 = vrot.slane %v3540, 4
        %v3543 = vrot.slane %v2690, 5
        %v3544 = vsel %vm1873, %v3542, %v3543
        %v3545 = vrot.slane %v3391, 5
        %v3546 = vrot.slane %v3545, 4
        %v3547 = vrot.slane %v2692, 5
        %v3548 = vsel %vm1873, %v3546, %v3547
        %v3549 = vrot.slane %v3547, 4
        %v3550 = vrot.slane %v2693, 5
        %v3551 = vsel %vm1873, %v3549, %v3550
        %s3552 = scalar_lea.vmem [#allocation6], 40
        %v3553 = vld [vmem:[%s3552] sm:$0xf]
        %v3554 = vld [vmem:[%s3552 + $0x4] sm:$0xf]
        %v3555 = vunpack.c.l.b16 %v3443
        %v3556 = vunpack.c.l.b16 %v3446
        %v3557 = vunpack.c.l.b16 %v3450
        %v3558 = vunpack.c.l.b16 %v3453
        %v3559 = vunpack.c.l.b16 %v3457
        %v3560 = vunpack.c.l.b16 %v3460
        %v3561 = vunpack.c.l.b16 %v3464
        %v3562 = vunpack.c.l.b16 %v3467
        %v3563 = vunpack.c.l.b16 %v3471
        %v3564 = vunpack.c.l.b16 %v3474
        %v3565 = vunpack.c.l.b16 %v3478
        %v3566 = vunpack.c.l.b16 %v3481
        %v3567 = vunpack.c.l.b16 %v3485
        %v3568 = vunpack.c.l.b16 %v3488
        %v3569 = vunpack.c.l.b16 %v3492
        %v3570 = vunpack.c.l.b16 %v3495
        %v3571 = vunpack.c.l.b16 %v3499
        %v3572 = vunpack.c.l.b16 %v3502
        %v3573 = vunpack.c.l.b16 %v3506
        %v3574 = vunpack.c.l.b16 %v3509
        %v3575 = vunpack.c.l.b16 %v3513
        %v3576 = vunpack.c.l.b16 %v3516
        %v3577 = vunpack.c.l.b16 %v3520
        %v3578 = vunpack.c.l.b16 %v3523
        %v3579 = vunpack.c.l.b16 %v3527
        %v3580 = vunpack.c.l.b16 %v3530
        %v3581 = vunpack.c.l.b16 %v3534
        %v3582 = vunpack.c.l.b16 %v3537
        %v3583 = vunpack.c.l.b16 %v3541
        %v3584 = vunpack.c.l.b16 %v3544
        %v3585 = vunpack.c.l.b16 %v3548
        %v3586 = vunpack.c.l.b16 %v3551
        %v3587 = vpack.c.b16 %v3556, %v3555
        %v3588 = vpack.c.b16 %v3558, %v3557
        %v3589 = vpack.c.b16 %v3560, %v3559
        %v3590 = vpack.c.b16 %v3562, %v3561
        %v3591 = vpack.c.b16 %v3564, %v3563
        %v3592 = vpack.c.b16 %v3566, %v3565
        %v3593 = vpack.c.b16 %v3568, %v3567
        %v3594 = vpack.c.b16 %v3570, %v3569
        %v3595 = vpack.c.b16 %v3572, %v3571
        %v3596 = vpack.c.b16 %v3574, %v3573
        %v3597 = vpack.c.b16 %v3576, %v3575
        %v3598 = vpack.c.b16 %v3578, %v3577
        %v3599 = vpack.c.b16 %v3580, %v3579
        %v3600 = vpack.c.b16 %v3582, %v3581
        %v3601 = vpack.c.b16 %v3584, %v3583
        %v3602 = vpack.c.b16 %v3586, %v3585
        %v3605 = vunpack.c.l.b16 %v3553
        %v3606 = vunpack.c.l.b16 %v3554
        %v3607 = vpack.c.b16 %v3606, %v3605
        %v3610 = vsel %vm1318, %v3587, 0
        %v3613 = vsel %vm1318, %v3588, 0
        %v3616 = vsel %vm1318, %v3589, 0
        %v3619 = vsel %vm1318, %v3590, 0
        %v3622 = vsel %vm1318, %v3591, 0
        %v3625 = vsel %vm1318, %v3592, 0
        %v3628 = vsel %vm1318, %v3593, 0
        %v3631 = vsel %vm1318, %v3594, 0
        %v3634 = vsel %vm1318, %v3595, 0
        %v3637 = vsel %vm1318, %v3596, 0
        %v3640 = vsel %vm1318, %v3597, 0
        %v3643 = vsel %vm1318, %v3598, 0
        %v3646 = vsel %vm1318, %v3599, 0
        %v3649 = vsel %vm1318, %v3600, 0
        %v3652 = vsel %vm1318, %v3601, 0
        %v3655 = vsel %vm1318, %v3602, 0
        %3657 = vmatprep.subr.bf16.mxu0 0
        %3658 = vmatpush1.bf16.msra.mxu0 0
        %3659 = vmatprep.subr.bf16.mxu0 0
        %3660 = vmatpush1.bf16.msra.mxu0 0
        %3661 = vmatprep.subr.bf16.mxu0 0
        %3662 = vmatpush1.bf16.msra.mxu0 0
        %3663 = vmatprep.subr.bf16.mxu0 0
        %3664 = vmatpush1.bf16.msra.mxu0 0
        %3665 = vmatprep.subr.bf16.mxu0 0
        %3666 = vmatpush1.bf16.msra.mxu0 0
        %3667 = vmatprep.subr.bf16.mxu0 0
        %3668 = vmatpush1.bf16.msra.mxu0 0
        %3669 = vmatprep.subr.bf16.mxu0 0
        %3670 = vmatpush1.bf16.msra.mxu0 0
        %3671 = vmatprep.subr.bf16.mxu0 0
        %3672 = vmatpush1.bf16.msra.mxu0 %v3607
        %3673 = vmatprep.subr.bf16.mxu0 0
        %3674 = vmatpush2.bf16.msra.mxu0 0
        %3675 = vmatprep.subr.bf16.mxu0 0
        %3676 = vmatpush2.bf16.msra.mxu0 0
        %3677 = vmatprep.subr.bf16.mxu0 0
        %3678 = vmatpush2.bf16.msra.mxu0 0
        %3679 = vmatprep.subr.bf16.mxu0 0
        %3680 = vmatpush2.bf16.msra.mxu0 0
        %3681 = vmatprep.subr.bf16.mxu0 0
        %3682 = vmatpush2.bf16.msra.mxu0 0
        %3683 = vmatprep.subr.bf16.mxu0 0
        %3684 = vmatpush2.bf16.msra.mxu0 0
        %3685 = vmatprep.subr.bf16.mxu0 0
        %3686 = vmatpush2.bf16.msra.mxu0 0
        %3687 = vmatprep.subr.bf16.mxu0 0
        %3688 = vmatpush2.bf16.msra.mxu0 0
        %3689 = vmatprep.mubr.bf16.mxu0 0
        %3690 = vmatmul.mubr.bf16.gmra.mxu0 %v3610
        %v3691 = vpop.f32.mrf.mxu0
        %v3692 = vadd.f32 0.0, %v3691
        %v3693 = vpop.f32.mrf.mxu0
        %v3694 = vpop.f32.mrf.mxu0
        %v3695 = vadd.f32 0.0, %v3694
        %v3696 = vpop.f32.mrf.mxu0
        %3697 = vmatprep.mubr.bf16.mxu0 0
        %3698 = vmatmul.mubr.bf16.gmra.mxu0 %v3613
        %v3699 = vpop.f32.mrf.mxu0
        %v3700 = vadd.f32 0.0, %v3699
        %v3701 = vpop.f32.mrf.mxu0
        %v3702 = vpop.f32.mrf.mxu0
        %v3703 = vadd.f32 0.0, %v3702
        %v3704 = vpop.f32.mrf.mxu0
        %3705 = vmatprep.mubr.bf16.mxu0 0
        %3706 = vmatmul.mubr.bf16.gmra.mxu0 %v3616
        %v3707 = vpop.f32.mrf.mxu0
        %v3708 = vadd.f32 0.0, %v3707
        %v3709 = vpop.f32.mrf.mxu0
        %v3710 = vpop.f32.mrf.mxu0
        %v3711 = vadd.f32 0.0, %v3710
        %v3712 = vpop.f32.mrf.mxu0
        %3713 = vmatprep.mubr.bf16.mxu0 0
        %3714 = vmatmul.mubr.bf16.gmra.mxu0 %v3619
        %v3715 = vpop.f32.mrf.mxu0
        %v3716 = vadd.f32 0.0, %v3715
        %v3717 = vpop.f32.mrf.mxu0
        %v3718 = vpop.f32.mrf.mxu0
        %v3719 = vadd.f32 0.0, %v3718
        %v3720 = vpop.f32.mrf.mxu0
        %3721 = vmatprep.mubr.bf16.mxu0 0
        %3722 = vmatmul.mubr.bf16.gmra.mxu0 %v3622
        %v3723 = vpop.f32.mrf.mxu0
        %v3724 = vadd.f32 0.0, %v3723
        %v3725 = vpop.f32.mrf.mxu0
        %v3726 = vpop.f32.mrf.mxu0
        %v3727 = vadd.f32 0.0, %v3726
        %v3728 = vpop.f32.mrf.mxu0
        %3729 = vmatprep.mubr.bf16.mxu0 0
        %3730 = vmatmul.mubr.bf16.gmra.mxu0 %v3625
        %v3731 = vpop.f32.mrf.mxu0
        %v3732 = vadd.f32 0.0, %v3731
        %v3733 = vpop.f32.mrf.mxu0
        %v3734 = vpop.f32.mrf.mxu0
        %v3735 = vadd.f32 0.0, %v3734
        %v3736 = vpop.f32.mrf.mxu0
        %3737 = vmatprep.mubr.bf16.mxu0 0
        %3738 = vmatmul.mubr.bf16.gmra.mxu0 %v3628
        %v3739 = vpop.f32.mrf.mxu0
        %v3740 = vadd.f32 0.0, %v3739
        %v3741 = vpop.f32.mrf.mxu0
        %v3742 = vpop.f32.mrf.mxu0
        %v3743 = vadd.f32 0.0, %v3742
        %v3744 = vpop.f32.mrf.mxu0
        %3745 = vmatprep.mubr.bf16.mxu0 0
        %3746 = vmatmul.mubr.bf16.gmra.mxu0 %v3631
        %v3747 = vpop.f32.mrf.mxu0
        %v3748 = vadd.f32 0.0, %v3747
        %v3749 = vpop.f32.mrf.mxu0
        %v3750 = vpop.f32.mrf.mxu0
        %v3751 = vadd.f32 0.0, %v3750
        %v3752 = vpop.f32.mrf.mxu0
        %3753 = vmatprep.mubr.bf16.mxu0 0
        %3754 = vmatmul.mubr.bf16.gmra.mxu0 %v3634
        %v3755 = vpop.f32.mrf.mxu0
        %v3756 = vadd.f32 0.0, %v3755
        %v3757 = vpop.f32.mrf.mxu0
        %v3758 = vpop.f32.mrf.mxu0
        %v3759 = vadd.f32 0.0, %v3758
        %v3760 = vpop.f32.mrf.mxu0
        %3761 = vmatprep.mubr.bf16.mxu0 0
        %3762 = vmatmul.mubr.bf16.gmra.mxu0 %v3637
        %v3763 = vpop.f32.mrf.mxu0
        %v3764 = vadd.f32 0.0, %v3763
        %v3765 = vpop.f32.mrf.mxu0
        %v3766 = vpop.f32.mrf.mxu0
        %v3767 = vadd.f32 0.0, %v3766
        %v3768 = vpop.f32.mrf.mxu0
        %3769 = vmatprep.mubr.bf16.mxu0 0
        %3770 = vmatmul.mubr.bf16.gmra.mxu0 %v3640
        %v3771 = vpop.f32.mrf.mxu0
        %v3772 = vadd.f32 0.0, %v3771
        %v3773 = vpop.f32.mrf.mxu0
        %v3774 = vpop.f32.mrf.mxu0
        %v3775 = vadd.f32 0.0, %v3774
        %v3776 = vpop.f32.mrf.mxu0
        %3777 = vmatprep.mubr.bf16.mxu0 0
        %3778 = vmatmul.mubr.bf16.gmra.mxu0 %v3643
        %v3779 = vpop.f32.mrf.mxu0
        %v3780 = vadd.f32 0.0, %v3779
        %v3781 = vpop.f32.mrf.mxu0
        %v3782 = vpop.f32.mrf.mxu0
        %v3783 = vadd.f32 0.0, %v3782
        %v3784 = vpop.f32.mrf.mxu0
        %3785 = vmatprep.mubr.bf16.mxu0 0
        %3786 = vmatmul.mubr.bf16.gmra.mxu0 %v3646
        %v3787 = vpop.f32.mrf.mxu0
        %v3788 = vadd.f32 0.0, %v3787
        %v3789 = vpop.f32.mrf.mxu0
        %v3790 = vpop.f32.mrf.mxu0
        %v3791 = vadd.f32 0.0, %v3790
        %v3792 = vpop.f32.mrf.mxu0
        %3793 = vmatprep.mubr.bf16.mxu0 0
        %3794 = vmatmul.mubr.bf16.gmra.mxu0 %v3649
        %v3795 = vpop.f32.mrf.mxu0
        %v3796 = vadd.f32 0.0, %v3795
        %v3797 = vpop.f32.mrf.mxu0
        %v3798 = vpop.f32.mrf.mxu0
        %v3799 = vadd.f32 0.0, %v3798
        %v3800 = vpop.f32.mrf.mxu0
        %3801 = vmatprep.mubr.bf16.mxu0 0
        %3802 = vmatmul.mubr.bf16.gmra.mxu0 %v3652
        %v3803 = vpop.f32.mrf.mxu0
        %v3804 = vadd.f32 0.0, %v3803
        %v3805 = vpop.f32.mrf.mxu0
        %v3806 = vpop.f32.mrf.mxu0
        %v3807 = vadd.f32 0.0, %v3806
        %v3808 = vpop.f32.mrf.mxu0
        %3809 = vmatprep.mubr.bf16.mxu0 0
        %3810 = vmatmul.mubr.bf16.gmra.mxu0 %v3655
        %v3811 = vpop.f32.mrf.mxu0
        %v3812 = vadd.f32 0.0, %v3811
        %v3813 = vpop.f32.mrf.mxu0
        %v3814 = vpop.f32.mrf.mxu0
        %v3815 = vadd.f32 0.0, %v3814
        %v3816 = vpop.f32.mrf.mxu0
        %3817 = vdwg.mxu0
        %v3818 = vadd.f32 %v3344, %v3692
        %v3819 = vadd.f32 %v3345, %v3695
        %v3820 = vadd.f32 %v3346, %v3700
        %v3821 = vadd.f32 %v3347, %v3703
        %v3822 = vadd.f32 %v3348, %v3708
        %v3823 = vadd.f32 %v3349, %v3711
        %v3824 = vadd.f32 %v3350, %v3716
        %v3825 = vadd.f32 %v3351, %v3719
        %v3826 = vadd.f32 %v3352, %v3724
        %v3827 = vadd.f32 %v3353, %v3727
        %v3828 = vadd.f32 %v3354, %v3732
        %v3829 = vadd.f32 %v3355, %v3735
        %v3830 = vadd.f32 %v3356, %v3740
        %v3831 = vadd.f32 %v3357, %v3743
        %v3832 = vadd.f32 %v3358, %v3748
        %v3833 = vadd.f32 %v3359, %v3751
        %v3834 = vadd.f32 %v3360, %v3756
        %v3835 = vadd.f32 %v3361, %v3759
        %v3836 = vadd.f32 %v3362, %v3764
        %v3837 = vadd.f32 %v3363, %v3767
        %v3838 = vadd.f32 %v3364, %v3772
        %v3839 = vadd.f32 %v3365, %v3775
        %v3840 = vadd.f32 %v3366, %v3780
        %v3841 = vadd.f32 %v3367, %v3783
        %v3842 = vadd.f32 %v3368, %v3788
        %v3843 = vadd.f32 %v3369, %v3791
        %v3844 = vadd.f32 %v3370, %v3796
        %v3845 = vadd.f32 %v3371, %v3799
        %v3846 = vadd.f32 %v3372, %v3804
        %v3847 = vadd.f32 %v3373, %v3807
        %v3848 = vadd.f32 %v3374, %v3812
        %v3849 = vadd.f32 %v3375, %v3815
        %s3850 = scalar_lea.vmem [#allocation2], 24
        %v3851 = vld [vmem:[%s3850] sm:$0xf]
        %v3852 = vld [vmem:[%s3850 + $0x4] sm:$0xf]
        %v3853 = vld [vmem:[%s3850 + $0xc] sm:$0xf]
        %v3854 = vld [vmem:[%s3850 + $0x10] sm:$0xf]
        %v3855 = vld [vmem:[%s3850 + $0x18] sm:$0xf]
        %v3856 = vld [vmem:[%s3850 + $0x1c] sm:$0xf]
        %v3857 = vld [vmem:[%s3850 + $0x24] sm:$0xf]
        %v3858 = vld [vmem:[%s3850 + $0x28] sm:$0xf]
        %v3859 = vld [vmem:[%s3850 + $0x30] sm:$0xf]
        %v3860 = vld [vmem:[%s3850 + $0x34] sm:$0xf]
        %v3861 = vld [vmem:[%s3850 + $0x3c] sm:$0xf]
        %v3862 = vld [vmem:[%s3850 + $0x40] sm:$0xf]
        %v3863 = vld [vmem:[%s3850 + $0x48] sm:$0xf]
        %v3864 = vld [vmem:[%s3850 + $0x4c] sm:$0xf]
        %v3865 = vld [vmem:[%s3850 + $0x54] sm:$0xf]
        %v3866 = vld [vmem:[%s3850 + $0x58] sm:$0xf]
        %v3867 = vld [vmem:[%s3850 + $0x60] sm:$0xf]
        %v3868 = vld [vmem:[%s3850 + $0x64] sm:$0xf]
        %v3869 = vld [vmem:[%s3850 + $0x6c] sm:$0xf]
        %v3870 = vld [vmem:[%s3850 + $0x70] sm:$0xf]
        %v3871 = vld [vmem:[%s3850 + $0x78] sm:$0xf]
        %v3872 = vld [vmem:[%s3850 + $0x7c] sm:$0xf]
        %v3873 = vld [vmem:[%s3850 + $0x84] sm:$0xf]
        %v3874 = vld [vmem:[%s3850 + $0x88] sm:$0xf]
        %v3875 = vld [vmem:[%s3850 + $0x90] sm:$0xf]
        %v3876 = vld [vmem:[%s3850 + $0x94] sm:$0xf]
        %v3877 = vld [vmem:[%s3850 + $0x9c] sm:$0xf]
        %v3878 = vld [vmem:[%s3850 + $0xa0] sm:$0xf]
        %v3879 = vld [vmem:[%s3850 + $0xa8] sm:$0xf]
        %v3880 = vld [vmem:[%s3850 + $0xac] sm:$0xf]
        %v3881 = vld [vmem:[%s3850 + $0xb4] sm:$0xf]
        %v3882 = vld [vmem:[%s3850 + $0xb8] sm:$0xf]
        %s3883 = scalar_lea.vmem [#allocation6], 48
        %v3884 = vld [vmem:[%s3883] sm:$0xf]
        %v3885 = vld [vmem:[%s3883 + $0x4] sm:$0xf]
        %v3918 = vunpack.c.l.b16 %v3851
        %v3919 = vunpack.c.l.b16 %v3852
        %v3920 = vunpack.c.l.b16 %v3853
        %v3921 = vunpack.c.l.b16 %v3854
        %v3922 = vunpack.c.l.b16 %v3855
        %v3923 = vunpack.c.l.b16 %v3856
        %v3924 = vunpack.c.l.b16 %v3857
        %v3925 = vunpack.c.l.b16 %v3858
        %v3926 = vunpack.c.l.b16 %v3859
        %v3927 = vunpack.c.l.b16 %v3860
        %v3928 = vunpack.c.l.b16 %v3861
        %v3929 = vunpack.c.l.b16 %v3862
        %v3930 = vunpack.c.l.b16 %v3863
        %v3931 = vunpack.c.l.b16 %v3864
        %v3932 = vunpack.c.l.b16 %v3865
        %v3933 = vunpack.c.l.b16 %v3866
        %v3934 = vunpack.c.l.b16 %v3867
        %v3935 = vunpack.c.l.b16 %v3868
        %v3936 = vunpack.c.l.b16 %v3869
        %v3937 = vunpack.c.l.b16 %v3870
        %v3938 = vunpack.c.l.b16 %v3871
        %v3939 = vunpack.c.l.b16 %v3872
        %v3940 = vunpack.c.l.b16 %v3873
        %v3941 = vunpack.c.l.b16 %v3874
        %v3942 = vunpack.c.l.b16 %v3875
        %v3943 = vunpack.c.l.b16 %v3876
        %v3944 = vunpack.c.l.b16 %v3877
        %v3945 = vunpack.c.l.b16 %v3878
        %v3946 = vunpack.c.l.b16 %v3879
        %v3947 = vunpack.c.l.b16 %v3880
        %v3948 = vunpack.c.l.b16 %v3881
        %v3949 = vunpack.c.l.b16 %v3882
        %v3950 = vpack.c.b16 %v3919, %v3918
        %v3951 = vpack.c.b16 %v3921, %v3920
        %v3952 = vpack.c.b16 %v3923, %v3922
        %v3953 = vpack.c.b16 %v3925, %v3924
        %v3954 = vpack.c.b16 %v3927, %v3926
        %v3955 = vpack.c.b16 %v3929, %v3928
        %v3956 = vpack.c.b16 %v3931, %v3930
        %v3957 = vpack.c.b16 %v3933, %v3932
        %v3958 = vpack.c.b16 %v3935, %v3934
        %v3959 = vpack.c.b16 %v3937, %v3936
        %v3960 = vpack.c.b16 %v3939, %v3938
        %v3961 = vpack.c.b16 %v3941, %v3940
        %v3962 = vpack.c.b16 %v3943, %v3942
        %v3963 = vpack.c.b16 %v3945, %v3944
        %v3964 = vpack.c.b16 %v3947, %v3946
        %v3965 = vpack.c.b16 %v3949, %v3948
        %v3968 = vunpack.c.l.b16 %v3884
        %v3969 = vunpack.c.l.b16 %v3885
        %v3970 = vpack.c.b16 %v3969, %v3968
        %v3973 = vsel %vm1318, %v3950, 0
        %v3976 = vsel %vm1318, %v3951, 0
        %v3979 = vsel %vm1318, %v3952, 0
        %v3982 = vsel %vm1318, %v3953, 0
        %v3985 = vsel %vm1318, %v3954, 0
        %v3988 = vsel %vm1318, %v3955, 0
        %v3991 = vsel %vm1318, %v3956, 0
        %v3994 = vsel %vm1318, %v3957, 0
        %v3997 = vsel %vm1318, %v3958, 0
        %v4000 = vsel %vm1318, %v3959, 0
        %v4003 = vsel %vm1318, %v3960, 0
        %v4006 = vsel %vm1318, %v3961, 0
        %v4009 = vsel %vm1318, %v3962, 0
        %v4012 = vsel %vm1318, %v3963, 0
        %v4015 = vsel %vm1318, %v3964, 0
        %v4018 = vsel %vm1318, %v3965, 0
        %4020 = vmatprep.subr.bf16.mxu0 0
        %4021 = vmatpush1.bf16.msra.mxu0 0
        %4022 = vmatprep.subr.bf16.mxu0 0
        %4023 = vmatpush1.bf16.msra.mxu0 0
        %4024 = vmatprep.subr.bf16.mxu0 0
        %4025 = vmatpush1.bf16.msra.mxu0 0
        %4026 = vmatprep.subr.bf16.mxu0 0
        %4027 = vmatpush1.bf16.msra.mxu0 0
        %4028 = vmatprep.subr.bf16.mxu0 0
        %4029 = vmatpush1.bf16.msra.mxu0 0
        %4030 = vmatprep.subr.bf16.mxu0 0
        %4031 = vmatpush1.bf16.msra.mxu0 0
        %4032 = vmatprep.subr.bf16.mxu0 0
        %4033 = vmatpush1.bf16.msra.mxu0 0
        %4034 = vmatprep.subr.bf16.mxu0 0
        %4035 = vmatpush1.bf16.msra.mxu0 %v3970
        %4036 = vmatprep.subr.bf16.mxu0 0
        %4037 = vmatpush2.bf16.msra.mxu0 0
        %4038 = vmatprep.subr.bf16.mxu0 0
        %4039 = vmatpush2.bf16.msra.mxu0 0
        %4040 = vmatprep.subr.bf16.mxu0 0
        %4041 = vmatpush2.bf16.msra.mxu0 0
        %4042 = vmatprep.subr.bf16.mxu0 0
        %4043 = vmatpush2.bf16.msra.mxu0 0
        %4044 = vmatprep.subr.bf16.mxu0 0
        %4045 = vmatpush2.bf16.msra.mxu0 0
        %4046 = vmatprep.subr.bf16.mxu0 0
        %4047 = vmatpush2.bf16.msra.mxu0 0
        %4048 = vmatprep.subr.bf16.mxu0 0
        %4049 = vmatpush2.bf16.msra.mxu0 0
        %4050 = vmatprep.subr.bf16.mxu0 0
        %4051 = vmatpush2.bf16.msra.mxu0 0
        %4052 = vmatprep.mubr.bf16.mxu0 0
        %4053 = vmatmul.mubr.bf16.gmra.mxu0 %v3973
        %v4054 = vpop.f32.mrf.mxu0
        %v4055 = vadd.f32 0.0, %v4054
        %v4056 = vpop.f32.mrf.mxu0
        %v4057 = vpop.f32.mrf.mxu0
        %v4058 = vadd.f32 0.0, %v4057
        %v4059 = vpop.f32.mrf.mxu0
        %4060 = vmatprep.mubr.bf16.mxu0 0
        %4061 = vmatmul.mubr.bf16.gmra.mxu0 %v3976
        %v4062 = vpop.f32.mrf.mxu0
        %v4063 = vadd.f32 0.0, %v4062
        %v4064 = vpop.f32.mrf.mxu0
        %v4065 = vpop.f32.mrf.mxu0
        %v4066 = vadd.f32 0.0, %v4065
        %v4067 = vpop.f32.mrf.mxu0
        %4068 = vmatprep.mubr.bf16.mxu0 0
        %4069 = vmatmul.mubr.bf16.gmra.mxu0 %v3979
        %v4070 = vpop.f32.mrf.mxu0
        %v4071 = vadd.f32 0.0, %v4070
        %v4072 = vpop.f32.mrf.mxu0
        %v4073 = vpop.f32.mrf.mxu0
        %v4074 = vadd.f32 0.0, %v4073
        %v4075 = vpop.f32.mrf.mxu0
        %4076 = vmatprep.mubr.bf16.mxu0 0
        %4077 = vmatmul.mubr.bf16.gmra.mxu0 %v3982
        %v4078 = vpop.f32.mrf.mxu0
        %v4079 = vadd.f32 0.0, %v4078
        %v4080 = vpop.f32.mrf.mxu0
        %v4081 = vpop.f32.mrf.mxu0
        %v4082 = vadd.f32 0.0, %v4081
        %v4083 = vpop.f32.mrf.mxu0
        %4084 = vmatprep.mubr.bf16.mxu0 0
        %4085 = vmatmul.mubr.bf16.gmra.mxu0 %v3985
        %v4086 = vpop.f32.mrf.mxu0
        %v4087 = vadd.f32 0.0, %v4086
        %v4088 = vpop.f32.mrf.mxu0
        %v4089 = vpop.f32.mrf.mxu0
        %v4090 = vadd.f32 0.0, %v4089
        %v4091 = vpop.f32.mrf.mxu0
        %4092 = vmatprep.mubr.bf16.mxu0 0
        %4093 = vmatmul.mubr.bf16.gmra.mxu0 %v3988
        %v4094 = vpop.f32.mrf.mxu0
        %v4095 = vadd.f32 0.0, %v4094
        %v4096 = vpop.f32.mrf.mxu0
        %v4097 = vpop.f32.mrf.mxu0
        %v4098 = vadd.f32 0.0, %v4097
        %v4099 = vpop.f32.mrf.mxu0
        %4100 = vmatprep.mubr.bf16.mxu0 0
        %4101 = vmatmul.mubr.bf16.gmra.mxu0 %v3991
        %v4102 = vpop.f32.mrf.mxu0
        %v4103 = vadd.f32 0.0, %v4102
        %v4104 = vpop.f32.mrf.mxu0
        %v4105 = vpop.f32.mrf.mxu0
        %v4106 = vadd.f32 0.0, %v4105
        %v4107 = vpop.f32.mrf.mxu0
        %4108 = vmatprep.mubr.bf16.mxu0 0
        %4109 = vmatmul.mubr.bf16.gmra.mxu0 %v3994
        %v4110 = vpop.f32.mrf.mxu0
        %v4111 = vadd.f32 0.0, %v4110
        %v4112 = vpop.f32.mrf.mxu0
        %v4113 = vpop.f32.mrf.mxu0
        %v4114 = vadd.f32 0.0, %v4113
        %v4115 = vpop.f32.mrf.mxu0
        %4116 = vmatprep.mubr.bf16.mxu0 0
        %4117 = vmatmul.mubr.bf16.gmra.mxu0 %v3997
        %v4118 = vpop.f32.mrf.mxu0
        %v4119 = vadd.f32 0.0, %v4118
        %v4120 = vpop.f32.mrf.mxu0
        %v4121 = vpop.f32.mrf.mxu0
        %v4122 = vadd.f32 0.0, %v4121
        %v4123 = vpop.f32.mrf.mxu0
        %4124 = vmatprep.mubr.bf16.mxu0 0
        %4125 = vmatmul.mubr.bf16.gmra.mxu0 %v4000
        %v4126 = vpop.f32.mrf.mxu0
        %v4127 = vadd.f32 0.0, %v4126
        %v4128 = vpop.f32.mrf.mxu0
        %v4129 = vpop.f32.mrf.mxu0
        %v4130 = vadd.f32 0.0, %v4129
        %v4131 = vpop.f32.mrf.mxu0
        %4132 = vmatprep.mubr.bf16.mxu0 0
        %4133 = vmatmul.mubr.bf16.gmra.mxu0 %v4003
        %v4134 = vpop.f32.mrf.mxu0
        %v4135 = vadd.f32 0.0, %v4134
        %v4136 = vpop.f32.mrf.mxu0
        %v4137 = vpop.f32.mrf.mxu0
        %v4138 = vadd.f32 0.0, %v4137
        %v4139 = vpop.f32.mrf.mxu0
        %4140 = vmatprep.mubr.bf16.mxu0 0
        %4141 = vmatmul.mubr.bf16.gmra.mxu0 %v4006
        %v4142 = vpop.f32.mrf.mxu0
        %v4143 = vadd.f32 0.0, %v4142
        %v4144 = vpop.f32.mrf.mxu0
        %v4145 = vpop.f32.mrf.mxu0
        %v4146 = vadd.f32 0.0, %v4145
        %v4147 = vpop.f32.mrf.mxu0
        %4148 = vmatprep.mubr.bf16.mxu0 0
        %4149 = vmatmul.mubr.bf16.gmra.mxu0 %v4009
        %v4150 = vpop.f32.mrf.mxu0
        %v4151 = vadd.f32 0.0, %v4150
        %v4152 = vpop.f32.mrf.mxu0
        %v4153 = vpop.f32.mrf.mxu0
        %v4154 = vadd.f32 0.0, %v4153
        %v4155 = vpop.f32.mrf.mxu0
        %4156 = vmatprep.mubr.bf16.mxu0 0
        %4157 = vmatmul.mubr.bf16.gmra.mxu0 %v4012
        %v4158 = vpop.f32.mrf.mxu0
        %v4159 = vadd.f32 0.0, %v4158
        %v4160 = vpop.f32.mrf.mxu0
        %v4161 = vpop.f32.mrf.mxu0
        %v4162 = vadd.f32 0.0, %v4161
        %v4163 = vpop.f32.mrf.mxu0
        %4164 = vmatprep.mubr.bf16.mxu0 0
        %4165 = vmatmul.mubr.bf16.gmra.mxu0 %v4015
        %v4166 = vpop.f32.mrf.mxu0
        %v4167 = vadd.f32 0.0, %v4166
        %v4168 = vpop.f32.mrf.mxu0
        %v4169 = vpop.f32.mrf.mxu0
        %v4170 = vadd.f32 0.0, %v4169
        %v4171 = vpop.f32.mrf.mxu0
        %4172 = vmatprep.mubr.bf16.mxu0 0
        %4173 = vmatmul.mubr.bf16.gmra.mxu0 %v4018
        %v4174 = vpop.f32.mrf.mxu0
        %v4175 = vadd.f32 0.0, %v4174
        %v4176 = vpop.f32.mrf.mxu0
        %v4177 = vpop.f32.mrf.mxu0
        %v4178 = vadd.f32 0.0, %v4177
        %v4179 = vpop.f32.mrf.mxu0
        %4180 = vdwg.mxu0
        %v4181 = vadd.f32 %v3818, %v4055
        %v4182 = vadd.f32 %v3819, %v4058
        %v4183 = vadd.f32 %v3820, %v4063
        %v4184 = vadd.f32 %v3821, %v4066
        %v4185 = vadd.f32 %v3822, %v4071
        %v4186 = vadd.f32 %v3823, %v4074
        %v4187 = vadd.f32 %v3824, %v4079
        %v4188 = vadd.f32 %v3825, %v4082
        %v4189 = vadd.f32 %v3826, %v4087
        %v4190 = vadd.f32 %v3827, %v4090
        %v4191 = vadd.f32 %v3828, %v4095
        %v4192 = vadd.f32 %v3829, %v4098
        %v4193 = vadd.f32 %v3830, %v4103
        %v4194 = vadd.f32 %v3831, %v4106
        %v4195 = vadd.f32 %v3832, %v4111
        %v4196 = vadd.f32 %v3833, %v4114
        %v4197 = vadd.f32 %v3834, %v4119
        %v4198 = vadd.f32 %v3835, %v4122
        %v4199 = vadd.f32 %v3836, %v4127
        %v4200 = vadd.f32 %v3837, %v4130
        %v4201 = vadd.f32 %v3838, %v4135
        %v4202 = vadd.f32 %v3839, %v4138
        %v4203 = vadd.f32 %v3840, %v4143
        %v4204 = vadd.f32 %v3841, %v4146
        %v4205 = vadd.f32 %v3842, %v4151
        %v4206 = vadd.f32 %v3843, %v4154
        %v4207 = vadd.f32 %v3844, %v4159
        %v4208 = vadd.f32 %v3845, %v4162
        %v4209 = vadd.f32 %v3846, %v4167
        %v4210 = vadd.f32 %v3847, %v4170
        %v4211 = vadd.f32 %v3848, %v4175
        %v4212 = vadd.f32 %v3849, %v4178
        %v4213 = vld [vmem:[%s3850] sm:$0xf]
        %v4214 = vld [vmem:[%s3850 + $0x4] sm:$0xf]
        %v4215 = vld [vmem:[%s3850 + $0x8] sm:$0x1]
        %v4216 = vld [vmem:[%s3850 + $0xc] sm:$0xf]
        %v4217 = vld [vmem:[%s3850 + $0x10] sm:$0xf]
        %v4218 = vld [vmem:[%s3850 + $0x14] sm:$0x1]
        %v4219 = vld [vmem:[%s3850 + $0x18] sm:$0xf]
        %v4220 = vld [vmem:[%s3850 + $0x1c] sm:$0xf]
        %v4221 = vld [vmem:[%s3850 + $0x20] sm:$0x1]
        %v4222 = vld [vmem:[%s3850 + $0x24] sm:$0xf]
        %v4223 = vld [vmem:[%s3850 + $0x28] sm:$0xf]
        %v4224 = vld [vmem:[%s3850 + $0x2c] sm:$0x1]
        %v4225 = vld [vmem:[%s3850 + $0x30] sm:$0xf]
        %v4226 = vld [vmem:[%s3850 + $0x34] sm:$0xf]
        %v4227 = vld [vmem:[%s3850 + $0x38] sm:$0x1]
        %v4228 = vld [vmem:[%s3850 + $0x3c] sm:$0xf]
        %v4229 = vld [vmem:[%s3850 + $0x40] sm:$0xf]
        %v4230 = vld [vmem:[%s3850 + $0x44] sm:$0x1]
        %v4231 = vld [vmem:[%s3850 + $0x48] sm:$0xf]
        %v4232 = vld [vmem:[%s3850 + $0x4c] sm:$0xf]
        %v4233 = vld [vmem:[%s3850 + $0x50] sm:$0x1]
        %v4234 = vld [vmem:[%s3850 + $0x54] sm:$0xf]
        %v4235 = vld [vmem:[%s3850 + $0x58] sm:$0xf]
        %v4236 = vld [vmem:[%s3850 + $0x5c] sm:$0x1]
        %v4237 = vld [vmem:[%s3850 + $0x60] sm:$0xf]
        %v4238 = vld [vmem:[%s3850 + $0x64] sm:$0xf]
        %v4239 = vld [vmem:[%s3850 + $0x68] sm:$0x1]
        %v4240 = vld [vmem:[%s3850 + $0x6c] sm:$0xf]
        %v4241 = vld [vmem:[%s3850 + $0x70] sm:$0xf]
        %v4242 = vld [vmem:[%s3850 + $0x74] sm:$0x1]
        %v4243 = vld [vmem:[%s3850 + $0x78] sm:$0xf]
        %v4244 = vld [vmem:[%s3850 + $0x7c] sm:$0xf]
        %v4245 = vld [vmem:[%s3850 + $0x80] sm:$0x1]
        %v4246 = vld [vmem:[%s3850 + $0x84] sm:$0xf]
        %v4247 = vld [vmem:[%s3850 + $0x88] sm:$0xf]
        %v4248 = vld [vmem:[%s3850 + $0x8c] sm:$0x1]
        %v4249 = vld [vmem:[%s3850 + $0x90] sm:$0xf]
        %v4250 = vld [vmem:[%s3850 + $0x94] sm:$0xf]
        %v4251 = vld [vmem:[%s3850 + $0x98] sm:$0x1]
        %v4252 = vld [vmem:[%s3850 + $0x9c] sm:$0xf]
        %v4253 = vld [vmem:[%s3850 + $0xa0] sm:$0xf]
        %v4254 = vld [vmem:[%s3850 + $0xa4] sm:$0x1]
        %v4255 = vld [vmem:[%s3850 + $0xa8] sm:$0xf]
        %v4256 = vld [vmem:[%s3850 + $0xac] sm:$0xf]
        %v4257 = vld [vmem:[%s3850 + $0xb0] sm:$0x1]
        %v4258 = vld [vmem:[%s3850 + $0xb4] sm:$0xf]
        %v4259 = vld [vmem:[%s3850 + $0xb8] sm:$0xf]
        %v4260 = vld [vmem:[%s3850 + $0xbc] sm:$0x1]
        %v4262 = vshrl.u32 %v4213, 16
        %v4264 = vrot.slane %v4262, 4
        %v4265 = vshll.u32 %v4213, 16
        %v4267 = vrot.slane %v4265, 5
        %v4268 = vor.u32 %v4264, %v4267
        %v4269 = vrot.slane %v4268, 4
        %v4271 = vshll.u32 %v4214, 16
        %v4273 = vrot.slane %v4271, 5
        %v4274 = vsel %vm876, %v4269, %v4273
        %v4275 = vshrl.u32 %v4214, 16
        %v4277 = vrot.slane %v4275, 4
        %v4278 = vor.u32 %v4277, %v4273
        %v4279 = vrot.slane %v4278, 4
        %v4281 = vshll.u32 %v4215, 16
        %v4283 = vrot.slane %v4281, 5
        %v4284 = vsel %vm876, %v4279, %v4283
        %v4286 = vshrl.u32 %v4216, 16
        %v4288 = vrot.slane %v4286, 4
        %v4289 = vshll.u32 %v4216, 16
        %v4291 = vrot.slane %v4289, 5
        %v4292 = vor.u32 %v4288, %v4291
        %v4293 = vrot.slane %v4292, 4
        %v4295 = vshll.u32 %v4217, 16
        %v4297 = vrot.slane %v4295, 5
        %v4298 = vsel %vm876, %v4293, %v4297
        %v4299 = vshrl.u32 %v4217, 16
        %v4301 = vrot.slane %v4299, 4
        %v4302 = vor.u32 %v4301, %v4297
        %v4303 = vrot.slane %v4302, 4
        %v4305 = vshll.u32 %v4218, 16
        %v4307 = vrot.slane %v4305, 5
        %v4308 = vsel %vm876, %v4303, %v4307
        %v4310 = vshrl.u32 %v4219, 16
        %v4312 = vrot.slane %v4310, 4
        %v4313 = vshll.u32 %v4219, 16
        %v4315 = vrot.slane %v4313, 5
        %v4316 = vor.u32 %v4312, %v4315
        %v4317 = vrot.slane %v4316, 4
        %v4319 = vshll.u32 %v4220, 16
        %v4321 = vrot.slane %v4319, 5
        %v4322 = vsel %vm876, %v4317, %v4321
        %v4323 = vshrl.u32 %v4220, 16
        %v4325 = vrot.slane %v4323, 4
        %v4326 = vor.u32 %v4325, %v4321
        %v4327 = vrot.slane %v4326, 4
        %v4329 = vshll.u32 %v4221, 16
        %v4331 = vrot.slane %v4329, 5
        %v4332 = vsel %vm876, %v4327, %v4331
        %v4334 = vshrl.u32 %v4222, 16
        %v4336 = vrot.slane %v4334, 4
        %v4337 = vshll.u32 %v4222, 16
        %v4339 = vrot.slane %v4337, 5
        %v4340 = vor.u32 %v4336, %v4339
        %v4341 = vrot.slane %v4340, 4
        %v4343 = vshll.u32 %v4223, 16
        %v4345 = vrot.slane %v4343, 5
        %v4346 = vsel %vm876, %v4341, %v4345
        %v4347 = vshrl.u32 %v4223, 16
        %v4349 = vrot.slane %v4347, 4
        %v4350 = vor.u32 %v4349, %v4345
        %v4351 = vrot.slane %v4350, 4
        %v4353 = vshll.u32 %v4224, 16
        %v4355 = vrot.slane %v4353, 5
        %v4356 = vsel %vm876, %v4351, %v4355
        %v4358 = vshrl.u32 %v4225, 16
        %v4360 = vrot.slane %v4358, 4
        %v4361 = vshll.u32 %v4225, 16
        %v4363 = vrot.slane %v4361, 5
        %v4364 = vor.u32 %v4360, %v4363
        %v4365 = vrot.slane %v4364, 4
        %v4367 = vshll.u32 %v4226, 16
        %v4369 = vrot.slane %v4367, 5
        %v4370 = vsel %vm876, %v4365, %v4369
        %v4371 = vshrl.u32 %v4226, 16
        %v4373 = vrot.slane %v4371, 4
        %v4374 = vor.u32 %v4373, %v4369
        %v4375 = vrot.slane %v4374, 4
        %v4377 = vshll.u32 %v4227, 16
        %v4379 = vrot.slane %v4377, 5
        %v4380 = vsel %vm876, %v4375, %v4379
        %v4382 = vshrl.u32 %v4228, 16
        %v4384 = vrot.slane %v4382, 4
        %v4385 = vshll.u32 %v4228, 16
        %v4387 = vrot.slane %v4385, 5
        %v4388 = vor.u32 %v4384, %v4387
        %v4389 = vrot.slane %v4388, 4
        %v4391 = vshll.u32 %v4229, 16
        %v4393 = vrot.slane %v4391, 5
        %v4394 = vsel %vm876, %v4389, %v4393
        %v4395 = vshrl.u32 %v4229, 16
        %v4397 = vrot.slane %v4395, 4
        %v4398 = vor.u32 %v4397, %v4393
        %v4399 = vrot.slane %v4398, 4
        %v4401 = vshll.u32 %v4230, 16
        %v4403 = vrot.slane %v4401, 5
        %v4404 = vsel %vm876, %v4399, %v4403
        %v4406 = vshrl.u32 %v4231, 16
        %v4408 = vrot.slane %v4406, 4
        %v4409 = vshll.u32 %v4231, 16
        %v4411 = vrot.slane %v4409, 5
        %v4412 = vor.u32 %v4408, %v4411
        %v4413 = vrot.slane %v4412, 4
        %v4415 = vshll.u32 %v4232, 16
        %v4417 = vrot.slane %v4415, 5
        %v4418 = vsel %vm876, %v4413, %v4417
        %v4419 = vshrl.u32 %v4232, 16
        %v4421 = vrot.slane %v4419, 4
        %v4422 = vor.u32 %v4421, %v4417
        %v4423 = vrot.slane %v4422, 4
        %v4425 = vshll.u32 %v4233, 16
        %v4427 = vrot.slane %v4425, 5
        %v4428 = vsel %vm876, %v4423, %v4427
        %v4430 = vshrl.u32 %v4234, 16
        %v4432 = vrot.slane %v4430, 4
        %v4433 = vshll.u32 %v4234, 16
        %v4435 = vrot.slane %v4433, 5
        %v4436 = vor.u32 %v4432, %v4435
        %v4437 = vrot.slane %v4436, 4
        %v4439 = vshll.u32 %v4235, 16
        %v4441 = vrot.slane %v4439, 5
        %v4442 = vsel %vm876, %v4437, %v4441
        %v4443 = vshrl.u32 %v4235, 16
        %v4445 = vrot.slane %v4443, 4
        %v4446 = vor.u32 %v4445, %v4441
        %v4447 = vrot.slane %v4446, 4
        %v4449 = vshll.u32 %v4236, 16
        %v4451 = vrot.slane %v4449, 5
        %v4452 = vsel %vm876, %v4447, %v4451
        %v4454 = vshrl.u32 %v4237, 16
        %v4456 = vrot.slane %v4454, 4
        %v4457 = vshll.u32 %v4237, 16
        %v4459 = vrot.slane %v4457, 5
        %v4460 = vor.u32 %v4456, %v4459
        %v4461 = vrot.slane %v4460, 4
        %v4463 = vshll.u32 %v4238, 16
        %v4465 = vrot.slane %v4463, 5
        %v4466 = vsel %vm876, %v4461, %v4465
        %v4467 = vshrl.u32 %v4238, 16
        %v4469 = vrot.slane %v4467, 4
        %v4470 = vor.u32 %v4469, %v4465
        %v4471 = vrot.slane %v4470, 4
        %v4473 = vshll.u32 %v4239, 16
        %v4475 = vrot.slane %v4473, 5
        %v4476 = vsel %vm876, %v4471, %v4475
        %v4478 = vshrl.u32 %v4240, 16
        %v4480 = vrot.slane %v4478, 4
        %v4481 = vshll.u32 %v4240, 16
        %v4483 = vrot.slane %v4481, 5
        %v4484 = vor.u32 %v4480, %v4483
        %v4485 = vrot.slane %v4484, 4
        %v4487 = vshll.u32 %v4241, 16
        %v4489 = vrot.slane %v4487, 5
        %v4490 = vsel %vm876, %v4485, %v4489
        %v4491 = vshrl.u32 %v4241, 16
        %v4493 = vrot.slane %v4491, 4
        %v4494 = vor.u32 %v4493, %v4489
        %v4495 = vrot.slane %v4494, 4
        %v4497 = vshll.u32 %v4242, 16
        %v4499 = vrot.slane %v4497, 5
        %v4500 = vsel %vm876, %v4495, %v4499
        %v4502 = vshrl.u32 %v4243, 16
        %v4504 = vrot.slane %v4502, 4
        %v4505 = vshll.u32 %v4243, 16
        %v4507 = vrot.slane %v4505, 5
        %v4508 = vor.u32 %v4504, %v4507
        %v4509 = vrot.slane %v4508, 4
        %v4511 = vshll.u32 %v4244, 16
        %v4513 = vrot.slane %v4511, 5
        %v4514 = vsel %vm876, %v4509, %v4513
        %v4515 = vshrl.u32 %v4244, 16
        %v4517 = vrot.slane %v4515, 4
        %v4518 = vor.u32 %v4517, %v4513
        %v4519 = vrot.slane %v4518, 4
        %v4521 = vshll.u32 %v4245, 16
        %v4523 = vrot.slane %v4521, 5
        %v4524 = vsel %vm876, %v4519, %v4523
        %v4526 = vshrl.u32 %v4246, 16
        %v4528 = vrot.slane %v4526, 4
        %v4529 = vshll.u32 %v4246, 16
        %v4531 = vrot.slane %v4529, 5
        %v4532 = vor.u32 %v4528, %v4531
        %v4533 = vrot.slane %v4532, 4
        %v4535 = vshll.u32 %v4247, 16
        %v4537 = vrot.slane %v4535, 5
        %v4538 = vsel %vm876, %v4533, %v4537
        %v4539 = vshrl.u32 %v4247, 16
        %v4541 = vrot.slane %v4539, 4
        %v4542 = vor.u32 %v4541, %v4537
        %v4543 = vrot.slane %v4542, 4
        %v4545 = vshll.u32 %v4248, 16
        %v4547 = vrot.slane %v4545, 5
        %v4548 = vsel %vm876, %v4543, %v4547
        %v4550 = vshrl.u32 %v4249, 16
        %v4552 = vrot.slane %v4550, 4
        %v4553 = vshll.u32 %v4249, 16
        %v4555 = vrot.slane %v4553, 5
        %v4556 = vor.u32 %v4552, %v4555
        %v4557 = vrot.slane %v4556, 4
        %v4559 = vshll.u32 %v4250, 16
        %v4561 = vrot.slane %v4559, 5
        %v4562 = vsel %vm876, %v4557, %v4561
        %v4563 = vshrl.u32 %v4250, 16
        %v4565 = vrot.slane %v4563, 4
        %v4566 = vor.u32 %v4565, %v4561
        %v4567 = vrot.slane %v4566, 4
        %v4569 = vshll.u32 %v4251, 16
        %v4571 = vrot.slane %v4569, 5
        %v4572 = vsel %vm876, %v4567, %v4571
        %v4574 = vshrl.u32 %v4252, 16
        %v4576 = vrot.slane %v4574, 4
        %v4577 = vshll.u32 %v4252, 16
        %v4579 = vrot.slane %v4577, 5
        %v4580 = vor.u32 %v4576, %v4579
        %v4581 = vrot.slane %v4580, 4
        %v4583 = vshll.u32 %v4253, 16
        %v4585 = vrot.slane %v4583, 5
        %v4586 = vsel %vm876, %v4581, %v4585
        %v4587 = vshrl.u32 %v4253, 16
        %v4589 = vrot.slane %v4587, 4
        %v4590 = vor.u32 %v4589, %v4585
        %v4591 = vrot.slane %v4590, 4
        %v4593 = vshll.u32 %v4254, 16
        %v4595 = vrot.slane %v4593, 5
        %v4596 = vsel %vm876, %v4591, %v4595
        %v4598 = vshrl.u32 %v4255, 16
        %v4600 = vrot.slane %v4598, 4
        %v4601 = vshll.u32 %v4255, 16
        %v4603 = vrot.slane %v4601, 5
        %v4604 = vor.u32 %v4600, %v4603
        %v4605 = vrot.slane %v4604, 4
        %v4607 = vshll.u32 %v4256, 16
        %v4609 = vrot.slane %v4607, 5
        %v4610 = vsel %vm876, %v4605, %v4609
        %v4611 = vshrl.u32 %v4256, 16
        %v4613 = vrot.slane %v4611, 4
        %v4614 = vor.u32 %v4613, %v4609
        %v4615 = vrot.slane %v4614, 4
        %v4617 = vshll.u32 %v4257, 16
        %v4619 = vrot.slane %v4617, 5
        %v4620 = vsel %vm876, %v4615, %v4619
        %v4622 = vshrl.u32 %v4258, 16
        %v4624 = vrot.slane %v4622, 4
        %v4625 = vshll.u32 %v4258, 16
        %v4627 = vrot.slane %v4625, 5
        %v4628 = vor.u32 %v4624, %v4627
        %v4629 = vrot.slane %v4628, 4
        %v4631 = vshll.u32 %v4259, 16
        %v4633 = vrot.slane %v4631, 5
        %v4634 = vsel %vm876, %v4629, %v4633
        %v4635 = vshrl.u32 %v4259, 16
        %v4637 = vrot.slane %v4635, 4
        %v4638 = vor.u32 %v4637, %v4633
        %v4639 = vrot.slane %v4638, 4
        %v4641 = vshll.u32 %v4260, 16
        %v4643 = vrot.slane %v4641, 5
        %v4644 = vsel %vm876, %v4639, %v4643
        %s4645 = scalar_lea.vmem [#allocation6], 56
        %v4646 = vld [vmem:[%s4645] sm:$0xf]
        %v4647 = vld [vmem:[%s4645 + $0x4] sm:$0xf]
        %v4648 = vunpack.c.l.b16 %v4274
        %v4649 = vunpack.c.l.b16 %v4284
        %v4650 = vunpack.c.l.b16 %v4298
        %v4651 = vunpack.c.l.b16 %v4308
        %v4652 = vunpack.c.l.b16 %v4322
        %v4653 = vunpack.c.l.b16 %v4332
        %v4654 = vunpack.c.l.b16 %v4346
        %v4655 = vunpack.c.l.b16 %v4356
        %v4656 = vunpack.c.l.b16 %v4370
        %v4657 = vunpack.c.l.b16 %v4380
        %v4658 = vunpack.c.l.b16 %v4394
        %v4659 = vunpack.c.l.b16 %v4404
        %v4660 = vunpack.c.l.b16 %v4418
        %v4661 = vunpack.c.l.b16 %v4428
        %v4662 = vunpack.c.l.b16 %v4442
        %v4663 = vunpack.c.l.b16 %v4452
        %v4664 = vunpack.c.l.b16 %v4466
        %v4665 = vunpack.c.l.b16 %v4476
        %v4666 = vunpack.c.l.b16 %v4490
        %v4667 = vunpack.c.l.b16 %v4500
        %v4668 = vunpack.c.l.b16 %v4514
        %v4669 = vunpack.c.l.b16 %v4524
        %v4670 = vunpack.c.l.b16 %v4538
        %v4671 = vunpack.c.l.b16 %v4548
        %v4672 = vunpack.c.l.b16 %v4562
        %v4673 = vunpack.c.l.b16 %v4572
        %v4674 = vunpack.c.l.b16 %v4586
        %v4675 = vunpack.c.l.b16 %v4596
        %v4676 = vunpack.c.l.b16 %v4610
        %v4677 = vunpack.c.l.b16 %v4620
        %v4678 = vunpack.c.l.b16 %v4634
        %v4679 = vunpack.c.l.b16 %v4644
        %v4680 = vpack.c.b16 %v4649, %v4648
        %v4681 = vpack.c.b16 %v4651, %v4650
        %v4682 = vpack.c.b16 %v4653, %v4652
        %v4683 = vpack.c.b16 %v4655, %v4654
        %v4684 = vpack.c.b16 %v4657, %v4656
        %v4685 = vpack.c.b16 %v4659, %v4658
        %v4686 = vpack.c.b16 %v4661, %v4660
        %v4687 = vpack.c.b16 %v4663, %v4662
        %v4688 = vpack.c.b16 %v4665, %v4664
        %v4689 = vpack.c.b16 %v4667, %v4666
        %v4690 = vpack.c.b16 %v4669, %v4668
        %v4691 = vpack.c.b16 %v4671, %v4670
        %v4692 = vpack.c.b16 %v4673, %v4672
        %v4693 = vpack.c.b16 %v4675, %v4674
        %v4694 = vpack.c.b16 %v4677, %v4676
        %v4695 = vpack.c.b16 %v4679, %v4678
        %v4698 = vunpack.c.l.b16 %v4646
        %v4699 = vunpack.c.l.b16 %v4647
        %v4700 = vpack.c.b16 %v4699, %v4698
        %v4703 = vsel %vm1318, %v4680, 0
        %v4706 = vsel %vm1318, %v4681, 0
        %v4709 = vsel %vm1318, %v4682, 0
        %v4712 = vsel %vm1318, %v4683, 0
        %v4715 = vsel %vm1318, %v4684, 0
        %v4718 = vsel %vm1318, %v4685, 0
        %v4721 = vsel %vm1318, %v4686, 0
        %v4724 = vsel %vm1318, %v4687, 0
        %v4727 = vsel %vm1318, %v4688, 0
        %v4730 = vsel %vm1318, %v4689, 0
        %v4733 = vsel %vm1318, %v4690, 0
        %v4736 = vsel %vm1318, %v4691, 0
        %v4739 = vsel %vm1318, %v4692, 0
        %v4742 = vsel %vm1318, %v4693, 0
        %v4745 = vsel %vm1318, %v4694, 0
        %v4748 = vsel %vm1318, %v4695, 0
        %4750 = vmatprep.subr.bf16.mxu0 0
        %4751 = vmatpush1.bf16.msra.mxu0 0
        %4752 = vmatprep.subr.bf16.mxu0 0
        %4753 = vmatpush1.bf16.msra.mxu0 0
        %4754 = vmatprep.subr.bf16.mxu0 0
        %4755 = vmatpush1.bf16.msra.mxu0 0
        %4756 = vmatprep.subr.bf16.mxu0 0
        %4757 = vmatpush1.bf16.msra.mxu0 0
        %4758 = vmatprep.subr.bf16.mxu0 0
        %4759 = vmatpush1.bf16.msra.mxu0 0
        %4760 = vmatprep.subr.bf16.mxu0 0
        %4761 = vmatpush1.bf16.msra.mxu0 0
        %4762 = vmatprep.subr.bf16.mxu0 0
        %4763 = vmatpush1.bf16.msra.mxu0 0
        %4764 = vmatprep.subr.bf16.mxu0 0
        %4765 = vmatpush1.bf16.msra.mxu0 %v4700
        %4766 = vmatprep.subr.bf16.mxu0 0
        %4767 = vmatpush2.bf16.msra.mxu0 0
        %4768 = vmatprep.subr.bf16.mxu0 0
        %4769 = vmatpush2.bf16.msra.mxu0 0
        %4770 = vmatprep.subr.bf16.mxu0 0
        %4771 = vmatpush2.bf16.msra.mxu0 0
        %4772 = vmatprep.subr.bf16.mxu0 0
        %4773 = vmatpush2.bf16.msra.mxu0 0
        %4774 = vmatprep.subr.bf16.mxu0 0
        %4775 = vmatpush2.bf16.msra.mxu0 0
        %4776 = vmatprep.subr.bf16.mxu0 0
        %4777 = vmatpush2.bf16.msra.mxu0 0
        %4778 = vmatprep.subr.bf16.mxu0 0
        %4779 = vmatpush2.bf16.msra.mxu0 0
        %4780 = vmatprep.subr.bf16.mxu0 0
        %4781 = vmatpush2.bf16.msra.mxu0 0
        %4782 = vmatprep.mubr.bf16.mxu0 0
        %4783 = vmatmul.mubr.bf16.gmra.mxu0 %v4703
        %v4784 = vpop.f32.mrf.mxu0
        %v4785 = vadd.f32 0.0, %v4784
        %v4786 = vpop.f32.mrf.mxu0
        %v4787 = vpop.f32.mrf.mxu0
        %v4788 = vadd.f32 0.0, %v4787
        %v4789 = vpop.f32.mrf.mxu0
        %4790 = vmatprep.mubr.bf16.mxu0 0
        %4791 = vmatmul.mubr.bf16.gmra.mxu0 %v4706
        %v4792 = vpop.f32.mrf.mxu0
        %v4793 = vadd.f32 0.0, %v4792
        %v4794 = vpop.f32.mrf.mxu0
        %v4795 = vpop.f32.mrf.mxu0
        %v4796 = vadd.f32 0.0, %v4795
        %v4797 = vpop.f32.mrf.mxu0
        %4798 = vmatprep.mubr.bf16.mxu0 0
        %4799 = vmatmul.mubr.bf16.gmra.mxu0 %v4709
        %v4800 = vpop.f32.mrf.mxu0
        %v4801 = vadd.f32 0.0, %v4800
        %v4802 = vpop.f32.mrf.mxu0
        %v4803 = vpop.f32.mrf.mxu0
        %v4804 = vadd.f32 0.0, %v4803
        %v4805 = vpop.f32.mrf.mxu0
        %4806 = vmatprep.mubr.bf16.mxu0 0
        %4807 = vmatmul.mubr.bf16.gmra.mxu0 %v4712
        %v4808 = vpop.f32.mrf.mxu0
        %v4809 = vadd.f32 0.0, %v4808
        %v4810 = vpop.f32.mrf.mxu0
        %v4811 = vpop.f32.mrf.mxu0
        %v4812 = vadd.f32 0.0, %v4811
        %v4813 = vpop.f32.mrf.mxu0
        %4814 = vmatprep.mubr.bf16.mxu0 0
        %4815 = vmatmul.mubr.bf16.gmra.mxu0 %v4715
        %v4816 = vpop.f32.mrf.mxu0
        %v4817 = vadd.f32 0.0, %v4816
        %v4818 = vpop.f32.mrf.mxu0
        %v4819 = vpop.f32.mrf.mxu0
        %v4820 = vadd.f32 0.0, %v4819
        %v4821 = vpop.f32.mrf.mxu0
        %4822 = vmatprep.mubr.bf16.mxu0 0
        %4823 = vmatmul.mubr.bf16.gmra.mxu0 %v4718
        %v4824 = vpop.f32.mrf.mxu0
        %v4825 = vadd.f32 0.0, %v4824
        %v4826 = vpop.f32.mrf.mxu0
        %v4827 = vpop.f32.mrf.mxu0
        %v4828 = vadd.f32 0.0, %v4827
        %v4829 = vpop.f32.mrf.mxu0
        %4830 = vmatprep.mubr.bf16.mxu0 0
        %4831 = vmatmul.mubr.bf16.gmra.mxu0 %v4721
        %v4832 = vpop.f32.mrf.mxu0
        %v4833 = vadd.f32 0.0, %v4832
        %v4834 = vpop.f32.mrf.mxu0
        %v4835 = vpop.f32.mrf.mxu0
        %v4836 = vadd.f32 0.0, %v4835
        %v4837 = vpop.f32.mrf.mxu0
        %4838 = vmatprep.mubr.bf16.mxu0 0
        %4839 = vmatmul.mubr.bf16.gmra.mxu0 %v4724
        %v4840 = vpop.f32.mrf.mxu0
        %v4841 = vadd.f32 0.0, %v4840
        %v4842 = vpop.f32.mrf.mxu0
        %v4843 = vpop.f32.mrf.mxu0
        %v4844 = vadd.f32 0.0, %v4843
        %v4845 = vpop.f32.mrf.mxu0
        %4846 = vmatprep.mubr.bf16.mxu0 0
        %4847 = vmatmul.mubr.bf16.gmra.mxu0 %v4727
        %v4848 = vpop.f32.mrf.mxu0
        %v4849 = vadd.f32 0.0, %v4848
        %v4850 = vpop.f32.mrf.mxu0
        %v4851 = vpop.f32.mrf.mxu0
        %v4852 = vadd.f32 0.0, %v4851
        %v4853 = vpop.f32.mrf.mxu0
        %4854 = vmatprep.mubr.bf16.mxu0 0
        %4855 = vmatmul.mubr.bf16.gmra.mxu0 %v4730
        %v4856 = vpop.f32.mrf.mxu0
        %v4857 = vadd.f32 0.0, %v4856
        %v4858 = vpop.f32.mrf.mxu0
        %v4859 = vpop.f32.mrf.mxu0
        %v4860 = vadd.f32 0.0, %v4859
        %v4861 = vpop.f32.mrf.mxu0
        %4862 = vmatprep.mubr.bf16.mxu0 0
        %4863 = vmatmul.mubr.bf16.gmra.mxu0 %v4733
        %v4864 = vpop.f32.mrf.mxu0
        %v4865 = vadd.f32 0.0, %v4864
        %v4866 = vpop.f32.mrf.mxu0
        %v4867 = vpop.f32.mrf.mxu0
        %v4868 = vadd.f32 0.0, %v4867
        %v4869 = vpop.f32.mrf.mxu0
        %4870 = vmatprep.mubr.bf16.mxu0 0
        %4871 = vmatmul.mubr.bf16.gmra.mxu0 %v4736
        %v4872 = vpop.f32.mrf.mxu0
        %v4873 = vadd.f32 0.0, %v4872
        %v4874 = vpop.f32.mrf.mxu0
        %v4875 = vpop.f32.mrf.mxu0
        %v4876 = vadd.f32 0.0, %v4875
        %v4877 = vpop.f32.mrf.mxu0
        %4878 = vmatprep.mubr.bf16.mxu0 0
        %4879 = vmatmul.mubr.bf16.gmra.mxu0 %v4739
        %v4880 = vpop.f32.mrf.mxu0
        %v4881 = vadd.f32 0.0, %v4880
        %v4882 = vpop.f32.mrf.mxu0
        %v4883 = vpop.f32.mrf.mxu0
        %v4884 = vadd.f32 0.0, %v4883
        %v4885 = vpop.f32.mrf.mxu0
        %4886 = vmatprep.mubr.bf16.mxu0 0
        %4887 = vmatmul.mubr.bf16.gmra.mxu0 %v4742
        %v4888 = vpop.f32.mrf.mxu0
        %v4889 = vadd.f32 0.0, %v4888
        %v4890 = vpop.f32.mrf.mxu0
        %v4891 = vpop.f32.mrf.mxu0
        %v4892 = vadd.f32 0.0, %v4891
        %v4893 = vpop.f32.mrf.mxu0
        %4894 = vmatprep.mubr.bf16.mxu0 0
        %4895 = vmatmul.mubr.bf16.gmra.mxu0 %v4745
        %v4896 = vpop.f32.mrf.mxu0
        %v4897 = vadd.f32 0.0, %v4896
        %v4898 = vpop.f32.mrf.mxu0
        %v4899 = vpop.f32.mrf.mxu0
        %v4900 = vadd.f32 0.0, %v4899
        %v4901 = vpop.f32.mrf.mxu0
        %4902 = vmatprep.mubr.bf16.mxu0 0
        %4903 = vmatmul.mubr.bf16.gmra.mxu0 %v4748
        %v4904 = vpop.f32.mrf.mxu0
        %v4905 = vadd.f32 0.0, %v4904
        %v4906 = vpop.f32.mrf.mxu0
        %v4907 = vpop.f32.mrf.mxu0
        %v4908 = vadd.f32 0.0, %v4907
        %v4909 = vpop.f32.mrf.mxu0
        %4910 = vdwg.mxu0
        %v4911 = vadd.f32 %v4181, %v4785
        %v4912 = vadd.f32 %v4182, %v4788
        %v4913 = vadd.f32 %v4183, %v4793
        %v4914 = vadd.f32 %v4184, %v4796
        %v4915 = vadd.f32 %v4185, %v4801
        %v4916 = vadd.f32 %v4186, %v4804
        %v4917 = vadd.f32 %v4187, %v4809
        %v4918 = vadd.f32 %v4188, %v4812
        %v4919 = vadd.f32 %v4189, %v4817
        %v4920 = vadd.f32 %v4190, %v4820
        %v4921 = vadd.f32 %v4191, %v4825
        %v4922 = vadd.f32 %v4192, %v4828
        %v4923 = vadd.f32 %v4193, %v4833
        %v4924 = vadd.f32 %v4194, %v4836
        %v4925 = vadd.f32 %v4195, %v4841
        %v4926 = vadd.f32 %v4196, %v4844
        %v4927 = vadd.f32 %v4197, %v4849
        %v4928 = vadd.f32 %v4198, %v4852
        %v4929 = vadd.f32 %v4199, %v4857
        %v4930 = vadd.f32 %v4200, %v4860
        %v4931 = vadd.f32 %v4201, %v4865
        %v4932 = vadd.f32 %v4202, %v4868
        %v4933 = vadd.f32 %v4203, %v4873
        %v4934 = vadd.f32 %v4204, %v4876
        %v4935 = vadd.f32 %v4205, %v4881
        %v4936 = vadd.f32 %v4206, %v4884
        %v4937 = vadd.f32 %v4207, %v4889
        %v4938 = vadd.f32 %v4208, %v4892
        %v4939 = vadd.f32 %v4209, %v4897
        %v4940 = vadd.f32 %v4210, %v4900
        %v4941 = vadd.f32 %v4211, %v4905
        %v4942 = vadd.f32 %v4212, %v4908
        %v4943 = vld [vmem:[%s3850] sm:$0xe]
        %v4944 = vld [vmem:[%s3850 + $0xc] sm:$0xe]
        %v4945 = vld [vmem:[%s3850 + $0x18] sm:$0xe]
        %v4946 = vld [vmem:[%s3850 + $0x24] sm:$0xe]
        %v4947 = vld [vmem:[%s3850 + $0x30] sm:$0xe]
        %v4948 = vld [vmem:[%s3850 + $0x3c] sm:$0xe]
        %v4949 = vld [vmem:[%s3850 + $0x48] sm:$0xe]
        %v4950 = vld [vmem:[%s3850 + $0x54] sm:$0xe]
        %v4951 = vld [vmem:[%s3850 + $0x60] sm:$0xe]
        %v4952 = vld [vmem:[%s3850 + $0x6c] sm:$0xe]
        %v4953 = vld [vmem:[%s3850 + $0x78] sm:$0xe]
        %v4954 = vld [vmem:[%s3850 + $0x84] sm:$0xe]
        %v4955 = vld [vmem:[%s3850 + $0x90] sm:$0xe]
        %v4956 = vld [vmem:[%s3850 + $0x9c] sm:$0xe]
        %v4957 = vld [vmem:[%s3850 + $0xa8] sm:$0xe]
        %v4958 = vld [vmem:[%s3850 + $0xb4] sm:$0xe]
        %v5007 = vrot.slane %v4943, 5
        %v5008 = vrot.slane %v5007, 4
        %v5009 = vrot.slane %v4214, 5
        %v5010 = vsel %vm1873, %v5008, %v5009
        %v5011 = vrot.slane %v5009, 4
        %v5012 = vrot.slane %v4215, 5
        %v5013 = vsel %vm1873, %v5011, %v5012
        %v5014 = vrot.slane %v4944, 5
        %v5015 = vrot.slane %v5014, 4
        %v5016 = vrot.slane %v4217, 5
        %v5017 = vsel %vm1873, %v5015, %v5016
        %v5018 = vrot.slane %v5016, 4
        %v5019 = vrot.slane %v4218, 5
        %v5020 = vsel %vm1873, %v5018, %v5019
        %v5021 = vrot.slane %v4945, 5
        %v5022 = vrot.slane %v5021, 4
        %v5023 = vrot.slane %v4220, 5
        %v5024 = vsel %vm1873, %v5022, %v5023
        %v5025 = vrot.slane %v5023, 4
        %v5026 = vrot.slane %v4221, 5
        %v5027 = vsel %vm1873, %v5025, %v5026
        %v5028 = vrot.slane %v4946, 5
        %v5029 = vrot.slane %v5028, 4
        %v5030 = vrot.slane %v4223, 5
        %v5031 = vsel %vm1873, %v5029, %v5030
        %v5032 = vrot.slane %v5030, 4
        %v5033 = vrot.slane %v4224, 5
        %v5034 = vsel %vm1873, %v5032, %v5033
        %v5035 = vrot.slane %v4947, 5
        %v5036 = vrot.slane %v5035, 4
        %v5037 = vrot.slane %v4226, 5
        %v5038 = vsel %vm1873, %v5036, %v5037
        %v5039 = vrot.slane %v5037, 4
        %v5040 = vrot.slane %v4227, 5
        %v5041 = vsel %vm1873, %v5039, %v5040
        %v5042 = vrot.slane %v4948, 5
        %v5043 = vrot.slane %v5042, 4
        %v5044 = vrot.slane %v4229, 5
        %v5045 = vsel %vm1873, %v5043, %v5044
        %v5046 = vrot.slane %v5044, 4
        %v5047 = vrot.slane %v4230, 5
        %v5048 = vsel %vm1873, %v5046, %v5047
        %v5049 = vrot.slane %v4949, 5
        %v5050 = vrot.slane %v5049, 4
        %v5051 = vrot.slane %v4232, 5
        %v5052 = vsel %vm1873, %v5050, %v5051
        %v5053 = vrot.slane %v5051, 4
        %v5054 = vrot.slane %v4233, 5
        %v5055 = vsel %vm1873, %v5053, %v5054
        %v5056 = vrot.slane %v4950, 5
        %v5057 = vrot.slane %v5056, 4
        %v5058 = vrot.slane %v4235, 5
        %v5059 = vsel %vm1873, %v5057, %v5058
        %v5060 = vrot.slane %v5058, 4
        %v5061 = vrot.slane %v4236, 5
        %v5062 = vsel %vm1873, %v5060, %v5061
        %v5063 = vrot.slane %v4951, 5
        %v5064 = vrot.slane %v5063, 4
        %v5065 = vrot.slane %v4238, 5
        %v5066 = vsel %vm1873, %v5064, %v5065
        %v5067 = vrot.slane %v5065, 4
        %v5068 = vrot.slane %v4239, 5
        %v5069 = vsel %vm1873, %v5067, %v5068
        %v5070 = vrot.slane %v4952, 5
        %v5071 = vrot.slane %v5070, 4
        %v5072 = vrot.slane %v4241, 5
        %v5073 = vsel %vm1873, %v5071, %v5072
        %v5074 = vrot.slane %v5072, 4
        %v5075 = vrot.slane %v4242, 5
        %v5076 = vsel %vm1873, %v5074, %v5075
        %v5077 = vrot.slane %v4953, 5
        %v5078 = vrot.slane %v5077, 4
        %v5079 = vrot.slane %v4244, 5
        %v5080 = vsel %vm1873, %v5078, %v5079
        %v5081 = vrot.slane %v5079, 4
        %v5082 = vrot.slane %v4245, 5
        %v5083 = vsel %vm1873, %v5081, %v5082
        %v5084 = vrot.slane %v4954, 5
        %v5085 = vrot.slane %v5084, 4
        %v5086 = vrot.slane %v4247, 5
        %v5087 = vsel %vm1873, %v5085, %v5086
        %v5088 = vrot.slane %v5086, 4
        %v5089 = vrot.slane %v4248, 5
        %v5090 = vsel %vm1873, %v5088, %v5089
        %v5091 = vrot.slane %v4955, 5
        %v5092 = vrot.slane %v5091, 4
        %v5093 = vrot.slane %v4250, 5
        %v5094 = vsel %vm1873, %v5092, %v5093
        %v5095 = vrot.slane %v5093, 4
        %v5096 = vrot.slane %v4251, 5
        %v5097 = vsel %vm1873, %v5095, %v5096
        %v5098 = vrot.slane %v4956, 5
        %v5099 = vrot.slane %v5098, 4
        %v5100 = vrot.slane %v4253, 5
        %v5101 = vsel %vm1873, %v5099, %v5100
        %v5102 = vrot.slane %v5100, 4
        %v5103 = vrot.slane %v4254, 5
        %v5104 = vsel %vm1873, %v5102, %v5103
        %v5105 = vrot.slane %v4957, 5
        %v5106 = vrot.slane %v5105, 4
        %v5107 = vrot.slane %v4256, 5
        %v5108 = vsel %vm1873, %v5106, %v5107
        %v5109 = vrot.slane %v5107, 4
        %v5110 = vrot.slane %v4257, 5
        %v5111 = vsel %vm1873, %v5109, %v5110
        %v5112 = vrot.slane %v4958, 5
        %v5113 = vrot.slane %v5112, 4
        %v5114 = vrot.slane %v4259, 5
        %v5115 = vsel %vm1873, %v5113, %v5114
        %v5116 = vrot.slane %v5114, 4
        %v5117 = vrot.slane %v4260, 5
        %v5118 = vsel %vm1873, %v5116, %v5117
        %s5119 = scalar_lea.vmem [#allocation6], 64
        %v5120 = vld [vmem:[%s5119] sm:$0xf]
        %v5121 = vld [vmem:[%s5119 + $0x4] sm:$0xf]
        %v5122 = vunpack.c.l.b16 %v5010
        %v5123 = vunpack.c.l.b16 %v5013
        %v5124 = vunpack.c.l.b16 %v5017
        %v5125 = vunpack.c.l.b16 %v5020
        %v5126 = vunpack.c.l.b16 %v5024
        %v5127 = vunpack.c.l.b16 %v5027
        %v5128 = vunpack.c.l.b16 %v5031
        %v5129 = vunpack.c.l.b16 %v5034
        %v5130 = vunpack.c.l.b16 %v5038
        %v5131 = vunpack.c.l.b16 %v5041
        %v5132 = vunpack.c.l.b16 %v5045
        %v5133 = vunpack.c.l.b16 %v5048
        %v5134 = vunpack.c.l.b16 %v5052
        %v5135 = vunpack.c.l.b16 %v5055
        %v5136 = vunpack.c.l.b16 %v5059
        %v5137 = vunpack.c.l.b16 %v5062
        %v5138 = vunpack.c.l.b16 %v5066
        %v5139 = vunpack.c.l.b16 %v5069
        %v5140 = vunpack.c.l.b16 %v5073
        %v5141 = vunpack.c.l.b16 %v5076
        %v5142 = vunpack.c.l.b16 %v5080
        %v5143 = vunpack.c.l.b16 %v5083
        %v5144 = vunpack.c.l.b16 %v5087
        %v5145 = vunpack.c.l.b16 %v5090
        %v5146 = vunpack.c.l.b16 %v5094
        %v5147 = vunpack.c.l.b16 %v5097
        %v5148 = vunpack.c.l.b16 %v5101
        %v5149 = vunpack.c.l.b16 %v5104
        %v5150 = vunpack.c.l.b16 %v5108
        %v5151 = vunpack.c.l.b16 %v5111
        %v5152 = vunpack.c.l.b16 %v5115
        %v5153 = vunpack.c.l.b16 %v5118
        %v5154 = vpack.c.b16 %v5123, %v5122
        %v5155 = vpack.c.b16 %v5125, %v5124
        %v5156 = vpack.c.b16 %v5127, %v5126
        %v5157 = vpack.c.b16 %v5129, %v5128
        %v5158 = vpack.c.b16 %v5131, %v5130
        %v5159 = vpack.c.b16 %v5133, %v5132
        %v5160 = vpack.c.b16 %v5135, %v5134
        %v5161 = vpack.c.b16 %v5137, %v5136
        %v5162 = vpack.c.b16 %v5139, %v5138
        %v5163 = vpack.c.b16 %v5141, %v5140
        %v5164 = vpack.c.b16 %v5143, %v5142
        %v5165 = vpack.c.b16 %v5145, %v5144
        %v5166 = vpack.c.b16 %v5147, %v5146
        %v5167 = vpack.c.b16 %v5149, %v5148
        %v5168 = vpack.c.b16 %v5151, %v5150
        %v5169 = vpack.c.b16 %v5153, %v5152
        %v5172 = vunpack.c.l.b16 %v5120
        %v5173 = vunpack.c.l.b16 %v5121
        %v5174 = vpack.c.b16 %v5173, %v5172
        %v5177 = vsel %vm1318, %v5154, 0
        %v5180 = vsel %vm1318, %v5155, 0
        %v5183 = vsel %vm1318, %v5156, 0
        %v5186 = vsel %vm1318, %v5157, 0
        %v5189 = vsel %vm1318, %v5158, 0
        %v5192 = vsel %vm1318, %v5159, 0
        %v5195 = vsel %vm1318, %v5160, 0
        %v5198 = vsel %vm1318, %v5161, 0
        %v5201 = vsel %vm1318, %v5162, 0
        %v5204 = vsel %vm1318, %v5163, 0
        %v5207 = vsel %vm1318, %v5164, 0
        %v5210 = vsel %vm1318, %v5165, 0
        %v5213 = vsel %vm1318, %v5166, 0
        %v5216 = vsel %vm1318, %v5167, 0
        %v5219 = vsel %vm1318, %v5168, 0
        %v5222 = vsel %vm1318, %v5169, 0
        %5224 = vmatprep.subr.bf16.mxu0 0
        %5225 = vmatpush1.bf16.msra.mxu0 0
        %5226 = vmatprep.subr.bf16.mxu0 0
        %5227 = vmatpush1.bf16.msra.mxu0 0
        %5228 = vmatprep.subr.bf16.mxu0 0
        %5229 = vmatpush1.bf16.msra.mxu0 0
        %5230 = vmatprep.subr.bf16.mxu0 0
        %5231 = vmatpush1.bf16.msra.mxu0 0
        %5232 = vmatprep.subr.bf16.mxu0 0
        %5233 = vmatpush1.bf16.msra.mxu0 0
        %5234 = vmatprep.subr.bf16.mxu0 0
        %5235 = vmatpush1.bf16.msra.mxu0 0
        %5236 = vmatprep.subr.bf16.mxu0 0
        %5237 = vmatpush1.bf16.msra.mxu0 0
        %5238 = vmatprep.subr.bf16.mxu0 0
        %5239 = vmatpush1.bf16.msra.mxu0 %v5174
        %5240 = vmatprep.subr.bf16.mxu0 0
        %5241 = vmatpush2.bf16.msra.mxu0 0
        %5242 = vmatprep.subr.bf16.mxu0 0
        %5243 = vmatpush2.bf16.msra.mxu0 0
        %5244 = vmatprep.subr.bf16.mxu0 0
        %5245 = vmatpush2.bf16.msra.mxu0 0
        %5246 = vmatprep.subr.bf16.mxu0 0
        %5247 = vmatpush2.bf16.msra.mxu0 0
        %5248 = vmatprep.subr.bf16.mxu0 0
        %5249 = vmatpush2.bf16.msra.mxu0 0
        %5250 = vmatprep.subr.bf16.mxu0 0
        %5251 = vmatpush2.bf16.msra.mxu0 0
        %5252 = vmatprep.subr.bf16.mxu0 0
        %5253 = vmatpush2.bf16.msra.mxu0 0
        %5254 = vmatprep.subr.bf16.mxu0 0
        %5255 = vmatpush2.bf16.msra.mxu0 0
        %5256 = vmatprep.mubr.bf16.mxu0 0
        %5257 = vmatmul.mubr.bf16.gmra.mxu0 %v5177
        %v5258 = vpop.f32.mrf.mxu0
        %v5259 = vadd.f32 0.0, %v5258
        %v5260 = vpop.f32.mrf.mxu0
        %v5261 = vpop.f32.mrf.mxu0
        %v5262 = vadd.f32 0.0, %v5261
        %v5263 = vpop.f32.mrf.mxu0
        %5264 = vmatprep.mubr.bf16.mxu0 0
        %5265 = vmatmul.mubr.bf16.gmra.mxu0 %v5180
        %v5266 = vpop.f32.mrf.mxu0
        %v5267 = vadd.f32 0.0, %v5266
        %v5268 = vpop.f32.mrf.mxu0
        %v5269 = vpop.f32.mrf.mxu0
        %v5270 = vadd.f32 0.0, %v5269
        %v5271 = vpop.f32.mrf.mxu0
        %5272 = vmatprep.mubr.bf16.mxu0 0
        %5273 = vmatmul.mubr.bf16.gmra.mxu0 %v5183
        %v5274 = vpop.f32.mrf.mxu0
        %v5275 = vadd.f32 0.0, %v5274
        %v5276 = vpop.f32.mrf.mxu0
        %v5277 = vpop.f32.mrf.mxu0
        %v5278 = vadd.f32 0.0, %v5277
        %v5279 = vpop.f32.mrf.mxu0
        %5280 = vmatprep.mubr.bf16.mxu0 0
        %5281 = vmatmul.mubr.bf16.gmra.mxu0 %v5186
        %v5282 = vpop.f32.mrf.mxu0
        %v5283 = vadd.f32 0.0, %v5282
        %v5284 = vpop.f32.mrf.mxu0
        %v5285 = vpop.f32.mrf.mxu0
        %v5286 = vadd.f32 0.0, %v5285
        %v5287 = vpop.f32.mrf.mxu0
        %5288 = vmatprep.mubr.bf16.mxu0 0
        %5289 = vmatmul.mubr.bf16.gmra.mxu0 %v5189
        %v5290 = vpop.f32.mrf.mxu0
        %v5291 = vadd.f32 0.0, %v5290
        %v5292 = vpop.f32.mrf.mxu0
        %v5293 = vpop.f32.mrf.mxu0
        %v5294 = vadd.f32 0.0, %v5293
        %v5295 = vpop.f32.mrf.mxu0
        %5296 = vmatprep.mubr.bf16.mxu0 0
        %5297 = vmatmul.mubr.bf16.gmra.mxu0 %v5192
        %v5298 = vpop.f32.mrf.mxu0
        %v5299 = vadd.f32 0.0, %v5298
        %v5300 = vpop.f32.mrf.mxu0
        %v5301 = vpop.f32.mrf.mxu0
        %v5302 = vadd.f32 0.0, %v5301
        %v5303 = vpop.f32.mrf.mxu0
        %5304 = vmatprep.mubr.bf16.mxu0 0
        %5305 = vmatmul.mubr.bf16.gmra.mxu0 %v5195
        %v5306 = vpop.f32.mrf.mxu0
        %v5307 = vadd.f32 0.0, %v5306
        %v5308 = vpop.f32.mrf.mxu0
        %v5309 = vpop.f32.mrf.mxu0
        %v5310 = vadd.f32 0.0, %v5309
        %v5311 = vpop.f32.mrf.mxu0
        %5312 = vmatprep.mubr.bf16.mxu0 0
        %5313 = vmatmul.mubr.bf16.gmra.mxu0 %v5198
        %v5314 = vpop.f32.mrf.mxu0
        %v5315 = vadd.f32 0.0, %v5314
        %v5316 = vpop.f32.mrf.mxu0
        %v5317 = vpop.f32.mrf.mxu0
        %v5318 = vadd.f32 0.0, %v5317
        %v5319 = vpop.f32.mrf.mxu0
        %5320 = vmatprep.mubr.bf16.mxu0 0
        %5321 = vmatmul.mubr.bf16.gmra.mxu0 %v5201
        %v5322 = vpop.f32.mrf.mxu0
        %v5323 = vadd.f32 0.0, %v5322
        %v5324 = vpop.f32.mrf.mxu0
        %v5325 = vpop.f32.mrf.mxu0
        %v5326 = vadd.f32 0.0, %v5325
        %v5327 = vpop.f32.mrf.mxu0
        %5328 = vmatprep.mubr.bf16.mxu0 0
        %5329 = vmatmul.mubr.bf16.gmra.mxu0 %v5204
        %v5330 = vpop.f32.mrf.mxu0
        %v5331 = vadd.f32 0.0, %v5330
        %v5332 = vpop.f32.mrf.mxu0
        %v5333 = vpop.f32.mrf.mxu0
        %v5334 = vadd.f32 0.0, %v5333
        %v5335 = vpop.f32.mrf.mxu0
        %5336 = vmatprep.mubr.bf16.mxu0 0
        %5337 = vmatmul.mubr.bf16.gmra.mxu0 %v5207
        %v5338 = vpop.f32.mrf.mxu0
        %v5339 = vadd.f32 0.0, %v5338
        %v5340 = vpop.f32.mrf.mxu0
        %v5341 = vpop.f32.mrf.mxu0
        %v5342 = vadd.f32 0.0, %v5341
        %v5343 = vpop.f32.mrf.mxu0
        %5344 = vmatprep.mubr.bf16.mxu0 0
        %5345 = vmatmul.mubr.bf16.gmra.mxu0 %v5210
        %v5346 = vpop.f32.mrf.mxu0
        %v5347 = vadd.f32 0.0, %v5346
        %v5348 = vpop.f32.mrf.mxu0
        %v5349 = vpop.f32.mrf.mxu0
        %v5350 = vadd.f32 0.0, %v5349
        %v5351 = vpop.f32.mrf.mxu0
        %5352 = vmatprep.mubr.bf16.mxu0 0
        %5353 = vmatmul.mubr.bf16.gmra.mxu0 %v5213
        %v5354 = vpop.f32.mrf.mxu0
        %v5355 = vadd.f32 0.0, %v5354
        %v5356 = vpop.f32.mrf.mxu0
        %v5357 = vpop.f32.mrf.mxu0
        %v5358 = vadd.f32 0.0, %v5357
        %v5359 = vpop.f32.mrf.mxu0
        %5360 = vmatprep.mubr.bf16.mxu0 0
        %5361 = vmatmul.mubr.bf16.gmra.mxu0 %v5216
        %v5362 = vpop.f32.mrf.mxu0
        %v5363 = vadd.f32 0.0, %v5362
        %v5364 = vpop.f32.mrf.mxu0
        %v5365 = vpop.f32.mrf.mxu0
        %v5366 = vadd.f32 0.0, %v5365
        %v5367 = vpop.f32.mrf.mxu0
        %5368 = vmatprep.mubr.bf16.mxu0 0
        %5369 = vmatmul.mubr.bf16.gmra.mxu0 %v5219
        %v5370 = vpop.f32.mrf.mxu0
        %v5371 = vadd.f32 0.0, %v5370
        %v5372 = vpop.f32.mrf.mxu0
        %v5373 = vpop.f32.mrf.mxu0
        %v5374 = vadd.f32 0.0, %v5373
        %v5375 = vpop.f32.mrf.mxu0
        %5376 = vmatprep.mubr.bf16.mxu0 0
        %5377 = vmatmul.mubr.bf16.gmra.mxu0 %v5222
        %v5378 = vpop.f32.mrf.mxu0
        %v5379 = vadd.f32 0.0, %v5378
        %v5380 = vpop.f32.mrf.mxu0
        %v5381 = vpop.f32.mrf.mxu0
        %v5382 = vadd.f32 0.0, %v5381
        %v5383 = vpop.f32.mrf.mxu0
        %5384 = vdwg.mxu0
        %v5385 = vadd.f32 %v4911, %v5259
        %v5386 = vadd.f32 %v4912, %v5262
        %v5387 = vadd.f32 %v4913, %v5267
        %v5388 = vadd.f32 %v4914, %v5270
        %v5389 = vadd.f32 %v4915, %v5275
        %v5390 = vadd.f32 %v4916, %v5278
        %v5391 = vadd.f32 %v4917, %v5283
        %v5392 = vadd.f32 %v4918, %v5286
        %v5393 = vadd.f32 %v4919, %v5291
        %v5394 = vadd.f32 %v4920, %v5294
        %v5395 = vadd.f32 %v4921, %v5299
        %v5396 = vadd.f32 %v4922, %v5302
        %v5397 = vadd.f32 %v4923, %v5307
        %v5398 = vadd.f32 %v4924, %v5310
        %v5399 = vadd.f32 %v4925, %v5315
        %v5400 = vadd.f32 %v4926, %v5318
        %v5401 = vadd.f32 %v4927, %v5323
        %v5402 = vadd.f32 %v4928, %v5326
        %v5403 = vadd.f32 %v4929, %v5331
        %v5404 = vadd.f32 %v4930, %v5334
        %v5405 = vadd.f32 %v4931, %v5339
        %v5406 = vadd.f32 %v4932, %v5342
        %v5407 = vadd.f32 %v4933, %v5347
        %v5408 = vadd.f32 %v4934, %v5350
        %v5409 = vadd.f32 %v4935, %v5355
        %v5410 = vadd.f32 %v4936, %v5358
        %v5411 = vadd.f32 %v4937, %v5363
        %v5412 = vadd.f32 %v4938, %v5366
        %v5413 = vadd.f32 %v4939, %v5371
        %v5414 = vadd.f32 %v4940, %v5374
        %v5415 = vadd.f32 %v4941, %v5379
        %v5416 = vadd.f32 %v4942, %v5382
        %v5417 = vld [vmem:[%s2] sm:$0x1]
        %v5419 = vlaneseq
        %v5420 = vshrl.u32 %v5419, 7
        %v5421 = vsub.s32 0, %v5420
        %v5422 = vrot.slane %v5417, %v5421
        %v5424 = vadd.f32 %v5385, %v5422
        %v5425 = vadd.f32 %v5386, %v5422
        %v5426 = vadd.f32 %v5387, %v5422
        %v5427 = vadd.f32 %v5388, %v5422
        %v5428 = vadd.f32 %v5389, %v5422
        %v5429 = vadd.f32 %v5390, %v5422
        %v5430 = vadd.f32 %v5391, %v5422
        %v5431 = vadd.f32 %v5392, %v5422
        %v5432 = vadd.f32 %v5393, %v5422
        %v5433 = vadd.f32 %v5394, %v5422
        %v5434 = vadd.f32 %v5395, %v5422
        %v5435 = vadd.f32 %v5396, %v5422
        %v5436 = vadd.f32 %v5397, %v5422
        %v5437 = vadd.f32 %v5398, %v5422
        %v5438 = vadd.f32 %v5399, %v5422
        %v5439 = vadd.f32 %v5400, %v5422
        %v5440 = vadd.f32 %v5401, %v5422
        %v5441 = vadd.f32 %v5402, %v5422
        %v5442 = vadd.f32 %v5403, %v5422
        %v5443 = vadd.f32 %v5404, %v5422
        %v5444 = vadd.f32 %v5405, %v5422
        %v5445 = vadd.f32 %v5406, %v5422
        %v5446 = vadd.f32 %v5407, %v5422
        %v5447 = vadd.f32 %v5408, %v5422
        %v5448 = vadd.f32 %v5409, %v5422
        %v5449 = vadd.f32 %v5410, %v5422
        %v5450 = vadd.f32 %v5411, %v5422
        %v5451 = vadd.f32 %v5412, %v5422
        %v5452 = vadd.f32 %v5413, %v5422
        %v5453 = vadd.f32 %v5414, %v5422
        %v5454 = vadd.f32 %v5415, %v5422
        %v5455 = vadd.f32 %v5416, %v5422
        %v5456 = vmax.f32 %v5424, 0.0
        %v5457 = vmax.f32 %v5425, 0.0
        %v5458 = vmax.f32 %v5426, 0.0
        %v5459 = vmax.f32 %v5427, 0.0
        %v5460 = vmax.f32 %v5428, 0.0
        %v5461 = vmax.f32 %v5429, 0.0
        %v5462 = vmax.f32 %v5430, 0.0
        %v5463 = vmax.f32 %v5431, 0.0
        %v5464 = vmax.f32 %v5432, 0.0
        %v5465 = vmax.f32 %v5433, 0.0
        %v5466 = vmax.f32 %v5434, 0.0
        %v5467 = vmax.f32 %v5435, 0.0
        %v5468 = vmax.f32 %v5436, 0.0
        %v5469 = vmax.f32 %v5437, 0.0
        %v5470 = vmax.f32 %v5438, 0.0
        %v5471 = vmax.f32 %v5439, 0.0
        %v5472 = vmax.f32 %v5440, 0.0
        %v5473 = vmax.f32 %v5441, 0.0
        %v5474 = vmax.f32 %v5442, 0.0
        %v5475 = vmax.f32 %v5443, 0.0
        %v5476 = vmax.f32 %v5444, 0.0
        %v5477 = vmax.f32 %v5445, 0.0
        %v5478 = vmax.f32 %v5446, 0.0
        %v5479 = vmax.f32 %v5447, 0.0
        %v5480 = vmax.f32 %v5448, 0.0
        %v5481 = vmax.f32 %v5449, 0.0
        %v5482 = vmax.f32 %v5450, 0.0
        %v5483 = vmax.f32 %v5451, 0.0
        %v5484 = vmax.f32 %v5452, 0.0
        %v5485 = vmax.f32 %v5453, 0.0
        %v5486 = vmax.f32 %v5454, 0.0
        %v5487 = vmax.f32 %v5455, 0.0
        %v5488 = vpack.c.bf16 %v5457, %v5456
        %v5489 = vpack.c.bf16 %v5459, %v5458
        %v5490 = vpack.c.bf16 %v5461, %v5460
        %v5491 = vpack.c.bf16 %v5463, %v5462
        %v5492 = vpack.c.bf16 %v5465, %v5464
        %v5493 = vpack.c.bf16 %v5467, %v5466
        %v5494 = vpack.c.bf16 %v5469, %v5468
        %v5495 = vpack.c.bf16 %v5471, %v5470
        %v5496 = vpack.c.bf16 %v5473, %v5472
        %v5497 = vpack.c.bf16 %v5475, %v5474
        %v5498 = vpack.c.bf16 %v5477, %v5476
        %v5499 = vpack.c.bf16 %v5479, %v5478
        %v5500 = vpack.c.bf16 %v5481, %v5480
        %v5501 = vpack.c.bf16 %v5483, %v5482
        %v5502 = vpack.c.bf16 %v5485, %v5484
        %v5503 = vpack.c.bf16 %v5487, %v5486
        %v5520 = vunpack.c.l.b16 %v5488
        %v5521 = vunpack.c.h.b16 %v5488
        %v5522 = vunpack.c.l.b16 %v5489
        %v5523 = vunpack.c.h.b16 %v5489
        %v5524 = vunpack.c.l.b16 %v5490
        %v5525 = vunpack.c.h.b16 %v5490
        %v5526 = vunpack.c.l.b16 %v5491
        %v5527 = vunpack.c.h.b16 %v5491
        %v5528 = vunpack.c.l.b16 %v5492
        %v5529 = vunpack.c.h.b16 %v5492
        %v5530 = vunpack.c.l.b16 %v5493
        %v5531 = vunpack.c.h.b16 %v5493
        %v5532 = vunpack.c.l.b16 %v5494
        %v5533 = vunpack.c.h.b16 %v5494
        %v5534 = vunpack.c.l.b16 %v5495
        %v5535 = vunpack.c.h.b16 %v5495
        %v5536 = vunpack.c.l.b16 %v5496
        %v5537 = vunpack.c.h.b16 %v5496
        %v5538 = vunpack.c.l.b16 %v5497
        %v5539 = vunpack.c.h.b16 %v5497
        %v5540 = vunpack.c.l.b16 %v5498
        %v5541 = vunpack.c.h.b16 %v5498
        %v5542 = vunpack.c.l.b16 %v5499
        %v5543 = vunpack.c.h.b16 %v5499
        %v5544 = vunpack.c.l.b16 %v5500
        %v5545 = vunpack.c.h.b16 %v5500
        %v5546 = vunpack.c.l.b16 %v5501
        %v5547 = vunpack.c.h.b16 %v5501
        %v5548 = vunpack.c.l.b16 %v5502
        %v5549 = vunpack.c.h.b16 %v5502
        %v5550 = vunpack.c.l.b16 %v5503
        %v5551 = vunpack.c.h.b16 %v5503
        %v5552 = vpack.c.b16 %v5520, %v5520
        %v5553 = vpack.c.b16 %v5521, %v5521
        %v5554 = vpack.c.b16 %v5522, %v5522
        %v5555 = vpack.c.b16 %v5523, %v5523
        %v5556 = vpack.c.b16 %v5524, %v5524
        %v5557 = vpack.c.b16 %v5525, %v5525
        %v5558 = vpack.c.b16 %v5526, %v5526
        %v5559 = vpack.c.b16 %v5527, %v5527
        %v5560 = vpack.c.b16 %v5528, %v5528
        %v5561 = vpack.c.b16 %v5529, %v5529
        %v5562 = vpack.c.b16 %v5530, %v5530
        %v5563 = vpack.c.b16 %v5531, %v5531
        %v5564 = vpack.c.b16 %v5532, %v5532
        %v5565 = vpack.c.b16 %v5533, %v5533
        %v5566 = vpack.c.b16 %v5534, %v5534
        %v5567 = vpack.c.b16 %v5535, %v5535
        %v5568 = vpack.c.b16 %v5536, %v5536
        %v5569 = vpack.c.b16 %v5537, %v5537
        %v5570 = vpack.c.b16 %v5538, %v5538
        %v5571 = vpack.c.b16 %v5539, %v5539
        %v5572 = vpack.c.b16 %v5540, %v5540
        %v5573 = vpack.c.b16 %v5541, %v5541
        %v5574 = vpack.c.b16 %v5542, %v5542
        %v5575 = vpack.c.b16 %v5543, %v5543
        %v5576 = vpack.c.b16 %v5544, %v5544
        %v5577 = vpack.c.b16 %v5545, %v5545
        %v5578 = vpack.c.b16 %v5546, %v5546
        %v5579 = vpack.c.b16 %v5547, %v5547
        %v5580 = vpack.c.b16 %v5548, %v5548
        %v5581 = vpack.c.b16 %v5549, %v5549
        %v5582 = vpack.c.b16 %v5550, %v5550
        %v5583 = vpack.c.b16 %v5551, %v5551
        %v5585 = vshrl.u32 %v5552, 16
        %v5587 = vrot.slane %v5585, 7
        %v5588 = vshll.u32 %v5552, 16
        %v5590 = vor.u32 %v5587, %v5588
        %v5591 = vrot.slane %v5587, 4
        %v5593 = vshrl.u32 %v5553, 16
        %v5595 = vrot.slane %v5593, 7
        %v5596 = vshll.u32 %v5553, 16
        %v5598 = vor.u32 %v5595, %v5596
        %v5599 = vsel %vm389, %v5591, %v5598
        %v5600 = vrot.slane %v5595, 4
        %v5602 = vshrl.u32 %v5554, 16
        %v5604 = vrot.slane %v5602, 7
        %v5605 = vshll.u32 %v5554, 16
        %v5607 = vor.u32 %v5604, %v5605
        %v5608 = vrot.slane %v5604, 4
        %v5610 = vshrl.u32 %v5555, 16
        %v5612 = vrot.slane %v5610, 7
        %v5613 = vshll.u32 %v5555, 16
        %v5615 = vor.u32 %v5612, %v5613
        %v5616 = vsel %vm389, %v5608, %v5615
        %v5617 = vrot.slane %v5612, 4
        %v5619 = vshrl.u32 %v5556, 16
        %v5621 = vrot.slane %v5619, 7
        %v5622 = vshll.u32 %v5556, 16
        %v5624 = vor.u32 %v5621, %v5622
        %v5625 = vrot.slane %v5621, 4
        %v5627 = vshrl.u32 %v5557, 16
        %v5629 = vrot.slane %v5627, 7
        %v5630 = vshll.u32 %v5557, 16
        %v5632 = vor.u32 %v5629, %v5630
        %v5633 = vsel %vm389, %v5625, %v5632
        %v5634 = vrot.slane %v5629, 4
        %v5636 = vshrl.u32 %v5558, 16
        %v5638 = vrot.slane %v5636, 7
        %v5639 = vshll.u32 %v5558, 16
        %v5641 = vor.u32 %v5638, %v5639
        %v5642 = vrot.slane %v5638, 4
        %v5644 = vshrl.u32 %v5559, 16
        %v5646 = vrot.slane %v5644, 7
        %v5647 = vshll.u32 %v5559, 16
        %v5649 = vor.u32 %v5646, %v5647
        %v5650 = vsel %vm389, %v5642, %v5649
        %v5651 = vrot.slane %v5646, 4
        %v5653 = vshrl.u32 %v5560, 16
        %v5655 = vrot.slane %v5653, 7
        %v5656 = vshll.u32 %v5560, 16
        %v5658 = vor.u32 %v5655, %v5656
        %v5659 = vrot.slane %v5655, 4
        %v5661 = vshrl.u32 %v5561, 16
        %v5663 = vrot.slane %v5661, 7
        %v5664 = vshll.u32 %v5561, 16
        %v5666 = vor.u32 %v5663, %v5664
        %v5667 = vsel %vm389, %v5659, %v5666
        %v5668 = vrot.slane %v5663, 4
        %v5670 = vshrl.u32 %v5562, 16
        %v5672 = vrot.slane %v5670, 7
        %v5673 = vshll.u32 %v5562, 16
        %v5675 = vor.u32 %v5672, %v5673
        %v5676 = vrot.slane %v5672, 4
        %v5678 = vshrl.u32 %v5563, 16
        %v5680 = vrot.slane %v5678, 7
        %v5681 = vshll.u32 %v5563, 16
        %v5683 = vor.u32 %v5680, %v5681
        %v5684 = vsel %vm389, %v5676, %v5683
        %v5685 = vrot.slane %v5680, 4
        %v5687 = vshrl.u32 %v5564, 16
        %v5689 = vrot.slane %v5687, 7
        %v5690 = vshll.u32 %v5564, 16
        %v5692 = vor.u32 %v5689, %v5690
        %v5693 = vrot.slane %v5689, 4
        %v5695 = vshrl.u32 %v5565, 16
        %v5697 = vrot.slane %v5695, 7
        %v5698 = vshll.u32 %v5565, 16
        %v5700 = vor.u32 %v5697, %v5698
        %v5701 = vsel %vm389, %v5693, %v5700
        %v5702 = vrot.slane %v5697, 4
        %v5704 = vshrl.u32 %v5566, 16
        %v5706 = vrot.slane %v5704, 7
        %v5707 = vshll.u32 %v5566, 16
        %v5709 = vor.u32 %v5706, %v5707
        %v5710 = vrot.slane %v5706, 4
        %v5712 = vshrl.u32 %v5567, 16
        %v5714 = vrot.slane %v5712, 7
        %v5715 = vshll.u32 %v5567, 16
        %v5717 = vor.u32 %v5714, %v5715
        %v5718 = vsel %vm389, %v5710, %v5717
        %v5719 = vrot.slane %v5714, 4
        %v5721 = vshrl.u32 %v5568, 16
        %v5723 = vrot.slane %v5721, 7
        %v5724 = vshll.u32 %v5568, 16
        %v5726 = vor.u32 %v5723, %v5724
        %v5727 = vrot.slane %v5723, 4
        %v5729 = vshrl.u32 %v5569, 16
        %v5731 = vrot.slane %v5729, 7
        %v5732 = vshll.u32 %v5569, 16
        %v5734 = vor.u32 %v5731, %v5732
        %v5735 = vsel %vm389, %v5727, %v5734
        %v5736 = vrot.slane %v5731, 4
        %v5738 = vshrl.u32 %v5570, 16
        %v5740 = vrot.slane %v5738, 7
        %v5741 = vshll.u32 %v5570, 16
        %v5743 = vor.u32 %v5740, %v5741
        %v5744 = vrot.slane %v5740, 4
        %v5746 = vshrl.u32 %v5571, 16
        %v5748 = vrot.slane %v5746, 7
        %v5749 = vshll.u32 %v5571, 16
        %v5751 = vor.u32 %v5748, %v5749
        %v5752 = vsel %vm389, %v5744, %v5751
        %v5753 = vrot.slane %v5748, 4
        %v5755 = vshrl.u32 %v5572, 16
        %v5757 = vrot.slane %v5755, 7
        %v5758 = vshll.u32 %v5572, 16
        %v5760 = vor.u32 %v5757, %v5758
        %v5761 = vrot.slane %v5757, 4
        %v5763 = vshrl.u32 %v5573, 16
        %v5765 = vrot.slane %v5763, 7
        %v5766 = vshll.u32 %v5573, 16
        %v5768 = vor.u32 %v5765, %v5766
        %v5769 = vsel %vm389, %v5761, %v5768
        %v5770 = vrot.slane %v5765, 4
        %v5772 = vshrl.u32 %v5574, 16
        %v5774 = vrot.slane %v5772, 7
        %v5775 = vshll.u32 %v5574, 16
        %v5777 = vor.u32 %v5774, %v5775
        %v5778 = vrot.slane %v5774, 4
        %v5780 = vshrl.u32 %v5575, 16
        %v5782 = vrot.slane %v5780, 7
        %v5783 = vshll.u32 %v5575, 16
        %v5785 = vor.u32 %v5782, %v5783
        %v5786 = vsel %vm389, %v5778, %v5785
        %v5787 = vrot.slane %v5782, 4
        %v5789 = vshrl.u32 %v5576, 16
        %v5791 = vrot.slane %v5789, 7
        %v5792 = vshll.u32 %v5576, 16
        %v5794 = vor.u32 %v5791, %v5792
        %v5795 = vrot.slane %v5791, 4
        %v5797 = vshrl.u32 %v5577, 16
        %v5799 = vrot.slane %v5797, 7
        %v5800 = vshll.u32 %v5577, 16
        %v5802 = vor.u32 %v5799, %v5800
        %v5803 = vsel %vm389, %v5795, %v5802
        %v5804 = vrot.slane %v5799, 4
        %v5806 = vshrl.u32 %v5578, 16
        %v5808 = vrot.slane %v5806, 7
        %v5809 = vshll.u32 %v5578, 16
        %v5811 = vor.u32 %v5808, %v5809
        %v5812 = vrot.slane %v5808, 4
        %v5814 = vshrl.u32 %v5579, 16
        %v5816 = vrot.slane %v5814, 7
        %v5817 = vshll.u32 %v5579, 16
        %v5819 = vor.u32 %v5816, %v5817
        %v5820 = vsel %vm389, %v5812, %v5819
        %v5821 = vrot.slane %v5816, 4
        %v5823 = vshrl.u32 %v5580, 16
        %v5825 = vrot.slane %v5823, 7
        %v5826 = vshll.u32 %v5580, 16
        %v5828 = vor.u32 %v5825, %v5826
        %v5829 = vrot.slane %v5825, 4
        %v5831 = vshrl.u32 %v5581, 16
        %v5833 = vrot.slane %v5831, 7
        %v5834 = vshll.u32 %v5581, 16
        %v5836 = vor.u32 %v5833, %v5834
        %v5837 = vsel %vm389, %v5829, %v5836
        %v5838 = vrot.slane %v5833, 4
        %v5840 = vshrl.u32 %v5582, 16
        %v5842 = vrot.slane %v5840, 7
        %v5843 = vshll.u32 %v5582, 16
        %v5845 = vor.u32 %v5842, %v5843
        %v5846 = vrot.slane %v5842, 4
        %v5848 = vshrl.u32 %v5583, 16
        %v5850 = vrot.slane %v5848, 7
        %v5851 = vshll.u32 %v5583, 16
        %v5853 = vor.u32 %v5850, %v5851
        %v5854 = vsel %vm389, %v5846, %v5853
        %v5855 = vrot.slane %v5850, 4
        %v5904 = vsel %vm711, %v5590, %v2646
        %5905 = vst [vmem:[%s254] sm:$0xf] %v5904
        %5906 = vst.msk [vmem:[%s254 + $0x4] sm:$0xf] %vm246, %v5599
        %v5907 = vld [vmem:[%s254 + $0x8] sm:$0x1]
        %v5908 = vsel %vm257, %v5600, %v5907
        %5909 = vst [vmem:[%s254 + $0x8] sm:$0x1] %v5908
        %v5910 = vld [vmem:[%s254 + $0xc] sm:$0xf]
        %v5911 = vsel %vm711, %v5607, %v5910
        %5912 = vst [vmem:[%s254 + $0xc] sm:$0xf] %v5911
        %5913 = vst.msk [vmem:[%s254 + $0x10] sm:$0xf] %vm246, %v5616
        %v5914 = vld [vmem:[%s254 + $0x14] sm:$0x1]
        %v5915 = vsel %vm257, %v5617, %v5914
        %5916 = vst [vmem:[%s254 + $0x14] sm:$0x1] %v5915
        %v5917 = vld [vmem:[%s254 + $0x18] sm:$0xf]
        %v5918 = vsel %vm711, %v5624, %v5917
        %5919 = vst [vmem:[%s254 + $0x18] sm:$0xf] %v5918
        %5920 = vst.msk [vmem:[%s254 + $0x1c] sm:$0xf] %vm246, %v5633
        %v5921 = vld [vmem:[%s254 + $0x20] sm:$0x1]
        %v5922 = vsel %vm257, %v5634, %v5921
        %5923 = vst [vmem:[%s254 + $0x20] sm:$0x1] %v5922
        %v5924 = vld [vmem:[%s254 + $0x24] sm:$0xf]
        %v5925 = vsel %vm711, %v5641, %v5924
        %5926 = vst [vmem:[%s254 + $0x24] sm:$0xf] %v5925
        %5927 = vst.msk [vmem:[%s254 + $0x28] sm:$0xf] %vm246, %v5650
        %v5928 = vld [vmem:[%s254 + $0x2c] sm:$0x1]
        %v5929 = vsel %vm257, %v5651, %v5928
        %5930 = vst [vmem:[%s254 + $0x2c] sm:$0x1] %v5929
        %v5931 = vld [vmem:[%s254 + $0x30] sm:$0xf]
        %v5932 = vsel %vm711, %v5658, %v5931
        %5933 = vst [vmem:[%s254 + $0x30] sm:$0xf] %v5932
        %5934 = vst.msk [vmem:[%s254 + $0x34] sm:$0xf] %vm246, %v5667
        %v5935 = vld [vmem:[%s254 + $0x38] sm:$0x1]
        %v5936 = vsel %vm257, %v5668, %v5935
        %5937 = vst [vmem:[%s254 + $0x38] sm:$0x1] %v5936
        %v5938 = vld [vmem:[%s254 + $0x3c] sm:$0xf]
        %v5939 = vsel %vm711, %v5675, %v5938
        %5940 = vst [vmem:[%s254 + $0x3c] sm:$0xf] %v5939
        %5941 = vst.msk [vmem:[%s254 + $0x40] sm:$0xf] %vm246, %v5684
        %v5942 = vld [vmem:[%s254 + $0x44] sm:$0x1]
        %v5943 = vsel %vm257, %v5685, %v5942
        %5944 = vst [vmem:[%s254 + $0x44] sm:$0x1] %v5943
        %v5945 = vld [vmem:[%s254 + $0x48] sm:$0xf]
        %v5946 = vsel %vm711, %v5692, %v5945
        %5947 = vst [vmem:[%s254 + $0x48] sm:$0xf] %v5946
        %5948 = vst.msk [vmem:[%s254 + $0x4c] sm:$0xf] %vm246, %v5701
        %v5949 = vld [vmem:[%s254 + $0x50] sm:$0x1]
        %v5950 = vsel %vm257, %v5702, %v5949
        %5951 = vst [vmem:[%s254 + $0x50] sm:$0x1] %v5950
        %v5952 = vld [vmem:[%s254 + $0x54] sm:$0xf]
        %v5953 = vsel %vm711, %v5709, %v5952
        %5954 = vst [vmem:[%s254 + $0x54] sm:$0xf] %v5953
        %5955 = vst.msk [vmem:[%s254 + $0x58] sm:$0xf] %vm246, %v5718
        %v5956 = vld [vmem:[%s254 + $0x5c] sm:$0x1]
        %v5957 = vsel %vm257, %v5719, %v5956
        %5958 = vst [vmem:[%s254 + $0x5c] sm:$0x1] %v5957
        %v5959 = vld [vmem:[%s254 + $0x60] sm:$0xf]
        %v5960 = vsel %vm711, %v5726, %v5959
        %5961 = vst [vmem:[%s254 + $0x60] sm:$0xf] %v5960
        %5962 = vst.msk [vmem:[%s254 + $0x64] sm:$0xf] %vm246, %v5735
        %v5963 = vld [vmem:[%s254 + $0x68] sm:$0x1]
        %v5964 = vsel %vm257, %v5736, %v5963
        %5965 = vst [vmem:[%s254 + $0x68] sm:$0x1] %v5964
        %v5966 = vld [vmem:[%s254 + $0x6c] sm:$0xf]
        %v5967 = vsel %vm711, %v5743, %v5966
        %5968 = vst [vmem:[%s254 + $0x6c] sm:$0xf] %v5967
        %5969 = vst.msk [vmem:[%s254 + $0x70] sm:$0xf] %vm246, %v5752
        %v5970 = vld [vmem:[%s254 + $0x74] sm:$0x1]
        %v5971 = vsel %vm257, %v5753, %v5970
        %5972 = vst [vmem:[%s254 + $0x74] sm:$0x1] %v5971
        %v5973 = vld [vmem:[%s254 + $0x78] sm:$0xf]
        %v5974 = vsel %vm711, %v5760, %v5973
        %5975 = vst [vmem:[%s254 + $0x78] sm:$0xf] %v5974
        %5976 = vst.msk [vmem:[%s254 + $0x7c] sm:$0xf] %vm246, %v5769
        %v5977 = vld [vmem:[%s254 + $0x80] sm:$0x1]
        %v5978 = vsel %vm257, %v5770, %v5977
        %5979 = vst [vmem:[%s254 + $0x80] sm:$0x1] %v5978
        %v5980 = vld [vmem:[%s254 + $0x84] sm:$0xf]
        %v5981 = vsel %vm711, %v5777, %v5980
        %5982 = vst [vmem:[%s254 + $0x84] sm:$0xf] %v5981
        %5983 = vst.msk [vmem:[%s254 + $0x88] sm:$0xf] %vm246, %v5786
        %v5984 = vld [vmem:[%s254 + $0x8c] sm:$0x1]
        %v5985 = vsel %vm257, %v5787, %v5984
        %5986 = vst [vmem:[%s254 + $0x8c] sm:$0x1] %v5985
        %v5987 = vld [vmem:[%s254 + $0x90] sm:$0xf]
        %v5988 = vsel %vm711, %v5794, %v5987
        %5989 = vst [vmem:[%s254 + $0x90] sm:$0xf] %v5988
        %5990 = vst.msk [vmem:[%s254 + $0x94] sm:$0xf] %vm246, %v5803
        %v5991 = vld [vmem:[%s254 + $0x98] sm:$0x1]
        %v5992 = vsel %vm257, %v5804, %v5991
        %5993 = vst [vmem:[%s254 + $0x98] sm:$0x1] %v5992
        %v5994 = vld [vmem:[%s254 + $0x9c] sm:$0xf]
        %v5995 = vsel %vm711, %v5811, %v5994
        %5996 = vst [vmem:[%s254 + $0x9c] sm:$0xf] %v5995
        %5997 = vst.msk [vmem:[%s254 + $0xa0] sm:$0xf] %vm246, %v5820
        %v5998 = vld [vmem:[%s254 + $0xa4] sm:$0x1]
        %v5999 = vsel %vm257, %v5821, %v5998
        %6000 = vst [vmem:[%s254 + $0xa4] sm:$0x1] %v5999
        %v6001 = vld [vmem:[%s254 + $0xa8] sm:$0xf]
        %v6002 = vsel %vm711, %v5828, %v6001
        %6003 = vst [vmem:[%s254 + $0xa8] sm:$0xf] %v6002
        %6004 = vst.msk [vmem:[%s254 + $0xac] sm:$0xf] %vm246, %v5837
        %v6005 = vld [vmem:[%s254 + $0xb0] sm:$0x1]
        %v6006 = vsel %vm257, %v5838, %v6005
        %6007 = vst [vmem:[%s254 + $0xb0] sm:$0x1] %v6006
        %v6008 = vld [vmem:[%s254 + $0xb4] sm:$0xf]
        %v6009 = vsel %vm711, %v5845, %v6008
        %6010 = vst [vmem:[%s254 + $0xb4] sm:$0xf] %v6009
        %6011 = vst.msk [vmem:[%s254 + $0xb8] sm:$0xf] %vm246, %v5854
        %v6012 = vld [vmem:[%s254 + $0xbc] sm:$0x1]
        %v6013 = vsel %vm257, %v5855, %v6012
        %6014 = vst [vmem:[%s254 + $0xbc] sm:$0x1] %v6013
        %v6015 = vld [vmem:[#allocation8] sm:$0xf]
        %v6016 = vld [vmem:[#allocation2] sm:$0xf]
        %v6017 = vld [vmem:[#allocation2 + $0x4] sm:$0xf]
        %v6018 = vld [vmem:[#allocation2 + $0xc] sm:$0xf]
        %v6019 = vld [vmem:[#allocation2 + $0x10] sm:$0xf]
        %v6020 = vld [vmem:[#allocation2 + $0x18] sm:$0xf]
        %v6021 = vld [vmem:[#allocation2 + $0x1c] sm:$0xf]
        %v6022 = vld [vmem:[#allocation2 + $0x24] sm:$0xf]
        %v6023 = vld [vmem:[#allocation2 + $0x28] sm:$0xf]
        %v6024 = vld [vmem:[#allocation2 + $0x30] sm:$0xf]
        %v6025 = vld [vmem:[#allocation2 + $0x34] sm:$0xf]
        %v6026 = vld [vmem:[#allocation2 + $0x3c] sm:$0xf]
        %v6027 = vld [vmem:[#allocation2 + $0x40] sm:$0xf]
        %v6028 = vld [vmem:[#allocation2 + $0x48] sm:$0xf]
        %v6029 = vld [vmem:[#allocation2 + $0x4c] sm:$0xf]
        %v6030 = vld [vmem:[#allocation2 + $0x54] sm:$0xf]
        %v6031 = vld [vmem:[#allocation2 + $0x58] sm:$0xf]
        %v6032 = vld [vmem:[#allocation2 + $0x60] sm:$0xf]
        %v6033 = vld [vmem:[#allocation2 + $0x64] sm:$0xf]
        %v6034 = vld [vmem:[#allocation2 + $0x6c] sm:$0xf]
        %v6035 = vld [vmem:[#allocation2 + $0x70] sm:$0xf]
        %v6036 = vld [vmem:[#allocation2 + $0x78] sm:$0xf]
        %v6037 = vld [vmem:[#allocation2 + $0x7c] sm:$0xf]
        %v6038 = vld [vmem:[#allocation2 + $0x84] sm:$0xf]
        %v6039 = vld [vmem:[#allocation2 + $0x88] sm:$0xf]
        %v6040 = vld [vmem:[#allocation2 + $0x90] sm:$0xf]
        %v6041 = vld [vmem:[#allocation2 + $0x94] sm:$0xf]
        %v6042 = vld [vmem:[#allocation2 + $0x9c] sm:$0xf]
        %v6043 = vld [vmem:[#allocation2 + $0xa0] sm:$0xf]
        %v6044 = vld [vmem:[#allocation2 + $0xa8] sm:$0xf]
        %v6045 = vld [vmem:[#allocation2 + $0xac] sm:$0xf]
        %v6046 = vld [vmem:[#allocation2 + $0xb4] sm:$0xf]
        %v6047 = vld [vmem:[#allocation2 + $0xb8] sm:$0xf]
        %s6048 = scalar_lea.vmem [#allocation8], 4
        %v6049 = vld [vmem:[%s6048] sm:$0xf]
        %v6050 = vld [vmem:[#allocation2 + $0x8] sm:$0x1]
        %v6051 = vld [vmem:[#allocation2 + $0x14] sm:$0x1]
        %v6052 = vld [vmem:[#allocation2 + $0x20] sm:$0x1]
        %v6053 = vld [vmem:[#allocation2 + $0x2c] sm:$0x1]
        %v6054 = vld [vmem:[#allocation2 + $0x38] sm:$0x1]
        %v6055 = vld [vmem:[#allocation2 + $0x44] sm:$0x1]
        %v6056 = vld [vmem:[#allocation2 + $0x50] sm:$0x1]
        %v6057 = vld [vmem:[#allocation2 + $0x5c] sm:$0x1]
        %v6058 = vld [vmem:[#allocation2 + $0x68] sm:$0x1]
        %v6059 = vld [vmem:[#allocation2 + $0x74] sm:$0x1]
        %v6060 = vld [vmem:[#allocation2 + $0x80] sm:$0x1]
        %v6061 = vld [vmem:[#allocation2 + $0x8c] sm:$0x1]
        %v6062 = vld [vmem:[#allocation2 + $0x98] sm:$0x1]
        %v6063 = vld [vmem:[#allocation2 + $0xa4] sm:$0x1]
        %v6064 = vld [vmem:[#allocation2 + $0xb0] sm:$0x1]
        %v6065 = vld [vmem:[#allocation2 + $0xbc] sm:$0x1]
        %v6067 = vshrl.u32 %v6016, 16
        %v6069 = vrot.slane %v6067, 4
        %v6070 = vshll.u32 %v6016, 16
        %v6072 = vrot.slane %v6070, 5
        %v6073 = vor.u32 %v6069, %v6072
        %v6074 = vrot.slane %v6073, 4
        %v6076 = vshll.u32 %v6017, 16
        %v6078 = vrot.slane %v6076, 5
        %v6079 = vsel %vm876, %v6074, %v6078
        %v6080 = vshrl.u32 %v6017, 16
        %v6082 = vrot.slane %v6080, 4
        %v6083 = vor.u32 %v6082, %v6078
        %v6084 = vrot.slane %v6083, 4
        %v6086 = vshll.u32 %v6050, 16
        %v6088 = vrot.slane %v6086, 5
        %v6089 = vsel %vm876, %v6084, %v6088
        %v6091 = vshrl.u32 %v6018, 16
        %v6093 = vrot.slane %v6091, 4
        %v6094 = vshll.u32 %v6018, 16
        %v6096 = vrot.slane %v6094, 5
        %v6097 = vor.u32 %v6093, %v6096
        %v6098 = vrot.slane %v6097, 4
        %v6100 = vshll.u32 %v6019, 16
        %v6102 = vrot.slane %v6100, 5
        %v6103 = vsel %vm876, %v6098, %v6102
        %v6104 = vshrl.u32 %v6019, 16
        %v6106 = vrot.slane %v6104, 4
        %v6107 = vor.u32 %v6106, %v6102
        %v6108 = vrot.slane %v6107, 4
        %v6110 = vshll.u32 %v6051, 16
        %v6112 = vrot.slane %v6110, 5
        %v6113 = vsel %vm876, %v6108, %v6112
        %v6115 = vshrl.u32 %v6020, 16
        %v6117 = vrot.slane %v6115, 4
        %v6118 = vshll.u32 %v6020, 16
        %v6120 = vrot.slane %v6118, 5
        %v6121 = vor.u32 %v6117, %v6120
        %v6122 = vrot.slane %v6121, 4
        %v6124 = vshll.u32 %v6021, 16
        %v6126 = vrot.slane %v6124, 5
        %v6127 = vsel %vm876, %v6122, %v6126
        %v6128 = vshrl.u32 %v6021, 16
        %v6130 = vrot.slane %v6128, 4
        %v6131 = vor.u32 %v6130, %v6126
        %v6132 = vrot.slane %v6131, 4
        %v6134 = vshll.u32 %v6052, 16
        %v6136 = vrot.slane %v6134, 5
        %v6137 = vsel %vm876, %v6132, %v6136
        %v6139 = vshrl.u32 %v6022, 16
        %v6141 = vrot.slane %v6139, 4
        %v6142 = vshll.u32 %v6022, 16
        %v6144 = vrot.slane %v6142, 5
        %v6145 = vor.u32 %v6141, %v6144
        %v6146 = vrot.slane %v6145, 4
        %v6148 = vshll.u32 %v6023, 16
        %v6150 = vrot.slane %v6148, 5
        %v6151 = vsel %vm876, %v6146, %v6150
        %v6152 = vshrl.u32 %v6023, 16
        %v6154 = vrot.slane %v6152, 4
        %v6155 = vor.u32 %v6154, %v6150
        %v6156 = vrot.slane %v6155, 4
        %v6158 = vshll.u32 %v6053, 16
        %v6160 = vrot.slane %v6158, 5
        %v6161 = vsel %vm876, %v6156, %v6160
        %v6163 = vshrl.u32 %v6024, 16
        %v6165 = vrot.slane %v6163, 4
        %v6166 = vshll.u32 %v6024, 16
        %v6168 = vrot.slane %v6166, 5
        %v6169 = vor.u32 %v6165, %v6168
        %v6170 = vrot.slane %v6169, 4
        %v6172 = vshll.u32 %v6025, 16
        %v6174 = vrot.slane %v6172, 5
        %v6175 = vsel %vm876, %v6170, %v6174
        %v6176 = vshrl.u32 %v6025, 16
        %v6178 = vrot.slane %v6176, 4
        %v6179 = vor.u32 %v6178, %v6174
        %v6180 = vrot.slane %v6179, 4
        %v6182 = vshll.u32 %v6054, 16
        %v6184 = vrot.slane %v6182, 5
        %v6185 = vsel %vm876, %v6180, %v6184
        %v6187 = vshrl.u32 %v6026, 16
        %v6189 = vrot.slane %v6187, 4
        %v6190 = vshll.u32 %v6026, 16
        %v6192 = vrot.slane %v6190, 5
        %v6193 = vor.u32 %v6189, %v6192
        %v6194 = vrot.slane %v6193, 4
        %v6196 = vshll.u32 %v6027, 16
        %v6198 = vrot.slane %v6196, 5
        %v6199 = vsel %vm876, %v6194, %v6198
        %v6200 = vshrl.u32 %v6027, 16
        %v6202 = vrot.slane %v6200, 4
        %v6203 = vor.u32 %v6202, %v6198
        %v6204 = vrot.slane %v6203, 4
        %v6206 = vshll.u32 %v6055, 16
        %v6208 = vrot.slane %v6206, 5
        %v6209 = vsel %vm876, %v6204, %v6208
        %v6211 = vshrl.u32 %v6028, 16
        %v6213 = vrot.slane %v6211, 4
        %v6214 = vshll.u32 %v6028, 16
        %v6216 = vrot.slane %v6214, 5
        %v6217 = vor.u32 %v6213, %v6216
        %v6218 = vrot.slane %v6217, 4
        %v6220 = vshll.u32 %v6029, 16
        %v6222 = vrot.slane %v6220, 5
        %v6223 = vsel %vm876, %v6218, %v6222
        %v6224 = vshrl.u32 %v6029, 16
        %v6226 = vrot.slane %v6224, 4
        %v6227 = vor.u32 %v6226, %v6222
        %v6228 = vrot.slane %v6227, 4
        %v6230 = vshll.u32 %v6056, 16
        %v6232 = vrot.slane %v6230, 5
        %v6233 = vsel %vm876, %v6228, %v6232
        %v6235 = vshrl.u32 %v6030, 16
        %v6237 = vrot.slane %v6235, 4
        %v6238 = vshll.u32 %v6030, 16
        %v6240 = vrot.slane %v6238, 5
        %v6241 = vor.u32 %v6237, %v6240
        %v6242 = vrot.slane %v6241, 4
        %v6244 = vshll.u32 %v6031, 16
        %v6246 = vrot.slane %v6244, 5
        %v6247 = vsel %vm876, %v6242, %v6246
        %v6248 = vshrl.u32 %v6031, 16
        %v6250 = vrot.slane %v6248, 4
        %v6251 = vor.u32 %v6250, %v6246
        %v6252 = vrot.slane %v6251, 4
        %v6254 = vshll.u32 %v6057, 16
        %v6256 = vrot.slane %v6254, 5
        %v6257 = vsel %vm876, %v6252, %v6256
        %v6259 = vshrl.u32 %v6032, 16
        %v6261 = vrot.slane %v6259, 4
        %v6262 = vshll.u32 %v6032, 16
        %v6264 = vrot.slane %v6262, 5
        %v6265 = vor.u32 %v6261, %v6264
        %v6266 = vrot.slane %v6265, 4
        %v6268 = vshll.u32 %v6033, 16
        %v6270 = vrot.slane %v6268, 5
        %v6271 = vsel %vm876, %v6266, %v6270
        %v6272 = vshrl.u32 %v6033, 16
        %v6274 = vrot.slane %v6272, 4
        %v6275 = vor.u32 %v6274, %v6270
        %v6276 = vrot.slane %v6275, 4
        %v6278 = vshll.u32 %v6058, 16
        %v6280 = vrot.slane %v6278, 5
        %v6281 = vsel %vm876, %v6276, %v6280
        %v6283 = vshrl.u32 %v6034, 16
        %v6285 = vrot.slane %v6283, 4
        %v6286 = vshll.u32 %v6034, 16
        %v6288 = vrot.slane %v6286, 5
        %v6289 = vor.u32 %v6285, %v6288
        %v6290 = vrot.slane %v6289, 4
        %v6292 = vshll.u32 %v6035, 16
        %v6294 = vrot.slane %v6292, 5
        %v6295 = vsel %vm876, %v6290, %v6294
        %v6296 = vshrl.u32 %v6035, 16
        %v6298 = vrot.slane %v6296, 4
        %v6299 = vor.u32 %v6298, %v6294
        %v6300 = vrot.slane %v6299, 4
        %v6302 = vshll.u32 %v6059, 16
        %v6304 = vrot.slane %v6302, 5
        %v6305 = vsel %vm876, %v6300, %v6304
        %v6307 = vshrl.u32 %v6036, 16
        %v6309 = vrot.slane %v6307, 4
        %v6310 = vshll.u32 %v6036, 16
        %v6312 = vrot.slane %v6310, 5
        %v6313 = vor.u32 %v6309, %v6312
        %v6314 = vrot.slane %v6313, 4
        %v6316 = vshll.u32 %v6037, 16
        %v6318 = vrot.slane %v6316, 5
        %v6319 = vsel %vm876, %v6314, %v6318
        %v6320 = vshrl.u32 %v6037, 16
        %v6322 = vrot.slane %v6320, 4
        %v6323 = vor.u32 %v6322, %v6318
        %v6324 = vrot.slane %v6323, 4
        %v6326 = vshll.u32 %v6060, 16
        %v6328 = vrot.slane %v6326, 5
        %v6329 = vsel %vm876, %v6324, %v6328
        %v6331 = vshrl.u32 %v6038, 16
        %v6333 = vrot.slane %v6331, 4
        %v6334 = vshll.u32 %v6038, 16
        %v6336 = vrot.slane %v6334, 5
        %v6337 = vor.u32 %v6333, %v6336
        %v6338 = vrot.slane %v6337, 4
        %v6340 = vshll.u32 %v6039, 16
        %v6342 = vrot.slane %v6340, 5
        %v6343 = vsel %vm876, %v6338, %v6342
        %v6344 = vshrl.u32 %v6039, 16
        %v6346 = vrot.slane %v6344, 4
        %v6347 = vor.u32 %v6346, %v6342
        %v6348 = vrot.slane %v6347, 4
        %v6350 = vshll.u32 %v6061, 16
        %v6352 = vrot.slane %v6350, 5
        %v6353 = vsel %vm876, %v6348, %v6352
        %v6355 = vshrl.u32 %v6040, 16
        %v6357 = vrot.slane %v6355, 4
        %v6358 = vshll.u32 %v6040, 16
        %v6360 = vrot.slane %v6358, 5
        %v6361 = vor.u32 %v6357, %v6360
        %v6362 = vrot.slane %v6361, 4
        %v6364 = vshll.u32 %v6041, 16
        %v6366 = vrot.slane %v6364, 5
        %v6367 = vsel %vm876, %v6362, %v6366
        %v6368 = vshrl.u32 %v6041, 16
        %v6370 = vrot.slane %v6368, 4
        %v6371 = vor.u32 %v6370, %v6366
        %v6372 = vrot.slane %v6371, 4
        %v6374 = vshll.u32 %v6062, 16
        %v6376 = vrot.slane %v6374, 5
        %v6377 = vsel %vm876, %v6372, %v6376
        %v6379 = vshrl.u32 %v6042, 16
        %v6381 = vrot.slane %v6379, 4
        %v6382 = vshll.u32 %v6042, 16
        %v6384 = vrot.slane %v6382, 5
        %v6385 = vor.u32 %v6381, %v6384
        %v6386 = vrot.slane %v6385, 4
        %v6388 = vshll.u32 %v6043, 16
        %v6390 = vrot.slane %v6388, 5
        %v6391 = vsel %vm876, %v6386, %v6390
        %v6392 = vshrl.u32 %v6043, 16
        %v6394 = vrot.slane %v6392, 4
        %v6395 = vor.u32 %v6394, %v6390
        %v6396 = vrot.slane %v6395, 4
        %v6398 = vshll.u32 %v6063, 16
        %v6400 = vrot.slane %v6398, 5
        %v6401 = vsel %vm876, %v6396, %v6400
        %v6403 = vshrl.u32 %v6044, 16
        %v6405 = vrot.slane %v6403, 4
        %v6406 = vshll.u32 %v6044, 16
        %v6408 = vrot.slane %v6406, 5
        %v6409 = vor.u32 %v6405, %v6408
        %v6410 = vrot.slane %v6409, 4
        %v6412 = vshll.u32 %v6045, 16
        %v6414 = vrot.slane %v6412, 5
        %v6415 = vsel %vm876, %v6410, %v6414
        %v6416 = vshrl.u32 %v6045, 16
        %v6418 = vrot.slane %v6416, 4
        %v6419 = vor.u32 %v6418, %v6414
        %v6420 = vrot.slane %v6419, 4
        %v6422 = vshll.u32 %v6064, 16
        %v6424 = vrot.slane %v6422, 5
        %v6425 = vsel %vm876, %v6420, %v6424
        %v6427 = vshrl.u32 %v6046, 16
        %v6429 = vrot.slane %v6427, 4
        %v6430 = vshll.u32 %v6046, 16
        %v6432 = vrot.slane %v6430, 5
        %v6433 = vor.u32 %v6429, %v6432
        %v6434 = vrot.slane %v6433, 4
        %v6436 = vshll.u32 %v6047, 16
        %v6438 = vrot.slane %v6436, 5
        %v6439 = vsel %vm876, %v6434, %v6438
        %v6440 = vshrl.u32 %v6047, 16
        %v6442 = vrot.slane %v6440, 4
        %v6443 = vor.u32 %v6442, %v6438
        %v6444 = vrot.slane %v6443, 4
        %v6446 = vshll.u32 %v6065, 16
        %v6448 = vrot.slane %v6446, 5
        %v6449 = vsel %vm876, %v6444, %v6448
        %v6450 = vunpack.c.l.b16 %v6079
        %v6451 = vunpack.c.l.b16 %v6089
        %v6452 = vunpack.c.l.b16 %v6103
        %v6453 = vunpack.c.l.b16 %v6113
        %v6454 = vunpack.c.l.b16 %v6127
        %v6455 = vunpack.c.l.b16 %v6137
        %v6456 = vunpack.c.l.b16 %v6151
        %v6457 = vunpack.c.l.b16 %v6161
        %v6458 = vunpack.c.l.b16 %v6175
        %v6459 = vunpack.c.l.b16 %v6185
        %v6460 = vunpack.c.l.b16 %v6199
        %v6461 = vunpack.c.l.b16 %v6209
        %v6462 = vunpack.c.l.b16 %v6223
        %v6463 = vunpack.c.l.b16 %v6233
        %v6464 = vunpack.c.l.b16 %v6247
        %v6465 = vunpack.c.l.b16 %v6257
        %v6466 = vunpack.c.l.b16 %v6271
        %v6467 = vunpack.c.l.b16 %v6281
        %v6468 = vunpack.c.l.b16 %v6295
        %v6469 = vunpack.c.l.b16 %v6305
        %v6470 = vunpack.c.l.b16 %v6319
        %v6471 = vunpack.c.l.b16 %v6329
        %v6472 = vunpack.c.l.b16 %v6343
        %v6473 = vunpack.c.l.b16 %v6353
        %v6474 = vunpack.c.l.b16 %v6367
        %v6475 = vunpack.c.l.b16 %v6377
        %v6476 = vunpack.c.l.b16 %v6391
        %v6477 = vunpack.c.l.b16 %v6401
        %v6478 = vunpack.c.l.b16 %v6415
        %v6479 = vunpack.c.l.b16 %v6425
        %v6480 = vunpack.c.l.b16 %v6439
        %v6481 = vunpack.c.l.b16 %v6449
        %v6482 = vpack.c.b16 %v6451, %v6450
        %v6483 = vpack.c.b16 %v6453, %v6452
        %v6484 = vpack.c.b16 %v6455, %v6454
        %v6485 = vpack.c.b16 %v6457, %v6456
        %v6486 = vpack.c.b16 %v6459, %v6458
        %v6487 = vpack.c.b16 %v6461, %v6460
        %v6488 = vpack.c.b16 %v6463, %v6462
        %v6489 = vpack.c.b16 %v6465, %v6464
        %v6490 = vpack.c.b16 %v6467, %v6466
        %v6491 = vpack.c.b16 %v6469, %v6468
        %v6492 = vpack.c.b16 %v6471, %v6470
        %v6493 = vpack.c.b16 %v6473, %v6472
        %v6494 = vpack.c.b16 %v6475, %v6474
        %v6495 = vpack.c.b16 %v6477, %v6476
        %v6496 = vpack.c.b16 %v6479, %v6478
        %v6497 = vpack.c.b16 %v6481, %v6480
        %v6499 = vsel %vm1318, %v6049, 0
        %v6502 = vsel %vm1318, %v6482, 0
        %v6505 = vsel %vm1318, %v6483, 0
        %v6508 = vsel %vm1318, %v6484, 0
        %v6511 = vsel %vm1318, %v6485, 0
        %v6514 = vsel %vm1318, %v6486, 0
        %v6517 = vsel %vm1318, %v6487, 0
        %v6520 = vsel %vm1318, %v6488, 0
        %v6523 = vsel %vm1318, %v6489, 0
        %v6526 = vsel %vm1318, %v6490, 0
        %v6529 = vsel %vm1318, %v6491, 0
        %v6532 = vsel %vm1318, %v6492, 0
        %v6535 = vsel %vm1318, %v6493, 0
        %v6538 = vsel %vm1318, %v6494, 0
        %v6541 = vsel %vm1318, %v6495, 0
        %v6544 = vsel %vm1318, %v6496, 0
        %v6547 = vsel %vm1318, %v6497, 0
        %6549 = vmatprep.subr.bf16.mxu0 0
        %6550 = vmatpush1.bf16.xpose.msra.mxu0 %v6523
        %6551 = vmatprep.subr.bf16.mxu0 0
        %6552 = vmatpush1.bf16.xpose.msra.mxu0 %v6520
        %6553 = vmatprep.subr.bf16.mxu0 0
        %6554 = vmatpush1.bf16.xpose.msra.mxu0 %v6517
        %6555 = vmatprep.subr.bf16.mxu0 0
        %6556 = vmatpush1.bf16.xpose.msra.mxu0 %v6514
        %6557 = vmatprep.subr.bf16.mxu0 0
        %6558 = vmatpush1.bf16.xpose.msra.mxu0 %v6511
        %6559 = vmatprep.subr.bf16.mxu0 0
        %6560 = vmatpush1.bf16.xpose.msra.mxu0 %v6508
        %6561 = vmatprep.subr.bf16.mxu0 0
        %6562 = vmatpush1.bf16.xpose.msra.mxu0 %v6505
        %6563 = vmatprep.subr.bf16.mxu0 0
        %6564 = vmatpush1.bf16.xpose.msra.mxu0 %v6502
        %6565 = vmatprep.subr.bf16.mxu0 0
        %6566 = vmatpush2.bf16.xpose.msra.mxu0 %v6547
        %6567 = vmatprep.subr.bf16.mxu0 0
        %6568 = vmatpush2.bf16.xpose.msra.mxu0 %v6544
        %6569 = vmatprep.subr.bf16.mxu0 0
        %6570 = vmatpush2.bf16.xpose.msra.mxu0 %v6541
        %6571 = vmatprep.subr.bf16.mxu0 0
        %6572 = vmatpush2.bf16.xpose.msra.mxu0 %v6538
        %6573 = vmatprep.subr.bf16.mxu0 0
        %6574 = vmatpush2.bf16.xpose.msra.mxu0 %v6535
        %6575 = vmatprep.subr.bf16.mxu0 0
        %6576 = vmatpush2.bf16.xpose.msra.mxu0 %v6532
        %6577 = vmatprep.subr.bf16.mxu0 0
        %6578 = vmatpush2.bf16.xpose.msra.mxu0 %v6529
        %6579 = vmatprep.subr.bf16.mxu0 0
        %6580 = vmatpush2.bf16.xpose.msra.mxu0 %v6526
        %6581 = vmatprep.mubr.bf16.mxu0 0
        %6582 = vmatmul.mubr.bf16.gmra.mxu0 %v6499
        %v6583 = vpop.f32.mrf.mxu0
        %v6584 = vadd.f32 0.0, %v6583
        %v6585 = vpop.f32.mrf.mxu0
        %v6586 = vadd.f32 0.0, %v6585
        %v6587 = vpop.f32.mrf.mxu0
        %v6588 = vpop.f32.mrf.mxu0
        %6589 = vdwg.mxu0
        %v6622 = vunpack.c.l.b16 %v6016
        %v6623 = vunpack.c.l.b16 %v6017
        %v6624 = vunpack.c.l.b16 %v6018
        %v6625 = vunpack.c.l.b16 %v6019
        %v6626 = vunpack.c.l.b16 %v6020
        %v6627 = vunpack.c.l.b16 %v6021
        %v6628 = vunpack.c.l.b16 %v6022
        %v6629 = vunpack.c.l.b16 %v6023
        %v6630 = vunpack.c.l.b16 %v6024
        %v6631 = vunpack.c.l.b16 %v6025
        %v6632 = vunpack.c.l.b16 %v6026
        %v6633 = vunpack.c.l.b16 %v6027
        %v6634 = vunpack.c.l.b16 %v6028
        %v6635 = vunpack.c.l.b16 %v6029
        %v6636 = vunpack.c.l.b16 %v6030
        %v6637 = vunpack.c.l.b16 %v6031
        %v6638 = vunpack.c.l.b16 %v6032
        %v6639 = vunpack.c.l.b16 %v6033
        %v6640 = vunpack.c.l.b16 %v6034
        %v6641 = vunpack.c.l.b16 %v6035
        %v6642 = vunpack.c.l.b16 %v6036
        %v6643 = vunpack.c.l.b16 %v6037
        %v6644 = vunpack.c.l.b16 %v6038
        %v6645 = vunpack.c.l.b16 %v6039
        %v6646 = vunpack.c.l.b16 %v6040
        %v6647 = vunpack.c.l.b16 %v6041
        %v6648 = vunpack.c.l.b16 %v6042
        %v6649 = vunpack.c.l.b16 %v6043
        %v6650 = vunpack.c.l.b16 %v6044
        %v6651 = vunpack.c.l.b16 %v6045
        %v6652 = vunpack.c.l.b16 %v6046
        %v6653 = vunpack.c.l.b16 %v6047
        %v6654 = vpack.c.b16 %v6623, %v6622
        %v6655 = vpack.c.b16 %v6625, %v6624
        %v6656 = vpack.c.b16 %v6627, %v6626
        %v6657 = vpack.c.b16 %v6629, %v6628
        %v6658 = vpack.c.b16 %v6631, %v6630
        %v6659 = vpack.c.b16 %v6633, %v6632
        %v6660 = vpack.c.b16 %v6635, %v6634
        %v6661 = vpack.c.b16 %v6637, %v6636
        %v6662 = vpack.c.b16 %v6639, %v6638
        %v6663 = vpack.c.b16 %v6641, %v6640
        %v6664 = vpack.c.b16 %v6643, %v6642
        %v6665 = vpack.c.b16 %v6645, %v6644
        %v6666 = vpack.c.b16 %v6647, %v6646
        %v6667 = vpack.c.b16 %v6649, %v6648
        %v6668 = vpack.c.b16 %v6651, %v6650
        %v6669 = vpack.c.b16 %v6653, %v6652
        %v6671 = vsel %vm1318, %v6015, 0
        %v6674 = vsel %vm1318, %v6654, 0
        %v6677 = vsel %vm1318, %v6655, 0
        %v6680 = vsel %vm1318, %v6656, 0
        %v6683 = vsel %vm1318, %v6657, 0
        %v6686 = vsel %vm1318, %v6658, 0
        %v6689 = vsel %vm1318, %v6659, 0
        %v6692 = vsel %vm1318, %v6660, 0
        %v6695 = vsel %vm1318, %v6661, 0
        %v6698 = vsel %vm1318, %v6662, 0
        %v6701 = vsel %vm1318, %v6663, 0
        %v6704 = vsel %vm1318, %v6664, 0
        %v6707 = vsel %vm1318, %v6665, 0
        %v6710 = vsel %vm1318, %v6666, 0
        %v6713 = vsel %vm1318, %v6667, 0
        %v6716 = vsel %vm1318, %v6668, 0
        %v6719 = vsel %vm1318, %v6669, 0
        %6721 = vmatprep.subr.bf16.mxu0 0
        %6722 = vmatpush1.bf16.xpose.msra.mxu0 %v6695
        %6723 = vmatprep.subr.bf16.mxu0 0
        %6724 = vmatpush1.bf16.xpose.msra.mxu0 %v6692
        %6725 = vmatprep.subr.bf16.mxu0 0
        %6726 = vmatpush1.bf16.xpose.msra.mxu0 %v6689
        %6727 = vmatprep.subr.bf16.mxu0 0
        %6728 = vmatpush1.bf16.xpose.msra.mxu0 %v6686
        %6729 = vmatprep.subr.bf16.mxu0 0
        %6730 = vmatpush1.bf16.xpose.msra.mxu0 %v6683
        %6731 = vmatprep.subr.bf16.mxu0 0
        %6732 = vmatpush1.bf16.xpose.msra.mxu0 %v6680
        %6733 = vmatprep.subr.bf16.mxu0 0
        %6734 = vmatpush1.bf16.xpose.msra.mxu0 %v6677
        %6735 = vmatprep.subr.bf16.mxu0 0
        %6736 = vmatpush1.bf16.xpose.msra.mxu0 %v6674
        %6737 = vmatprep.subr.bf16.mxu0 0
        %6738 = vmatpush2.bf16.xpose.msra.mxu0 %v6719
        %6739 = vmatprep.subr.bf16.mxu0 0
        %6740 = vmatpush2.bf16.xpose.msra.mxu0 %v6716
        %6741 = vmatprep.subr.bf16.mxu0 0
        %6742 = vmatpush2.bf16.xpose.msra.mxu0 %v6713
        %6743 = vmatprep.subr.bf16.mxu0 0
        %6744 = vmatpush2.bf16.xpose.msra.mxu0 %v6710
        %6745 = vmatprep.subr.bf16.mxu0 0
        %6746 = vmatpush2.bf16.xpose.msra.mxu0 %v6707
        %6747 = vmatprep.subr.bf16.mxu0 0
        %6748 = vmatpush2.bf16.xpose.msra.mxu0 %v6704
        %6749 = vmatprep.subr.bf16.mxu0 0
        %6750 = vmatpush2.bf16.xpose.msra.mxu0 %v6701
        %6751 = vmatprep.subr.bf16.mxu0 0
        %6752 = vmatpush2.bf16.xpose.msra.mxu0 %v6698
        %6753 = vmatprep.mubr.bf16.mxu0 0
        %6754 = vmatmul.mubr.bf16.gmra.mxu0 %v6671
        %v6755 = vpop.f32.mrf.mxu0
        %v6756 = vadd.f32 %v6584, %v6755
        %v6757 = vpop.f32.mrf.mxu0
        %v6758 = vadd.f32 %v6586, %v6757
        %v6759 = vpop.f32.mrf.mxu0
        %v6760 = vpop.f32.mrf.mxu0
        %6761 = vdwg.mxu0
        %s6762 = scalar_lea.vmem [#allocation8], 8
        %v6763 = vld [vmem:[%s6762] sm:$0xf]
        %v6764 = vld [vmem:[#allocation2] sm:$0xe]
        %v6765 = vld [vmem:[#allocation2 + $0xc] sm:$0xe]
        %v6766 = vld [vmem:[#allocation2 + $0x18] sm:$0xe]
        %v6767 = vld [vmem:[#allocation2 + $0x24] sm:$0xe]
        %v6768 = vld [vmem:[#allocation2 + $0x30] sm:$0xe]
        %v6769 = vld [vmem:[#allocation2 + $0x3c] sm:$0xe]
        %v6770 = vld [vmem:[#allocation2 + $0x48] sm:$0xe]
        %v6771 = vld [vmem:[#allocation2 + $0x54] sm:$0xe]
        %v6772 = vld [vmem:[#allocation2 + $0x60] sm:$0xe]
        %v6773 = vld [vmem:[#allocation2 + $0x6c] sm:$0xe]
        %v6774 = vld [vmem:[#allocation2 + $0x78] sm:$0xe]
        %v6775 = vld [vmem:[#allocation2 + $0x84] sm:$0xe]
        %v6776 = vld [vmem:[#allocation2 + $0x90] sm:$0xe]
        %v6777 = vld [vmem:[#allocation2 + $0x9c] sm:$0xe]
        %v6778 = vld [vmem:[#allocation2 + $0xa8] sm:$0xe]
        %v6779 = vld [vmem:[#allocation2 + $0xb4] sm:$0xe]
        %v6812 = vrot.slane %v6764, 5
        %v6813 = vrot.slane %v6812, 4
        %v6814 = vrot.slane %v6017, 5
        %v6815 = vsel %vm1873, %v6813, %v6814
        %v6816 = vrot.slane %v6814, 4
        %v6817 = vrot.slane %v6050, 5
        %v6818 = vsel %vm1873, %v6816, %v6817
        %v6819 = vrot.slane %v6765, 5
        %v6820 = vrot.slane %v6819, 4
        %v6821 = vrot.slane %v6019, 5
        %v6822 = vsel %vm1873, %v6820, %v6821
        %v6823 = vrot.slane %v6821, 4
        %v6824 = vrot.slane %v6051, 5
        %v6825 = vsel %vm1873, %v6823, %v6824
        %v6826 = vrot.slane %v6766, 5
        %v6827 = vrot.slane %v6826, 4
        %v6828 = vrot.slane %v6021, 5
        %v6829 = vsel %vm1873, %v6827, %v6828
        %v6830 = vrot.slane %v6828, 4
        %v6831 = vrot.slane %v6052, 5
        %v6832 = vsel %vm1873, %v6830, %v6831
        %v6833 = vrot.slane %v6767, 5
        %v6834 = vrot.slane %v6833, 4
        %v6835 = vrot.slane %v6023, 5
        %v6836 = vsel %vm1873, %v6834, %v6835
        %v6837 = vrot.slane %v6835, 4
        %v6838 = vrot.slane %v6053, 5
        %v6839 = vsel %vm1873, %v6837, %v6838
        %v6840 = vrot.slane %v6768, 5
        %v6841 = vrot.slane %v6840, 4
        %v6842 = vrot.slane %v6025, 5
        %v6843 = vsel %vm1873, %v6841, %v6842
        %v6844 = vrot.slane %v6842, 4
        %v6845 = vrot.slane %v6054, 5
        %v6846 = vsel %vm1873, %v6844, %v6845
        %v6847 = vrot.slane %v6769, 5
        %v6848 = vrot.slane %v6847, 4
        %v6849 = vrot.slane %v6027, 5
        %v6850 = vsel %vm1873, %v6848, %v6849
        %v6851 = vrot.slane %v6849, 4
        %v6852 = vrot.slane %v6055, 5
        %v6853 = vsel %vm1873, %v6851, %v6852
        %v6854 = vrot.slane %v6770, 5
        %v6855 = vrot.slane %v6854, 4
        %v6856 = vrot.slane %v6029, 5
        %v6857 = vsel %vm1873, %v6855, %v6856
        %v6858 = vrot.slane %v6856, 4
        %v6859 = vrot.slane %v6056, 5
        %v6860 = vsel %vm1873, %v6858, %v6859
        %v6861 = vrot.slane %v6771, 5
        %v6862 = vrot.slane %v6861, 4
        %v6863 = vrot.slane %v6031, 5
        %v6864 = vsel %vm1873, %v6862, %v6863
        %v6865 = vrot.slane %v6863, 4
        %v6866 = vrot.slane %v6057, 5
        %v6867 = vsel %vm1873, %v6865, %v6866
        %v6868 = vrot.slane %v6772, 5
        %v6869 = vrot.slane %v6868, 4
        %v6870 = vrot.slane %v6033, 5
        %v6871 = vsel %vm1873, %v6869, %v6870
        %v6872 = vrot.slane %v6870, 4
        %v6873 = vrot.slane %v6058, 5
        %v6874 = vsel %vm1873, %v6872, %v6873
        %v6875 = vrot.slane %v6773, 5
        %v6876 = vrot.slane %v6875, 4
        %v6877 = vrot.slane %v6035, 5
        %v6878 = vsel %vm1873, %v6876, %v6877
        %v6879 = vrot.slane %v6877, 4
        %v6880 = vrot.slane %v6059, 5
        %v6881 = vsel %vm1873, %v6879, %v6880
        %v6882 = vrot.slane %v6774, 5
        %v6883 = vrot.slane %v6882, 4
        %v6884 = vrot.slane %v6037, 5
        %v6885 = vsel %vm1873, %v6883, %v6884
        %v6886 = vrot.slane %v6884, 4
        %v6887 = vrot.slane %v6060, 5
        %v6888 = vsel %vm1873, %v6886, %v6887
        %v6889 = vrot.slane %v6775, 5
        %v6890 = vrot.slane %v6889, 4
        %v6891 = vrot.slane %v6039, 5
        %v6892 = vsel %vm1873, %v6890, %v6891
        %v6893 = vrot.slane %v6891, 4
        %v6894 = vrot.slane %v6061, 5
        %v6895 = vsel %vm1873, %v6893, %v6894
        %v6896 = vrot.slane %v6776, 5
        %v6897 = vrot.slane %v6896, 4
        %v6898 = vrot.slane %v6041, 5
        %v6899 = vsel %vm1873, %v6897, %v6898
        %v6900 = vrot.slane %v6898, 4
        %v6901 = vrot.slane %v6062, 5
        %v6902 = vsel %vm1873, %v6900, %v6901
        %v6903 = vrot.slane %v6777, 5
        %v6904 = vrot.slane %v6903, 4
        %v6905 = vrot.slane %v6043, 5
        %v6906 = vsel %vm1873, %v6904, %v6905
        %v6907 = vrot.slane %v6905, 4
        %v6908 = vrot.slane %v6063, 5
        %v6909 = vsel %vm1873, %v6907, %v6908
        %v6910 = vrot.slane %v6778, 5
        %v6911 = vrot.slane %v6910, 4
        %v6912 = vrot.slane %v6045, 5
        %v6913 = vsel %vm1873, %v6911, %v6912
        %v6914 = vrot.slane %v6912, 4
        %v6915 = vrot.slane %v6064, 5
        %v6916 = vsel %vm1873, %v6914, %v6915
        %v6917 = vrot.slane %v6779, 5
        %v6918 = vrot.slane %v6917, 4
        %v6919 = vrot.slane %v6047, 5
        %v6920 = vsel %vm1873, %v6918, %v6919
        %v6921 = vrot.slane %v6919, 4
        %v6922 = vrot.slane %v6065, 5
        %v6923 = vsel %vm1873, %v6921, %v6922
        %v6924 = vunpack.c.l.b16 %v6815
        %v6925 = vunpack.c.l.b16 %v6818
        %v6926 = vunpack.c.l.b16 %v6822
        %v6927 = vunpack.c.l.b16 %v6825
        %v6928 = vunpack.c.l.b16 %v6829
        %v6929 = vunpack.c.l.b16 %v6832
        %v6930 = vunpack.c.l.b16 %v6836
        %v6931 = vunpack.c.l.b16 %v6839
        %v6932 = vunpack.c.l.b16 %v6843
        %v6933 = vunpack.c.l.b16 %v6846
        %v6934 = vunpack.c.l.b16 %v6850
        %v6935 = vunpack.c.l.b16 %v6853
        %v6936 = vunpack.c.l.b16 %v6857
        %v6937 = vunpack.c.l.b16 %v6860
        %v6938 = vunpack.c.l.b16 %v6864
        %v6939 = vunpack.c.l.b16 %v6867
        %v6940 = vunpack.c.l.b16 %v6871
        %v6941 = vunpack.c.l.b16 %v6874
        %v6942 = vunpack.c.l.b16 %v6878
        %v6943 = vunpack.c.l.b16 %v6881
        %v6944 = vunpack.c.l.b16 %v6885
        %v6945 = vunpack.c.l.b16 %v6888
        %v6946 = vunpack.c.l.b16 %v6892
        %v6947 = vunpack.c.l.b16 %v6895
        %v6948 = vunpack.c.l.b16 %v6899
        %v6949 = vunpack.c.l.b16 %v6902
        %v6950 = vunpack.c.l.b16 %v6906
        %v6951 = vunpack.c.l.b16 %v6909
        %v6952 = vunpack.c.l.b16 %v6913
        %v6953 = vunpack.c.l.b16 %v6916
        %v6954 = vunpack.c.l.b16 %v6920
        %v6955 = vunpack.c.l.b16 %v6923
        %v6956 = vpack.c.b16 %v6925, %v6924
        %v6957 = vpack.c.b16 %v6927, %v6926
        %v6958 = vpack.c.b16 %v6929, %v6928
        %v6959 = vpack.c.b16 %v6931, %v6930
        %v6960 = vpack.c.b16 %v6933, %v6932
        %v6961 = vpack.c.b16 %v6935, %v6934
        %v6962 = vpack.c.b16 %v6937, %v6936
        %v6963 = vpack.c.b16 %v6939, %v6938
        %v6964 = vpack.c.b16 %v6941, %v6940
        %v6965 = vpack.c.b16 %v6943, %v6942
        %v6966 = vpack.c.b16 %v6945, %v6944
        %v6967 = vpack.c.b16 %v6947, %v6946
        %v6968 = vpack.c.b16 %v6949, %v6948
        %v6969 = vpack.c.b16 %v6951, %v6950
        %v6970 = vpack.c.b16 %v6953, %v6952
        %v6971 = vpack.c.b16 %v6955, %v6954
        %v6973 = vsel %vm1318, %v6763, 0
        %v6976 = vsel %vm1318, %v6956, 0
        %v6979 = vsel %vm1318, %v6957, 0
        %v6982 = vsel %vm1318, %v6958, 0
        %v6985 = vsel %vm1318, %v6959, 0
        %v6988 = vsel %vm1318, %v6960, 0
        %v6991 = vsel %vm1318, %v6961, 0
        %v6994 = vsel %vm1318, %v6962, 0
        %v6997 = vsel %vm1318, %v6963, 0
        %v7000 = vsel %vm1318, %v6964, 0
        %v7003 = vsel %vm1318, %v6965, 0
        %v7006 = vsel %vm1318, %v6966, 0
        %v7009 = vsel %vm1318, %v6967, 0
        %v7012 = vsel %vm1318, %v6968, 0
        %v7015 = vsel %vm1318, %v6969, 0
        %v7018 = vsel %vm1318, %v6970, 0
        %v7021 = vsel %vm1318, %v6971, 0
        %7023 = vmatprep.subr.bf16.mxu0 0
        %7024 = vmatpush1.bf16.xpose.msra.mxu0 %v6997
        %7025 = vmatprep.subr.bf16.mxu0 0
        %7026 = vmatpush1.bf16.xpose.msra.mxu0 %v6994
        %7027 = vmatprep.subr.bf16.mxu0 0
        %7028 = vmatpush1.bf16.xpose.msra.mxu0 %v6991
        %7029 = vmatprep.subr.bf16.mxu0 0
        %7030 = vmatpush1.bf16.xpose.msra.mxu0 %v6988
        %7031 = vmatprep.subr.bf16.mxu0 0
        %7032 = vmatpush1.bf16.xpose.msra.mxu0 %v6985
        %7033 = vmatprep.subr.bf16.mxu0 0
        %7034 = vmatpush1.bf16.xpose.msra.mxu0 %v6982
        %7035 = vmatprep.subr.bf16.mxu0 0
        %7036 = vmatpush1.bf16.xpose.msra.mxu0 %v6979
        %7037 = vmatprep.subr.bf16.mxu0 0
        %7038 = vmatpush1.bf16.xpose.msra.mxu0 %v6976
        %7039 = vmatprep.subr.bf16.mxu0 0
        %7040 = vmatpush2.bf16.xpose.msra.mxu0 %v7021
        %7041 = vmatprep.subr.bf16.mxu0 0
        %7042 = vmatpush2.bf16.xpose.msra.mxu0 %v7018
        %7043 = vmatprep.subr.bf16.mxu0 0
        %7044 = vmatpush2.bf16.xpose.msra.mxu0 %v7015
        %7045 = vmatprep.subr.bf16.mxu0 0
        %7046 = vmatpush2.bf16.xpose.msra.mxu0 %v7012
        %7047 = vmatprep.subr.bf16.mxu0 0
        %7048 = vmatpush2.bf16.xpose.msra.mxu0 %v7009
        %7049 = vmatprep.subr.bf16.mxu0 0
        %7050 = vmatpush2.bf16.xpose.msra.mxu0 %v7006
        %7051 = vmatprep.subr.bf16.mxu0 0
        %7052 = vmatpush2.bf16.xpose.msra.mxu0 %v7003
        %7053 = vmatprep.subr.bf16.mxu0 0
        %7054 = vmatpush2.bf16.xpose.msra.mxu0 %v7000
        %7055 = vmatprep.mubr.bf16.mxu0 0
        %7056 = vmatmul.mubr.bf16.gmra.mxu0 %v6973
        %v7057 = vpop.f32.mrf.mxu0
        %v7058 = vadd.f32 0.0, %v7057
        %v7059 = vpop.f32.mrf.mxu0
        %v7060 = vadd.f32 0.0, %v7059
        %v7061 = vpop.f32.mrf.mxu0
        %v7062 = vpop.f32.mrf.mxu0
        %7063 = vdwg.mxu0
        %v7064 = vadd.f32 %v6756, %v7058
        %v7065 = vadd.f32 %v6758, %v7060
        %s7066 = scalar_lea.vmem [#allocation8], 12
        %v7067 = vld [vmem:[%s7066] sm:$0xf]
        %v7068 = vld [vmem:[%s254] sm:$0xf]
        %v7069 = vld [vmem:[%s254 + $0x4] sm:$0xf]
        %v7070 = vld [vmem:[%s254 + $0xc] sm:$0xf]
        %v7071 = vld [vmem:[%s254 + $0x10] sm:$0xf]
        %v7072 = vld [vmem:[%s254 + $0x18] sm:$0xf]
        %v7073 = vld [vmem:[%s254 + $0x1c] sm:$0xf]
        %v7074 = vld [vmem:[%s254 + $0x24] sm:$0xf]
        %v7075 = vld [vmem:[%s254 + $0x28] sm:$0xf]
        %v7076 = vld [vmem:[%s254 + $0x30] sm:$0xf]
        %v7077 = vld [vmem:[%s254 + $0x34] sm:$0xf]
        %v7078 = vld [vmem:[%s254 + $0x3c] sm:$0xf]
        %v7079 = vld [vmem:[%s254 + $0x40] sm:$0xf]
        %v7080 = vld [vmem:[%s254 + $0x48] sm:$0xf]
        %v7081 = vld [vmem:[%s254 + $0x4c] sm:$0xf]
        %v7082 = vld [vmem:[%s254 + $0x54] sm:$0xf]
        %v7083 = vld [vmem:[%s254 + $0x58] sm:$0xf]
        %v7084 = vld [vmem:[%s254 + $0x60] sm:$0xf]
        %v7085 = vld [vmem:[%s254 + $0x64] sm:$0xf]
        %v7086 = vld [vmem:[%s254 + $0x6c] sm:$0xf]
        %v7087 = vld [vmem:[%s254 + $0x70] sm:$0xf]
        %v7088 = vld [vmem:[%s254 + $0x78] sm:$0xf]
        %v7089 = vld [vmem:[%s254 + $0x7c] sm:$0xf]
        %v7090 = vld [vmem:[%s254 + $0x84] sm:$0xf]
        %v7091 = vld [vmem:[%s254 + $0x88] sm:$0xf]
        %v7092 = vld [vmem:[%s254 + $0x90] sm:$0xf]
        %v7093 = vld [vmem:[%s254 + $0x94] sm:$0xf]
        %v7094 = vld [vmem:[%s254 + $0x9c] sm:$0xf]
        %v7095 = vld [vmem:[%s254 + $0xa0] sm:$0xf]
        %v7096 = vld [vmem:[%s254 + $0xa8] sm:$0xf]
        %v7097 = vld [vmem:[%s254 + $0xac] sm:$0xf]
        %v7098 = vld [vmem:[%s254 + $0xb4] sm:$0xf]
        %v7099 = vld [vmem:[%s254 + $0xb8] sm:$0xf]
        %v7132 = vunpack.c.l.b16 %v7068
        %v7133 = vunpack.c.l.b16 %v7069
        %v7134 = vunpack.c.l.b16 %v7070
        %v7135 = vunpack.c.l.b16 %v7071
        %v7136 = vunpack.c.l.b16 %v7072
        %v7137 = vunpack.c.l.b16 %v7073
        %v7138 = vunpack.c.l.b16 %v7074
        %v7139 = vunpack.c.l.b16 %v7075
        %v7140 = vunpack.c.l.b16 %v7076
        %v7141 = vunpack.c.l.b16 %v7077
        %v7142 = vunpack.c.l.b16 %v7078
        %v7143 = vunpack.c.l.b16 %v7079
        %v7144 = vunpack.c.l.b16 %v7080
        %v7145 = vunpack.c.l.b16 %v7081
        %v7146 = vunpack.c.l.b16 %v7082
        %v7147 = vunpack.c.l.b16 %v7083
        %v7148 = vunpack.c.l.b16 %v7084
        %v7149 = vunpack.c.l.b16 %v7085
        %v7150 = vunpack.c.l.b16 %v7086
        %v7151 = vunpack.c.l.b16 %v7087
        %v7152 = vunpack.c.l.b16 %v7088
        %v7153 = vunpack.c.l.b16 %v7089
        %v7154 = vunpack.c.l.b16 %v7090
        %v7155 = vunpack.c.l.b16 %v7091
        %v7156 = vunpack.c.l.b16 %v7092
        %v7157 = vunpack.c.l.b16 %v7093
        %v7158 = vunpack.c.l.b16 %v7094
        %v7159 = vunpack.c.l.b16 %v7095
        %v7160 = vunpack.c.l.b16 %v7096
        %v7161 = vunpack.c.l.b16 %v7097
        %v7162 = vunpack.c.l.b16 %v7098
        %v7163 = vunpack.c.l.b16 %v7099
        %v7164 = vpack.c.b16 %v7133, %v7132
        %v7165 = vpack.c.b16 %v7135, %v7134
        %v7166 = vpack.c.b16 %v7137, %v7136
        %v7167 = vpack.c.b16 %v7139, %v7138
        %v7168 = vpack.c.b16 %v7141, %v7140
        %v7169 = vpack.c.b16 %v7143, %v7142
        %v7170 = vpack.c.b16 %v7145, %v7144
        %v7171 = vpack.c.b16 %v7147, %v7146
        %v7172 = vpack.c.b16 %v7149, %v7148
        %v7173 = vpack.c.b16 %v7151, %v7150
        %v7174 = vpack.c.b16 %v7153, %v7152
        %v7175 = vpack.c.b16 %v7155, %v7154
        %v7176 = vpack.c.b16 %v7157, %v7156
        %v7177 = vpack.c.b16 %v7159, %v7158
        %v7178 = vpack.c.b16 %v7161, %v7160
        %v7179 = vpack.c.b16 %v7163, %v7162
        %v7181 = vsel %vm1318, %v7067, 0
        %v7184 = vsel %vm1318, %v7164, 0
        %v7187 = vsel %vm1318, %v7165, 0
        %v7190 = vsel %vm1318, %v7166, 0
        %v7193 = vsel %vm1318, %v7167, 0
        %v7196 = vsel %vm1318, %v7168, 0
        %v7199 = vsel %vm1318, %v7169, 0
        %v7202 = vsel %vm1318, %v7170, 0
        %v7205 = vsel %vm1318, %v7171, 0
        %v7208 = vsel %vm1318, %v7172, 0
        %v7211 = vsel %vm1318, %v7173, 0
        %v7214 = vsel %vm1318, %v7174, 0
        %v7217 = vsel %vm1318, %v7175, 0
        %v7220 = vsel %vm1318, %v7176, 0
        %v7223 = vsel %vm1318, %v7177, 0
        %v7226 = vsel %vm1318, %v7178, 0
        %v7229 = vsel %vm1318, %v7179, 0
        %7231 = vmatprep.subr.bf16.mxu0 0
        %7232 = vmatpush1.bf16.xpose.msra.mxu0 %v7205
        %7233 = vmatprep.subr.bf16.mxu0 0
        %7234 = vmatpush1.bf16.xpose.msra.mxu0 %v7202
        %7235 = vmatprep.subr.bf16.mxu0 0
        %7236 = vmatpush1.bf16.xpose.msra.mxu0 %v7199
        %7237 = vmatprep.subr.bf16.mxu0 0
        %7238 = vmatpush1.bf16.xpose.msra.mxu0 %v7196
        %7239 = vmatprep.subr.bf16.mxu0 0
        %7240 = vmatpush1.bf16.xpose.msra.mxu0 %v7193
        %7241 = vmatprep.subr.bf16.mxu0 0
        %7242 = vmatpush1.bf16.xpose.msra.mxu0 %v7190
        %7243 = vmatprep.subr.bf16.mxu0 0
        %7244 = vmatpush1.bf16.xpose.msra.mxu0 %v7187
        %7245 = vmatprep.subr.bf16.mxu0 0
        %7246 = vmatpush1.bf16.xpose.msra.mxu0 %v7184
        %7247 = vmatprep.subr.bf16.mxu0 0
        %7248 = vmatpush2.bf16.xpose.msra.mxu0 %v7229
        %7249 = vmatprep.subr.bf16.mxu0 0
        %7250 = vmatpush2.bf16.xpose.msra.mxu0 %v7226
        %7251 = vmatprep.subr.bf16.mxu0 0
        %7252 = vmatpush2.bf16.xpose.msra.mxu0 %v7223
        %7253 = vmatprep.subr.bf16.mxu0 0
        %7254 = vmatpush2.bf16.xpose.msra.mxu0 %v7220
        %7255 = vmatprep.subr.bf16.mxu0 0
        %7256 = vmatpush2.bf16.xpose.msra.mxu0 %v7217
        %7257 = vmatprep.subr.bf16.mxu0 0
        %7258 = vmatpush2.bf16.xpose.msra.mxu0 %v7214
        %7259 = vmatprep.subr.bf16.mxu0 0
        %7260 = vmatpush2.bf16.xpose.msra.mxu0 %v7211
        %7261 = vmatprep.subr.bf16.mxu0 0
        %7262 = vmatpush2.bf16.xpose.msra.mxu0 %v7208
        %7263 = vmatprep.mubr.bf16.mxu0 0
        %7264 = vmatmul.mubr.bf16.gmra.mxu0 %v7181
        %v7265 = vpop.f32.mrf.mxu0
        %v7266 = vadd.f32 0.0, %v7265
        %v7267 = vpop.f32.mrf.mxu0
        %v7268 = vadd.f32 0.0, %v7267
        %v7269 = vpop.f32.mrf.mxu0
        %v7270 = vpop.f32.mrf.mxu0
        %7271 = vdwg.mxu0
        %v7272 = vadd.f32 %v7064, %v7266
        %v7273 = vadd.f32 %v7065, %v7268
        %s7274 = scalar_lea.vmem [#allocation8], 16
        %v7275 = vld [vmem:[%s7274] sm:$0xf]
        %v7276 = vld [vmem:[%s254] sm:$0xf]
        %v7277 = vld [vmem:[%s254 + $0x4] sm:$0xf]
        %v7278 = vld [vmem:[%s254 + $0x8] sm:$0x1]
        %v7279 = vld [vmem:[%s254 + $0xc] sm:$0xf]
        %v7280 = vld [vmem:[%s254 + $0x10] sm:$0xf]
        %v7281 = vld [vmem:[%s254 + $0x14] sm:$0x1]
        %v7282 = vld [vmem:[%s254 + $0x18] sm:$0xf]
        %v7283 = vld [vmem:[%s254 + $0x1c] sm:$0xf]
        %v7284 = vld [vmem:[%s254 + $0x20] sm:$0x1]
        %v7285 = vld [vmem:[%s254 + $0x24] sm:$0xf]
        %v7286 = vld [vmem:[%s254 + $0x28] sm:$0xf]
        %v7287 = vld [vmem:[%s254 + $0x2c] sm:$0x1]
        %v7288 = vld [vmem:[%s254 + $0x30] sm:$0xf]
        %v7289 = vld [vmem:[%s254 + $0x34] sm:$0xf]
        %v7290 = vld [vmem:[%s254 + $0x38] sm:$0x1]
        %v7291 = vld [vmem:[%s254 + $0x3c] sm:$0xf]
        %v7292 = vld [vmem:[%s254 + $0x40] sm:$0xf]
        %v7293 = vld [vmem:[%s254 + $0x44] sm:$0x1]
        %v7294 = vld [vmem:[%s254 + $0x48] sm:$0xf]
        %v7295 = vld [vmem:[%s254 + $0x4c] sm:$0xf]
        %v7296 = vld [vmem:[%s254 + $0x50] sm:$0x1]
        %v7297 = vld [vmem:[%s254 + $0x54] sm:$0xf]
        %v7298 = vld [vmem:[%s254 + $0x58] sm:$0xf]
        %v7299 = vld [vmem:[%s254 + $0x5c] sm:$0x1]
        %v7300 = vld [vmem:[%s254 + $0x60] sm:$0xf]
        %v7301 = vld [vmem:[%s254 + $0x64] sm:$0xf]
        %v7302 = vld [vmem:[%s254 + $0x68] sm:$0x1]
        %v7303 = vld [vmem:[%s254 + $0x6c] sm:$0xf]
        %v7304 = vld [vmem:[%s254 + $0x70] sm:$0xf]
        %v7305 = vld [vmem:[%s254 + $0x74] sm:$0x1]
        %v7306 = vld [vmem:[%s254 + $0x78] sm:$0xf]
        %v7307 = vld [vmem:[%s254 + $0x7c] sm:$0xf]
        %v7308 = vld [vmem:[%s254 + $0x80] sm:$0x1]
        %v7309 = vld [vmem:[%s254 + $0x84] sm:$0xf]
        %v7310 = vld [vmem:[%s254 + $0x88] sm:$0xf]
        %v7311 = vld [vmem:[%s254 + $0x8c] sm:$0x1]
        %v7312 = vld [vmem:[%s254 + $0x90] sm:$0xf]
        %v7313 = vld [vmem:[%s254 + $0x94] sm:$0xf]
        %v7314 = vld [vmem:[%s254 + $0x98] sm:$0x1]
        %v7315 = vld [vmem:[%s254 + $0x9c] sm:$0xf]
        %v7316 = vld [vmem:[%s254 + $0xa0] sm:$0xf]
        %v7317 = vld [vmem:[%s254 + $0xa4] sm:$0x1]
        %v7318 = vld [vmem:[%s254 + $0xa8] sm:$0xf]
        %v7319 = vld [vmem:[%s254 + $0xac] sm:$0xf]
        %v7320 = vld [vmem:[%s254 + $0xb0] sm:$0x1]
        %v7321 = vld [vmem:[%s254 + $0xb4] sm:$0xf]
        %v7322 = vld [vmem:[%s254 + $0xb8] sm:$0xf]
        %v7323 = vld [vmem:[%s254 + $0xbc] sm:$0x1]
        %v7325 = vshrl.u32 %v7276, 16
        %v7327 = vrot.slane %v7325, 4
        %v7328 = vshll.u32 %v7276, 16
        %v7330 = vrot.slane %v7328, 5
        %v7331 = vor.u32 %v7327, %v7330
        %v7332 = vrot.slane %v7331, 4
        %v7334 = vshll.u32 %v7277, 16
        %v7336 = vrot.slane %v7334, 5
        %v7337 = vsel %vm876, %v7332, %v7336
        %v7338 = vshrl.u32 %v7277, 16
        %v7340 = vrot.slane %v7338, 4
        %v7341 = vor.u32 %v7340, %v7336
        %v7342 = vrot.slane %v7341, 4
        %v7344 = vshll.u32 %v7278, 16
        %v7346 = vrot.slane %v7344, 5
        %v7347 = vsel %vm876, %v7342, %v7346
        %v7349 = vshrl.u32 %v7279, 16
        %v7351 = vrot.slane %v7349, 4
        %v7352 = vshll.u32 %v7279, 16
        %v7354 = vrot.slane %v7352, 5
        %v7355 = vor.u32 %v7351, %v7354
        %v7356 = vrot.slane %v7355, 4
        %v7358 = vshll.u32 %v7280, 16
        %v7360 = vrot.slane %v7358, 5
        %v7361 = vsel %vm876, %v7356, %v7360
        %v7362 = vshrl.u32 %v7280, 16
        %v7364 = vrot.slane %v7362, 4
        %v7365 = vor.u32 %v7364, %v7360
        %v7366 = vrot.slane %v7365, 4
        %v7368 = vshll.u32 %v7281, 16
        %v7370 = vrot.slane %v7368, 5
        %v7371 = vsel %vm876, %v7366, %v7370
        %v7373 = vshrl.u32 %v7282, 16
        %v7375 = vrot.slane %v7373, 4
        %v7376 = vshll.u32 %v7282, 16
        %v7378 = vrot.slane %v7376, 5
        %v7379 = vor.u32 %v7375, %v7378
        %v7380 = vrot.slane %v7379, 4
        %v7382 = vshll.u32 %v7283, 16
        %v7384 = vrot.slane %v7382, 5
        %v7385 = vsel %vm876, %v7380, %v7384
        %v7386 = vshrl.u32 %v7283, 16
        %v7388 = vrot.slane %v7386, 4
        %v7389 = vor.u32 %v7388, %v7384
        %v7390 = vrot.slane %v7389, 4
        %v7392 = vshll.u32 %v7284, 16
        %v7394 = vrot.slane %v7392, 5
        %v7395 = vsel %vm876, %v7390, %v7394
        %v7397 = vshrl.u32 %v7285, 16
        %v7399 = vrot.slane %v7397, 4
        %v7400 = vshll.u32 %v7285, 16
        %v7402 = vrot.slane %v7400, 5
        %v7403 = vor.u32 %v7399, %v7402
        %v7404 = vrot.slane %v7403, 4
        %v7406 = vshll.u32 %v7286, 16
        %v7408 = vrot.slane %v7406, 5
        %v7409 = vsel %vm876, %v7404, %v7408
        %v7410 = vshrl.u32 %v7286, 16
        %v7412 = vrot.slane %v7410, 4
        %v7413 = vor.u32 %v7412, %v7408
        %v7414 = vrot.slane %v7413, 4
        %v7416 = vshll.u32 %v7287, 16
        %v7418 = vrot.slane %v7416, 5
        %v7419 = vsel %vm876, %v7414, %v7418
        %v7421 = vshrl.u32 %v7288, 16
        %v7423 = vrot.slane %v7421, 4
        %v7424 = vshll.u32 %v7288, 16
        %v7426 = vrot.slane %v7424, 5
        %v7427 = vor.u32 %v7423, %v7426
        %v7428 = vrot.slane %v7427, 4
        %v7430 = vshll.u32 %v7289, 16
        %v7432 = vrot.slane %v7430, 5
        %v7433 = vsel %vm876, %v7428, %v7432
        %v7434 = vshrl.u32 %v7289, 16
        %v7436 = vrot.slane %v7434, 4
        %v7437 = vor.u32 %v7436, %v7432
        %v7438 = vrot.slane %v7437, 4
        %v7440 = vshll.u32 %v7290, 16
        %v7442 = vrot.slane %v7440, 5
        %v7443 = vsel %vm876, %v7438, %v7442
        %v7445 = vshrl.u32 %v7291, 16
        %v7447 = vrot.slane %v7445, 4
        %v7448 = vshll.u32 %v7291, 16
        %v7450 = vrot.slane %v7448, 5
        %v7451 = vor.u32 %v7447, %v7450
        %v7452 = vrot.slane %v7451, 4
        %v7454 = vshll.u32 %v7292, 16
        %v7456 = vrot.slane %v7454, 5
        %v7457 = vsel %vm876, %v7452, %v7456
        %v7458 = vshrl.u32 %v7292, 16
        %v7460 = vrot.slane %v7458, 4
        %v7461 = vor.u32 %v7460, %v7456
        %v7462 = vrot.slane %v7461, 4
        %v7464 = vshll.u32 %v7293, 16
        %v7466 = vrot.slane %v7464, 5
        %v7467 = vsel %vm876, %v7462, %v7466
        %v7469 = vshrl.u32 %v7294, 16
        %v7471 = vrot.slane %v7469, 4
        %v7472 = vshll.u32 %v7294, 16
        %v7474 = vrot.slane %v7472, 5
        %v7475 = vor.u32 %v7471, %v7474
        %v7476 = vrot.slane %v7475, 4
        %v7478 = vshll.u32 %v7295, 16
        %v7480 = vrot.slane %v7478, 5
        %v7481 = vsel %vm876, %v7476, %v7480
        %v7482 = vshrl.u32 %v7295, 16
        %v7484 = vrot.slane %v7482, 4
        %v7485 = vor.u32 %v7484, %v7480
        %v7486 = vrot.slane %v7485, 4
        %v7488 = vshll.u32 %v7296, 16
        %v7490 = vrot.slane %v7488, 5
        %v7491 = vsel %vm876, %v7486, %v7490
        %v7493 = vshrl.u32 %v7297, 16
        %v7495 = vrot.slane %v7493, 4
        %v7496 = vshll.u32 %v7297, 16
        %v7498 = vrot.slane %v7496, 5
        %v7499 = vor.u32 %v7495, %v7498
        %v7500 = vrot.slane %v7499, 4
        %v7502 = vshll.u32 %v7298, 16
        %v7504 = vrot.slane %v7502, 5
        %v7505 = vsel %vm876, %v7500, %v7504
        %v7506 = vshrl.u32 %v7298, 16
        %v7508 = vrot.slane %v7506, 4
        %v7509 = vor.u32 %v7508, %v7504
        %v7510 = vrot.slane %v7509, 4
        %v7512 = vshll.u32 %v7299, 16
        %v7514 = vrot.slane %v7512, 5
        %v7515 = vsel %vm876, %v7510, %v7514
        %v7517 = vshrl.u32 %v7300, 16
        %v7519 = vrot.slane %v7517, 4
        %v7520 = vshll.u32 %v7300, 16
        %v7522 = vrot.slane %v7520, 5
        %v7523 = vor.u32 %v7519, %v7522
        %v7524 = vrot.slane %v7523, 4
        %v7526 = vshll.u32 %v7301, 16
        %v7528 = vrot.slane %v7526, 5
        %v7529 = vsel %vm876, %v7524, %v7528
        %v7530 = vshrl.u32 %v7301, 16
        %v7532 = vrot.slane %v7530, 4
        %v7533 = vor.u32 %v7532, %v7528
        %v7534 = vrot.slane %v7533, 4
        %v7536 = vshll.u32 %v7302, 16
        %v7538 = vrot.slane %v7536, 5
        %v7539 = vsel %vm876, %v7534, %v7538
        %v7541 = vshrl.u32 %v7303, 16
        %v7543 = vrot.slane %v7541, 4
        %v7544 = vshll.u32 %v7303, 16
        %v7546 = vrot.slane %v7544, 5
        %v7547 = vor.u32 %v7543, %v7546
        %v7548 = vrot.slane %v7547, 4
        %v7550 = vshll.u32 %v7304, 16
        %v7552 = vrot.slane %v7550, 5
        %v7553 = vsel %vm876, %v7548, %v7552
        %v7554 = vshrl.u32 %v7304, 16
        %v7556 = vrot.slane %v7554, 4
        %v7557 = vor.u32 %v7556, %v7552
        %v7558 = vrot.slane %v7557, 4
        %v7560 = vshll.u32 %v7305, 16
        %v7562 = vrot.slane %v7560, 5
        %v7563 = vsel %vm876, %v7558, %v7562
        %v7565 = vshrl.u32 %v7306, 16
        %v7567 = vrot.slane %v7565, 4
        %v7568 = vshll.u32 %v7306, 16
        %v7570 = vrot.slane %v7568, 5
        %v7571 = vor.u32 %v7567, %v7570
        %v7572 = vrot.slane %v7571, 4
        %v7574 = vshll.u32 %v7307, 16
        %v7576 = vrot.slane %v7574, 5
        %v7577 = vsel %vm876, %v7572, %v7576
        %v7578 = vshrl.u32 %v7307, 16
        %v7580 = vrot.slane %v7578, 4
        %v7581 = vor.u32 %v7580, %v7576
        %v7582 = vrot.slane %v7581, 4
        %v7584 = vshll.u32 %v7308, 16
        %v7586 = vrot.slane %v7584, 5
        %v7587 = vsel %vm876, %v7582, %v7586
        %v7589 = vshrl.u32 %v7309, 16
        %v7591 = vrot.slane %v7589, 4
        %v7592 = vshll.u32 %v7309, 16
        %v7594 = vrot.slane %v7592, 5
        %v7595 = vor.u32 %v7591, %v7594
        %v7596 = vrot.slane %v7595, 4
        %v7598 = vshll.u32 %v7310, 16
        %v7600 = vrot.slane %v7598, 5
        %v7601 = vsel %vm876, %v7596, %v7600
        %v7602 = vshrl.u32 %v7310, 16
        %v7604 = vrot.slane %v7602, 4
        %v7605 = vor.u32 %v7604, %v7600
        %v7606 = vrot.slane %v7605, 4
        %v7608 = vshll.u32 %v7311, 16
        %v7610 = vrot.slane %v7608, 5
        %v7611 = vsel %vm876, %v7606, %v7610
        %v7613 = vshrl.u32 %v7312, 16
        %v7615 = vrot.slane %v7613, 4
        %v7616 = vshll.u32 %v7312, 16
        %v7618 = vrot.slane %v7616, 5
        %v7619 = vor.u32 %v7615, %v7618
        %v7620 = vrot.slane %v7619, 4
        %v7622 = vshll.u32 %v7313, 16
        %v7624 = vrot.slane %v7622, 5
        %v7625 = vsel %vm876, %v7620, %v7624
        %v7626 = vshrl.u32 %v7313, 16
        %v7628 = vrot.slane %v7626, 4
        %v7629 = vor.u32 %v7628, %v7624
        %v7630 = vrot.slane %v7629, 4
        %v7632 = vshll.u32 %v7314, 16
        %v7634 = vrot.slane %v7632, 5
        %v7635 = vsel %vm876, %v7630, %v7634
        %v7637 = vshrl.u32 %v7315, 16
        %v7639 = vrot.slane %v7637, 4
        %v7640 = vshll.u32 %v7315, 16
        %v7642 = vrot.slane %v7640, 5
        %v7643 = vor.u32 %v7639, %v7642
        %v7644 = vrot.slane %v7643, 4
        %v7646 = vshll.u32 %v7316, 16
        %v7648 = vrot.slane %v7646, 5
        %v7649 = vsel %vm876, %v7644, %v7648
        %v7650 = vshrl.u32 %v7316, 16
        %v7652 = vrot.slane %v7650, 4
        %v7653 = vor.u32 %v7652, %v7648
        %v7654 = vrot.slane %v7653, 4
        %v7656 = vshll.u32 %v7317, 16
        %v7658 = vrot.slane %v7656, 5
        %v7659 = vsel %vm876, %v7654, %v7658
        %v7661 = vshrl.u32 %v7318, 16
        %v7663 = vrot.slane %v7661, 4
        %v7664 = vshll.u32 %v7318, 16
        %v7666 = vrot.slane %v7664, 5
        %v7667 = vor.u32 %v7663, %v7666
        %v7668 = vrot.slane %v7667, 4
        %v7670 = vshll.u32 %v7319, 16
        %v7672 = vrot.slane %v7670, 5
        %v7673 = vsel %vm876, %v7668, %v7672
        %v7674 = vshrl.u32 %v7319, 16
        %v7676 = vrot.slane %v7674, 4
        %v7677 = vor.u32 %v7676, %v7672
        %v7678 = vrot.slane %v7677, 4
        %v7680 = vshll.u32 %v7320, 16
        %v7682 = vrot.slane %v7680, 5
        %v7683 = vsel %vm876, %v7678, %v7682
        %v7685 = vshrl.u32 %v7321, 16
        %v7687 = vrot.slane %v7685, 4
        %v7688 = vshll.u32 %v7321, 16
        %v7690 = vrot.slane %v7688, 5
        %v7691 = vor.u32 %v7687, %v7690
        %v7692 = vrot.slane %v7691, 4
        %v7694 = vshll.u32 %v7322, 16
        %v7696 = vrot.slane %v7694, 5
        %v7697 = vsel %vm876, %v7692, %v7696
        %v7698 = vshrl.u32 %v7322, 16
        %v7700 = vrot.slane %v7698, 4
        %v7701 = vor.u32 %v7700, %v7696
        %v7702 = vrot.slane %v7701, 4
        %v7704 = vshll.u32 %v7323, 16
        %v7706 = vrot.slane %v7704, 5
        %v7707 = vsel %vm876, %v7702, %v7706
        %v7708 = vunpack.c.l.b16 %v7337
        %v7709 = vunpack.c.l.b16 %v7347
        %v7710 = vunpack.c.l.b16 %v7361
        %v7711 = vunpack.c.l.b16 %v7371
        %v7712 = vunpack.c.l.b16 %v7385
        %v7713 = vunpack.c.l.b16 %v7395
        %v7714 = vunpack.c.l.b16 %v7409
        %v7715 = vunpack.c.l.b16 %v7419
        %v7716 = vunpack.c.l.b16 %v7433
        %v7717 = vunpack.c.l.b16 %v7443
        %v7718 = vunpack.c.l.b16 %v7457
        %v7719 = vunpack.c.l.b16 %v7467
        %v7720 = vunpack.c.l.b16 %v7481
        %v7721 = vunpack.c.l.b16 %v7491
        %v7722 = vunpack.c.l.b16 %v7505
        %v7723 = vunpack.c.l.b16 %v7515
        %v7724 = vunpack.c.l.b16 %v7529
        %v7725 = vunpack.c.l.b16 %v7539
        %v7726 = vunpack.c.l.b16 %v7553
        %v7727 = vunpack.c.l.b16 %v7563
        %v7728 = vunpack.c.l.b16 %v7577
        %v7729 = vunpack.c.l.b16 %v7587
        %v7730 = vunpack.c.l.b16 %v7601
        %v7731 = vunpack.c.l.b16 %v7611
        %v7732 = vunpack.c.l.b16 %v7625
        %v7733 = vunpack.c.l.b16 %v7635
        %v7734 = vunpack.c.l.b16 %v7649
        %v7735 = vunpack.c.l.b16 %v7659
        %v7736 = vunpack.c.l.b16 %v7673
        %v7737 = vunpack.c.l.b16 %v7683
        %v7738 = vunpack.c.l.b16 %v7697
        %v7739 = vunpack.c.l.b16 %v7707
        %v7740 = vpack.c.b16 %v7709, %v7708
        %v7741 = vpack.c.b16 %v7711, %v7710
        %v7742 = vpack.c.b16 %v7713, %v7712
        %v7743 = vpack.c.b16 %v7715, %v7714
        %v7744 = vpack.c.b16 %v7717, %v7716
        %v7745 = vpack.c.b16 %v7719, %v7718
        %v7746 = vpack.c.b16 %v7721, %v7720
        %v7747 = vpack.c.b16 %v7723, %v7722
        %v7748 = vpack.c.b16 %v7725, %v7724
        %v7749 = vpack.c.b16 %v7727, %v7726
        %v7750 = vpack.c.b16 %v7729, %v7728
        %v7751 = vpack.c.b16 %v7731, %v7730
        %v7752 = vpack.c.b16 %v7733, %v7732
        %v7753 = vpack.c.b16 %v7735, %v7734
        %v7754 = vpack.c.b16 %v7737, %v7736
        %v7755 = vpack.c.b16 %v7739, %v7738
        %v7757 = vsel %vm1318, %v7275, 0
        %v7760 = vsel %vm1318, %v7740, 0
        %v7763 = vsel %vm1318, %v7741, 0
        %v7766 = vsel %vm1318, %v7742, 0
        %v7769 = vsel %vm1318, %v7743, 0
        %v7772 = vsel %vm1318, %v7744, 0
        %v7775 = vsel %vm1318, %v7745, 0
        %v7778 = vsel %vm1318, %v7746, 0
        %v7781 = vsel %vm1318, %v7747, 0
        %v7784 = vsel %vm1318, %v7748, 0
        %v7787 = vsel %vm1318, %v7749, 0
        %v7790 = vsel %vm1318, %v7750, 0
        %v7793 = vsel %vm1318, %v7751, 0
        %v7796 = vsel %vm1318, %v7752, 0
        %v7799 = vsel %vm1318, %v7753, 0
        %v7802 = vsel %vm1318, %v7754, 0
        %v7805 = vsel %vm1318, %v7755, 0
        %7807 = vmatprep.subr.bf16.mxu0 0
        %7808 = vmatpush1.bf16.xpose.msra.mxu0 %v7781
        %7809 = vmatprep.subr.bf16.mxu0 0
        %7810 = vmatpush1.bf16.xpose.msra.mxu0 %v7778
        %7811 = vmatprep.subr.bf16.mxu0 0
        %7812 = vmatpush1.bf16.xpose.msra.mxu0 %v7775
        %7813 = vmatprep.subr.bf16.mxu0 0
        %7814 = vmatpush1.bf16.xpose.msra.mxu0 %v7772
        %7815 = vmatprep.subr.bf16.mxu0 0
        %7816 = vmatpush1.bf16.xpose.msra.mxu0 %v7769
        %7817 = vmatprep.subr.bf16.mxu0 0
        %7818 = vmatpush1.bf16.xpose.msra.mxu0 %v7766
        %7819 = vmatprep.subr.bf16.mxu0 0
        %7820 = vmatpush1.bf16.xpose.msra.mxu0 %v7763
        %7821 = vmatprep.subr.bf16.mxu0 0
        %7822 = vmatpush1.bf16.xpose.msra.mxu0 %v7760
        %7823 = vmatprep.subr.bf16.mxu0 0
        %7824 = vmatpush2.bf16.xpose.msra.mxu0 %v7805
        %7825 = vmatprep.subr.bf16.mxu0 0
        %7826 = vmatpush2.bf16.xpose.msra.mxu0 %v7802
        %7827 = vmatprep.subr.bf16.mxu0 0
        %7828 = vmatpush2.bf16.xpose.msra.mxu0 %v7799
        %7829 = vmatprep.subr.bf16.mxu0 0
        %7830 = vmatpush2.bf16.xpose.msra.mxu0 %v7796
        %7831 = vmatprep.subr.bf16.mxu0 0
        %7832 = vmatpush2.bf16.xpose.msra.mxu0 %v7793
        %7833 = vmatprep.subr.bf16.mxu0 0
        %7834 = vmatpush2.bf16.xpose.msra.mxu0 %v7790
        %7835 = vmatprep.subr.bf16.mxu0 0
        %7836 = vmatpush2.bf16.xpose.msra.mxu0 %v7787
        %7837 = vmatprep.subr.bf16.mxu0 0
        %7838 = vmatpush2.bf16.xpose.msra.mxu0 %v7784
        %7839 = vmatprep.mubr.bf16.mxu0 0
        %7840 = vmatmul.mubr.bf16.gmra.mxu0 %v7757
        %v7841 = vpop.f32.mrf.mxu0
        %v7842 = vadd.f32 0.0, %v7841
        %v7843 = vpop.f32.mrf.mxu0
        %v7844 = vadd.f32 0.0, %v7843
        %v7845 = vpop.f32.mrf.mxu0
        %v7846 = vpop.f32.mrf.mxu0
        %7847 = vdwg.mxu0
        %v7848 = vadd.f32 %v7272, %v7842
        %v7849 = vadd.f32 %v7273, %v7844
        %s7850 = scalar_lea.vmem [#allocation8], 20
        %v7851 = vld [vmem:[%s7850] sm:$0xf]
        %v7852 = vld [vmem:[%s254] sm:$0xe]
        %v7853 = vld [vmem:[%s254 + $0xc] sm:$0xe]
        %v7854 = vld [vmem:[%s254 + $0x18] sm:$0xe]
        %v7855 = vld [vmem:[%s254 + $0x24] sm:$0xe]
        %v7856 = vld [vmem:[%s254 + $0x30] sm:$0xe]
        %v7857 = vld [vmem:[%s254 + $0x3c] sm:$0xe]
        %v7858 = vld [vmem:[%s254 + $0x48] sm:$0xe]
        %v7859 = vld [vmem:[%s254 + $0x54] sm:$0xe]
        %v7860 = vld [vmem:[%s254 + $0x60] sm:$0xe]
        %v7861 = vld [vmem:[%s254 + $0x6c] sm:$0xe]
        %v7862 = vld [vmem:[%s254 + $0x78] sm:$0xe]
        %v7863 = vld [vmem:[%s254 + $0x84] sm:$0xe]
        %v7864 = vld [vmem:[%s254 + $0x90] sm:$0xe]
        %v7865 = vld [vmem:[%s254 + $0x9c] sm:$0xe]
        %v7866 = vld [vmem:[%s254 + $0xa8] sm:$0xe]
        %v7867 = vld [vmem:[%s254 + $0xb4] sm:$0xe]
        %v7916 = vrot.slane %v7852, 5
        %v7917 = vrot.slane %v7916, 4
        %v7918 = vrot.slane %v7277, 5
        %v7919 = vsel %vm1873, %v7917, %v7918
        %v7920 = vrot.slane %v7918, 4
        %v7921 = vrot.slane %v7278, 5
        %v7922 = vsel %vm1873, %v7920, %v7921
        %v7923 = vrot.slane %v7853, 5
        %v7924 = vrot.slane %v7923, 4
        %v7925 = vrot.slane %v7280, 5
        %v7926 = vsel %vm1873, %v7924, %v7925
        %v7927 = vrot.slane %v7925, 4
        %v7928 = vrot.slane %v7281, 5
        %v7929 = vsel %vm1873, %v7927, %v7928
        %v7930 = vrot.slane %v7854, 5
        %v7931 = vrot.slane %v7930, 4
        %v7932 = vrot.slane %v7283, 5
        %v7933 = vsel %vm1873, %v7931, %v7932
        %v7934 = vrot.slane %v7932, 4
        %v7935 = vrot.slane %v7284, 5
        %v7936 = vsel %vm1873, %v7934, %v7935
        %v7937 = vrot.slane %v7855, 5
        %v7938 = vrot.slane %v7937, 4
        %v7939 = vrot.slane %v7286, 5
        %v7940 = vsel %vm1873, %v7938, %v7939
        %v7941 = vrot.slane %v7939, 4
        %v7942 = vrot.slane %v7287, 5
        %v7943 = vsel %vm1873, %v7941, %v7942
        %v7944 = vrot.slane %v7856, 5
        %v7945 = vrot.slane %v7944, 4
        %v7946 = vrot.slane %v7289, 5
        %v7947 = vsel %vm1873, %v7945, %v7946
        %v7948 = vrot.slane %v7946, 4
        %v7949 = vrot.slane %v7290, 5
        %v7950 = vsel %vm1873, %v7948, %v7949
        %v7951 = vrot.slane %v7857, 5
        %v7952 = vrot.slane %v7951, 4
        %v7953 = vrot.slane %v7292, 5
        %v7954 = vsel %vm1873, %v7952, %v7953
        %v7955 = vrot.slane %v7953, 4
        %v7956 = vrot.slane %v7293, 5
        %v7957 = vsel %vm1873, %v7955, %v7956
        %v7958 = vrot.slane %v7858, 5
        %v7959 = vrot.slane %v7958, 4
        %v7960 = vrot.slane %v7295, 5
        %v7961 = vsel %vm1873, %v7959, %v7960
        %v7962 = vrot.slane %v7960, 4
        %v7963 = vrot.slane %v7296, 5
        %v7964 = vsel %vm1873, %v7962, %v7963
        %v7965 = vrot.slane %v7859, 5
        %v7966 = vrot.slane %v7965, 4
        %v7967 = vrot.slane %v7298, 5
        %v7968 = vsel %vm1873, %v7966, %v7967
        %v7969 = vrot.slane %v7967, 4
        %v7970 = vrot.slane %v7299, 5
        %v7971 = vsel %vm1873, %v7969, %v7970
        %v7972 = vrot.slane %v7860, 5
        %v7973 = vrot.slane %v7972, 4
        %v7974 = vrot.slane %v7301, 5
        %v7975 = vsel %vm1873, %v7973, %v7974
        %v7976 = vrot.slane %v7974, 4
        %v7977 = vrot.slane %v7302, 5
        %v7978 = vsel %vm1873, %v7976, %v7977
        %v7979 = vrot.slane %v7861, 5
        %v7980 = vrot.slane %v7979, 4
        %v7981 = vrot.slane %v7304, 5
        %v7982 = vsel %vm1873, %v7980, %v7981
        %v7983 = vrot.slane %v7981, 4
        %v7984 = vrot.slane %v7305, 5
        %v7985 = vsel %vm1873, %v7983, %v7984
        %v7986 = vrot.slane %v7862, 5
        %v7987 = vrot.slane %v7986, 4
        %v7988 = vrot.slane %v7307, 5
        %v7989 = vsel %vm1873, %v7987, %v7988
        %v7990 = vrot.slane %v7988, 4
        %v7991 = vrot.slane %v7308, 5
        %v7992 = vsel %vm1873, %v7990, %v7991
        %v7993 = vrot.slane %v7863, 5
        %v7994 = vrot.slane %v7993, 4
        %v7995 = vrot.slane %v7310, 5
        %v7996 = vsel %vm1873, %v7994, %v7995
        %v7997 = vrot.slane %v7995, 4
        %v7998 = vrot.slane %v7311, 5
        %v7999 = vsel %vm1873, %v7997, %v7998
        %v8000 = vrot.slane %v7864, 5
        %v8001 = vrot.slane %v8000, 4
        %v8002 = vrot.slane %v7313, 5
        %v8003 = vsel %vm1873, %v8001, %v8002
        %v8004 = vrot.slane %v8002, 4
        %v8005 = vrot.slane %v7314, 5
        %v8006 = vsel %vm1873, %v8004, %v8005
        %v8007 = vrot.slane %v7865, 5
        %v8008 = vrot.slane %v8007, 4
        %v8009 = vrot.slane %v7316, 5
        %v8010 = vsel %vm1873, %v8008, %v8009
        %v8011 = vrot.slane %v8009, 4
        %v8012 = vrot.slane %v7317, 5
        %v8013 = vsel %vm1873, %v8011, %v8012
        %v8014 = vrot.slane %v7866, 5
        %v8015 = vrot.slane %v8014, 4
        %v8016 = vrot.slane %v7319, 5
        %v8017 = vsel %vm1873, %v8015, %v8016
        %v8018 = vrot.slane %v8016, 4
        %v8019 = vrot.slane %v7320, 5
        %v8020 = vsel %vm1873, %v8018, %v8019
        %v8021 = vrot.slane %v7867, 5
        %v8022 = vrot.slane %v8021, 4
        %v8023 = vrot.slane %v7322, 5
        %v8024 = vsel %vm1873, %v8022, %v8023
        %v8025 = vrot.slane %v8023, 4
        %v8026 = vrot.slane %v7323, 5
        %v8027 = vsel %vm1873, %v8025, %v8026
        %v8028 = vunpack.c.l.b16 %v7919
        %v8029 = vunpack.c.l.b16 %v7922
        %v8030 = vunpack.c.l.b16 %v7926
        %v8031 = vunpack.c.l.b16 %v7929
        %v8032 = vunpack.c.l.b16 %v7933
        %v8033 = vunpack.c.l.b16 %v7936
        %v8034 = vunpack.c.l.b16 %v7940
        %v8035 = vunpack.c.l.b16 %v7943
        %v8036 = vunpack.c.l.b16 %v7947
        %v8037 = vunpack.c.l.b16 %v7950
        %v8038 = vunpack.c.l.b16 %v7954
        %v8039 = vunpack.c.l.b16 %v7957
        %v8040 = vunpack.c.l.b16 %v7961
        %v8041 = vunpack.c.l.b16 %v7964
        %v8042 = vunpack.c.l.b16 %v7968
        %v8043 = vunpack.c.l.b16 %v7971
        %v8044 = vunpack.c.l.b16 %v7975
        %v8045 = vunpack.c.l.b16 %v7978
        %v8046 = vunpack.c.l.b16 %v7982
        %v8047 = vunpack.c.l.b16 %v7985
        %v8048 = vunpack.c.l.b16 %v7989
        %v8049 = vunpack.c.l.b16 %v7992
        %v8050 = vunpack.c.l.b16 %v7996
        %v8051 = vunpack.c.l.b16 %v7999
        %v8052 = vunpack.c.l.b16 %v8003
        %v8053 = vunpack.c.l.b16 %v8006
        %v8054 = vunpack.c.l.b16 %v8010
        %v8055 = vunpack.c.l.b16 %v8013
        %v8056 = vunpack.c.l.b16 %v8017
        %v8057 = vunpack.c.l.b16 %v8020
        %v8058 = vunpack.c.l.b16 %v8024
        %v8059 = vunpack.c.l.b16 %v8027
        %v8060 = vpack.c.b16 %v8029, %v8028
        %v8061 = vpack.c.b16 %v8031, %v8030
        %v8062 = vpack.c.b16 %v8033, %v8032
        %v8063 = vpack.c.b16 %v8035, %v8034
        %v8064 = vpack.c.b16 %v8037, %v8036
        %v8065 = vpack.c.b16 %v8039, %v8038
        %v8066 = vpack.c.b16 %v8041, %v8040
        %v8067 = vpack.c.b16 %v8043, %v8042
        %v8068 = vpack.c.b16 %v8045, %v8044
        %v8069 = vpack.c.b16 %v8047, %v8046
        %v8070 = vpack.c.b16 %v8049, %v8048
        %v8071 = vpack.c.b16 %v8051, %v8050
        %v8072 = vpack.c.b16 %v8053, %v8052
        %v8073 = vpack.c.b16 %v8055, %v8054
        %v8074 = vpack.c.b16 %v8057, %v8056
        %v8075 = vpack.c.b16 %v8059, %v8058
        %v8077 = vsel %vm1318, %v7851, 0
        %v8080 = vsel %vm1318, %v8060, 0
        %v8083 = vsel %vm1318, %v8061, 0
        %v8086 = vsel %vm1318, %v8062, 0
        %v8089 = vsel %vm1318, %v8063, 0
        %v8092 = vsel %vm1318, %v8064, 0
        %v8095 = vsel %vm1318, %v8065, 0
        %v8098 = vsel %vm1318, %v8066, 0
        %v8101 = vsel %vm1318, %v8067, 0
        %v8104 = vsel %vm1318, %v8068, 0
        %v8107 = vsel %vm1318, %v8069, 0
        %v8110 = vsel %vm1318, %v8070, 0
        %v8113 = vsel %vm1318, %v8071, 0
        %v8116 = vsel %vm1318, %v8072, 0
        %v8119 = vsel %vm1318, %v8073, 0
        %v8122 = vsel %vm1318, %v8074, 0
        %v8125 = vsel %vm1318, %v8075, 0
        %8127 = vmatprep.subr.bf16.mxu0 0
        %8128 = vmatpush1.bf16.xpose.msra.mxu0 %v8101
        %8129 = vmatprep.subr.bf16.mxu0 0
        %8130 = vmatpush1.bf16.xpose.msra.mxu0 %v8098
        %8131 = vmatprep.subr.bf16.mxu0 0
        %8132 = vmatpush1.bf16.xpose.msra.mxu0 %v8095
        %8133 = vmatprep.subr.bf16.mxu0 0
        %8134 = vmatpush1.bf16.xpose.msra.mxu0 %v8092
        %8135 = vmatprep.subr.bf16.mxu0 0
        %8136 = vmatpush1.bf16.xpose.msra.mxu0 %v8089
        %8137 = vmatprep.subr.bf16.mxu0 0
        %8138 = vmatpush1.bf16.xpose.msra.mxu0 %v8086
        %8139 = vmatprep.subr.bf16.mxu0 0
        %8140 = vmatpush1.bf16.xpose.msra.mxu0 %v8083
        %8141 = vmatprep.subr.bf16.mxu0 0
        %8142 = vmatpush1.bf16.xpose.msra.mxu0 %v8080
        %8143 = vmatprep.subr.bf16.mxu0 0
        %8144 = vmatpush2.bf16.xpose.msra.mxu0 %v8125
        %8145 = vmatprep.subr.bf16.mxu0 0
        %8146 = vmatpush2.bf16.xpose.msra.mxu0 %v8122
        %8147 = vmatprep.subr.bf16.mxu0 0
        %8148 = vmatpush2.bf16.xpose.msra.mxu0 %v8119
        %8149 = vmatprep.subr.bf16.mxu0 0
        %8150 = vmatpush2.bf16.xpose.msra.mxu0 %v8116
        %8151 = vmatprep.subr.bf16.mxu0 0
        %8152 = vmatpush2.bf16.xpose.msra.mxu0 %v8113
        %8153 = vmatprep.subr.bf16.mxu0 0
        %8154 = vmatpush2.bf16.xpose.msra.mxu0 %v8110
        %8155 = vmatprep.subr.bf16.mxu0 0
        %8156 = vmatpush2.bf16.xpose.msra.mxu0 %v8107
        %8157 = vmatprep.subr.bf16.mxu0 0
        %8158 = vmatpush2.bf16.xpose.msra.mxu0 %v8104
        %8159 = vmatprep.mubr.bf16.mxu0 0
        %8160 = vmatmul.mubr.bf16.gmra.mxu0 %v8077
        %v8161 = vpop.f32.mrf.mxu0
        %v8162 = vadd.f32 0.0, %v8161
        %v8163 = vpop.f32.mrf.mxu0
        %v8164 = vadd.f32 0.0, %v8163
        %v8165 = vpop.f32.mrf.mxu0
        %v8166 = vpop.f32.mrf.mxu0
        %8167 = vdwg.mxu0
        %v8168 = vadd.f32 %v7848, %v8162
        %v8169 = vadd.f32 %v7849, %v8164
        %s8170 = scalar_lea.vmem [#allocation8], 24
        %v8171 = vld [vmem:[%s8170] sm:$0xf]
        %v8172 = vld [vmem:[%s3850] sm:$0xf]
        %v8173 = vld [vmem:[%s3850 + $0x4] sm:$0xf]
        %v8174 = vld [vmem:[%s3850 + $0xc] sm:$0xf]
        %v8175 = vld [vmem:[%s3850 + $0x10] sm:$0xf]
        %v8176 = vld [vmem:[%s3850 + $0x18] sm:$0xf]
        %v8177 = vld [vmem:[%s3850 + $0x1c] sm:$0xf]
        %v8178 = vld [vmem:[%s3850 + $0x24] sm:$0xf]
        %v8179 = vld [vmem:[%s3850 + $0x28] sm:$0xf]
        %v8180 = vld [vmem:[%s3850 + $0x30] sm:$0xf]
        %v8181 = vld [vmem:[%s3850 + $0x34] sm:$0xf]
        %v8182 = vld [vmem:[%s3850 + $0x3c] sm:$0xf]
        %v8183 = vld [vmem:[%s3850 + $0x40] sm:$0xf]
        %v8184 = vld [vmem:[%s3850 + $0x48] sm:$0xf]
        %v8185 = vld [vmem:[%s3850 + $0x4c] sm:$0xf]
        %v8186 = vld [vmem:[%s3850 + $0x54] sm:$0xf]
        %v8187 = vld [vmem:[%s3850 + $0x58] sm:$0xf]
        %v8188 = vld [vmem:[%s3850 + $0x60] sm:$0xf]
        %v8189 = vld [vmem:[%s3850 + $0x64] sm:$0xf]
        %v8190 = vld [vmem:[%s3850 + $0x6c] sm:$0xf]
        %v8191 = vld [vmem:[%s3850 + $0x70] sm:$0xf]
        %v8192 = vld [vmem:[%s3850 + $0x78] sm:$0xf]
        %v8193 = vld [vmem:[%s3850 + $0x7c] sm:$0xf]
        %v8194 = vld [vmem:[%s3850 + $0x84] sm:$0xf]
        %v8195 = vld [vmem:[%s3850 + $0x88] sm:$0xf]
        %v8196 = vld [vmem:[%s3850 + $0x90] sm:$0xf]
        %v8197 = vld [vmem:[%s3850 + $0x94] sm:$0xf]
        %v8198 = vld [vmem:[%s3850 + $0x9c] sm:$0xf]
        %v8199 = vld [vmem:[%s3850 + $0xa0] sm:$0xf]
        %v8200 = vld [vmem:[%s3850 + $0xa8] sm:$0xf]
        %v8201 = vld [vmem:[%s3850 + $0xac] sm:$0xf]
        %v8202 = vld [vmem:[%s3850 + $0xb4] sm:$0xf]
        %v8203 = vld [vmem:[%s3850 + $0xb8] sm:$0xf]
        %v8236 = vunpack.c.l.b16 %v8172
        %v8237 = vunpack.c.l.b16 %v8173
        %v8238 = vunpack.c.l.b16 %v8174
        %v8239 = vunpack.c.l.b16 %v8175
        %v8240 = vunpack.c.l.b16 %v8176
        %v8241 = vunpack.c.l.b16 %v8177
        %v8242 = vunpack.c.l.b16 %v8178
        %v8243 = vunpack.c.l.b16 %v8179
        %v8244 = vunpack.c.l.b16 %v8180
        %v8245 = vunpack.c.l.b16 %v8181
        %v8246 = vunpack.c.l.b16 %v8182
        %v8247 = vunpack.c.l.b16 %v8183
        %v8248 = vunpack.c.l.b16 %v8184
        %v8249 = vunpack.c.l.b16 %v8185
        %v8250 = vunpack.c.l.b16 %v8186
        %v8251 = vunpack.c.l.b16 %v8187
        %v8252 = vunpack.c.l.b16 %v8188
        %v8253 = vunpack.c.l.b16 %v8189
        %v8254 = vunpack.c.l.b16 %v8190
        %v8255 = vunpack.c.l.b16 %v8191
        %v8256 = vunpack.c.l.b16 %v8192
        %v8257 = vunpack.c.l.b16 %v8193
        %v8258 = vunpack.c.l.b16 %v8194
        %v8259 = vunpack.c.l.b16 %v8195
        %v8260 = vunpack.c.l.b16 %v8196
        %v8261 = vunpack.c.l.b16 %v8197
        %v8262 = vunpack.c.l.b16 %v8198
        %v8263 = vunpack.c.l.b16 %v8199
        %v8264 = vunpack.c.l.b16 %v8200
        %v8265 = vunpack.c.l.b16 %v8201
        %v8266 = vunpack.c.l.b16 %v8202
        %v8267 = vunpack.c.l.b16 %v8203
        %v8268 = vpack.c.b16 %v8237, %v8236
        %v8269 = vpack.c.b16 %v8239, %v8238
        %v8270 = vpack.c.b16 %v8241, %v8240
        %v8271 = vpack.c.b16 %v8243, %v8242
        %v8272 = vpack.c.b16 %v8245, %v8244
        %v8273 = vpack.c.b16 %v8247, %v8246
        %v8274 = vpack.c.b16 %v8249, %v8248
        %v8275 = vpack.c.b16 %v8251, %v8250
        %v8276 = vpack.c.b16 %v8253, %v8252
        %v8277 = vpack.c.b16 %v8255, %v8254
        %v8278 = vpack.c.b16 %v8257, %v8256
        %v8279 = vpack.c.b16 %v8259, %v8258
        %v8280 = vpack.c.b16 %v8261, %v8260
        %v8281 = vpack.c.b16 %v8263, %v8262
        %v8282 = vpack.c.b16 %v8265, %v8264
        %v8283 = vpack.c.b16 %v8267, %v8266
        %v8285 = vsel %vm1318, %v8171, 0
        %v8288 = vsel %vm1318, %v8268, 0
        %v8291 = vsel %vm1318, %v8269, 0
        %v8294 = vsel %vm1318, %v8270, 0
        %v8297 = vsel %vm1318, %v8271, 0
        %v8300 = vsel %vm1318, %v8272, 0
        %v8303 = vsel %vm1318, %v8273, 0
        %v8306 = vsel %vm1318, %v8274, 0
        %v8309 = vsel %vm1318, %v8275, 0
        %v8312 = vsel %vm1318, %v8276, 0
        %v8315 = vsel %vm1318, %v8277, 0
        %v8318 = vsel %vm1318, %v8278, 0
        %v8321 = vsel %vm1318, %v8279, 0
        %v8324 = vsel %vm1318, %v8280, 0
        %v8327 = vsel %vm1318, %v8281, 0
        %v8330 = vsel %vm1318, %v8282, 0
        %v8333 = vsel %vm1318, %v8283, 0
        %8335 = vmatprep.subr.bf16.mxu0 0
        %8336 = vmatpush1.bf16.xpose.msra.mxu0 %v8309
        %8337 = vmatprep.subr.bf16.mxu0 0
        %8338 = vmatpush1.bf16.xpose.msra.mxu0 %v8306
        %8339 = vmatprep.subr.bf16.mxu0 0
        %8340 = vmatpush1.bf16.xpose.msra.mxu0 %v8303
        %8341 = vmatprep.subr.bf16.mxu0 0
        %8342 = vmatpush1.bf16.xpose.msra.mxu0 %v8300
        %8343 = vmatprep.subr.bf16.mxu0 0
        %8344 = vmatpush1.bf16.xpose.msra.mxu0 %v8297
        %8345 = vmatprep.subr.bf16.mxu0 0
        %8346 = vmatpush1.bf16.xpose.msra.mxu0 %v8294
        %8347 = vmatprep.subr.bf16.mxu0 0
        %8348 = vmatpush1.bf16.xpose.msra.mxu0 %v8291
        %8349 = vmatprep.subr.bf16.mxu0 0
        %8350 = vmatpush1.bf16.xpose.msra.mxu0 %v8288
        %8351 = vmatprep.subr.bf16.mxu0 0
        %8352 = vmatpush2.bf16.xpose.msra.mxu0 %v8333
        %8353 = vmatprep.subr.bf16.mxu0 0
        %8354 = vmatpush2.bf16.xpose.msra.mxu0 %v8330
        %8355 = vmatprep.subr.bf16.mxu0 0
        %8356 = vmatpush2.bf16.xpose.msra.mxu0 %v8327
        %8357 = vmatprep.subr.bf16.mxu0 0
        %8358 = vmatpush2.bf16.xpose.msra.mxu0 %v8324
        %8359 = vmatprep.subr.bf16.mxu0 0
        %8360 = vmatpush2.bf16.xpose.msra.mxu0 %v8321
        %8361 = vmatprep.subr.bf16.mxu0 0
        %8362 = vmatpush2.bf16.xpose.msra.mxu0 %v8318
        %8363 = vmatprep.subr.bf16.mxu0 0
        %8364 = vmatpush2.bf16.xpose.msra.mxu0 %v8315
        %8365 = vmatprep.subr.bf16.mxu0 0
        %8366 = vmatpush2.bf16.xpose.msra.mxu0 %v8312
        %8367 = vmatprep.mubr.bf16.mxu0 0
        %8368 = vmatmul.mubr.bf16.gmra.mxu0 %v8285
        %v8369 = vpop.f32.mrf.mxu0
        %v8370 = vadd.f32 0.0, %v8369
        %v8371 = vpop.f32.mrf.mxu0
        %v8372 = vadd.f32 0.0, %v8371
        %v8373 = vpop.f32.mrf.mxu0
        %v8374 = vpop.f32.mrf.mxu0
        %8375 = vdwg.mxu0
        %v8376 = vadd.f32 %v8168, %v8370
        %v8377 = vadd.f32 %v8169, %v8372
        %s8378 = scalar_lea.vmem [#allocation8], 28
        %v8379 = vld [vmem:[%s8378] sm:$0xf]
        %v8380 = vld [vmem:[%s3850] sm:$0xf]
        %v8381 = vld [vmem:[%s3850 + $0x4] sm:$0xf]
        %v8382 = vld [vmem:[%s3850 + $0x8] sm:$0x1]
        %v8383 = vld [vmem:[%s3850 + $0xc] sm:$0xf]
        %v8384 = vld [vmem:[%s3850 + $0x10] sm:$0xf]
        %v8385 = vld [vmem:[%s3850 + $0x14] sm:$0x1]
        %v8386 = vld [vmem:[%s3850 + $0x18] sm:$0xf]
        %v8387 = vld [vmem:[%s3850 + $0x1c] sm:$0xf]
        %v8388 = vld [vmem:[%s3850 + $0x20] sm:$0x1]
        %v8389 = vld [vmem:[%s3850 + $0x24] sm:$0xf]
        %v8390 = vld [vmem:[%s3850 + $0x28] sm:$0xf]
        %v8391 = vld [vmem:[%s3850 + $0x2c] sm:$0x1]
        %v8392 = vld [vmem:[%s3850 + $0x30] sm:$0xf]
        %v8393 = vld [vmem:[%s3850 + $0x34] sm:$0xf]
        %v8394 = vld [vmem:[%s3850 + $0x38] sm:$0x1]
        %v8395 = vld [vmem:[%s3850 + $0x3c] sm:$0xf]
        %v8396 = vld [vmem:[%s3850 + $0x40] sm:$0xf]
        %v8397 = vld [vmem:[%s3850 + $0x44] sm:$0x1]
        %v8398 = vld [vmem:[%s3850 + $0x48] sm:$0xf]
        %v8399 = vld [vmem:[%s3850 + $0x4c] sm:$0xf]
        %v8400 = vld [vmem:[%s3850 + $0x50] sm:$0x1]
        %v8401 = vld [vmem:[%s3850 + $0x54] sm:$0xf]
        %v8402 = vld [vmem:[%s3850 + $0x58] sm:$0xf]
        %v8403 = vld [vmem:[%s3850 + $0x5c] sm:$0x1]
        %v8404 = vld [vmem:[%s3850 + $0x60] sm:$0xf]
        %v8405 = vld [vmem:[%s3850 + $0x64] sm:$0xf]
        %v8406 = vld [vmem:[%s3850 + $0x68] sm:$0x1]
        %v8407 = vld [vmem:[%s3850 + $0x6c] sm:$0xf]
        %v8408 = vld [vmem:[%s3850 + $0x70] sm:$0xf]
        %v8409 = vld [vmem:[%s3850 + $0x74] sm:$0x1]
        %v8410 = vld [vmem:[%s3850 + $0x78] sm:$0xf]
        %v8411 = vld [vmem:[%s3850 + $0x7c] sm:$0xf]
        %v8412 = vld [vmem:[%s3850 + $0x80] sm:$0x1]
        %v8413 = vld [vmem:[%s3850 + $0x84] sm:$0xf]
        %v8414 = vld [vmem:[%s3850 + $0x88] sm:$0xf]
        %v8415 = vld [vmem:[%s3850 + $0x8c] sm:$0x1]
        %v8416 = vld [vmem:[%s3850 + $0x90] sm:$0xf]
        %v8417 = vld [vmem:[%s3850 + $0x94] sm:$0xf]
        %v8418 = vld [vmem:[%s3850 + $0x98] sm:$0x1]
        %v8419 = vld [vmem:[%s3850 + $0x9c] sm:$0xf]
        %v8420 = vld [vmem:[%s3850 + $0xa0] sm:$0xf]
        %v8421 = vld [vmem:[%s3850 + $0xa4] sm:$0x1]
        %v8422 = vld [vmem:[%s3850 + $0xa8] sm:$0xf]
        %v8423 = vld [vmem:[%s3850 + $0xac] sm:$0xf]
        %v8424 = vld [vmem:[%s3850 + $0xb0] sm:$0x1]
        %v8425 = vld [vmem:[%s3850 + $0xb4] sm:$0xf]
        %v8426 = vld [vmem:[%s3850 + $0xb8] sm:$0xf]
        %v8427 = vld [vmem:[%s3850 + $0xbc] sm:$0x1]
        %v8429 = vshrl.u32 %v8380, 16
        %v8431 = vrot.slane %v8429, 4
        %v8432 = vshll.u32 %v8380, 16
        %v8434 = vrot.slane %v8432, 5
        %v8435 = vor.u32 %v8431, %v8434
        %v8436 = vrot.slane %v8435, 4
        %v8438 = vshll.u32 %v8381, 16
        %v8440 = vrot.slane %v8438, 5
        %v8441 = vsel %vm876, %v8436, %v8440
        %v8442 = vshrl.u32 %v8381, 16
        %v8444 = vrot.slane %v8442, 4
        %v8445 = vor.u32 %v8444, %v8440
        %v8446 = vrot.slane %v8445, 4
        %v8448 = vshll.u32 %v8382, 16
        %v8450 = vrot.slane %v8448, 5
        %v8451 = vsel %vm876, %v8446, %v8450
        %v8453 = vshrl.u32 %v8383, 16
        %v8455 = vrot.slane %v8453, 4
        %v8456 = vshll.u32 %v8383, 16
        %v8458 = vrot.slane %v8456, 5
        %v8459 = vor.u32 %v8455, %v8458
        %v8460 = vrot.slane %v8459, 4
        %v8462 = vshll.u32 %v8384, 16
        %v8464 = vrot.slane %v8462, 5
        %v8465 = vsel %vm876, %v8460, %v8464
        %v8466 = vshrl.u32 %v8384, 16
        %v8468 = vrot.slane %v8466, 4
        %v8469 = vor.u32 %v8468, %v8464
        %v8470 = vrot.slane %v8469, 4
        %v8472 = vshll.u32 %v8385, 16
        %v8474 = vrot.slane %v8472, 5
        %v8475 = vsel %vm876, %v8470, %v8474
        %v8477 = vshrl.u32 %v8386, 16
        %v8479 = vrot.slane %v8477, 4
        %v8480 = vshll.u32 %v8386, 16
        %v8482 = vrot.slane %v8480, 5
        %v8483 = vor.u32 %v8479, %v8482
        %v8484 = vrot.slane %v8483, 4
        %v8486 = vshll.u32 %v8387, 16
        %v8488 = vrot.slane %v8486, 5
        %v8489 = vsel %vm876, %v8484, %v8488
        %v8490 = vshrl.u32 %v8387, 16
        %v8492 = vrot.slane %v8490, 4
        %v8493 = vor.u32 %v8492, %v8488
        %v8494 = vrot.slane %v8493, 4
        %v8496 = vshll.u32 %v8388, 16
        %v8498 = vrot.slane %v8496, 5
        %v8499 = vsel %vm876, %v8494, %v8498
        %v8501 = vshrl.u32 %v8389, 16
        %v8503 = vrot.slane %v8501, 4
        %v8504 = vshll.u32 %v8389, 16
        %v8506 = vrot.slane %v8504, 5
        %v8507 = vor.u32 %v8503, %v8506
        %v8508 = vrot.slane %v8507, 4
        %v8510 = vshll.u32 %v8390, 16
        %v8512 = vrot.slane %v8510, 5
        %v8513 = vsel %vm876, %v8508, %v8512
        %v8514 = vshrl.u32 %v8390, 16
        %v8516 = vrot.slane %v8514, 4
        %v8517 = vor.u32 %v8516, %v8512
        %v8518 = vrot.slane %v8517, 4
        %v8520 = vshll.u32 %v8391, 16
        %v8522 = vrot.slane %v8520, 5
        %v8523 = vsel %vm876, %v8518, %v8522
        %v8525 = vshrl.u32 %v8392, 16
        %v8527 = vrot.slane %v8525, 4
        %v8528 = vshll.u32 %v8392, 16
        %v8530 = vrot.slane %v8528, 5
        %v8531 = vor.u32 %v8527, %v8530
        %v8532 = vrot.slane %v8531, 4
        %v8534 = vshll.u32 %v8393, 16
        %v8536 = vrot.slane %v8534, 5
        %v8537 = vsel %vm876, %v8532, %v8536
        %v8538 = vshrl.u32 %v8393, 16
        %v8540 = vrot.slane %v8538, 4
        %v8541 = vor.u32 %v8540, %v8536
        %v8542 = vrot.slane %v8541, 4
        %v8544 = vshll.u32 %v8394, 16
        %v8546 = vrot.slane %v8544, 5
        %v8547 = vsel %vm876, %v8542, %v8546
        %v8549 = vshrl.u32 %v8395, 16
        %v8551 = vrot.slane %v8549, 4
        %v8552 = vshll.u32 %v8395, 16
        %v8554 = vrot.slane %v8552, 5
        %v8555 = vor.u32 %v8551, %v8554
        %v8556 = vrot.slane %v8555, 4
        %v8558 = vshll.u32 %v8396, 16
        %v8560 = vrot.slane %v8558, 5
        %v8561 = vsel %vm876, %v8556, %v8560
        %v8562 = vshrl.u32 %v8396, 16
        %v8564 = vrot.slane %v8562, 4
        %v8565 = vor.u32 %v8564, %v8560
        %v8566 = vrot.slane %v8565, 4
        %v8568 = vshll.u32 %v8397, 16
        %v8570 = vrot.slane %v8568, 5
        %v8571 = vsel %vm876, %v8566, %v8570
        %v8573 = vshrl.u32 %v8398, 16
        %v8575 = vrot.slane %v8573, 4
        %v8576 = vshll.u32 %v8398, 16
        %v8578 = vrot.slane %v8576, 5
        %v8579 = vor.u32 %v8575, %v8578
        %v8580 = vrot.slane %v8579, 4
        %v8582 = vshll.u32 %v8399, 16
        %v8584 = vrot.slane %v8582, 5
        %v8585 = vsel %vm876, %v8580, %v8584
        %v8586 = vshrl.u32 %v8399, 16
        %v8588 = vrot.slane %v8586, 4
        %v8589 = vor.u32 %v8588, %v8584
        %v8590 = vrot.slane %v8589, 4
        %v8592 = vshll.u32 %v8400, 16
        %v8594 = vrot.slane %v8592, 5
        %v8595 = vsel %vm876, %v8590, %v8594
        %v8597 = vshrl.u32 %v8401, 16
        %v8599 = vrot.slane %v8597, 4
        %v8600 = vshll.u32 %v8401, 16
        %v8602 = vrot.slane %v8600, 5
        %v8603 = vor.u32 %v8599, %v8602
        %v8604 = vrot.slane %v8603, 4
        %v8606 = vshll.u32 %v8402, 16
        %v8608 = vrot.slane %v8606, 5
        %v8609 = vsel %vm876, %v8604, %v8608
        %v8610 = vshrl.u32 %v8402, 16
        %v8612 = vrot.slane %v8610, 4
        %v8613 = vor.u32 %v8612, %v8608
        %v8614 = vrot.slane %v8613, 4
        %v8616 = vshll.u32 %v8403, 16
        %v8618 = vrot.slane %v8616, 5
        %v8619 = vsel %vm876, %v8614, %v8618
        %v8621 = vshrl.u32 %v8404, 16
        %v8623 = vrot.slane %v8621, 4
        %v8624 = vshll.u32 %v8404, 16
        %v8626 = vrot.slane %v8624, 5
        %v8627 = vor.u32 %v8623, %v8626
        %v8628 = vrot.slane %v8627, 4
        %v8630 = vshll.u32 %v8405, 16
        %v8632 = vrot.slane %v8630, 5
        %v8633 = vsel %vm876, %v8628, %v8632
        %v8634 = vshrl.u32 %v8405, 16
        %v8636 = vrot.slane %v8634, 4
        %v8637 = vor.u32 %v8636, %v8632
        %v8638 = vrot.slane %v8637, 4
        %v8640 = vshll.u32 %v8406, 16
        %v8642 = vrot.slane %v8640, 5
        %v8643 = vsel %vm876, %v8638, %v8642
        %v8645 = vshrl.u32 %v8407, 16
        %v8647 = vrot.slane %v8645, 4
        %v8648 = vshll.u32 %v8407, 16
        %v8650 = vrot.slane %v8648, 5
        %v8651 = vor.u32 %v8647, %v8650
        %v8652 = vrot.slane %v8651, 4
        %v8654 = vshll.u32 %v8408, 16
        %v8656 = vrot.slane %v8654, 5
        %v8657 = vsel %vm876, %v8652, %v8656
        %v8658 = vshrl.u32 %v8408, 16
        %v8660 = vrot.slane %v8658, 4
        %v8661 = vor.u32 %v8660, %v8656
        %v8662 = vrot.slane %v8661, 4
        %v8664 = vshll.u32 %v8409, 16
        %v8666 = vrot.slane %v8664, 5
        %v8667 = vsel %vm876, %v8662, %v8666
        %v8669 = vshrl.u32 %v8410, 16
        %v8671 = vrot.slane %v8669, 4
        %v8672 = vshll.u32 %v8410, 16
        %v8674 = vrot.slane %v8672, 5
        %v8675 = vor.u32 %v8671, %v8674
        %v8676 = vrot.slane %v8675, 4
        %v8678 = vshll.u32 %v8411, 16
        %v8680 = vrot.slane %v8678, 5
        %v8681 = vsel %vm876, %v8676, %v8680
        %v8682 = vshrl.u32 %v8411, 16
        %v8684 = vrot.slane %v8682, 4
        %v8685 = vor.u32 %v8684, %v8680
        %v8686 = vrot.slane %v8685, 4
        %v8688 = vshll.u32 %v8412, 16
        %v8690 = vrot.slane %v8688, 5
        %v8691 = vsel %vm876, %v8686, %v8690
        %v8693 = vshrl.u32 %v8413, 16
        %v8695 = vrot.slane %v8693, 4
        %v8696 = vshll.u32 %v8413, 16
        %v8698 = vrot.slane %v8696, 5
        %v8699 = vor.u32 %v8695, %v8698
        %v8700 = vrot.slane %v8699, 4
        %v8702 = vshll.u32 %v8414, 16
        %v8704 = vrot.slane %v8702, 5
        %v8705 = vsel %vm876, %v8700, %v8704
        %v8706 = vshrl.u32 %v8414, 16
        %v8708 = vrot.slane %v8706, 4
        %v8709 = vor.u32 %v8708, %v8704
        %v8710 = vrot.slane %v8709, 4
        %v8712 = vshll.u32 %v8415, 16
        %v8714 = vrot.slane %v8712, 5
        %v8715 = vsel %vm876, %v8710, %v8714
        %v8717 = vshrl.u32 %v8416, 16
        %v8719 = vrot.slane %v8717, 4
        %v8720 = vshll.u32 %v8416, 16
        %v8722 = vrot.slane %v8720, 5
        %v8723 = vor.u32 %v8719, %v8722
        %v8724 = vrot.slane %v8723, 4
        %v8726 = vshll.u32 %v8417, 16
        %v8728 = vrot.slane %v8726, 5
        %v8729 = vsel %vm876, %v8724, %v8728
        %v8730 = vshrl.u32 %v8417, 16
        %v8732 = vrot.slane %v8730, 4
        %v8733 = vor.u32 %v8732, %v8728
        %v8734 = vrot.slane %v8733, 4
        %v8736 = vshll.u32 %v8418, 16
        %v8738 = vrot.slane %v8736, 5
        %v8739 = vsel %vm876, %v8734, %v8738
        %v8741 = vshrl.u32 %v8419, 16
        %v8743 = vrot.slane %v8741, 4
        %v8744 = vshll.u32 %v8419, 16
        %v8746 = vrot.slane %v8744, 5
        %v8747 = vor.u32 %v8743, %v8746
        %v8748 = vrot.slane %v8747, 4
        %v8750 = vshll.u32 %v8420, 16
        %v8752 = vrot.slane %v8750, 5
        %v8753 = vsel %vm876, %v8748, %v8752
        %v8754 = vshrl.u32 %v8420, 16
        %v8756 = vrot.slane %v8754, 4
        %v8757 = vor.u32 %v8756, %v8752
        %v8758 = vrot.slane %v8757, 4
        %v8760 = vshll.u32 %v8421, 16
        %v8762 = vrot.slane %v8760, 5
        %v8763 = vsel %vm876, %v8758, %v8762
        %v8765 = vshrl.u32 %v8422, 16
        %v8767 = vrot.slane %v8765, 4
        %v8768 = vshll.u32 %v8422, 16
        %v8770 = vrot.slane %v8768, 5
        %v8771 = vor.u32 %v8767, %v8770
        %v8772 = vrot.slane %v8771, 4
        %v8774 = vshll.u32 %v8423, 16
        %v8776 = vrot.slane %v8774, 5
        %v8777 = vsel %vm876, %v8772, %v8776
        %v8778 = vshrl.u32 %v8423, 16
        %v8780 = vrot.slane %v8778, 4
        %v8781 = vor.u32 %v8780, %v8776
        %v8782 = vrot.slane %v8781, 4
        %v8784 = vshll.u32 %v8424, 16
        %v8786 = vrot.slane %v8784, 5
        %v8787 = vsel %vm876, %v8782, %v8786
        %v8789 = vshrl.u32 %v8425, 16
        %v8791 = vrot.slane %v8789, 4
        %v8792 = vshll.u32 %v8425, 16
        %v8794 = vrot.slane %v8792, 5
        %v8795 = vor.u32 %v8791, %v8794
        %v8796 = vrot.slane %v8795, 4
        %v8798 = vshll.u32 %v8426, 16
        %v8800 = vrot.slane %v8798, 5
        %v8801 = vsel %vm876, %v8796, %v8800
        %v8802 = vshrl.u32 %v8426, 16
        %v8804 = vrot.slane %v8802, 4
        %v8805 = vor.u32 %v8804, %v8800
        %v8806 = vrot.slane %v8805, 4
        %v8808 = vshll.u32 %v8427, 16
        %v8810 = vrot.slane %v8808, 5
        %v8811 = vsel %vm876, %v8806, %v8810
        %v8812 = vunpack.c.l.b16 %v8441
        %v8813 = vunpack.c.l.b16 %v8451
        %v8814 = vunpack.c.l.b16 %v8465
        %v8815 = vunpack.c.l.b16 %v8475
        %v8816 = vunpack.c.l.b16 %v8489
        %v8817 = vunpack.c.l.b16 %v8499
        %v8818 = vunpack.c.l.b16 %v8513
        %v8819 = vunpack.c.l.b16 %v8523
        %v8820 = vunpack.c.l.b16 %v8537
        %v8821 = vunpack.c.l.b16 %v8547
        %v8822 = vunpack.c.l.b16 %v8561
        %v8823 = vunpack.c.l.b16 %v8571
        %v8824 = vunpack.c.l.b16 %v8585
        %v8825 = vunpack.c.l.b16 %v8595
        %v8826 = vunpack.c.l.b16 %v8609
        %v8827 = vunpack.c.l.b16 %v8619
        %v8828 = vunpack.c.l.b16 %v8633
        %v8829 = vunpack.c.l.b16 %v8643
        %v8830 = vunpack.c.l.b16 %v8657
        %v8831 = vunpack.c.l.b16 %v8667
        %v8832 = vunpack.c.l.b16 %v8681
        %v8833 = vunpack.c.l.b16 %v8691
        %v8834 = vunpack.c.l.b16 %v8705
        %v8835 = vunpack.c.l.b16 %v8715
        %v8836 = vunpack.c.l.b16 %v8729
        %v8837 = vunpack.c.l.b16 %v8739
        %v8838 = vunpack.c.l.b16 %v8753
        %v8839 = vunpack.c.l.b16 %v8763
        %v8840 = vunpack.c.l.b16 %v8777
        %v8841 = vunpack.c.l.b16 %v8787
        %v8842 = vunpack.c.l.b16 %v8801
        %v8843 = vunpack.c.l.b16 %v8811
        %v8844 = vpack.c.b16 %v8813, %v8812
        %v8845 = vpack.c.b16 %v8815, %v8814
        %v8846 = vpack.c.b16 %v8817, %v8816
        %v8847 = vpack.c.b16 %v8819, %v8818
        %v8848 = vpack.c.b16 %v8821, %v8820
        %v8849 = vpack.c.b16 %v8823, %v8822
        %v8850 = vpack.c.b16 %v8825, %v8824
        %v8851 = vpack.c.b16 %v8827, %v8826
        %v8852 = vpack.c.b16 %v8829, %v8828
        %v8853 = vpack.c.b16 %v8831, %v8830
        %v8854 = vpack.c.b16 %v8833, %v8832
        %v8855 = vpack.c.b16 %v8835, %v8834
        %v8856 = vpack.c.b16 %v8837, %v8836
        %v8857 = vpack.c.b16 %v8839, %v8838
        %v8858 = vpack.c.b16 %v8841, %v8840
        %v8859 = vpack.c.b16 %v8843, %v8842
        %v8861 = vsel %vm1318, %v8379, 0
        %v8864 = vsel %vm1318, %v8844, 0
        %v8867 = vsel %vm1318, %v8845, 0
        %v8870 = vsel %vm1318, %v8846, 0
        %v8873 = vsel %vm1318, %v8847, 0
        %v8876 = vsel %vm1318, %v8848, 0
        %v8879 = vsel %vm1318, %v8849, 0
        %v8882 = vsel %vm1318, %v8850, 0
        %v8885 = vsel %vm1318, %v8851, 0
        %v8888 = vsel %vm1318, %v8852, 0
        %v8891 = vsel %vm1318, %v8853, 0
        %v8894 = vsel %vm1318, %v8854, 0
        %v8897 = vsel %vm1318, %v8855, 0
        %v8900 = vsel %vm1318, %v8856, 0
        %v8903 = vsel %vm1318, %v8857, 0
        %v8906 = vsel %vm1318, %v8858, 0
        %v8909 = vsel %vm1318, %v8859, 0
        %8911 = vmatprep.subr.bf16.mxu0 0
        %8912 = vmatpush1.bf16.xpose.msra.mxu0 %v8885
        %8913 = vmatprep.subr.bf16.mxu0 0
        %8914 = vmatpush1.bf16.xpose.msra.mxu0 %v8882
        %8915 = vmatprep.subr.bf16.mxu0 0
        %8916 = vmatpush1.bf16.xpose.msra.mxu0 %v8879
        %8917 = vmatprep.subr.bf16.mxu0 0
        %8918 = vmatpush1.bf16.xpose.msra.mxu0 %v8876
        %8919 = vmatprep.subr.bf16.mxu0 0
        %8920 = vmatpush1.bf16.xpose.msra.mxu0 %v8873
        %8921 = vmatprep.subr.bf16.mxu0 0
        %8922 = vmatpush1.bf16.xpose.msra.mxu0 %v8870
        %8923 = vmatprep.subr.bf16.mxu0 0
        %8924 = vmatpush1.bf16.xpose.msra.mxu0 %v8867
        %8925 = vmatprep.subr.bf16.mxu0 0
        %8926 = vmatpush1.bf16.xpose.msra.mxu0 %v8864
        %8927 = vmatprep.subr.bf16.mxu0 0
        %8928 = vmatpush2.bf16.xpose.msra.mxu0 %v8909
        %8929 = vmatprep.subr.bf16.mxu0 0
        %8930 = vmatpush2.bf16.xpose.msra.mxu0 %v8906
        %8931 = vmatprep.subr.bf16.mxu0 0
        %8932 = vmatpush2.bf16.xpose.msra.mxu0 %v8903
        %8933 = vmatprep.subr.bf16.mxu0 0
        %8934 = vmatpush2.bf16.xpose.msra.mxu0 %v8900
        %8935 = vmatprep.subr.bf16.mxu0 0
        %8936 = vmatpush2.bf16.xpose.msra.mxu0 %v8897
        %8937 = vmatprep.subr.bf16.mxu0 0
        %8938 = vmatpush2.bf16.xpose.msra.mxu0 %v8894
        %8939 = vmatprep.subr.bf16.mxu0 0
        %8940 = vmatpush2.bf16.xpose.msra.mxu0 %v8891
        %8941 = vmatprep.subr.bf16.mxu0 0
        %8942 = vmatpush2.bf16.xpose.msra.mxu0 %v8888
        %8943 = vmatprep.mubr.bf16.mxu0 0
        %8944 = vmatmul.mubr.bf16.gmra.mxu0 %v8861
        %v8945 = vpop.f32.mrf.mxu0
        %v8946 = vadd.f32 0.0, %v8945
        %v8947 = vpop.f32.mrf.mxu0
        %v8948 = vadd.f32 0.0, %v8947
        %v8949 = vpop.f32.mrf.mxu0
        %v8950 = vpop.f32.mrf.mxu0
        %8951 = vdwg.mxu0
        %v8952 = vadd.f32 %v8376, %v8946
        %v8953 = vadd.f32 %v8377, %v8948
        %s8954 = scalar_lea.vmem [#allocation8], 32
        %v8955 = vld [vmem:[%s8954] sm:$0xf]
        %v8956 = vld [vmem:[%s3850] sm:$0xe]
        %v8957 = vld [vmem:[%s3850 + $0xc] sm:$0xe]
        %v8958 = vld [vmem:[%s3850 + $0x18] sm:$0xe]
        %v8959 = vld [vmem:[%s3850 + $0x24] sm:$0xe]
        %v8960 = vld [vmem:[%s3850 + $0x30] sm:$0xe]
        %v8961 = vld [vmem:[%s3850 + $0x3c] sm:$0xe]
        %v8962 = vld [vmem:[%s3850 + $0x48] sm:$0xe]
        %v8963 = vld [vmem:[%s3850 + $0x54] sm:$0xe]
        %v8964 = vld [vmem:[%s3850 + $0x60] sm:$0xe]
        %v8965 = vld [vmem:[%s3850 + $0x6c] sm:$0xe]
        %v8966 = vld [vmem:[%s3850 + $0x78] sm:$0xe]
        %v8967 = vld [vmem:[%s3850 + $0x84] sm:$0xe]
        %v8968 = vld [vmem:[%s3850 + $0x90] sm:$0xe]
        %v8969 = vld [vmem:[%s3850 + $0x9c] sm:$0xe]
        %v8970 = vld [vmem:[%s3850 + $0xa8] sm:$0xe]
        %v8971 = vld [vmem:[%s3850 + $0xb4] sm:$0xe]
        %v9020 = vrot.slane %v8956, 5
        %v9021 = vrot.slane %v9020, 4
        %v9022 = vrot.slane %v8381, 5
        %v9023 = vsel %vm1873, %v9021, %v9022
        %v9024 = vrot.slane %v9022, 4
        %v9025 = vrot.slane %v8382, 5
        %v9026 = vsel %vm1873, %v9024, %v9025
        %v9027 = vrot.slane %v8957, 5
        %v9028 = vrot.slane %v9027, 4
        %v9029 = vrot.slane %v8384, 5
        %v9030 = vsel %vm1873, %v9028, %v9029
        %v9031 = vrot.slane %v9029, 4
        %v9032 = vrot.slane %v8385, 5
        %v9033 = vsel %vm1873, %v9031, %v9032
        %v9034 = vrot.slane %v8958, 5
        %v9035 = vrot.slane %v9034, 4
        %v9036 = vrot.slane %v8387, 5
        %v9037 = vsel %vm1873, %v9035, %v9036
        %v9038 = vrot.slane %v9036, 4
        %v9039 = vrot.slane %v8388, 5
        %v9040 = vsel %vm1873, %v9038, %v9039
        %v9041 = vrot.slane %v8959, 5
        %v9042 = vrot.slane %v9041, 4
        %v9043 = vrot.slane %v8390, 5
        %v9044 = vsel %vm1873, %v9042, %v9043
        %v9045 = vrot.slane %v9043, 4
        %v9046 = vrot.slane %v8391, 5
        %v9047 = vsel %vm1873, %v9045, %v9046
        %v9048 = vrot.slane %v8960, 5
        %v9049 = vrot.slane %v9048, 4
        %v9050 = vrot.slane %v8393, 5
        %v9051 = vsel %vm1873, %v9049, %v9050
        %v9052 = vrot.slane %v9050, 4
        %v9053 = vrot.slane %v8394, 5
        %v9054 = vsel %vm1873, %v9052, %v9053
        %v9055 = vrot.slane %v8961, 5
        %v9056 = vrot.slane %v9055, 4
        %v9057 = vrot.slane %v8396, 5
        %v9058 = vsel %vm1873, %v9056, %v9057
        %v9059 = vrot.slane %v9057, 4
        %v9060 = vrot.slane %v8397, 5
        %v9061 = vsel %vm1873, %v9059, %v9060
        %v9062 = vrot.slane %v8962, 5
        %v9063 = vrot.slane %v9062, 4
        %v9064 = vrot.slane %v8399, 5
        %v9065 = vsel %vm1873, %v9063, %v9064
        %v9066 = vrot.slane %v9064, 4
        %v9067 = vrot.slane %v8400, 5
        %v9068 = vsel %vm1873, %v9066, %v9067
        %v9069 = vrot.slane %v8963, 5
        %v9070 = vrot.slane %v9069, 4
        %v9071 = vrot.slane %v8402, 5
        %v9072 = vsel %vm1873, %v9070, %v9071
        %v9073 = vrot.slane %v9071, 4
        %v9074 = vrot.slane %v8403, 5
        %v9075 = vsel %vm1873, %v9073, %v9074
        %v9076 = vrot.slane %v8964, 5
        %v9077 = vrot.slane %v9076, 4
        %v9078 = vrot.slane %v8405, 5
        %v9079 = vsel %vm1873, %v9077, %v9078
        %v9080 = vrot.slane %v9078, 4
        %v9081 = vrot.slane %v8406, 5
        %v9082 = vsel %vm1873, %v9080, %v9081
        %v9083 = vrot.slane %v8965, 5
        %v9084 = vrot.slane %v9083, 4
        %v9085 = vrot.slane %v8408, 5
        %v9086 = vsel %vm1873, %v9084, %v9085
        %v9087 = vrot.slane %v9085, 4
        %v9088 = vrot.slane %v8409, 5
        %v9089 = vsel %vm1873, %v9087, %v9088
        %v9090 = vrot.slane %v8966, 5
        %v9091 = vrot.slane %v9090, 4
        %v9092 = vrot.slane %v8411, 5
        %v9093 = vsel %vm1873, %v9091, %v9092
        %v9094 = vrot.slane %v9092, 4
        %v9095 = vrot.slane %v8412, 5
        %v9096 = vsel %vm1873, %v9094, %v9095
        %v9097 = vrot.slane %v8967, 5
        %v9098 = vrot.slane %v9097, 4
        %v9099 = vrot.slane %v8414, 5
        %v9100 = vsel %vm1873, %v9098, %v9099
        %v9101 = vrot.slane %v9099, 4
        %v9102 = vrot.slane %v8415, 5
        %v9103 = vsel %vm1873, %v9101, %v9102
        %v9104 = vrot.slane %v8968, 5
        %v9105 = vrot.slane %v9104, 4
        %v9106 = vrot.slane %v8417, 5
        %v9107 = vsel %vm1873, %v9105, %v9106
        %v9108 = vrot.slane %v9106, 4
        %v9109 = vrot.slane %v8418, 5
        %v9110 = vsel %vm1873, %v9108, %v9109
        %v9111 = vrot.slane %v8969, 5
        %v9112 = vrot.slane %v9111, 4
        %v9113 = vrot.slane %v8420, 5
        %v9114 = vsel %vm1873, %v9112, %v9113
        %v9115 = vrot.slane %v9113, 4
        %v9116 = vrot.slane %v8421, 5
        %v9117 = vsel %vm1873, %v9115, %v9116
        %v9118 = vrot.slane %v8970, 5
        %v9119 = vrot.slane %v9118, 4
        %v9120 = vrot.slane %v8423, 5
        %v9121 = vsel %vm1873, %v9119, %v9120
        %v9122 = vrot.slane %v9120, 4
        %v9123 = vrot.slane %v8424, 5
        %v9124 = vsel %vm1873, %v9122, %v9123
        %v9125 = vrot.slane %v8971, 5
        %v9126 = vrot.slane %v9125, 4
        %v9127 = vrot.slane %v8426, 5
        %v9128 = vsel %vm1873, %v9126, %v9127
        %v9129 = vrot.slane %v9127, 4
        %v9130 = vrot.slane %v8427, 5
        %v9131 = vsel %vm1873, %v9129, %v9130
        %v9132 = vunpack.c.l.b16 %v9023
        %v9133 = vunpack.c.l.b16 %v9026
        %v9134 = vunpack.c.l.b16 %v9030
        %v9135 = vunpack.c.l.b16 %v9033
        %v9136 = vunpack.c.l.b16 %v9037
        %v9137 = vunpack.c.l.b16 %v9040
        %v9138 = vunpack.c.l.b16 %v9044
        %v9139 = vunpack.c.l.b16 %v9047
        %v9140 = vunpack.c.l.b16 %v9051
        %v9141 = vunpack.c.l.b16 %v9054
        %v9142 = vunpack.c.l.b16 %v9058
        %v9143 = vunpack.c.l.b16 %v9061
        %v9144 = vunpack.c.l.b16 %v9065
        %v9145 = vunpack.c.l.b16 %v9068
        %v9146 = vunpack.c.l.b16 %v9072
        %v9147 = vunpack.c.l.b16 %v9075
        %v9148 = vunpack.c.l.b16 %v9079
        %v9149 = vunpack.c.l.b16 %v9082
        %v9150 = vunpack.c.l.b16 %v9086
        %v9151 = vunpack.c.l.b16 %v9089
        %v9152 = vunpack.c.l.b16 %v9093
        %v9153 = vunpack.c.l.b16 %v9096
        %v9154 = vunpack.c.l.b16 %v9100
        %v9155 = vunpack.c.l.b16 %v9103
        %v9156 = vunpack.c.l.b16 %v9107
        %v9157 = vunpack.c.l.b16 %v9110
        %v9158 = vunpack.c.l.b16 %v9114
        %v9159 = vunpack.c.l.b16 %v9117
        %v9160 = vunpack.c.l.b16 %v9121
        %v9161 = vunpack.c.l.b16 %v9124
        %v9162 = vunpack.c.l.b16 %v9128
        %v9163 = vunpack.c.l.b16 %v9131
        %v9164 = vpack.c.b16 %v9133, %v9132
        %v9165 = vpack.c.b16 %v9135, %v9134
        %v9166 = vpack.c.b16 %v9137, %v9136
        %v9167 = vpack.c.b16 %v9139, %v9138
        %v9168 = vpack.c.b16 %v9141, %v9140
        %v9169 = vpack.c.b16 %v9143, %v9142
        %v9170 = vpack.c.b16 %v9145, %v9144
        %v9171 = vpack.c.b16 %v9147, %v9146
        %v9172 = vpack.c.b16 %v9149, %v9148
        %v9173 = vpack.c.b16 %v9151, %v9150
        %v9174 = vpack.c.b16 %v9153, %v9152
        %v9175 = vpack.c.b16 %v9155, %v9154
        %v9176 = vpack.c.b16 %v9157, %v9156
        %v9177 = vpack.c.b16 %v9159, %v9158
        %v9178 = vpack.c.b16 %v9161, %v9160
        %v9179 = vpack.c.b16 %v9163, %v9162
        %v9181 = vsel %vm1318, %v8955, 0
        %v9184 = vsel %vm1318, %v9164, 0
        %v9187 = vsel %vm1318, %v9165, 0
        %v9190 = vsel %vm1318, %v9166, 0
        %v9193 = vsel %vm1318, %v9167, 0
        %v9196 = vsel %vm1318, %v9168, 0
        %v9199 = vsel %vm1318, %v9169, 0
        %v9202 = vsel %vm1318, %v9170, 0
        %v9205 = vsel %vm1318, %v9171, 0
        %v9208 = vsel %vm1318, %v9172, 0
        %v9211 = vsel %vm1318, %v9173, 0
        %v9214 = vsel %vm1318, %v9174, 0
        %v9217 = vsel %vm1318, %v9175, 0
        %v9220 = vsel %vm1318, %v9176, 0
        %v9223 = vsel %vm1318, %v9177, 0
        %v9226 = vsel %vm1318, %v9178, 0
        %v9229 = vsel %vm1318, %v9179, 0
        %9231 = vmatprep.subr.bf16.mxu0 0
        %9232 = vmatpush1.bf16.xpose.msra.mxu0 %v9205
        %9233 = vmatprep.subr.bf16.mxu0 0
        %9234 = vmatpush1.bf16.xpose.msra.mxu0 %v9202
        %9235 = vmatprep.subr.bf16.mxu0 0
        %9236 = vmatpush1.bf16.xpose.msra.mxu0 %v9199
        %9237 = vmatprep.subr.bf16.mxu0 0
        %9238 = vmatpush1.bf16.xpose.msra.mxu0 %v9196
        %9239 = vmatprep.subr.bf16.mxu0 0
        %9240 = vmatpush1.bf16.xpose.msra.mxu0 %v9193
        %9241 = vmatprep.subr.bf16.mxu0 0
        %9242 = vmatpush1.bf16.xpose.msra.mxu0 %v9190
        %9243 = vmatprep.subr.bf16.mxu0 0
        %9244 = vmatpush1.bf16.xpose.msra.mxu0 %v9187
        %9245 = vmatprep.subr.bf16.mxu0 0
        %9246 = vmatpush1.bf16.xpose.msra.mxu0 %v9184
        %9247 = vmatprep.subr.bf16.mxu0 0
        %9248 = vmatpush2.bf16.xpose.msra.mxu0 %v9229
        %9249 = vmatprep.subr.bf16.mxu0 0
        %9250 = vmatpush2.bf16.xpose.msra.mxu0 %v9226
        %9251 = vmatprep.subr.bf16.mxu0 0
        %9252 = vmatpush2.bf16.xpose.msra.mxu0 %v9223
        %9253 = vmatprep.subr.bf16.mxu0 0
        %9254 = vmatpush2.bf16.xpose.msra.mxu0 %v9220
        %9255 = vmatprep.subr.bf16.mxu0 0
        %9256 = vmatpush2.bf16.xpose.msra.mxu0 %v9217
        %9257 = vmatprep.subr.bf16.mxu0 0
        %9258 = vmatpush2.bf16.xpose.msra.mxu0 %v9214
        %9259 = vmatprep.subr.bf16.mxu0 0
        %9260 = vmatpush2.bf16.xpose.msra.mxu0 %v9211
        %9261 = vmatprep.subr.bf16.mxu0 0
        %9262 = vmatpush2.bf16.xpose.msra.mxu0 %v9208
        %9263 = vmatprep.mubr.bf16.mxu0 0
        %9264 = vmatmul.mubr.bf16.gmra.mxu0 %v9181
        %v9265 = vpop.f32.mrf.mxu0
        %v9266 = vadd.f32 0.0, %v9265
        %v9267 = vpop.f32.mrf.mxu0
        %v9268 = vadd.f32 0.0, %v9267
        %v9269 = vpop.f32.mrf.mxu0
        %v9270 = vpop.f32.mrf.mxu0
        %9271 = vdwg.mxu0
        %v9272 = vadd.f32 %v8952, %v9266
        %v9273 = vadd.f32 %v8953, %v9268
        %9274 = vst [vmem:[%s244] sm:$0xff] %v9272
        %9275 = vst [vmem:[%s244 + $0x8] sm:$0xff] %v9273
        %s9276 = sand.u32 %s119, 1
        %s9277 = scalar_lea.sflag [#allocation5], %s9276
        %s9278 = sand.u32 %s119, 1
        %s9279 = smul.addr %s9278, 16
        %s9280 = scalar_lea.vmem [#allocation9], %s9279
        // Predicated region
        $region49: #{tpu_custom_call.1} parent=35 // pred_check
          %p9281 = pneg %p129
        $region50: #{tpu_custom_call.1} parent=35 // pred_check_branch
          %9283 = sbr.rel (%p9281) target = $region52
        $region51: #{tpu_custom_call.1} parent=35 // pred_region
          %s9285 = ssub.s32 256, 256
          %9286 = vsyncadd %s9277, %s9285
          %s9287 = smul.addr %s22, 2
          %s9288 = smul.addr %s9287, 128
          %s9289 = scalar_lea.hbm %s4, %s9288
          %s9291 = sshll.u32 %s9280, 4
          %s9292 = int_to_ptr.vmem [resolvable:$true] %s9291
          %9294 = dma.vmem_to_hbm [thread:$0]  %s9292, 256, %s9289, %s9277
        $region52: #{tpu_custom_call.1} parent=35 // pred_fallthru
          _
      $region36: #{tpu_custom_call.1} parent=5 // pred_fallthru
        _
      %p9295 = scmp.le.s32.totalorder 2, %s17
      // Predicated region
      $region53: #{tpu_custom_call.1} parent=5 // pred_check
        %p9296 = pneg %p9295
      $region54: #{tpu_custom_call.1} parent=5 // pred_check_branch
        %9298 = sbr.rel (%p9296) target = $region56
      $region55: #{tpu_custom_call.1} parent=5 // pred_region
        %s9299 = ssub.s32 %s17, 2
        // Predicated region
        $region57: #{tpu_custom_call.1} parent=55 // pred_check
          %p9300 = pneg %p135
        $region58: #{tpu_custom_call.1} parent=55 // pred_check_branch
          %9302 = sbr.rel (%p9300) target = $region60
        $region59: #{tpu_custom_call.1} parent=55 // pred_region
          %s9303 = sand.u32 %s120, 1
          %s9304 = scalar_lea.sflag [#allocation5], %s9303
          %s9305 = sand.u32 %s120, 1
          %s9306 = smul.addr %s9305, 16
          %s9307 = scalar_lea.vmem [#allocation9], %s9306
          %9308 = dma.done %s9304, 256
        $region60: #{tpu_custom_call.1} parent=55 // pred_fallthru
          _
      $region56: #{tpu_custom_call.1} parent=5 // pred_fallthru
        _
    $region6: #{tpu_custom_call.1} parent=1 // loop_footer
      %s21 = sadd.s32 1, %s17
    $region7: #{tpu_custom_call.1} parent=1 // loop_footer_branch
      %16 = sbr.rel target = $region3
    $region8: #{tpu_custom_call.1} parent=1 // loop_exit
      _
    %9309 = vsyncpa [#allocation4], 1
    %s9310 = scalar_lea.sflag [#allocation4], 1
    %9311 = vsyncpa %s9310, 1
    %9312 = vsyncpa [#allocation7], 1
    %9313 = vsyncpa [#allocation5], 1
    %s9314 = scalar_lea.sflag [#allocation5], 1
    %9315 = vsyncpa %s9314, 1

</llo_original>
